<compile_context>
chip_gen: v7x
topology: tpu7x:2x2x1
jax: 0.10.0
libtpu: 0.0.40
codegen_flags: <defaults>
</compile_context>

<pallas_src>
import jax
import jax.numpy as jnp
from jax import lax
from jax.experimental import pallas as pl
from jax.experimental.pallas import tpu as pltpu


# ---------------------------------------------------------------------------
# Fused kernel: (folded) projections -> attention -> softmax -> residual.
# One batch element per grid step, channel-major layout.
# ---------------------------------------------------------------------------
def _context_aware_kernel(xt_ref, xr_ref, wfvk_ref, bfvk_ref, wq_ref, bq_ref,
                          o_ref):
    # xt_ref : [1, C_in, HW] bf16   (natural NCHW layout, channel-major)
    # xr_ref : [1, HW, C_in] bf16   (spatial-major, for the Q projection)
    # wfvk   : [2C+C8, C_in] bf16   (rows: [W_base^T ; (W_base@W_v)^T ; (W_base@W_k)^T])
    # bfvk   : [2C+C8, 1]    f32
    # wq     : [C_in, C8]    bf16   (W_base @ W_q, folded)
    # bq     : [1, C8]       f32
    # o_ref  : [1, C, HW]    f32
    C = o_ref.shape[1]
    C8 = wq_ref.shape[1]

    xt = xt_ref[0]                                                  # [C_in, HW]
    xr = xr_ref[0]                                                  # [HW, C_in]

    # feats / V / K in channel-major layout, one MXU pass (f32 accumulation).
    r = (jnp.dot(wfvk_ref[...], xt, preferred_element_type=jnp.float32)
         + bfvk_ref[...])                                           # [2C+C8, HW] f32
    feats_t = r[0:C]                                                # [C,  HW] residual (f32)
    v_t = r[C:2 * C]                                                # [C,  HW]
    k_t = r[2 * C:2 * C + C8]                                       # [C8, HW]

    # Q projection in spatial-major layout.
    q = (jnp.dot(xr, wq_ref[...], preferred_element_type=jnp.float32)
         + bq_ref[...])                                             # [HW, C8] f32

    # energy[i, j] = <q_i, k_j>  — plain NN matmul, bf16 operands, f32 acc.
    energy = jnp.dot(q.astype(jnp.bfloat16), k_t.astype(jnp.bfloat16),
                     preferred_element_type=jnp.float32)            # [HW, HW]

    # Row softmax over j (lane axis), all in f32; divide -> EUP reciprocal.
    e_max = jnp.max(energy, axis=-1, keepdims=True)
    p = jnp.exp(energy - e_max)
    attn = p * pl.reciprocal(jnp.sum(p, axis=-1, keepdims=True), approx=True)

    # out_t[c, i] = sum_j v_t[c, j] * attn[i, j]   (RHS-transposed MXU matmul),
    # plus the residual.  Result written directly in NCHW ([C, HW]) layout.
    out_t = lax.dot_general(v_t.astype(jnp.bfloat16), attn.astype(jnp.bfloat16),
                            (((1,), (1,)), ((), ())),
                            preferred_element_type=jnp.float32) + feats_t
    o_ref[0] = out_t                                                # [C, HW]


# ---------------------------------------------------------------------------
# Wrapper: weight folding + single fused pallas_call (output already NCHW).
# ---------------------------------------------------------------------------
def _fold_params(params):
    # NOTE: folding is valid only because the synthesized base_model is a pure
    # linear 1x1 conv (no nonlinearity).  In real use fold once, not per call.
    hi = lax.Precision.HIGHEST
    wb, bb = params["w_base"], params["b_base"]                     # [C_in,C], [1,C]
    wq_f = jnp.dot(wb, params["w_q"], precision=hi)                 # [C_in, C8]
    bq_f = jnp.dot(bb, params["w_q"], precision=hi) + params["b_q"]
    wk_f = jnp.dot(wb, params["w_k"], precision=hi)                 # [C_in, C8]
    bk_f = jnp.dot(bb, params["w_k"], precision=hi) + params["b_k"]
    wv_f = jnp.dot(wb, params["w_v"], precision=hi)                 # [C_in, C]
    bv_f = jnp.dot(bb, params["w_v"], precision=hi) + params["b_v"]

    # Channel-major stack for the [*, HW]-layout projections: feats, V, K.
    w_fvk_t = jnp.concatenate([wb.T, wv_f.T, wk_f.T], axis=0)       # [2C+C8, C_in]
    b_fvk_t = jnp.concatenate([bb.T, bv_f.T, bk_f.T], axis=0)       # [2C+C8, 1]
    return (w_fvk_t.astype(jnp.bfloat16), b_fvk_t.astype(jnp.float32),
            wq_f.astype(jnp.bfloat16), bq_f.astype(jnp.float32))


def context_aware_forward(x_nchw, params):
    B, C_in, H, W = x_nchw.shape
    HW = H * W
    C = params["w_base"].shape[1]
    C8 = params["w_q"].shape[1]

    w_fvk_t, b_fvk_t, wq_f, bq_f = _fold_params(params)

    # Channel-major input is a free reshape of NCHW; the spatial-major copy for
    # the Q projection is an 8 KB transpose (negligible).
    x_t = x_nchw.reshape(B, C_in, HW).astype(jnp.bfloat16)          # [B, C_in, HW]
    x_r = jnp.transpose(x_t, (0, 2, 1))                             # [B, HW, C_in]

    flops = 2 * B * (HW * C_in * (2 * C + C8)    # packed feats/V/K projection
                     + HW * C_in * C8            # Q projection
                     + HW * HW * C8              # energy = Q K^T
                     + HW * HW * C)              # attn @ V
    bytes_accessed = (2 * x_t.size + 2 * w_fvk_t.size + 4 * b_fvk_t.size
                      + 2 * wq_f.size + 4 * bq_f.size + 4 * B * HW * C
                      + 2 * x_r.size)

    out_nchw = pl.pallas_call(
        _context_aware_kernel,
        out_shape=jax.ShapeDtypeStruct((B, C, HW), jnp.float32),
        grid=(B,),
        in_specs=[
            pl.BlockSpec((1, C_in, HW), lambda b: (b, 0, 0)),
            pl.BlockSpec((1, HW, C_in), lambda b: (b, 0, 0)),
            pl.BlockSpec((2 * C + C8, C_in), lambda b: (0, 0)),
            pl.BlockSpec((2 * C + C8, 1), lambda b: (0, 0)),
            pl.BlockSpec((C_in, C8), lambda b: (0, 0)),
            pl.BlockSpec((1, C8), lambda b: (0, 0)),
        ],
        out_specs=pl.BlockSpec((1, C, HW), lambda b: (b, 0, 0)),
        compiler_params=pltpu.CompilerParams(
            dimension_semantics=("parallel",),          # both TCs on v7x
            vmem_limit_bytes=32 * 1024 * 1024,
        ),
        cost_estimate=pl.CostEstimate(
            flops=flops,
            transcendentals=B * HW * HW,                # exp in softmax
            bytes_accessed=bytes_accessed),
    )(x_t, x_r, w_fvk_t, b_fvk_t, wq_f, bq_f)

    # [B, C, HW] -> [B, C, H, W]: a free reshape (no transpose kernel).
    return out_nchw.reshape(B, C, H, W)


def init_params(key, c_in, c_feat):
    c8 = c_feat // 8
    ks = jax.random.split(key, 8)

    def lin(k, fan_in, shape, scale=1.0):
        return (scale / jnp.sqrt(fan_in)) * jax.random.normal(k, shape, jnp.float32)

    return {
        "w_base": lin(ks[0], c_in, (c_in, c_feat)),
        "b_base": 0.1 * jax.random.normal(ks[1], (1, c_feat), jnp.float32),
        "w_q":    lin(ks[2], c_feat, (c_feat, c8), scale=0.3),
        "b_q":    0.1 * jax.random.normal(ks[3], (1, c8), jnp.float32),
        "w_k":    lin(ks[4], c_feat, (c_feat, c8), scale=0.3),
        "b_k":    0.1 * jax.random.normal(ks[5], (1, c8), jnp.float32),
        "w_v":    lin(ks[6], c_feat, (c_feat, c_feat)),
        "b_v":    0.1 * jax.random.normal(ks[7], (1, c_feat), jnp.float32),
    }


if __name__ == "__main__":
    B, C_IN, H, W = 2, 4, 16, 16          # HW = 256 (lane/sublane friendly)
    C_FEAT = 1280                         # SelfAttention(in_dim=1280) per the module

    key = jax.random.PRNGKey(0)
    kx, kp = jax.random.split(key)
    x = jax.random.normal(kx, (B, C_IN, H, W), jnp.float32)
    params = init_params(kp, C_IN, C_FEAT)

    out = context_aware_forward(x, params)
    jax.block_until_ready(out)
    assert out.shape == (B, C_FEAT, H, W)

    # Plain-JAX f32 reference of the same math (PyTorch semantics).
    def ref_forward(xi, p):
        b, c_in, h, w = xi.shape
        hw = h * w
        with jax.default_matmul_precision("highest"):
            xf = xi.reshape(b, c_in, hw).transpose(0, 2, 1)          # [B, HW, C_in]
            feats = xf @ p["w_base"] + p["b_base"]                   # base_model
            q = feats @ p["w_q"] + p["b_q"]
            k = feats @ p["w_k"] + p["b_k"]
            v = feats @ p["w_v"] + p["b_v"]
            energy = jnp.einsum("bic,bjc->bij", q, k)
            attn = jax.nn.softmax(energy, axis=-1)
            o = jnp.einsum("bij,bjc->bic", attn, v) + feats          # residual
        return o.transpose(0, 2, 1).reshape(b, -1, h, w)

    ref = ref_forward(x, params)
    max_err = float(jnp.max(jnp.abs(out - ref)))
    # bf16 matmul operands with f32 accumulation / f32 softmax.
    assert jnp.allclose(out, ref, atol=3e-2, rtol=3e-2), max_err

    print("KERNEL_OK")
</pallas_src>

<mosaic_0001>
module attributes {stable_mosaic.version = 11 : i64} {
  func.func @_context_aware_kernel(%arg0: i32, %arg1: memref<1x4x256xbf16, #tpu.memory_space<vmem>>, %arg2: memref<1x256x4xbf16, #tpu.memory_space<vmem>>, %arg3: memref<2720x4xbf16, #tpu.memory_space<vmem>>, %arg4: memref<2720x1xf32, #tpu.memory_space<vmem>>, %arg5: memref<4x160xbf16, #tpu.memory_space<vmem>>, %arg6: memref<1x160xf32, #tpu.memory_space<vmem>>, %arg7: memref<1x1280x256xf32, #tpu.memory_space<vmem>>) attributes {dimension_semantics = [#tpu.dimension_semantics<parallel>], iteration_bounds = array<i64: 2>, scalar_prefetch = 0 : i64, scratch_operands = 0 : i64, tpu.core_type = #tpu.core_type<tc>, window_params = [{transform_indices = @transform_0, window_bounds = array<i64: 1, 4, 256>}, {transform_indices = @transform_1, window_bounds = array<i64: 1, 256, 4>}, {pipeline_mode = #tpu.pipeline_mode<synchronous>, transform_indices = @transform_2, window_bounds = array<i64: 2720, 4>}, {pipeline_mode = #tpu.pipeline_mode<synchronous>, transform_indices = @transform_3, window_bounds = array<i64: 2720, 1>}, {pipeline_mode = #tpu.pipeline_mode<synchronous>, transform_indices = @transform_4, window_bounds = array<i64: 4, 160>}, {pipeline_mode = #tpu.pipeline_mode<synchronous>, transform_indices = @transform_5, window_bounds = array<i64: 1, 160>}, {transform_indices = @transform_6, window_bounds = array<i64: 1, 1280, 256>}]} {
    %c0 = arith.constant 0 : index
    %c0_0 = arith.constant 0 : index
    %c0_1 = arith.constant 0 : index
    %0 = vector.load %arg1[%c0, %c0_0, %c0_1] : memref<1x4x256xbf16, #tpu.memory_space<vmem>>, vector<1x4x256xbf16>
    %1 = vector.shape_cast %0 : vector<1x4x256xbf16> to vector<4x256xbf16>
    %c0_2 = arith.constant 0 : index
    %c0_3 = arith.constant 0 : index
    %c0_4 = arith.constant 0 : index
    %2 = vector.load %arg2[%c0_2, %c0_3, %c0_4] : memref<1x256x4xbf16, #tpu.memory_space<vmem>>, vector<1x256x4xbf16>
    %3 = vector.shape_cast %2 : vector<1x256x4xbf16> to vector<256x4xbf16>
    %c0_5 = arith.constant 0 : index
    %c0_6 = arith.constant 0 : index
    %4 = vector.load %arg3[%c0_5, %c0_6] : memref<2720x4xbf16, #tpu.memory_space<vmem>>, vector<2720x4xbf16>
    %cst = arith.constant dense<0.000000e+00> : vector<2720x256xf32>
    %5 = tpu.matmul %4, %1, %cst {dimension_numbers = #tpu.dot_dimension_numbers<[1], [0], [0], [1], [0, 0, 1, 1], [], []>} : vector<2720x4xbf16>, vector<4x256xbf16>, vector<2720x256xf32> -> vector<2720x256xf32>
    %c0_7 = arith.constant 0 : index
    %c0_8 = arith.constant 0 : index
    %6 = vector.load %arg4[%c0_7, %c0_8] : memref<2720x1xf32, #tpu.memory_space<vmem>>, vector<2720x1xf32>
    %7 = vector.broadcast %6 : vector<2720x1xf32> to vector<2720x256xf32>
    %8 = arith.addf %5, %7 : vector<2720x256xf32>
    %9 = vector.extract_strided_slice %8 {offsets = [0, 0], sizes = [1280, 256], strides = [1, 1]} : vector<2720x256xf32> to vector<1280x256xf32>
    %10 = vector.extract_strided_slice %8 {offsets = [1280, 0], sizes = [1280, 256], strides = [1, 1]} : vector<2720x256xf32> to vector<1280x256xf32>
    %11 = vector.extract_strided_slice %8 {offsets = [2560, 0], sizes = [160, 256], strides = [1, 1]} : vector<2720x256xf32> to vector<160x256xf32>
    %c0_9 = arith.constant 0 : index
    %c0_10 = arith.constant 0 : index
    %12 = vector.load %arg5[%c0_9, %c0_10] : memref<4x160xbf16, #tpu.memory_space<vmem>>, vector<4x160xbf16>
    %cst_11 = arith.constant dense<0.000000e+00> : vector<256x160xf32>
    %13 = tpu.matmul %3, %12, %cst_11 {dimension_numbers = #tpu.dot_dimension_numbers<[1], [0], [0], [1], [0, 0, 1, 1], [], []>} : vector<256x4xbf16>, vector<4x160xbf16>, vector<256x160xf32> -> vector<256x160xf32>
    %c0_12 = arith.constant 0 : index
    %c0_13 = arith.constant 0 : index
    %14 = vector.load %arg6[%c0_12, %c0_13] : memref<1x160xf32, #tpu.memory_space<vmem>>, vector<1x160xf32>
    %15 = vector.broadcast %14 : vector<1x160xf32> to vector<256x160xf32>
    %16 = arith.addf %13, %15 : vector<256x160xf32>
    %17 = arith.truncf %16 : vector<256x160xf32> to vector<256x160xbf16>
    %18 = arith.truncf %11 : vector<160x256xf32> to vector<160x256xbf16>
    %cst_14 = arith.constant dense<0.000000e+00> : vector<256x256xf32>
    %19 = tpu.matmul %17, %18, %cst_14 {dimension_numbers = #tpu.dot_dimension_numbers<[1], [0], [0], [1], [0, 0, 1, 1], [], []>} : vector<256x160xbf16>, vector<160x256xbf16>, vector<256x256xf32> -> vector<256x256xf32>
    %cst_15 = arith.constant dense<0xFF800000> : vector<256xf32>
    %20 = vector.multi_reduction <maximumf>, %19, %cst_15 [1] : vector<256x256xf32> to vector<256xf32>
    %21 = vector.shape_cast %20 : vector<256xf32> to vector<256x1xf32>
    %22 = vector.broadcast %21 : vector<256x1xf32> to vector<256x256xf32>
    %23 = arith.subf %19, %22 : vector<256x256xf32>
    %24 = math.exp %23 : vector<256x256xf32>
    %cst_16 = arith.constant dense<0.000000e+00> : vector<256xf32>
    %25 = vector.multi_reduction <add>, %24, %cst_16 [1] : vector<256x256xf32> to vector<256xf32>
    %26 = vector.shape_cast %25 : vector<256xf32> to vector<256x1xf32>
    %27 = tpu.reciprocal %26 {approx = true} : vector<256x1xf32> -> vector<256x1xf32>
    %28 = vector.broadcast %27 : vector<256x1xf32> to vector<256x256xf32>
    %29 = arith.mulf %24, %28 : vector<256x256xf32>
    %30 = arith.truncf %10 : vector<1280x256xf32> to vector<1280x256xbf16>
    %31 = arith.truncf %29 : vector<256x256xf32> to vector<256x256xbf16>
    %cst_17 = arith.constant dense<0.000000e+00> : vector<1280x256xf32>
    %32 = tpu.matmul %30, %31, %cst_17 {dimension_numbers = #tpu.dot_dimension_numbers<[1], [1], [0], [0], [0, 0, 1, 0], [], []>} : vector<1280x256xbf16>, vector<256x256xbf16>, vector<1280x256xf32> -> vector<1280x256xf32>
    %33 = arith.addf %32, %9 : vector<1280x256xf32>
    %c0_18 = arith.constant 0 : index
    %c0_19 = arith.constant 0 : index
    %c0_20 = arith.constant 0 : index
    %34 = vector.load %arg7[%c0_18, %c0_19, %c0_20] : memref<1x1280x256xf32, #tpu.memory_space<vmem>>, vector<1x1280x256xf32>
    %35 = vector.shape_cast %34 : vector<1x1280x256xf32> to vector<1280x256xf32>
    %36 = vector.shape_cast %33 : vector<1280x256xf32> to vector<1x1280x256xf32>
    tpu.vector_store %arg7[%c0_18, %c0_19, %c0_20], %36 {strides = array<i32>} : memref<1x1280x256xf32, #tpu.memory_space<vmem>>, vector<1x1280x256xf32>,
    return
  }
  func.func @transform_0(%arg0: i32) -> (i32, i32, i32) {
    %c0_i32 = arith.constant 0 : i32
    %c0_i32_0 = arith.constant 0 : i32
    %c0_i32_1 = arith.constant 0 : i32
    return %arg0, %c0_i32, %c0_i32_0 : i32, i32, i32
  }
  func.func @transform_1(%arg0: i32) -> (i32, i32, i32) {
    %c0_i32 = arith.constant 0 : i32
    %c0_i32_0 = arith.constant 0 : i32
    %c0_i32_1 = arith.constant 0 : i32
    return %arg0, %c0_i32, %c0_i32_0 : i32, i32, i32
  }
  func.func @transform_2(%arg0: i32) -> (i32, i32) {
    %c0_i32 = arith.constant 0 : i32
    %c0_i32_0 = arith.constant 0 : i32
    %c0_i32_1 = arith.constant 0 : i32
    return %c0_i32, %c0_i32_0 : i32, i32
  }
  func.func @transform_3(%arg0: i32) -> (i32, i32) {
    %c0_i32 = arith.constant 0 : i32
    %c0_i32_0 = arith.constant 0 : i32
    %c0_i32_1 = arith.constant 0 : i32
    return %c0_i32, %c0_i32_0 : i32, i32
  }
  func.func @transform_4(%arg0: i32) -> (i32, i32) {
    %c0_i32 = arith.constant 0 : i32
    %c0_i32_0 = arith.constant 0 : i32
    %c0_i32_1 = arith.constant 0 : i32
    return %c0_i32, %c0_i32_0 : i32, i32
  }
  func.func @transform_5(%arg0: i32) -> (i32, i32) {
    %c0_i32 = arith.constant 0 : i32
    %c0_i32_0 = arith.constant 0 : i32
    %c0_i32_1 = arith.constant 0 : i32
    return %c0_i32, %c0_i32_0 : i32, i32
  }
  func.func @transform_6(%arg0: i32) -> (i32, i32, i32) {
    %c0_i32 = arith.constant 0 : i32
    %c0_i32_0 = arith.constant 0 : i32
    %c0_i32_1 = arith.constant 0 : i32
    return %arg0, %c0_i32, %c0_i32_0 : i32, i32, i32
  }
}

</mosaic_0001>

<llo_original>
// kernel: tpu_custom_call.1
$region0: #{tpu_custom_call.1}
  #allocation0 [shape = 'u32[]', space=smem, size = 0x4, offset = 0x4, fixed_abs, tag = 'smem constant byte address 0x4 - core index']
  #allocation1 [shape = 'u32[144,128]{1,0:T(1,128)}', space=vmem, size = 0x12000, scoped, tag = 'internal scratch']
  %s0 = inlined_call_operand.hbm [shape: bf16[2,4,256], index: 0, kind: input, shape index: {}]
  %s1 = inlined_call_operand.vmem [shape: bf16[2,256,4], index: 1, kind: input, shape index: {}]
  %s2 = inlined_call_operand.vmem [shape: bf16[2720,4], index: 2, kind: input, shape index: {}]
  %s3 = inlined_call_operand.vmem [shape: f32[2720,1], index: 3, kind: input, shape index: {}]
  %s4 = inlined_call_operand.hbm [shape: bf16[4,160], index: 4, kind: input, shape index: {}]
  %s5 = inlined_call_operand.hbm [shape: f32[1,160], index: 5, kind: input, shape index: {}]
  %s6 = inlined_call_operand.hbm [shape: f32[2,1280,256], index: 6, kind: output, shape index: {}]
  %s7 = sld [smem:[#allocation0]]
  $region69: #{tpu_custom_call.1} parent=0
    _
  %s9 = ssub.s32 1, %s7
  %s10 = scalar_select 0, %s9, %s7
  $region1: #{tpu_custom_call.1} parent=0
    #allocation2 [shape = 'u8[4096]{0}', space=vmem, size = 0x1000, scoped, tag = 'input window, operand 0']
    #allocation3 [shape = 's32[2]{0}', space=sflag, size = 0x8, scoped, tag = 'scoped memory for tpu_custom_call.1']
    #allocation4 [shape = 's32[2]{0}', space=sflag, size = 0x8, scoped, tag = 'scoped memory for tpu_custom_call.1']
    #allocation5 [shape = 'u8[2048]{0}', space=vmem, size = 0x800, scoped, tag = 'input window, operand 4, single buffered']
    #allocation6 [shape = 's32[1]{0}', space=sflag, size = 0x4, scoped, tag = 'scoped memory for tpu_custom_call.1']
    #allocation7 [shape = 'u8[1024]{0}', space=vmem, size = 0x400, scoped, tag = 'input window, operand 5, single buffered']
    #allocation8 [shape = 'u8[2621440]{0}', space=vmem, size = 0x280000, scoped, tag = 'output window, operand 0']
    %11 = vsyncpa [#allocation3], 0
    %s12 = scalar_lea.sflag [#allocation3], 1
    %13 = vsyncpa %s12, 0
    %14 = vsyncpa [#allocation6], 0
    %15 = vsyncpa [#allocation4], 0
    %s16 = scalar_lea.sflag [#allocation4], 1
    %17 = vsyncpa %s16, 0
    loop: start=0, step=1, limit=4
    $region2: #{tpu_custom_call.1} parent=1 // loop_pre_header
      _
    $region3: #{tpu_custom_call.1} parent=1 // loop_header
      %s19 = sphi 0, %s23
      %p20 = scmp.ge.s32.totalorder %s19, 4
      %s29 = sphi 0, %s31
      %s32 = sphi 0, %s29
      %s33 = sphi 0, %s32
      %s49 = sphi 0, %s33
      %s55 = sphi 0, %s57
      %s58 = sphi 0, %s55
      %s59 = sphi 0, %s58
      %s75 = sphi 0, %s59
      %s79 = sphi 0, %s79
      %s81 = sphi 0, %s79
      %s82 = sphi 0, %s81
      %s96 = sphi 0, %s82
      %s100 = sphi 0, %s100
      %s102 = sphi 0, %s100
      %s103 = sphi 0, %s102
      %s117 = sphi 0, %s103
      %s121 = sphi 0, %s121
      %s123 = sphi 0, %s121
      %s124 = sphi 0, %s123
      %s138 = sphi 0, %s124
      %s142 = sphi 0, %s142
      %s144 = sphi 0, %s142
      %s145 = sphi 0, %s144
      %s159 = sphi 0, %s145
      %s165 = sphi 0, %s167
      %s168 = sphi 0, %s165
      %s169 = sphi 0, %s168
      %s185 = sphi 0, %s169
    $region4: #{tpu_custom_call.1} parent=1 // loop_header_branch
      %22 = sbr.rel (%p20) target = $region8
    $region5: #{tpu_custom_call.1} parent=1 // loop_body
      %s24 = ssub.s32 %s19, 1
      %s25 = ssub.s32 %s19, 2
      %s26 = sadd.s32 %s19, 1
      %s27 = ssub.s32 %s19, %s26
      %p28 = scmp.eq.s32.totalorder %s27, 0
      %s30 = sadd.s32 %s29, 1
      %s31 = scalar_select %p28, %s29, %s30
      %p34 = pneg %p28
      %p35 = scmp.eq.s32.totalorder %s19, 1
      %p36 = por %p34, %p35
      %p37 = scmp.ne.s32.totalorder %s29, %s32
      %p38 = scmp.eq.s32.totalorder %s19, 0
      %p39 = por %p37, %p38
      %p40 = scmp.ne.s32.totalorder %s29, %s32
      %p41 = scmp.eq.s32.totalorder %s24, 1
      %p42 = por %p40, %p41
      %p43 = scmp.ne.s32.totalorder %s32, %s33
      %p44 = scmp.eq.s32.totalorder %s24, 0
      %p45 = por %p43, %p44
      %p46 = scmp.ne.s32.totalorder %s32, %s33
      %p47 = scmp.eq.s32.totalorder %s25, 1
      %p48 = por %p46, %p47
      %p50 = scmp.ne.s32.totalorder %s33, %s49
      %p51 = scmp.eq.s32.totalorder %s25, 0
      %p52 = por %p50, %p51
      %s53 = ssub.s32 %s19, %s26
      %p54 = scmp.eq.s32.totalorder %s53, 0
      %s56 = sadd.s32 %s55, 1
      %s57 = scalar_select %p54, %s55, %s56
      %p60 = pneg %p54
      %p61 = scmp.eq.s32.totalorder %s19, 1
      %p62 = por %p60, %p61
      %p63 = scmp.ne.s32.totalorder %s55, %s58
      %p64 = scmp.eq.s32.totalorder %s19, 0
      %p65 = por %p63, %p64
      %p66 = scmp.ne.s32.totalorder %s55, %s58
      %p67 = scmp.eq.s32.totalorder %s24, 1
      %p68 = por %p66, %p67
      %p69 = scmp.ne.s32.totalorder %s58, %s59
      %p70 = scmp.eq.s32.totalorder %s24, 0
      %p71 = por %p69, %p70
      %p72 = scmp.ne.s32.totalorder %s58, %s59
      %p73 = scmp.eq.s32.totalorder %s25, 1
      %p74 = por %p72, %p73
      %p76 = scmp.ne.s32.totalorder %s59, %s75
      %p77 = scmp.eq.s32.totalorder %s25, 0
      %p78 = por %p76, %p77
      %s80 = sadd.s32 %s79, 1
      %p83 = scmp.eq.s32.totalorder %s19, 1
      %p84 = scmp.ne.s32.totalorder %s79, %s81
      %p85 = scmp.eq.s32.totalorder %s19, 0
      %p86 = por %p84, %p85
      %p87 = scmp.ne.s32.totalorder %s79, %s81
      %p88 = scmp.eq.s32.totalorder %s24, 1
      %p89 = por %p87, %p88
      %p90 = scmp.ne.s32.totalorder %s81, %s82
      %p91 = scmp.eq.s32.totalorder %s24, 0
      %p92 = por %p90, %p91
      %p93 = scmp.ne.s32.totalorder %s81, %s82
      %p94 = scmp.eq.s32.totalorder %s25, 1
      %p95 = por %p93, %p94
      %p97 = scmp.ne.s32.totalorder %s82, %s96
      %p98 = scmp.eq.s32.totalorder %s25, 0
      %p99 = por %p97, %p98
      %s101 = sadd.s32 %s100, 1
      %p104 = scmp.eq.s32.totalorder %s19, 1
      %p105 = scmp.ne.s32.totalorder %s100, %s102
      %p106 = scmp.eq.s32.totalorder %s19, 0
      %p107 = por %p105, %p106
      %p108 = scmp.ne.s32.totalorder %s100, %s102
      %p109 = scmp.eq.s32.totalorder %s24, 1
      %p110 = por %p108, %p109
      %p111 = scmp.ne.s32.totalorder %s102, %s103
      %p112 = scmp.eq.s32.totalorder %s24, 0
      %p113 = por %p111, %p112
      %p114 = scmp.ne.s32.totalorder %s102, %s103
      %p115 = scmp.eq.s32.totalorder %s25, 1
      %p116 = por %p114, %p115
      %p118 = scmp.ne.s32.totalorder %s103, %s117
      %p119 = scmp.eq.s32.totalorder %s25, 0
      %p120 = por %p118, %p119
      %s122 = sadd.s32 %s121, 1
      %p125 = scmp.eq.s32.totalorder %s19, 1
      %p126 = scmp.ne.s32.totalorder %s121, %s123
      %p127 = scmp.eq.s32.totalorder %s19, 0
      %p128 = por %p126, %p127
      %p129 = scmp.ne.s32.totalorder %s121, %s123
      %p130 = scmp.eq.s32.totalorder %s24, 1
      %p131 = por %p129, %p130
      %p132 = scmp.ne.s32.totalorder %s123, %s124
      %p133 = scmp.eq.s32.totalorder %s24, 0
      %p134 = por %p132, %p133
      %p135 = scmp.ne.s32.totalorder %s123, %s124
      %p136 = scmp.eq.s32.totalorder %s25, 1
      %p137 = por %p135, %p136
      %p139 = scmp.ne.s32.totalorder %s124, %s138
      %p140 = scmp.eq.s32.totalorder %s25, 0
      %p141 = por %p139, %p140
      %s143 = sadd.s32 %s142, 1
      %p146 = scmp.eq.s32.totalorder %s19, 1
      %p147 = scmp.ne.s32.totalorder %s142, %s144
      %p148 = scmp.eq.s32.totalorder %s19, 0
      %p149 = por %p147, %p148
      %p150 = scmp.ne.s32.totalorder %s142, %s144
      %p151 = scmp.eq.s32.totalorder %s24, 1
      %p152 = por %p150, %p151
      %p153 = scmp.ne.s32.totalorder %s144, %s145
      %p154 = scmp.eq.s32.totalorder %s24, 0
      %p155 = por %p153, %p154
      %p156 = scmp.ne.s32.totalorder %s144, %s145
      %p157 = scmp.eq.s32.totalorder %s25, 1
      %p158 = por %p156, %p157
      %p160 = scmp.ne.s32.totalorder %s145, %s159
      %p161 = scmp.eq.s32.totalorder %s25, 0
      %p162 = por %p160, %p161
      %s163 = ssub.s32 %s19, %s26
      %p164 = scmp.eq.s32.totalorder %s163, 0
      %s166 = sadd.s32 %s165, 1
      %s167 = scalar_select %p164, %s165, %s166
      %p170 = pneg %p164
      %p171 = scmp.eq.s32.totalorder %s19, 1
      %p172 = por %p170, %p171
      %p173 = scmp.ne.s32.totalorder %s165, %s168
      %p174 = scmp.eq.s32.totalorder %s19, 0
      %p175 = por %p173, %p174
      %p176 = scmp.ne.s32.totalorder %s165, %s168
      %p177 = scmp.eq.s32.totalorder %s24, 1
      %p178 = por %p176, %p177
      %p179 = scmp.ne.s32.totalorder %s168, %s169
      %p180 = scmp.eq.s32.totalorder %s24, 0
      %p181 = por %p179, %p180
      %p182 = scmp.ne.s32.totalorder %s168, %s169
      %p183 = scmp.eq.s32.totalorder %s25, 1
      %p184 = por %p182, %p183
      %p186 = scmp.ne.s32.totalorder %s169, %s185
      %p187 = scmp.eq.s32.totalorder %s25, 0
      %p188 = por %p186, %p187
      %p189 = scmp.le.s32.totalorder 1, %s19
      %p190 = scmp.lt.s32.totalorder %s19, 3
      %p191 = pnand %p189, %p190
      %p192 = pneg %p191
      // Predicated region
      $region9: #{tpu_custom_call.1} parent=5 // pred_check
        _
      $region10: #{tpu_custom_call.1} parent=5 // pred_check_branch
        %194 = sbr.rel (%p191) target = $region12
      $region11: #{tpu_custom_call.1} parent=5 // pred_region
        %s195 = ssub.s32 %s19, 1
        // Predicated region
        $region13: #{tpu_custom_call.1} parent=11 // pred_check
          %p196 = pneg %p92
        $region14: #{tpu_custom_call.1} parent=11 // pred_check_branch
          %198 = sbr.rel (%p196) target = $region16
        $region15: #{tpu_custom_call.1} parent=11 // pred_region
          _
        $region16: #{tpu_custom_call.1} parent=11 // pred_fallthru
          _
        // Predicated region
        $region17: #{tpu_custom_call.1} parent=11 // pred_check
          %p199 = pneg %p113
        $region18: #{tpu_custom_call.1} parent=11 // pred_check_branch
          %201 = sbr.rel (%p199) target = $region20
        $region19: #{tpu_custom_call.1} parent=11 // pred_region
          _
        $region20: #{tpu_custom_call.1} parent=11 // pred_fallthru
          _
        // Predicated region
        $region21: #{tpu_custom_call.1} parent=11 // pred_check
          %p202 = pneg %p134
        $region22: #{tpu_custom_call.1} parent=11 // pred_check_branch
          %204 = sbr.rel (%p202) target = $region24
        $region23: #{tpu_custom_call.1} parent=11 // pred_region
          %s206 = ssub.s32 64, 64
          %207 = vsyncadd [#allocation6], %s206
          %s209 = sshll.u32 [#allocation5], 4
          %s210 = int_to_ptr.vmem [resolvable:$true] %s209
          %212 = dma.hbm_to_vmem [thread:$0]  %s4, 64, %s210, [#allocation6]
        $region24: #{tpu_custom_call.1} parent=11 // pred_fallthru
          _
        // Predicated region
        $region25: #{tpu_custom_call.1} parent=11 // pred_check
          %p213 = pneg %p155
        $region26: #{tpu_custom_call.1} parent=11 // pred_check_branch
          %215 = sbr.rel (%p213) target = $region28
        $region27: #{tpu_custom_call.1} parent=11 // pred_region
          %s217 = ssub.s32 32, 32
          %218 = vsyncadd [#allocation6], %s217
          %s220 = sshll.u32 [#allocation7], 4
          %s221 = int_to_ptr.vmem [resolvable:$true] %s220
          %223 = dma.hbm_to_vmem [thread:$0]  %s5, 32, %s221, [#allocation6]
        $region28: #{tpu_custom_call.1} parent=11 // pred_fallthru
          _
      $region12: #{tpu_custom_call.1} parent=5 // pred_fallthru
        _
      %p224 = scmp.lt.s32.totalorder %s19, 2
      // Predicated region
      $region29: #{tpu_custom_call.1} parent=5 // pred_check
        %p225 = pneg %p224
      $region30: #{tpu_custom_call.1} parent=5 // pred_check_branch
        %227 = sbr.rel (%p225) target = $region32
      $region31: #{tpu_custom_call.1} parent=5 // pred_region
        // Predicated region
        $region33: #{tpu_custom_call.1} parent=31 // pred_check
          %p228 = pneg %p39
        $region34: #{tpu_custom_call.1} parent=31 // pred_check_branch
          %230 = sbr.rel (%p228) target = $region36
        $region35: #{tpu_custom_call.1} parent=31 // pred_region
          %s231 = sand.u32 %s29, 1
          %s232 = scalar_lea.sflag [#allocation3], %s231
          %s233 = sand.u32 %s29, 1
          %s234 = smul.addr %s233, 4
          %s235 = scalar_lea.vmem [#allocation2], %s234
          %s237 = ssub.s32 64, 64
          %238 = vsyncadd %s232, %s237
          %s239 = smul.addr %s19, 2
          %s240 = smul.addr %s239, 32
          %s241 = scalar_lea.hbm %s0, %s240
          %s243 = sshll.u32 %s235, 4
          %s244 = int_to_ptr.vmem [resolvable:$true] %s243
          %246 = dma.hbm_to_vmem [thread:$0]  %s241, 64, %s244, %s232
        $region36: #{tpu_custom_call.1} parent=31 // pred_fallthru
          _
        // Predicated region
        $region37: #{tpu_custom_call.1} parent=31 // pred_check
          %p247 = pneg %p65
        $region38: #{tpu_custom_call.1} parent=31 // pred_check_branch
          %249 = sbr.rel (%p247) target = $region40
        $region39: #{tpu_custom_call.1} parent=31 // pred_region
          %p250 = scmp.lt.s32.totalorder %s19, 1
          %s251 = scalar_select %p250, %s19, 1
          %s252 = smul.addr %s251, 32
          %s253 = smul.addr %s252, 4
          %s254 = scalar_lea.vmem %s1, %s253
        $region40: #{tpu_custom_call.1} parent=31 // pred_fallthru
          _
      $region32: #{tpu_custom_call.1} parent=5 // pred_fallthru
        _
      %p255 = scmp.le.s32.totalorder 1, %s19
      %p256 = scmp.lt.s32.totalorder %s19, 3
      %p257 = pnand %p255, %p256
      %p258 = pneg %p257
      // Predicated region
      $region41: #{tpu_custom_call.1} parent=5 // pred_check
        _
      $region42: #{tpu_custom_call.1} parent=5 // pred_check_branch
        %260 = sbr.rel (%p257) target = $region44
      $region43: #{tpu_custom_call.1} parent=5 // pred_region
        %s261 = ssub.s32 %s19, 1
        %s262 = sand.u32 %s32, 1
        %s263 = scalar_lea.sflag [#allocation3], %s262
        %s264 = sand.u32 %s32, 1
        %s265 = smul.addr %s264, 4
        %s266 = scalar_lea.vmem [#allocation2], %s265
        // Predicated region
        $region45: #{tpu_custom_call.1} parent=43 // pred_check
          %p267 = pneg %p45
        $region46: #{tpu_custom_call.1} parent=43 // pred_check_branch
          %269 = sbr.rel (%p267) target = $region48
        $region47: #{tpu_custom_call.1} parent=43 // pred_region
          %270 = dma.done %s263, 64
        $region48: #{tpu_custom_call.1} parent=43 // pred_fallthru
          _
        // Predicated region
        $region49: #{tpu_custom_call.1} parent=43 // pred_check
          %p271 = pneg %p134
        $region50: #{tpu_custom_call.1} parent=43 // pred_check_branch
          %273 = sbr.rel (%p271) target = $region52
        $region51: #{tpu_custom_call.1} parent=43 // pred_region
          %274 = dma.done [#allocation6], 64
        $region52: #{tpu_custom_call.1} parent=43 // pred_fallthru
          _
        // Predicated region
        $region53: #{tpu_custom_call.1} parent=43 // pred_check
          %p275 = pneg %p155
        $region54: #{tpu_custom_call.1} parent=43 // pred_check_branch
          %277 = sbr.rel (%p275) target = $region56
        $region55: #{tpu_custom_call.1} parent=43 // pred_region
          %278 = dma.done [#allocation6], 32
        $region56: #{tpu_custom_call.1} parent=43 // pred_fallthru
          _
        %s279 = sand.u32 %s32, 1
        %s280 = scalar_lea.sflag [#allocation3], %s279
        %s281 = sand.u32 %s32, 1
        %s282 = smul.addr %s281, 4
        %s283 = scalar_lea.vmem [#allocation2], %s282
        %p284 = pneg %p45
        %p285 = pneg %p42
        %p286 = scmp.lt.s32.totalorder %s24, 1
        %s287 = scalar_select %p286, %s24, 1
        %s288 = smul.addr %s287, 32
        %s289 = smul.addr %s288, 4
        %s290 = scalar_lea.vmem %s1, %s289
        %p291 = pneg %p71
        %p292 = pneg %p68
        %p293 = pneg %p92
        %p294 = pneg %p89
        %p295 = pneg %p113
        %p296 = pneg %p110
        %p297 = pneg %p134
        %p298 = pneg %p131
        %p299 = pneg %p155
        %p300 = pneg %p152
        %p301 = pneg %p181
        %p302 = pneg %p178
        %s303 = sand.u32 %s168, 1
        %s304 = scalar_lea.sflag [#allocation4], %s303
        %s305 = sand.u32 %s168, 1
        %s306 = smul.addr %s305, 2560
        %s307 = scalar_lea.vmem [#allocation8], %s306
        %p308 = scmp.lt.s32.totalorder %s24, 1
        %s309 = scalar_select %p308, %s24, 1
        %s310 = smul.addr %s309, 32
        %s311 = smul.addr %s310, 4
        %s312 = scalar_lea.vmem %s1, %s311
        %v314 = vld [vmem:[%s266] sm:$0xf]
        %v315 = vld [vmem:[%s312] sm:$0xf]
        %v316 = vld [vmem:[%s312 + $0x4] sm:$0xf]
        %v317 = vld [vmem:[%s312 + $0x8] sm:$0xf]
        %v318 = vld [vmem:[%s312 + $0xc] sm:$0xf]
        %v319 = vld [vmem:[%s312 + $0x10] sm:$0xf]
        %v320 = vld [vmem:[%s312 + $0x14] sm:$0xf]
        %v321 = vld [vmem:[%s312 + $0x18] sm:$0xf]
        %v322 = vld [vmem:[%s312 + $0x1c] sm:$0xf]
        %v323 = vld [vmem:[%s312 + $0x20] sm:$0xf]
        %v324 = vld [vmem:[%s312 + $0x24] sm:$0xf]
        %v325 = vld [vmem:[%s312 + $0x28] sm:$0xf]
        %v326 = vld [vmem:[%s312 + $0x2c] sm:$0xf]
        %v327 = vld [vmem:[%s312 + $0x30] sm:$0xf]
        %v328 = vld [vmem:[%s312 + $0x34] sm:$0xf]
        %v329 = vld [vmem:[%s312 + $0x38] sm:$0xf]
        %v330 = vld [vmem:[%s312 + $0x3c] sm:$0xf]
        %v331 = vld [vmem:[%s312 + $0x40] sm:$0xf]
        %v332 = vld [vmem:[%s312 + $0x44] sm:$0xf]
        %v333 = vld [vmem:[%s312 + $0x48] sm:$0xf]
        %v334 = vld [vmem:[%s312 + $0x4c] sm:$0xf]
        %v335 = vld [vmem:[%s312 + $0x50] sm:$0xf]
        %v336 = vld [vmem:[%s312 + $0x54] sm:$0xf]
        %v337 = vld [vmem:[%s312 + $0x58] sm:$0xf]
        %v338 = vld [vmem:[%s312 + $0x5c] sm:$0xf]
        %v339 = vld [vmem:[%s312 + $0x60] sm:$0xf]
        %v340 = vld [vmem:[%s312 + $0x64] sm:$0xf]
        %v341 = vld [vmem:[%s312 + $0x68] sm:$0xf]
        %v342 = vld [vmem:[%s312 + $0x6c] sm:$0xf]
        %v343 = vld [vmem:[%s312 + $0x70] sm:$0xf]
        %v344 = vld [vmem:[%s312 + $0x74] sm:$0xf]
        %v345 = vld [vmem:[%s312 + $0x78] sm:$0xf]
        %v346 = vld [vmem:[%s312 + $0x7c] sm:$0xf]
        %v347 = vld [vmem:[%s2] sm:$0xf]
        %v348 = vld [vmem:[%s2 + $0x4] sm:$0xf]
        %v349 = vld [vmem:[%s2 + $0x8] sm:$0xf]
        %v350 = vld [vmem:[%s2 + $0xc] sm:$0xf]
        %v351 = vld [vmem:[%s2 + $0x10] sm:$0xf]
        %v352 = vld [vmem:[%s2 + $0x14] sm:$0xf]
        %v353 = vld [vmem:[%s2 + $0x18] sm:$0xf]
        %v354 = vld [vmem:[%s2 + $0x1c] sm:$0xf]
        %v355 = vld [vmem:[%s2 + $0x20] sm:$0xf]
        %v356 = vld [vmem:[%s2 + $0x24] sm:$0xf]
        %v357 = vld [vmem:[%s2 + $0x28] sm:$0xf]
        %v358 = vld [vmem:[%s2 + $0x2c] sm:$0xf]
        %v359 = vld [vmem:[%s2 + $0x30] sm:$0xf]
        %v360 = vld [vmem:[%s2 + $0x34] sm:$0xf]
        %v361 = vld [vmem:[%s2 + $0x38] sm:$0xf]
        %v362 = vld [vmem:[%s2 + $0x3c] sm:$0xf]
        %v363 = vld [vmem:[%s2 + $0x40] sm:$0xf]
        %v364 = vld [vmem:[%s2 + $0x44] sm:$0xf]
        %v365 = vld [vmem:[%s2 + $0x48] sm:$0xf]
        %v366 = vld [vmem:[%s2 + $0x4c] sm:$0xf]
        %v367 = vld [vmem:[%s2 + $0x50] sm:$0xf]
        %v368 = vld [vmem:[%s2 + $0x54] sm:$0xf]
        %v369 = vld [vmem:[%s2 + $0x58] sm:$0xf]
        %v370 = vld [vmem:[%s2 + $0x5c] sm:$0xf]
        %v371 = vld [vmem:[%s2 + $0x60] sm:$0xf]
        %v372 = vld [vmem:[%s2 + $0x64] sm:$0xf]
        %v373 = vld [vmem:[%s2 + $0x68] sm:$0xf]
        %v374 = vld [vmem:[%s2 + $0x6c] sm:$0xf]
        %v375 = vld [vmem:[%s2 + $0x70] sm:$0xf]
        %v376 = vld [vmem:[%s2 + $0x74] sm:$0xf]
        %v377 = vld [vmem:[%s2 + $0x78] sm:$0xf]
        %v378 = vld [vmem:[%s2 + $0x7c] sm:$0xf]
        %v379 = vld [vmem:[%s2 + $0x80] sm:$0xf]
        %v380 = vld [vmem:[%s2 + $0x84] sm:$0xf]
        %v381 = vld [vmem:[%s2 + $0x88] sm:$0xf]
        %v382 = vld [vmem:[%s2 + $0x8c] sm:$0xf]
        %v383 = vld [vmem:[%s2 + $0x90] sm:$0xf]
        %v384 = vld [vmem:[%s2 + $0x94] sm:$0xf]
        %v385 = vld [vmem:[%s2 + $0x98] sm:$0xf]
        %v386 = vld [vmem:[%s2 + $0x9c] sm:$0xf]
        %v387 = vld [vmem:[%s2 + $0xa0] sm:$0xf]
        %v388 = vld [vmem:[%s2 + $0xa4] sm:$0xf]
        %v389 = vld [vmem:[%s2 + $0xa8] sm:$0xf]
        %v390 = vld [vmem:[%s2 + $0xac] sm:$0xf]
        %v391 = vld [vmem:[%s2 + $0xb0] sm:$0xf]
        %v392 = vld [vmem:[%s2 + $0xb4] sm:$0xf]
        %v393 = vld [vmem:[%s2 + $0xb8] sm:$0xf]
        %v394 = vld [vmem:[%s2 + $0xbc] sm:$0xf]
        %v395 = vld [vmem:[%s2 + $0xc0] sm:$0xf]
        %v396 = vld [vmem:[%s2 + $0xc4] sm:$0xf]
        %v397 = vld [vmem:[%s2 + $0xc8] sm:$0xf]
        %v398 = vld [vmem:[%s2 + $0xcc] sm:$0xf]
        %v399 = vld [vmem:[%s2 + $0xd0] sm:$0xf]
        %v400 = vld [vmem:[%s2 + $0xd4] sm:$0xf]
        %v401 = vld [vmem:[%s2 + $0xd8] sm:$0xf]
        %v402 = vld [vmem:[%s2 + $0xdc] sm:$0xf]
        %v403 = vld [vmem:[%s2 + $0xe0] sm:$0xf]
        %v404 = vld [vmem:[%s2 + $0xe4] sm:$0xf]
        %v405 = vld [vmem:[%s2 + $0xe8] sm:$0xf]
        %v406 = vld [vmem:[%s2 + $0xec] sm:$0xf]
        %v407 = vld [vmem:[%s2 + $0xf0] sm:$0xf]
        %v408 = vld [vmem:[%s2 + $0xf4] sm:$0xf]
        %v409 = vld [vmem:[%s2 + $0xf8] sm:$0xf]
        %v410 = vld [vmem:[%s2 + $0xfc] sm:$0xf]
        %v411 = vld [vmem:[%s2 + $0x100] sm:$0xf]
        %v412 = vld [vmem:[%s2 + $0x104] sm:$0xf]
        %v413 = vld [vmem:[%s2 + $0x108] sm:$0xf]
        %v414 = vld [vmem:[%s2 + $0x10c] sm:$0xf]
        %v415 = vld [vmem:[%s2 + $0x110] sm:$0xf]
        %v416 = vld [vmem:[%s2 + $0x114] sm:$0xf]
        %v417 = vld [vmem:[%s2 + $0x118] sm:$0xf]
        %v418 = vld [vmem:[%s2 + $0x11c] sm:$0xf]
        %v419 = vld [vmem:[%s2 + $0x120] sm:$0xf]
        %v420 = vld [vmem:[%s2 + $0x124] sm:$0xf]
        %v421 = vld [vmem:[%s2 + $0x128] sm:$0xf]
        %v422 = vld [vmem:[%s2 + $0x12c] sm:$0xf]
        %v423 = vld [vmem:[%s2 + $0x130] sm:$0xf]
        %v424 = vld [vmem:[%s2 + $0x134] sm:$0xf]
        %v425 = vld [vmem:[%s2 + $0x138] sm:$0xf]
        %v426 = vld [vmem:[%s2 + $0x13c] sm:$0xf]
        %v427 = vld [vmem:[%s2 + $0x140] sm:$0xf]
        %v428 = vld [vmem:[%s2 + $0x144] sm:$0xf]
        %v429 = vld [vmem:[%s2 + $0x148] sm:$0xf]
        %v430 = vld [vmem:[%s2 + $0x14c] sm:$0xf]
        %v431 = vld [vmem:[%s2 + $0x150] sm:$0xf]
        %v432 = vld [vmem:[%s2 + $0x154] sm:$0xf]
        %v433 = vld [vmem:[%s2 + $0x158] sm:$0xf]
        %v434 = vld [vmem:[%s2 + $0x15c] sm:$0xf]
        %v435 = vld [vmem:[%s2 + $0x160] sm:$0xf]
        %v436 = vld [vmem:[%s2 + $0x164] sm:$0xf]
        %v437 = vld [vmem:[%s2 + $0x168] sm:$0xf]
        %v438 = vld [vmem:[%s2 + $0x16c] sm:$0xf]
        %v439 = vld [vmem:[%s2 + $0x170] sm:$0xf]
        %v440 = vld [vmem:[%s2 + $0x174] sm:$0xf]
        %v441 = vld [vmem:[%s2 + $0x178] sm:$0xf]
        %v442 = vld [vmem:[%s2 + $0x17c] sm:$0xf]
        %v443 = vld [vmem:[%s2 + $0x180] sm:$0xf]
        %v444 = vld [vmem:[%s2 + $0x184] sm:$0xf]
        %v445 = vld [vmem:[%s2 + $0x188] sm:$0xf]
        %v446 = vld [vmem:[%s2 + $0x18c] sm:$0xf]
        %v447 = vld [vmem:[%s2 + $0x190] sm:$0xf]
        %v448 = vld [vmem:[%s2 + $0x194] sm:$0xf]
        %v449 = vld [vmem:[%s2 + $0x198] sm:$0xf]
        %v450 = vld [vmem:[%s2 + $0x19c] sm:$0xf]
        %v451 = vld [vmem:[%s2 + $0x1a0] sm:$0xf]
        %v452 = vld [vmem:[%s2 + $0x1a4] sm:$0xf]
        %v453 = vld [vmem:[%s2 + $0x1a8] sm:$0xf]
        %v454 = vld [vmem:[%s2 + $0x1ac] sm:$0xf]
        %v455 = vld [vmem:[%s2 + $0x1b0] sm:$0xf]
        %v456 = vld [vmem:[%s2 + $0x1b4] sm:$0xf]
        %v457 = vld [vmem:[%s2 + $0x1b8] sm:$0xf]
        %v458 = vld [vmem:[%s2 + $0x1bc] sm:$0xf]
        %v459 = vld [vmem:[%s2 + $0x1c0] sm:$0xf]
        %v460 = vld [vmem:[%s2 + $0x1c4] sm:$0xf]
        %v461 = vld [vmem:[%s2 + $0x1c8] sm:$0xf]
        %v462 = vld [vmem:[%s2 + $0x1cc] sm:$0xf]
        %v463 = vld [vmem:[%s2 + $0x1d0] sm:$0xf]
        %v464 = vld [vmem:[%s2 + $0x1d4] sm:$0xf]
        %v465 = vld [vmem:[%s2 + $0x1d8] sm:$0xf]
        %v466 = vld [vmem:[%s2 + $0x1dc] sm:$0xf]
        %v467 = vld [vmem:[%s2 + $0x1e0] sm:$0xf]
        %v468 = vld [vmem:[%s2 + $0x1e4] sm:$0xf]
        %v469 = vld [vmem:[%s2 + $0x1e8] sm:$0xf]
        %v470 = vld [vmem:[%s2 + $0x1ec] sm:$0xf]
        %v471 = vld [vmem:[%s2 + $0x1f0] sm:$0xf]
        %v472 = vld [vmem:[%s2 + $0x1f4] sm:$0xf]
        %v473 = vld [vmem:[%s2 + $0x1f8] sm:$0xf]
        %v474 = vld [vmem:[%s2 + $0x1fc] sm:$0xf]
        %v475 = vld [vmem:[%s2 + $0x200] sm:$0xf]
        %v476 = vld [vmem:[%s2 + $0x204] sm:$0xf]
        %v477 = vld [vmem:[%s2 + $0x208] sm:$0xf]
        %v478 = vld [vmem:[%s2 + $0x20c] sm:$0xf]
        %v479 = vld [vmem:[%s2 + $0x210] sm:$0xf]
        %v480 = vld [vmem:[%s2 + $0x214] sm:$0xf]
        %v481 = vld [vmem:[%s2 + $0x218] sm:$0xf]
        %v482 = vld [vmem:[%s2 + $0x21c] sm:$0xf]
        %v483 = vld [vmem:[%s2 + $0x220] sm:$0xf]
        %v484 = vld [vmem:[%s2 + $0x224] sm:$0xf]
        %v485 = vld [vmem:[%s2 + $0x228] sm:$0xf]
        %v486 = vld [vmem:[%s2 + $0x22c] sm:$0xf]
        %v487 = vld [vmem:[%s2 + $0x230] sm:$0xf]
        %v488 = vld [vmem:[%s2 + $0x234] sm:$0xf]
        %v489 = vld [vmem:[%s2 + $0x238] sm:$0xf]
        %v490 = vld [vmem:[%s2 + $0x23c] sm:$0xf]
        %v491 = vld [vmem:[%s2 + $0x240] sm:$0xf]
        %v492 = vld [vmem:[%s2 + $0x244] sm:$0xf]
        %v493 = vld [vmem:[%s2 + $0x248] sm:$0xf]
        %v494 = vld [vmem:[%s2 + $0x24c] sm:$0xf]
        %v495 = vld [vmem:[%s2 + $0x250] sm:$0xf]
        %v496 = vld [vmem:[%s2 + $0x254] sm:$0xf]
        %v497 = vld [vmem:[%s2 + $0x258] sm:$0xf]
        %v498 = vld [vmem:[%s2 + $0x25c] sm:$0xf]
        %v499 = vld [vmem:[%s2 + $0x260] sm:$0xf]
        %v500 = vld [vmem:[%s2 + $0x264] sm:$0xf]
        %v501 = vld [vmem:[%s2 + $0x268] sm:$0xf]
        %v502 = vld [vmem:[%s2 + $0x26c] sm:$0xf]
        %v503 = vld [vmem:[%s2 + $0x270] sm:$0xf]
        %v504 = vld [vmem:[%s2 + $0x274] sm:$0xf]
        %v505 = vld [vmem:[%s2 + $0x278] sm:$0xf]
        %v506 = vld [vmem:[%s2 + $0x27c] sm:$0xf]
        %v507 = vld [vmem:[%s2 + $0x280] sm:$0xf]
        %v508 = vld [vmem:[%s2 + $0x284] sm:$0xf]
        %v509 = vld [vmem:[%s2 + $0x288] sm:$0xf]
        %v510 = vld [vmem:[%s2 + $0x28c] sm:$0xf]
        %v511 = vld [vmem:[%s2 + $0x290] sm:$0xf]
        %v512 = vld [vmem:[%s2 + $0x294] sm:$0xf]
        %v513 = vld [vmem:[%s2 + $0x298] sm:$0xf]
        %v514 = vld [vmem:[%s2 + $0x29c] sm:$0xf]
        %v515 = vld [vmem:[%s2 + $0x2a0] sm:$0xf]
        %v516 = vld [vmem:[%s2 + $0x2a4] sm:$0xf]
        %v517 = vld [vmem:[%s2 + $0x2a8] sm:$0xf]
        %v518 = vld [vmem:[%s2 + $0x2ac] sm:$0xf]
        %v519 = vld [vmem:[%s2 + $0x2b0] sm:$0xf]
        %v520 = vld [vmem:[%s2 + $0x2b4] sm:$0xf]
        %v521 = vld [vmem:[%s2 + $0x2b8] sm:$0xf]
        %v522 = vld [vmem:[%s2 + $0x2bc] sm:$0xf]
        %v523 = vld [vmem:[%s2 + $0x2c0] sm:$0xf]
        %v524 = vld [vmem:[%s2 + $0x2c4] sm:$0xf]
        %v525 = vld [vmem:[%s2 + $0x2c8] sm:$0xf]
        %v526 = vld [vmem:[%s2 + $0x2cc] sm:$0xf]
        %v527 = vld [vmem:[%s2 + $0x2d0] sm:$0xf]
        %v528 = vld [vmem:[%s2 + $0x2d4] sm:$0xf]
        %v529 = vld [vmem:[%s2 + $0x2d8] sm:$0xf]
        %v530 = vld [vmem:[%s2 + $0x2dc] sm:$0xf]
        %v531 = vld [vmem:[%s2 + $0x2e0] sm:$0xf]
        %v532 = vld [vmem:[%s2 + $0x2e4] sm:$0xf]
        %v533 = vld [vmem:[%s2 + $0x2e8] sm:$0xf]
        %v534 = vld [vmem:[%s2 + $0x2ec] sm:$0xf]
        %v535 = vld [vmem:[%s2 + $0x2f0] sm:$0xf]
        %v536 = vld [vmem:[%s2 + $0x2f4] sm:$0xf]
        %v537 = vld [vmem:[%s2 + $0x2f8] sm:$0xf]
        %v538 = vld [vmem:[%s2 + $0x2fc] sm:$0xf]
        %v539 = vld [vmem:[%s2 + $0x300] sm:$0xf]
        %v540 = vld [vmem:[%s2 + $0x304] sm:$0xf]
        %v541 = vld [vmem:[%s2 + $0x308] sm:$0xf]
        %v542 = vld [vmem:[%s2 + $0x30c] sm:$0xf]
        %v543 = vld [vmem:[%s2 + $0x310] sm:$0xf]
        %v544 = vld [vmem:[%s2 + $0x314] sm:$0xf]
        %v545 = vld [vmem:[%s2 + $0x318] sm:$0xf]
        %v546 = vld [vmem:[%s2 + $0x31c] sm:$0xf]
        %v547 = vld [vmem:[%s2 + $0x320] sm:$0xf]
        %v548 = vld [vmem:[%s2 + $0x324] sm:$0xf]
        %v549 = vld [vmem:[%s2 + $0x328] sm:$0xf]
        %v550 = vld [vmem:[%s2 + $0x32c] sm:$0xf]
        %v551 = vld [vmem:[%s2 + $0x330] sm:$0xf]
        %v552 = vld [vmem:[%s2 + $0x334] sm:$0xf]
        %v553 = vld [vmem:[%s2 + $0x338] sm:$0xf]
        %v554 = vld [vmem:[%s2 + $0x33c] sm:$0xf]
        %v555 = vld [vmem:[%s2 + $0x340] sm:$0xf]
        %v556 = vld [vmem:[%s2 + $0x344] sm:$0xf]
        %v557 = vld [vmem:[%s2 + $0x348] sm:$0xf]
        %v558 = vld [vmem:[%s2 + $0x34c] sm:$0xf]
        %v559 = vld [vmem:[%s2 + $0x350] sm:$0xf]
        %v560 = vld [vmem:[%s2 + $0x354] sm:$0xf]
        %v561 = vld [vmem:[%s2 + $0x358] sm:$0xf]
        %v562 = vld [vmem:[%s2 + $0x35c] sm:$0xf]
        %v563 = vld [vmem:[%s2 + $0x360] sm:$0xf]
        %v564 = vld [vmem:[%s2 + $0x364] sm:$0xf]
        %v565 = vld [vmem:[%s2 + $0x368] sm:$0xf]
        %v566 = vld [vmem:[%s2 + $0x36c] sm:$0xf]
        %v567 = vld [vmem:[%s2 + $0x370] sm:$0xf]
        %v568 = vld [vmem:[%s2 + $0x374] sm:$0xf]
        %v569 = vld [vmem:[%s2 + $0x378] sm:$0xf]
        %v570 = vld [vmem:[%s2 + $0x37c] sm:$0xf]
        %v571 = vld [vmem:[%s2 + $0x380] sm:$0xf]
        %v572 = vld [vmem:[%s2 + $0x384] sm:$0xf]
        %v573 = vld [vmem:[%s2 + $0x388] sm:$0xf]
        %v574 = vld [vmem:[%s2 + $0x38c] sm:$0xf]
        %v575 = vld [vmem:[%s2 + $0x390] sm:$0xf]
        %v576 = vld [vmem:[%s2 + $0x394] sm:$0xf]
        %v577 = vld [vmem:[%s2 + $0x398] sm:$0xf]
        %v578 = vld [vmem:[%s2 + $0x39c] sm:$0xf]
        %v579 = vld [vmem:[%s2 + $0x3a0] sm:$0xf]
        %v580 = vld [vmem:[%s2 + $0x3a4] sm:$0xf]
        %v581 = vld [vmem:[%s2 + $0x3a8] sm:$0xf]
        %v582 = vld [vmem:[%s2 + $0x3ac] sm:$0xf]
        %v583 = vld [vmem:[%s2 + $0x3b0] sm:$0xf]
        %v584 = vld [vmem:[%s2 + $0x3b4] sm:$0xf]
        %v585 = vld [vmem:[%s2 + $0x3b8] sm:$0xf]
        %v586 = vld [vmem:[%s2 + $0x3bc] sm:$0xf]
        %v587 = vld [vmem:[%s2 + $0x3c0] sm:$0xf]
        %v588 = vld [vmem:[%s2 + $0x3c4] sm:$0xf]
        %v589 = vld [vmem:[%s2 + $0x3c8] sm:$0xf]
        %v590 = vld [vmem:[%s2 + $0x3cc] sm:$0xf]
        %v591 = vld [vmem:[%s2 + $0x3d0] sm:$0xf]
        %v592 = vld [vmem:[%s2 + $0x3d4] sm:$0xf]
        %v593 = vld [vmem:[%s2 + $0x3d8] sm:$0xf]
        %v594 = vld [vmem:[%s2 + $0x3dc] sm:$0xf]
        %v595 = vld [vmem:[%s2 + $0x3e0] sm:$0xf]
        %v596 = vld [vmem:[%s2 + $0x3e4] sm:$0xf]
        %v597 = vld [vmem:[%s2 + $0x3e8] sm:$0xf]
        %v598 = vld [vmem:[%s2 + $0x3ec] sm:$0xf]
        %v599 = vld [vmem:[%s2 + $0x3f0] sm:$0xf]
        %v600 = vld [vmem:[%s2 + $0x3f4] sm:$0xf]
        %v601 = vld [vmem:[%s2 + $0x3f8] sm:$0xf]
        %v602 = vld [vmem:[%s2 + $0x3fc] sm:$0xf]
        %v603 = vld [vmem:[%s2 + $0x400] sm:$0xf]
        %v604 = vld [vmem:[%s2 + $0x404] sm:$0xf]
        %v605 = vld [vmem:[%s2 + $0x408] sm:$0xf]
        %v606 = vld [vmem:[%s2 + $0x40c] sm:$0xf]
        %v607 = vld [vmem:[%s2 + $0x410] sm:$0xf]
        %v608 = vld [vmem:[%s2 + $0x414] sm:$0xf]
        %v609 = vld [vmem:[%s2 + $0x418] sm:$0xf]
        %v610 = vld [vmem:[%s2 + $0x41c] sm:$0xf]
        %v611 = vld [vmem:[%s2 + $0x420] sm:$0xf]
        %v612 = vld [vmem:[%s2 + $0x424] sm:$0xf]
        %v613 = vld [vmem:[%s2 + $0x428] sm:$0xf]
        %v614 = vld [vmem:[%s2 + $0x42c] sm:$0xf]
        %v615 = vld [vmem:[%s2 + $0x430] sm:$0xf]
        %v616 = vld [vmem:[%s2 + $0x434] sm:$0xf]
        %v617 = vld [vmem:[%s2 + $0x438] sm:$0xf]
        %v618 = vld [vmem:[%s2 + $0x43c] sm:$0xf]
        %v619 = vld [vmem:[%s2 + $0x440] sm:$0xf]
        %v620 = vld [vmem:[%s2 + $0x444] sm:$0xf]
        %v621 = vld [vmem:[%s2 + $0x448] sm:$0xf]
        %v622 = vld [vmem:[%s2 + $0x44c] sm:$0xf]
        %v623 = vld [vmem:[%s2 + $0x450] sm:$0xf]
        %v624 = vld [vmem:[%s2 + $0x454] sm:$0xf]
        %v625 = vld [vmem:[%s2 + $0x458] sm:$0xf]
        %v626 = vld [vmem:[%s2 + $0x45c] sm:$0xf]
        %v627 = vld [vmem:[%s2 + $0x460] sm:$0xf]
        %v628 = vld [vmem:[%s2 + $0x464] sm:$0xf]
        %v629 = vld [vmem:[%s2 + $0x468] sm:$0xf]
        %v630 = vld [vmem:[%s2 + $0x46c] sm:$0xf]
        %v631 = vld [vmem:[%s2 + $0x470] sm:$0xf]
        %v632 = vld [vmem:[%s2 + $0x474] sm:$0xf]
        %v633 = vld [vmem:[%s2 + $0x478] sm:$0xf]
        %v634 = vld [vmem:[%s2 + $0x47c] sm:$0xf]
        %v635 = vld [vmem:[%s2 + $0x480] sm:$0xf]
        %v636 = vld [vmem:[%s2 + $0x484] sm:$0xf]
        %v637 = vld [vmem:[%s2 + $0x488] sm:$0xf]
        %v638 = vld [vmem:[%s2 + $0x48c] sm:$0xf]
        %v639 = vld [vmem:[%s2 + $0x490] sm:$0xf]
        %v640 = vld [vmem:[%s2 + $0x494] sm:$0xf]
        %v641 = vld [vmem:[%s2 + $0x498] sm:$0xf]
        %v642 = vld [vmem:[%s2 + $0x49c] sm:$0xf]
        %v643 = vld [vmem:[%s2 + $0x4a0] sm:$0xf]
        %v644 = vld [vmem:[%s2 + $0x4a4] sm:$0xf]
        %v645 = vld [vmem:[%s2 + $0x4a8] sm:$0xf]
        %v646 = vld [vmem:[%s2 + $0x4ac] sm:$0xf]
        %v647 = vld [vmem:[%s2 + $0x4b0] sm:$0xf]
        %v648 = vld [vmem:[%s2 + $0x4b4] sm:$0xf]
        %v649 = vld [vmem:[%s2 + $0x4b8] sm:$0xf]
        %v650 = vld [vmem:[%s2 + $0x4bc] sm:$0xf]
        %v651 = vld [vmem:[%s2 + $0x4c0] sm:$0xf]
        %v652 = vld [vmem:[%s2 + $0x4c4] sm:$0xf]
        %v653 = vld [vmem:[%s2 + $0x4c8] sm:$0xf]
        %v654 = vld [vmem:[%s2 + $0x4cc] sm:$0xf]
        %v655 = vld [vmem:[%s2 + $0x4d0] sm:$0xf]
        %v656 = vld [vmem:[%s2 + $0x4d4] sm:$0xf]
        %v657 = vld [vmem:[%s2 + $0x4d8] sm:$0xf]
        %v658 = vld [vmem:[%s2 + $0x4dc] sm:$0xf]
        %v659 = vld [vmem:[%s2 + $0x4e0] sm:$0xf]
        %v660 = vld [vmem:[%s2 + $0x4e4] sm:$0xf]
        %v661 = vld [vmem:[%s2 + $0x4e8] sm:$0xf]
        %v662 = vld [vmem:[%s2 + $0x4ec] sm:$0xf]
        %v663 = vld [vmem:[%s2 + $0x4f0] sm:$0xf]
        %v664 = vld [vmem:[%s2 + $0x4f4] sm:$0xf]
        %v665 = vld [vmem:[%s2 + $0x4f8] sm:$0xf]
        %v666 = vld [vmem:[%s2 + $0x4fc] sm:$0xf]
        %v667 = vld [vmem:[%s2 + $0x500] sm:$0xf]
        %v668 = vld [vmem:[%s2 + $0x504] sm:$0xf]
        %v669 = vld [vmem:[%s2 + $0x508] sm:$0xf]
        %v670 = vld [vmem:[%s2 + $0x50c] sm:$0xf]
        %v671 = vld [vmem:[%s2 + $0x510] sm:$0xf]
        %v672 = vld [vmem:[%s2 + $0x514] sm:$0xf]
        %v673 = vld [vmem:[%s2 + $0x518] sm:$0xf]
        %v674 = vld [vmem:[%s2 + $0x51c] sm:$0xf]
        %v675 = vld [vmem:[%s2 + $0x520] sm:$0xf]
        %v676 = vld [vmem:[%s2 + $0x524] sm:$0xf]
        %v677 = vld [vmem:[%s2 + $0x528] sm:$0xf]
        %v678 = vld [vmem:[%s2 + $0x52c] sm:$0xf]
        %v679 = vld [vmem:[%s2 + $0x530] sm:$0xf]
        %v680 = vld [vmem:[%s2 + $0x534] sm:$0xf]
        %v681 = vld [vmem:[%s2 + $0x538] sm:$0xf]
        %v682 = vld [vmem:[%s2 + $0x53c] sm:$0xf]
        %v683 = vld [vmem:[%s2 + $0x540] sm:$0xf]
        %v684 = vld [vmem:[%s2 + $0x544] sm:$0xf]
        %v685 = vld [vmem:[%s2 + $0x548] sm:$0xf]
        %v686 = vld [vmem:[%s2 + $0x54c] sm:$0xf]
        %v687 = vld [vmem:[%s3] sm:$0xff]
        %v688 = vld [vmem:[%s3 + $0x8] sm:$0xff]
        %v689 = vld [vmem:[%s3 + $0x10] sm:$0xff]
        %v690 = vld [vmem:[%s3 + $0x18] sm:$0xff]
        %v691 = vld [vmem:[%s3 + $0x20] sm:$0xff]
        %v692 = vld [vmem:[%s3 + $0x28] sm:$0xff]
        %v693 = vld [vmem:[%s3 + $0x30] sm:$0xff]
        %v694 = vld [vmem:[%s3 + $0x38] sm:$0xff]
        %v695 = vld [vmem:[%s3 + $0x40] sm:$0xff]
        %v696 = vld [vmem:[%s3 + $0x48] sm:$0xff]
        %v697 = vld [vmem:[%s3 + $0x50] sm:$0xff]
        %v698 = vld [vmem:[%s3 + $0x58] sm:$0xff]
        %v699 = vld [vmem:[%s3 + $0x60] sm:$0xff]
        %v700 = vld [vmem:[%s3 + $0x68] sm:$0xff]
        %v701 = vld [vmem:[%s3 + $0x70] sm:$0xff]
        %v702 = vld [vmem:[%s3 + $0x78] sm:$0xff]
        %v703 = vld [vmem:[%s3 + $0x80] sm:$0xff]
        %v704 = vld [vmem:[%s3 + $0x88] sm:$0xff]
        %v705 = vld [vmem:[%s3 + $0x90] sm:$0xff]
        %v706 = vld [vmem:[%s3 + $0x98] sm:$0xff]
        %v707 = vld [vmem:[%s3 + $0xa0] sm:$0xff]
        %v708 = vld [vmem:[%s3 + $0xa8] sm:$0xff]
        %v709 = vld [vmem:[%s3 + $0xb0] sm:$0xff]
        %v710 = vld [vmem:[%s3 + $0xb8] sm:$0xff]
        %v711 = vld [vmem:[%s3 + $0xc0] sm:$0xff]
        %v712 = vld [vmem:[%s3 + $0xc8] sm:$0xff]
        %v713 = vld [vmem:[%s3 + $0xd0] sm:$0xff]
        %v714 = vld [vmem:[%s3 + $0xd8] sm:$0xff]
        %v715 = vld [vmem:[%s3 + $0xe0] sm:$0xff]
        %v716 = vld [vmem:[%s3 + $0xe8] sm:$0xff]
        %v717 = vld [vmem:[%s3 + $0xf0] sm:$0xff]
        %v718 = vld [vmem:[%s3 + $0xf8] sm:$0xff]
        %v719 = vld [vmem:[%s3 + $0x100] sm:$0xff]
        %v720 = vld [vmem:[%s3 + $0x108] sm:$0xff]
        %v721 = vld [vmem:[%s3 + $0x110] sm:$0xff]
        %v722 = vld [vmem:[%s3 + $0x118] sm:$0xff]
        %v723 = vld [vmem:[%s3 + $0x120] sm:$0xff]
        %v724 = vld [vmem:[%s3 + $0x128] sm:$0xff]
        %v725 = vld [vmem:[%s3 + $0x130] sm:$0xff]
        %v726 = vld [vmem:[%s3 + $0x138] sm:$0xff]
        %v727 = vld [vmem:[%s3 + $0x140] sm:$0xff]
        %v728 = vld [vmem:[%s3 + $0x148] sm:$0xff]
        %v729 = vld [vmem:[%s3 + $0x150] sm:$0xff]
        %v730 = vld [vmem:[%s3 + $0x158] sm:$0xff]
        %v731 = vld [vmem:[%s3 + $0x160] sm:$0xff]
        %v732 = vld [vmem:[%s3 + $0x168] sm:$0xff]
        %v733 = vld [vmem:[%s3 + $0x170] sm:$0xff]
        %v734 = vld [vmem:[%s3 + $0x178] sm:$0xff]
        %v735 = vld [vmem:[%s3 + $0x180] sm:$0xff]
        %v736 = vld [vmem:[%s3 + $0x188] sm:$0xff]
        %v737 = vld [vmem:[%s3 + $0x190] sm:$0xff]
        %v738 = vld [vmem:[%s3 + $0x198] sm:$0xff]
        %v739 = vld [vmem:[%s3 + $0x1a0] sm:$0xff]
        %v740 = vld [vmem:[%s3 + $0x1a8] sm:$0xff]
        %v741 = vld [vmem:[%s3 + $0x1b0] sm:$0xff]
        %v742 = vld [vmem:[%s3 + $0x1b8] sm:$0xff]
        %v743 = vld [vmem:[%s3 + $0x1c0] sm:$0xff]
        %v744 = vld [vmem:[%s3 + $0x1c8] sm:$0xff]
        %v745 = vld [vmem:[%s3 + $0x1d0] sm:$0xff]
        %v746 = vld [vmem:[%s3 + $0x1d8] sm:$0xff]
        %v747 = vld [vmem:[%s3 + $0x1e0] sm:$0xff]
        %v748 = vld [vmem:[%s3 + $0x1e8] sm:$0xff]
        %v749 = vld [vmem:[%s3 + $0x1f0] sm:$0xff]
        %v750 = vld [vmem:[%s3 + $0x1f8] sm:$0xff]
        %v751 = vld [vmem:[%s3 + $0x200] sm:$0xff]
        %v752 = vld [vmem:[%s3 + $0x208] sm:$0xff]
        %v753 = vld [vmem:[%s3 + $0x210] sm:$0xff]
        %v754 = vld [vmem:[%s3 + $0x218] sm:$0xff]
        %v755 = vld [vmem:[%s3 + $0x220] sm:$0xff]
        %v756 = vld [vmem:[%s3 + $0x228] sm:$0xff]
        %v757 = vld [vmem:[%s3 + $0x230] sm:$0xff]
        %v758 = vld [vmem:[%s3 + $0x238] sm:$0xff]
        %v759 = vld [vmem:[%s3 + $0x240] sm:$0xff]
        %v760 = vld [vmem:[%s3 + $0x248] sm:$0xff]
        %v761 = vld [vmem:[%s3 + $0x250] sm:$0xff]
        %v762 = vld [vmem:[%s3 + $0x258] sm:$0xff]
        %v763 = vld [vmem:[%s3 + $0x260] sm:$0xff]
        %v764 = vld [vmem:[%s3 + $0x268] sm:$0xff]
        %v765 = vld [vmem:[%s3 + $0x270] sm:$0xff]
        %v766 = vld [vmem:[%s3 + $0x278] sm:$0xff]
        %v767 = vld [vmem:[%s3 + $0x280] sm:$0xff]
        %v768 = vld [vmem:[%s3 + $0x288] sm:$0xff]
        %v769 = vld [vmem:[%s3 + $0x290] sm:$0xff]
        %v770 = vld [vmem:[%s3 + $0x298] sm:$0xff]
        %v771 = vld [vmem:[%s3 + $0x2a0] sm:$0xff]
        %v772 = vld [vmem:[%s3 + $0x2a8] sm:$0xff]
        %v773 = vld [vmem:[%s3 + $0x2b0] sm:$0xff]
        %v774 = vld [vmem:[%s3 + $0x2b8] sm:$0xff]
        %v775 = vld [vmem:[%s3 + $0x2c0] sm:$0xff]
        %v776 = vld [vmem:[%s3 + $0x2c8] sm:$0xff]
        %v777 = vld [vmem:[%s3 + $0x2d0] sm:$0xff]
        %v778 = vld [vmem:[%s3 + $0x2d8] sm:$0xff]
        %v779 = vld [vmem:[%s3 + $0x2e0] sm:$0xff]
        %v780 = vld [vmem:[%s3 + $0x2e8] sm:$0xff]
        %v781 = vld [vmem:[%s3 + $0x2f0] sm:$0xff]
        %v782 = vld [vmem:[%s3 + $0x2f8] sm:$0xff]
        %v783 = vld [vmem:[%s3 + $0x300] sm:$0xff]
        %v784 = vld [vmem:[%s3 + $0x308] sm:$0xff]
        %v785 = vld [vmem:[%s3 + $0x310] sm:$0xff]
        %v786 = vld [vmem:[%s3 + $0x318] sm:$0xff]
        %v787 = vld [vmem:[%s3 + $0x320] sm:$0xff]
        %v788 = vld [vmem:[%s3 + $0x328] sm:$0xff]
        %v789 = vld [vmem:[%s3 + $0x330] sm:$0xff]
        %v790 = vld [vmem:[%s3 + $0x338] sm:$0xff]
        %v791 = vld [vmem:[%s3 + $0x340] sm:$0xff]
        %v792 = vld [vmem:[%s3 + $0x348] sm:$0xff]
        %v793 = vld [vmem:[%s3 + $0x350] sm:$0xff]
        %v794 = vld [vmem:[%s3 + $0x358] sm:$0xff]
        %v795 = vld [vmem:[%s3 + $0x360] sm:$0xff]
        %v796 = vld [vmem:[%s3 + $0x368] sm:$0xff]
        %v797 = vld [vmem:[%s3 + $0x370] sm:$0xff]
        %v798 = vld [vmem:[%s3 + $0x378] sm:$0xff]
        %v799 = vld [vmem:[%s3 + $0x380] sm:$0xff]
        %v800 = vld [vmem:[%s3 + $0x388] sm:$0xff]
        %v801 = vld [vmem:[%s3 + $0x390] sm:$0xff]
        %v802 = vld [vmem:[%s3 + $0x398] sm:$0xff]
        %v803 = vld [vmem:[%s3 + $0x3a0] sm:$0xff]
        %v804 = vld [vmem:[%s3 + $0x3a8] sm:$0xff]
        %v805 = vld [vmem:[%s3 + $0x3b0] sm:$0xff]
        %v806 = vld [vmem:[%s3 + $0x3b8] sm:$0xff]
        %v807 = vld [vmem:[%s3 + $0x3c0] sm:$0xff]
        %v808 = vld [vmem:[%s3 + $0x3c8] sm:$0xff]
        %v809 = vld [vmem:[%s3 + $0x3d0] sm:$0xff]
        %v810 = vld [vmem:[%s3 + $0x3d8] sm:$0xff]
        %v811 = vld [vmem:[%s3 + $0x3e0] sm:$0xff]
        %v812 = vld [vmem:[%s3 + $0x3e8] sm:$0xff]
        %v813 = vld [vmem:[%s3 + $0x3f0] sm:$0xff]
        %v814 = vld [vmem:[%s3 + $0x3f8] sm:$0xff]
        %v815 = vld [vmem:[%s3 + $0x400] sm:$0xff]
        %v816 = vld [vmem:[%s3 + $0x408] sm:$0xff]
        %v817 = vld [vmem:[%s3 + $0x410] sm:$0xff]
        %v818 = vld [vmem:[%s3 + $0x418] sm:$0xff]
        %v819 = vld [vmem:[%s3 + $0x420] sm:$0xff]
        %v820 = vld [vmem:[%s3 + $0x428] sm:$0xff]
        %v821 = vld [vmem:[%s3 + $0x430] sm:$0xff]
        %v822 = vld [vmem:[%s3 + $0x438] sm:$0xff]
        %v823 = vld [vmem:[%s3 + $0x440] sm:$0xff]
        %v824 = vld [vmem:[%s3 + $0x448] sm:$0xff]
        %v825 = vld [vmem:[%s3 + $0x450] sm:$0xff]
        %v826 = vld [vmem:[%s3 + $0x458] sm:$0xff]
        %v827 = vld [vmem:[%s3 + $0x460] sm:$0xff]
        %v828 = vld [vmem:[%s3 + $0x468] sm:$0xff]
        %v829 = vld [vmem:[%s3 + $0x470] sm:$0xff]
        %v830 = vld [vmem:[%s3 + $0x478] sm:$0xff]
        %v831 = vld [vmem:[%s3 + $0x480] sm:$0xff]
        %v832 = vld [vmem:[%s3 + $0x488] sm:$0xff]
        %v833 = vld [vmem:[%s3 + $0x490] sm:$0xff]
        %v834 = vld [vmem:[%s3 + $0x498] sm:$0xff]
        %v835 = vld [vmem:[%s3 + $0x4a0] sm:$0xff]
        %v836 = vld [vmem:[%s3 + $0x4a8] sm:$0xff]
        %v837 = vld [vmem:[%s3 + $0x4b0] sm:$0xff]
        %v838 = vld [vmem:[%s3 + $0x4b8] sm:$0xff]
        %v839 = vld [vmem:[%s3 + $0x4c0] sm:$0xff]
        %v840 = vld [vmem:[%s3 + $0x4c8] sm:$0xff]
        %v841 = vld [vmem:[%s3 + $0x4d0] sm:$0xff]
        %v842 = vld [vmem:[%s3 + $0x4d8] sm:$0xff]
        %v843 = vld [vmem:[%s3 + $0x4e0] sm:$0xff]
        %v844 = vld [vmem:[%s3 + $0x4e8] sm:$0xff]
        %v845 = vld [vmem:[%s3 + $0x4f0] sm:$0xff]
        %v846 = vld [vmem:[%s3 + $0x4f8] sm:$0xff]
        %v847 = vld [vmem:[%s3 + $0x500] sm:$0xff]
        %v848 = vld [vmem:[%s3 + $0x508] sm:$0xff]
        %v849 = vld [vmem:[%s3 + $0x510] sm:$0xff]
        %v850 = vld [vmem:[%s3 + $0x518] sm:$0xff]
        %v851 = vld [vmem:[%s3 + $0x520] sm:$0xff]
        %v852 = vld [vmem:[%s3 + $0x528] sm:$0xff]
        %v853 = vld [vmem:[%s3 + $0x530] sm:$0xff]
        %v854 = vld [vmem:[%s3 + $0x538] sm:$0xff]
        %v855 = vld [vmem:[%s3 + $0x540] sm:$0xff]
        %v856 = vld [vmem:[%s3 + $0x548] sm:$0xff]
        %v857 = vld [vmem:[%s3 + $0x550] sm:$0xff]
        %v858 = vld [vmem:[%s3 + $0x558] sm:$0xff]
        %v859 = vld [vmem:[%s3 + $0x560] sm:$0xff]
        %v860 = vld [vmem:[%s3 + $0x568] sm:$0xff]
        %v861 = vld [vmem:[%s3 + $0x570] sm:$0xff]
        %v862 = vld [vmem:[%s3 + $0x578] sm:$0xff]
        %v863 = vld [vmem:[%s3 + $0x580] sm:$0xff]
        %v864 = vld [vmem:[%s3 + $0x588] sm:$0xff]
        %v865 = vld [vmem:[%s3 + $0x590] sm:$0xff]
        %v866 = vld [vmem:[%s3 + $0x598] sm:$0xff]
        %v867 = vld [vmem:[%s3 + $0x5a0] sm:$0xff]
        %v868 = vld [vmem:[%s3 + $0x5a8] sm:$0xff]
        %v869 = vld [vmem:[%s3 + $0x5b0] sm:$0xff]
        %v870 = vld [vmem:[%s3 + $0x5b8] sm:$0xff]
        %v871 = vld [vmem:[%s3 + $0x5c0] sm:$0xff]
        %v872 = vld [vmem:[%s3 + $0x5c8] sm:$0xff]
        %v873 = vld [vmem:[%s3 + $0x5d0] sm:$0xff]
        %v874 = vld [vmem:[%s3 + $0x5d8] sm:$0xff]
        %v875 = vld [vmem:[%s3 + $0x5e0] sm:$0xff]
        %v876 = vld [vmem:[%s3 + $0x5e8] sm:$0xff]
        %v877 = vld [vmem:[%s3 + $0x5f0] sm:$0xff]
        %v878 = vld [vmem:[%s3 + $0x5f8] sm:$0xff]
        %v879 = vld [vmem:[%s3 + $0x600] sm:$0xff]
        %v880 = vld [vmem:[%s3 + $0x608] sm:$0xff]
        %v881 = vld [vmem:[%s3 + $0x610] sm:$0xff]
        %v882 = vld [vmem:[%s3 + $0x618] sm:$0xff]
        %v883 = vld [vmem:[%s3 + $0x620] sm:$0xff]
        %v884 = vld [vmem:[%s3 + $0x628] sm:$0xff]
        %v885 = vld [vmem:[%s3 + $0x630] sm:$0xff]
        %v886 = vld [vmem:[%s3 + $0x638] sm:$0xff]
        %v887 = vld [vmem:[%s3 + $0x640] sm:$0xff]
        %v888 = vld [vmem:[%s3 + $0x648] sm:$0xff]
        %v889 = vld [vmem:[%s3 + $0x650] sm:$0xff]
        %v890 = vld [vmem:[%s3 + $0x658] sm:$0xff]
        %v891 = vld [vmem:[%s3 + $0x660] sm:$0xff]
        %v892 = vld [vmem:[%s3 + $0x668] sm:$0xff]
        %v893 = vld [vmem:[%s3 + $0x670] sm:$0xff]
        %v894 = vld [vmem:[%s3 + $0x678] sm:$0xff]
        %v895 = vld [vmem:[%s3 + $0x680] sm:$0xff]
        %v896 = vld [vmem:[%s3 + $0x688] sm:$0xff]
        %v897 = vld [vmem:[%s3 + $0x690] sm:$0xff]
        %v898 = vld [vmem:[%s3 + $0x698] sm:$0xff]
        %v899 = vld [vmem:[%s3 + $0x6a0] sm:$0xff]
        %v900 = vld [vmem:[%s3 + $0x6a8] sm:$0xff]
        %v901 = vld [vmem:[%s3 + $0x6b0] sm:$0xff]
        %v902 = vld [vmem:[%s3 + $0x6b8] sm:$0xff]
        %v903 = vld [vmem:[%s3 + $0x6c0] sm:$0xff]
        %v904 = vld [vmem:[%s3 + $0x6c8] sm:$0xff]
        %v905 = vld [vmem:[%s3 + $0x6d0] sm:$0xff]
        %v906 = vld [vmem:[%s3 + $0x6d8] sm:$0xff]
        %v907 = vld [vmem:[%s3 + $0x6e0] sm:$0xff]
        %v908 = vld [vmem:[%s3 + $0x6e8] sm:$0xff]
        %v909 = vld [vmem:[%s3 + $0x6f0] sm:$0xff]
        %v910 = vld [vmem:[%s3 + $0x6f8] sm:$0xff]
        %v911 = vld [vmem:[%s3 + $0x700] sm:$0xff]
        %v912 = vld [vmem:[%s3 + $0x708] sm:$0xff]
        %v913 = vld [vmem:[%s3 + $0x710] sm:$0xff]
        %v914 = vld [vmem:[%s3 + $0x718] sm:$0xff]
        %v915 = vld [vmem:[%s3 + $0x720] sm:$0xff]
        %v916 = vld [vmem:[%s3 + $0x728] sm:$0xff]
        %v917 = vld [vmem:[%s3 + $0x730] sm:$0xff]
        %v918 = vld [vmem:[%s3 + $0x738] sm:$0xff]
        %v919 = vld [vmem:[%s3 + $0x740] sm:$0xff]
        %v920 = vld [vmem:[%s3 + $0x748] sm:$0xff]
        %v921 = vld [vmem:[%s3 + $0x750] sm:$0xff]
        %v922 = vld [vmem:[%s3 + $0x758] sm:$0xff]
        %v923 = vld [vmem:[%s3 + $0x760] sm:$0xff]
        %v924 = vld [vmem:[%s3 + $0x768] sm:$0xff]
        %v925 = vld [vmem:[%s3 + $0x770] sm:$0xff]
        %v926 = vld [vmem:[%s3 + $0x778] sm:$0xff]
        %v927 = vld [vmem:[%s3 + $0x780] sm:$0xff]
        %v928 = vld [vmem:[%s3 + $0x788] sm:$0xff]
        %v929 = vld [vmem:[%s3 + $0x790] sm:$0xff]
        %v930 = vld [vmem:[%s3 + $0x798] sm:$0xff]
        %v931 = vld [vmem:[%s3 + $0x7a0] sm:$0xff]
        %v932 = vld [vmem:[%s3 + $0x7a8] sm:$0xff]
        %v933 = vld [vmem:[%s3 + $0x7b0] sm:$0xff]
        %v934 = vld [vmem:[%s3 + $0x7b8] sm:$0xff]
        %v935 = vld [vmem:[%s3 + $0x7c0] sm:$0xff]
        %v936 = vld [vmem:[%s3 + $0x7c8] sm:$0xff]
        %v937 = vld [vmem:[%s3 + $0x7d0] sm:$0xff]
        %v938 = vld [vmem:[%s3 + $0x7d8] sm:$0xff]
        %v939 = vld [vmem:[%s3 + $0x7e0] sm:$0xff]
        %v940 = vld [vmem:[%s3 + $0x7e8] sm:$0xff]
        %v941 = vld [vmem:[%s3 + $0x7f0] sm:$0xff]
        %v942 = vld [vmem:[%s3 + $0x7f8] sm:$0xff]
        %v943 = vld [vmem:[%s3 + $0x800] sm:$0xff]
        %v944 = vld [vmem:[%s3 + $0x808] sm:$0xff]
        %v945 = vld [vmem:[%s3 + $0x810] sm:$0xff]
        %v946 = vld [vmem:[%s3 + $0x818] sm:$0xff]
        %v947 = vld [vmem:[%s3 + $0x820] sm:$0xff]
        %v948 = vld [vmem:[%s3 + $0x828] sm:$0xff]
        %v949 = vld [vmem:[%s3 + $0x830] sm:$0xff]
        %v950 = vld [vmem:[%s3 + $0x838] sm:$0xff]
        %v951 = vld [vmem:[%s3 + $0x840] sm:$0xff]
        %v952 = vld [vmem:[%s3 + $0x848] sm:$0xff]
        %v953 = vld [vmem:[%s3 + $0x850] sm:$0xff]
        %v954 = vld [vmem:[%s3 + $0x858] sm:$0xff]
        %v955 = vld [vmem:[%s3 + $0x860] sm:$0xff]
        %v956 = vld [vmem:[%s3 + $0x868] sm:$0xff]
        %v957 = vld [vmem:[%s3 + $0x870] sm:$0xff]
        %v958 = vld [vmem:[%s3 + $0x878] sm:$0xff]
        %v959 = vld [vmem:[%s3 + $0x880] sm:$0xff]
        %v960 = vld [vmem:[%s3 + $0x888] sm:$0xff]
        %v961 = vld [vmem:[%s3 + $0x890] sm:$0xff]
        %v962 = vld [vmem:[%s3 + $0x898] sm:$0xff]
        %v963 = vld [vmem:[%s3 + $0x8a0] sm:$0xff]
        %v964 = vld [vmem:[%s3 + $0x8a8] sm:$0xff]
        %v965 = vld [vmem:[%s3 + $0x8b0] sm:$0xff]
        %v966 = vld [vmem:[%s3 + $0x8b8] sm:$0xff]
        %v967 = vld [vmem:[%s3 + $0x8c0] sm:$0xff]
        %v968 = vld [vmem:[%s3 + $0x8c8] sm:$0xff]
        %v969 = vld [vmem:[%s3 + $0x8d0] sm:$0xff]
        %v970 = vld [vmem:[%s3 + $0x8d8] sm:$0xff]
        %v971 = vld [vmem:[%s3 + $0x8e0] sm:$0xff]
        %v972 = vld [vmem:[%s3 + $0x8e8] sm:$0xff]
        %v973 = vld [vmem:[%s3 + $0x8f0] sm:$0xff]
        %v974 = vld [vmem:[%s3 + $0x8f8] sm:$0xff]
        %v975 = vld [vmem:[%s3 + $0x900] sm:$0xff]
        %v976 = vld [vmem:[%s3 + $0x908] sm:$0xff]
        %v977 = vld [vmem:[%s3 + $0x910] sm:$0xff]
        %v978 = vld [vmem:[%s3 + $0x918] sm:$0xff]
        %v979 = vld [vmem:[%s3 + $0x920] sm:$0xff]
        %v980 = vld [vmem:[%s3 + $0x928] sm:$0xff]
        %v981 = vld [vmem:[%s3 + $0x930] sm:$0xff]
        %v982 = vld [vmem:[%s3 + $0x938] sm:$0xff]
        %v983 = vld [vmem:[%s3 + $0x940] sm:$0xff]
        %v984 = vld [vmem:[%s3 + $0x948] sm:$0xff]
        %v985 = vld [vmem:[%s3 + $0x950] sm:$0xff]
        %v986 = vld [vmem:[%s3 + $0x958] sm:$0xff]
        %v987 = vld [vmem:[%s3 + $0x960] sm:$0xff]
        %v988 = vld [vmem:[%s3 + $0x968] sm:$0xff]
        %v989 = vld [vmem:[%s3 + $0x970] sm:$0xff]
        %v990 = vld [vmem:[%s3 + $0x978] sm:$0xff]
        %v991 = vld [vmem:[%s3 + $0x980] sm:$0xff]
        %v992 = vld [vmem:[%s3 + $0x988] sm:$0xff]
        %v993 = vld [vmem:[%s3 + $0x990] sm:$0xff]
        %v994 = vld [vmem:[%s3 + $0x998] sm:$0xff]
        %v995 = vld [vmem:[%s3 + $0x9a0] sm:$0xff]
        %v996 = vld [vmem:[%s3 + $0x9a8] sm:$0xff]
        %v997 = vld [vmem:[%s3 + $0x9b0] sm:$0xff]
        %v998 = vld [vmem:[%s3 + $0x9b8] sm:$0xff]
        %v999 = vld [vmem:[%s3 + $0x9c0] sm:$0xff]
        %v1000 = vld [vmem:[%s3 + $0x9c8] sm:$0xff]
        %v1001 = vld [vmem:[%s3 + $0x9d0] sm:$0xff]
        %v1002 = vld [vmem:[%s3 + $0x9d8] sm:$0xff]
        %v1003 = vld [vmem:[%s3 + $0x9e0] sm:$0xff]
        %v1004 = vld [vmem:[%s3 + $0x9e8] sm:$0xff]
        %v1005 = vld [vmem:[%s3 + $0x9f0] sm:$0xff]
        %v1006 = vld [vmem:[%s3 + $0x9f8] sm:$0xff]
        %v1007 = vld [vmem:[%s3 + $0xa00] sm:$0xff]
        %v1008 = vld [vmem:[%s3 + $0xa08] sm:$0xff]
        %v1009 = vld [vmem:[%s3 + $0xa10] sm:$0xff]
        %v1010 = vld [vmem:[%s3 + $0xa18] sm:$0xff]
        %v1011 = vld [vmem:[%s3 + $0xa20] sm:$0xff]
        %v1012 = vld [vmem:[%s3 + $0xa28] sm:$0xff]
        %v1013 = vld [vmem:[%s3 + $0xa30] sm:$0xff]
        %v1014 = vld [vmem:[%s3 + $0xa38] sm:$0xff]
        %v1015 = vld [vmem:[%s3 + $0xa40] sm:$0xff]
        %v1016 = vld [vmem:[%s3 + $0xa48] sm:$0xff]
        %v1017 = vld [vmem:[%s3 + $0xa50] sm:$0xff]
        %v1018 = vld [vmem:[%s3 + $0xa58] sm:$0xff]
        %v1019 = vld [vmem:[%s3 + $0xa60] sm:$0xff]
        %v1020 = vld [vmem:[%s3 + $0xa68] sm:$0xff]
        %v1021 = vld [vmem:[%s3 + $0xa70] sm:$0xff]
        %v1022 = vld [vmem:[%s3 + $0xa78] sm:$0xff]
        %v1023 = vld [vmem:[%s3 + $0xa80] sm:$0xff]
        %v1024 = vld [vmem:[%s3 + $0xa88] sm:$0xff]
        %v1025 = vld [vmem:[%s3 + $0xa90] sm:$0xff]
        %v1026 = vld [vmem:[%s3 + $0xa98] sm:$0xff]
        %1028 = vset.pattern.permute.xlu0 0
        %1029 = vperm.xlu0 %1028, %v687
        %v1030 = vpop.permute.xlu0 %1029
        %1033 = vset.pattern.permute.xlu0 0
        %1034 = vperm.xlu0 %1033, %v688
        %v1035 = vpop.permute.xlu0 %1034
        %1038 = vset.pattern.permute.xlu0 0
        %1039 = vperm.xlu0 %1038, %v689
        %v1040 = vpop.permute.xlu0 %1039
        %1043 = vset.pattern.permute.xlu0 0
        %1044 = vperm.xlu0 %1043, %v690
        %v1045 = vpop.permute.xlu0 %1044
        %1048 = vset.pattern.permute.xlu0 0
        %1049 = vperm.xlu0 %1048, %v691
        %v1050 = vpop.permute.xlu0 %1049
        %1053 = vset.pattern.permute.xlu0 0
        %1054 = vperm.xlu0 %1053, %v692
        %v1055 = vpop.permute.xlu0 %1054
        %1058 = vset.pattern.permute.xlu0 0
        %1059 = vperm.xlu0 %1058, %v693
        %v1060 = vpop.permute.xlu0 %1059
        %1063 = vset.pattern.permute.xlu0 0
        %1064 = vperm.xlu0 %1063, %v694
        %v1065 = vpop.permute.xlu0 %1064
        %1068 = vset.pattern.permute.xlu0 0
        %1069 = vperm.xlu0 %1068, %v695
        %v1070 = vpop.permute.xlu0 %1069
        %1073 = vset.pattern.permute.xlu0 0
        %1074 = vperm.xlu0 %1073, %v696
        %v1075 = vpop.permute.xlu0 %1074
        %1078 = vset.pattern.permute.xlu0 0
        %1079 = vperm.xlu0 %1078, %v697
        %v1080 = vpop.permute.xlu0 %1079
        %1083 = vset.pattern.permute.xlu0 0
        %1084 = vperm.xlu0 %1083, %v698
        %v1085 = vpop.permute.xlu0 %1084
        %1088 = vset.pattern.permute.xlu0 0
        %1089 = vperm.xlu0 %1088, %v699
        %v1090 = vpop.permute.xlu0 %1089
        %1093 = vset.pattern.permute.xlu0 0
        %1094 = vperm.xlu0 %1093, %v700
        %v1095 = vpop.permute.xlu0 %1094
        %1098 = vset.pattern.permute.xlu0 0
        %1099 = vperm.xlu0 %1098, %v701
        %v1100 = vpop.permute.xlu0 %1099
        %1103 = vset.pattern.permute.xlu0 0
        %1104 = vperm.xlu0 %1103, %v702
        %v1105 = vpop.permute.xlu0 %1104
        %1108 = vset.pattern.permute.xlu0 0
        %1109 = vperm.xlu0 %1108, %v703
        %v1110 = vpop.permute.xlu0 %1109
        %1113 = vset.pattern.permute.xlu0 0
        %1114 = vperm.xlu0 %1113, %v704
        %v1115 = vpop.permute.xlu0 %1114
        %1118 = vset.pattern.permute.xlu0 0
        %1119 = vperm.xlu0 %1118, %v705
        %v1120 = vpop.permute.xlu0 %1119
        %1123 = vset.pattern.permute.xlu0 0
        %1124 = vperm.xlu0 %1123, %v706
        %v1125 = vpop.permute.xlu0 %1124
        %1128 = vset.pattern.permute.xlu0 0
        %1129 = vperm.xlu0 %1128, %v707
        %v1130 = vpop.permute.xlu0 %1129
        %1133 = vset.pattern.permute.xlu0 0
        %1134 = vperm.xlu0 %1133, %v708
        %v1135 = vpop.permute.xlu0 %1134
        %1138 = vset.pattern.permute.xlu0 0
        %1139 = vperm.xlu0 %1138, %v709
        %v1140 = vpop.permute.xlu0 %1139
        %1143 = vset.pattern.permute.xlu0 0
        %1144 = vperm.xlu0 %1143, %v710
        %v1145 = vpop.permute.xlu0 %1144
        %1148 = vset.pattern.permute.xlu0 0
        %1149 = vperm.xlu0 %1148, %v711
        %v1150 = vpop.permute.xlu0 %1149
        %1153 = vset.pattern.permute.xlu0 0
        %1154 = vperm.xlu0 %1153, %v712
        %v1155 = vpop.permute.xlu0 %1154
        %1158 = vset.pattern.permute.xlu0 0
        %1159 = vperm.xlu0 %1158, %v713
        %v1160 = vpop.permute.xlu0 %1159
        %1163 = vset.pattern.permute.xlu0 0
        %1164 = vperm.xlu0 %1163, %v714
        %v1165 = vpop.permute.xlu0 %1164
        %1168 = vset.pattern.permute.xlu0 0
        %1169 = vperm.xlu0 %1168, %v715
        %v1170 = vpop.permute.xlu0 %1169
        %1173 = vset.pattern.permute.xlu0 0
        %1174 = vperm.xlu0 %1173, %v716
        %v1175 = vpop.permute.xlu0 %1174
        %1178 = vset.pattern.permute.xlu0 0
        %1179 = vperm.xlu0 %1178, %v717
        %v1180 = vpop.permute.xlu0 %1179
        %1183 = vset.pattern.permute.xlu0 0
        %1184 = vperm.xlu0 %1183, %v718
        %v1185 = vpop.permute.xlu0 %1184
        %1188 = vset.pattern.permute.xlu0 0
        %1189 = vperm.xlu0 %1188, %v719
        %v1190 = vpop.permute.xlu0 %1189
        %1193 = vset.pattern.permute.xlu0 0
        %1194 = vperm.xlu0 %1193, %v720
        %v1195 = vpop.permute.xlu0 %1194
        %1198 = vset.pattern.permute.xlu0 0
        %1199 = vperm.xlu0 %1198, %v721
        %v1200 = vpop.permute.xlu0 %1199
        %1203 = vset.pattern.permute.xlu0 0
        %1204 = vperm.xlu0 %1203, %v722
        %v1205 = vpop.permute.xlu0 %1204
        %1208 = vset.pattern.permute.xlu0 0
        %1209 = vperm.xlu0 %1208, %v723
        %v1210 = vpop.permute.xlu0 %1209
        %1213 = vset.pattern.permute.xlu0 0
        %1214 = vperm.xlu0 %1213, %v724
        %v1215 = vpop.permute.xlu0 %1214
        %1218 = vset.pattern.permute.xlu0 0
        %1219 = vperm.xlu0 %1218, %v725
        %v1220 = vpop.permute.xlu0 %1219
        %1223 = vset.pattern.permute.xlu0 0
        %1224 = vperm.xlu0 %1223, %v726
        %v1225 = vpop.permute.xlu0 %1224
        %1228 = vset.pattern.permute.xlu0 0
        %1229 = vperm.xlu0 %1228, %v727
        %v1230 = vpop.permute.xlu0 %1229
        %1233 = vset.pattern.permute.xlu0 0
        %1234 = vperm.xlu0 %1233, %v728
        %v1235 = vpop.permute.xlu0 %1234
        %1238 = vset.pattern.permute.xlu0 0
        %1239 = vperm.xlu0 %1238, %v729
        %v1240 = vpop.permute.xlu0 %1239
        %1243 = vset.pattern.permute.xlu0 0
        %1244 = vperm.xlu0 %1243, %v730
        %v1245 = vpop.permute.xlu0 %1244
        %1248 = vset.pattern.permute.xlu0 0
        %1249 = vperm.xlu0 %1248, %v731
        %v1250 = vpop.permute.xlu0 %1249
        %1253 = vset.pattern.permute.xlu0 0
        %1254 = vperm.xlu0 %1253, %v732
        %v1255 = vpop.permute.xlu0 %1254
        %1258 = vset.pattern.permute.xlu0 0
        %1259 = vperm.xlu0 %1258, %v733
        %v1260 = vpop.permute.xlu0 %1259
        %1263 = vset.pattern.permute.xlu0 0
        %1264 = vperm.xlu0 %1263, %v734
        %v1265 = vpop.permute.xlu0 %1264
        %1268 = vset.pattern.permute.xlu0 0
        %1269 = vperm.xlu0 %1268, %v735
        %v1270 = vpop.permute.xlu0 %1269
        %1273 = vset.pattern.permute.xlu0 0
        %1274 = vperm.xlu0 %1273, %v736
        %v1275 = vpop.permute.xlu0 %1274
        %1278 = vset.pattern.permute.xlu0 0
        %1279 = vperm.xlu0 %1278, %v737
        %v1280 = vpop.permute.xlu0 %1279
        %1283 = vset.pattern.permute.xlu0 0
        %1284 = vperm.xlu0 %1283, %v738
        %v1285 = vpop.permute.xlu0 %1284
        %1288 = vset.pattern.permute.xlu0 0
        %1289 = vperm.xlu0 %1288, %v739
        %v1290 = vpop.permute.xlu0 %1289
        %1293 = vset.pattern.permute.xlu0 0
        %1294 = vperm.xlu0 %1293, %v740
        %v1295 = vpop.permute.xlu0 %1294
        %1298 = vset.pattern.permute.xlu0 0
        %1299 = vperm.xlu0 %1298, %v741
        %v1300 = vpop.permute.xlu0 %1299
        %1303 = vset.pattern.permute.xlu0 0
        %1304 = vperm.xlu0 %1303, %v742
        %v1305 = vpop.permute.xlu0 %1304
        %1308 = vset.pattern.permute.xlu0 0
        %1309 = vperm.xlu0 %1308, %v743
        %v1310 = vpop.permute.xlu0 %1309
        %1313 = vset.pattern.permute.xlu0 0
        %1314 = vperm.xlu0 %1313, %v744
        %v1315 = vpop.permute.xlu0 %1314
        %1318 = vset.pattern.permute.xlu0 0
        %1319 = vperm.xlu0 %1318, %v745
        %v1320 = vpop.permute.xlu0 %1319
        %1323 = vset.pattern.permute.xlu0 0
        %1324 = vperm.xlu0 %1323, %v746
        %v1325 = vpop.permute.xlu0 %1324
        %1328 = vset.pattern.permute.xlu0 0
        %1329 = vperm.xlu0 %1328, %v747
        %v1330 = vpop.permute.xlu0 %1329
        %1333 = vset.pattern.permute.xlu0 0
        %1334 = vperm.xlu0 %1333, %v748
        %v1335 = vpop.permute.xlu0 %1334
        %1338 = vset.pattern.permute.xlu0 0
        %1339 = vperm.xlu0 %1338, %v749
        %v1340 = vpop.permute.xlu0 %1339
        %1343 = vset.pattern.permute.xlu0 0
        %1344 = vperm.xlu0 %1343, %v750
        %v1345 = vpop.permute.xlu0 %1344
        %1348 = vset.pattern.permute.xlu0 0
        %1349 = vperm.xlu0 %1348, %v751
        %v1350 = vpop.permute.xlu0 %1349
        %1353 = vset.pattern.permute.xlu0 0
        %1354 = vperm.xlu0 %1353, %v752
        %v1355 = vpop.permute.xlu0 %1354
        %1358 = vset.pattern.permute.xlu0 0
        %1359 = vperm.xlu0 %1358, %v753
        %v1360 = vpop.permute.xlu0 %1359
        %1363 = vset.pattern.permute.xlu0 0
        %1364 = vperm.xlu0 %1363, %v754
        %v1365 = vpop.permute.xlu0 %1364
        %1368 = vset.pattern.permute.xlu0 0
        %1369 = vperm.xlu0 %1368, %v755
        %v1370 = vpop.permute.xlu0 %1369
        %1373 = vset.pattern.permute.xlu0 0
        %1374 = vperm.xlu0 %1373, %v756
        %v1375 = vpop.permute.xlu0 %1374
        %1378 = vset.pattern.permute.xlu0 0
        %1379 = vperm.xlu0 %1378, %v757
        %v1380 = vpop.permute.xlu0 %1379
        %1383 = vset.pattern.permute.xlu0 0
        %1384 = vperm.xlu0 %1383, %v758
        %v1385 = vpop.permute.xlu0 %1384
        %1388 = vset.pattern.permute.xlu0 0
        %1389 = vperm.xlu0 %1388, %v759
        %v1390 = vpop.permute.xlu0 %1389
        %1393 = vset.pattern.permute.xlu0 0
        %1394 = vperm.xlu0 %1393, %v760
        %v1395 = vpop.permute.xlu0 %1394
        %1398 = vset.pattern.permute.xlu0 0
        %1399 = vperm.xlu0 %1398, %v761
        %v1400 = vpop.permute.xlu0 %1399
        %1403 = vset.pattern.permute.xlu0 0
        %1404 = vperm.xlu0 %1403, %v762
        %v1405 = vpop.permute.xlu0 %1404
        %1408 = vset.pattern.permute.xlu0 0
        %1409 = vperm.xlu0 %1408, %v763
        %v1410 = vpop.permute.xlu0 %1409
        %1413 = vset.pattern.permute.xlu0 0
        %1414 = vperm.xlu0 %1413, %v764
        %v1415 = vpop.permute.xlu0 %1414
        %1418 = vset.pattern.permute.xlu0 0
        %1419 = vperm.xlu0 %1418, %v765
        %v1420 = vpop.permute.xlu0 %1419
        %1423 = vset.pattern.permute.xlu0 0
        %1424 = vperm.xlu0 %1423, %v766
        %v1425 = vpop.permute.xlu0 %1424
        %1428 = vset.pattern.permute.xlu0 0
        %1429 = vperm.xlu0 %1428, %v767
        %v1430 = vpop.permute.xlu0 %1429
        %1433 = vset.pattern.permute.xlu0 0
        %1434 = vperm.xlu0 %1433, %v768
        %v1435 = vpop.permute.xlu0 %1434
        %1438 = vset.pattern.permute.xlu0 0
        %1439 = vperm.xlu0 %1438, %v769
        %v1440 = vpop.permute.xlu0 %1439
        %1443 = vset.pattern.permute.xlu0 0
        %1444 = vperm.xlu0 %1443, %v770
        %v1445 = vpop.permute.xlu0 %1444
        %1448 = vset.pattern.permute.xlu0 0
        %1449 = vperm.xlu0 %1448, %v771
        %v1450 = vpop.permute.xlu0 %1449
        %1453 = vset.pattern.permute.xlu0 0
        %1454 = vperm.xlu0 %1453, %v772
        %v1455 = vpop.permute.xlu0 %1454
        %1458 = vset.pattern.permute.xlu0 0
        %1459 = vperm.xlu0 %1458, %v773
        %v1460 = vpop.permute.xlu0 %1459
        %1463 = vset.pattern.permute.xlu0 0
        %1464 = vperm.xlu0 %1463, %v774
        %v1465 = vpop.permute.xlu0 %1464
        %1468 = vset.pattern.permute.xlu0 0
        %1469 = vperm.xlu0 %1468, %v775
        %v1470 = vpop.permute.xlu0 %1469
        %1473 = vset.pattern.permute.xlu0 0
        %1474 = vperm.xlu0 %1473, %v776
        %v1475 = vpop.permute.xlu0 %1474
        %1478 = vset.pattern.permute.xlu0 0
        %1479 = vperm.xlu0 %1478, %v777
        %v1480 = vpop.permute.xlu0 %1479
        %1483 = vset.pattern.permute.xlu0 0
        %1484 = vperm.xlu0 %1483, %v778
        %v1485 = vpop.permute.xlu0 %1484
        %1488 = vset.pattern.permute.xlu0 0
        %1489 = vperm.xlu0 %1488, %v779
        %v1490 = vpop.permute.xlu0 %1489
        %1493 = vset.pattern.permute.xlu0 0
        %1494 = vperm.xlu0 %1493, %v780
        %v1495 = vpop.permute.xlu0 %1494
        %1498 = vset.pattern.permute.xlu0 0
        %1499 = vperm.xlu0 %1498, %v781
        %v1500 = vpop.permute.xlu0 %1499
        %1503 = vset.pattern.permute.xlu0 0
        %1504 = vperm.xlu0 %1503, %v782
        %v1505 = vpop.permute.xlu0 %1504
        %1508 = vset.pattern.permute.xlu0 0
        %1509 = vperm.xlu0 %1508, %v783
        %v1510 = vpop.permute.xlu0 %1509
        %1513 = vset.pattern.permute.xlu0 0
        %1514 = vperm.xlu0 %1513, %v784
        %v1515 = vpop.permute.xlu0 %1514
        %1518 = vset.pattern.permute.xlu0 0
        %1519 = vperm.xlu0 %1518, %v785
        %v1520 = vpop.permute.xlu0 %1519
        %1523 = vset.pattern.permute.xlu0 0
        %1524 = vperm.xlu0 %1523, %v786
        %v1525 = vpop.permute.xlu0 %1524
        %1528 = vset.pattern.permute.xlu0 0
        %1529 = vperm.xlu0 %1528, %v787
        %v1530 = vpop.permute.xlu0 %1529
        %1533 = vset.pattern.permute.xlu0 0
        %1534 = vperm.xlu0 %1533, %v788
        %v1535 = vpop.permute.xlu0 %1534
        %1538 = vset.pattern.permute.xlu0 0
        %1539 = vperm.xlu0 %1538, %v789
        %v1540 = vpop.permute.xlu0 %1539
        %1543 = vset.pattern.permute.xlu0 0
        %1544 = vperm.xlu0 %1543, %v790
        %v1545 = vpop.permute.xlu0 %1544
        %1548 = vset.pattern.permute.xlu0 0
        %1549 = vperm.xlu0 %1548, %v791
        %v1550 = vpop.permute.xlu0 %1549
        %1553 = vset.pattern.permute.xlu0 0
        %1554 = vperm.xlu0 %1553, %v792
        %v1555 = vpop.permute.xlu0 %1554
        %1558 = vset.pattern.permute.xlu0 0
        %1559 = vperm.xlu0 %1558, %v793
        %v1560 = vpop.permute.xlu0 %1559
        %1563 = vset.pattern.permute.xlu0 0
        %1564 = vperm.xlu0 %1563, %v794
        %v1565 = vpop.permute.xlu0 %1564
        %1568 = vset.pattern.permute.xlu0 0
        %1569 = vperm.xlu0 %1568, %v795
        %v1570 = vpop.permute.xlu0 %1569
        %1573 = vset.pattern.permute.xlu0 0
        %1574 = vperm.xlu0 %1573, %v796
        %v1575 = vpop.permute.xlu0 %1574
        %1578 = vset.pattern.permute.xlu0 0
        %1579 = vperm.xlu0 %1578, %v797
        %v1580 = vpop.permute.xlu0 %1579
        %1583 = vset.pattern.permute.xlu0 0
        %1584 = vperm.xlu0 %1583, %v798
        %v1585 = vpop.permute.xlu0 %1584
        %1588 = vset.pattern.permute.xlu0 0
        %1589 = vperm.xlu0 %1588, %v799
        %v1590 = vpop.permute.xlu0 %1589
        %1593 = vset.pattern.permute.xlu0 0
        %1594 = vperm.xlu0 %1593, %v800
        %v1595 = vpop.permute.xlu0 %1594
        %1598 = vset.pattern.permute.xlu0 0
        %1599 = vperm.xlu0 %1598, %v801
        %v1600 = vpop.permute.xlu0 %1599
        %1603 = vset.pattern.permute.xlu0 0
        %1604 = vperm.xlu0 %1603, %v802
        %v1605 = vpop.permute.xlu0 %1604
        %1608 = vset.pattern.permute.xlu0 0
        %1609 = vperm.xlu0 %1608, %v803
        %v1610 = vpop.permute.xlu0 %1609
        %1613 = vset.pattern.permute.xlu0 0
        %1614 = vperm.xlu0 %1613, %v804
        %v1615 = vpop.permute.xlu0 %1614
        %1618 = vset.pattern.permute.xlu0 0
        %1619 = vperm.xlu0 %1618, %v805
        %v1620 = vpop.permute.xlu0 %1619
        %1623 = vset.pattern.permute.xlu0 0
        %1624 = vperm.xlu0 %1623, %v806
        %v1625 = vpop.permute.xlu0 %1624
        %1628 = vset.pattern.permute.xlu0 0
        %1629 = vperm.xlu0 %1628, %v807
        %v1630 = vpop.permute.xlu0 %1629
        %1633 = vset.pattern.permute.xlu0 0
        %1634 = vperm.xlu0 %1633, %v808
        %v1635 = vpop.permute.xlu0 %1634
        %1638 = vset.pattern.permute.xlu0 0
        %1639 = vperm.xlu0 %1638, %v809
        %v1640 = vpop.permute.xlu0 %1639
        %1643 = vset.pattern.permute.xlu0 0
        %1644 = vperm.xlu0 %1643, %v810
        %v1645 = vpop.permute.xlu0 %1644
        %1648 = vset.pattern.permute.xlu0 0
        %1649 = vperm.xlu0 %1648, %v811
        %v1650 = vpop.permute.xlu0 %1649
        %1653 = vset.pattern.permute.xlu0 0
        %1654 = vperm.xlu0 %1653, %v812
        %v1655 = vpop.permute.xlu0 %1654
        %1658 = vset.pattern.permute.xlu0 0
        %1659 = vperm.xlu0 %1658, %v813
        %v1660 = vpop.permute.xlu0 %1659
        %1663 = vset.pattern.permute.xlu0 0
        %1664 = vperm.xlu0 %1663, %v814
        %v1665 = vpop.permute.xlu0 %1664
        %1668 = vset.pattern.permute.xlu0 0
        %1669 = vperm.xlu0 %1668, %v815
        %v1670 = vpop.permute.xlu0 %1669
        %1673 = vset.pattern.permute.xlu0 0
        %1674 = vperm.xlu0 %1673, %v816
        %v1675 = vpop.permute.xlu0 %1674
        %1678 = vset.pattern.permute.xlu0 0
        %1679 = vperm.xlu0 %1678, %v817
        %v1680 = vpop.permute.xlu0 %1679
        %1683 = vset.pattern.permute.xlu0 0
        %1684 = vperm.xlu0 %1683, %v818
        %v1685 = vpop.permute.xlu0 %1684
        %1688 = vset.pattern.permute.xlu0 0
        %1689 = vperm.xlu0 %1688, %v819
        %v1690 = vpop.permute.xlu0 %1689
        %1693 = vset.pattern.permute.xlu0 0
        %1694 = vperm.xlu0 %1693, %v820
        %v1695 = vpop.permute.xlu0 %1694
        %1698 = vset.pattern.permute.xlu0 0
        %1699 = vperm.xlu0 %1698, %v821
        %v1700 = vpop.permute.xlu0 %1699
        %1703 = vset.pattern.permute.xlu0 0
        %1704 = vperm.xlu0 %1703, %v822
        %v1705 = vpop.permute.xlu0 %1704
        %1708 = vset.pattern.permute.xlu0 0
        %1709 = vperm.xlu0 %1708, %v823
        %v1710 = vpop.permute.xlu0 %1709
        %1713 = vset.pattern.permute.xlu0 0
        %1714 = vperm.xlu0 %1713, %v824
        %v1715 = vpop.permute.xlu0 %1714
        %1718 = vset.pattern.permute.xlu0 0
        %1719 = vperm.xlu0 %1718, %v825
        %v1720 = vpop.permute.xlu0 %1719
        %1723 = vset.pattern.permute.xlu0 0
        %1724 = vperm.xlu0 %1723, %v826
        %v1725 = vpop.permute.xlu0 %1724
        %1728 = vset.pattern.permute.xlu0 0
        %1729 = vperm.xlu0 %1728, %v827
        %v1730 = vpop.permute.xlu0 %1729
        %1733 = vset.pattern.permute.xlu0 0
        %1734 = vperm.xlu0 %1733, %v828
        %v1735 = vpop.permute.xlu0 %1734
        %1738 = vset.pattern.permute.xlu0 0
        %1739 = vperm.xlu0 %1738, %v829
        %v1740 = vpop.permute.xlu0 %1739
        %1743 = vset.pattern.permute.xlu0 0
        %1744 = vperm.xlu0 %1743, %v830
        %v1745 = vpop.permute.xlu0 %1744
        %1748 = vset.pattern.permute.xlu0 0
        %1749 = vperm.xlu0 %1748, %v831
        %v1750 = vpop.permute.xlu0 %1749
        %1753 = vset.pattern.permute.xlu0 0
        %1754 = vperm.xlu0 %1753, %v832
        %v1755 = vpop.permute.xlu0 %1754
        %1758 = vset.pattern.permute.xlu0 0
        %1759 = vperm.xlu0 %1758, %v833
        %v1760 = vpop.permute.xlu0 %1759
        %1763 = vset.pattern.permute.xlu0 0
        %1764 = vperm.xlu0 %1763, %v834
        %v1765 = vpop.permute.xlu0 %1764
        %1768 = vset.pattern.permute.xlu0 0
        %1769 = vperm.xlu0 %1768, %v835
        %v1770 = vpop.permute.xlu0 %1769
        %1773 = vset.pattern.permute.xlu0 0
        %1774 = vperm.xlu0 %1773, %v836
        %v1775 = vpop.permute.xlu0 %1774
        %1778 = vset.pattern.permute.xlu0 0
        %1779 = vperm.xlu0 %1778, %v837
        %v1780 = vpop.permute.xlu0 %1779
        %1783 = vset.pattern.permute.xlu0 0
        %1784 = vperm.xlu0 %1783, %v838
        %v1785 = vpop.permute.xlu0 %1784
        %1788 = vset.pattern.permute.xlu0 0
        %1789 = vperm.xlu0 %1788, %v839
        %v1790 = vpop.permute.xlu0 %1789
        %1793 = vset.pattern.permute.xlu0 0
        %1794 = vperm.xlu0 %1793, %v840
        %v1795 = vpop.permute.xlu0 %1794
        %1798 = vset.pattern.permute.xlu0 0
        %1799 = vperm.xlu0 %1798, %v841
        %v1800 = vpop.permute.xlu0 %1799
        %1803 = vset.pattern.permute.xlu0 0
        %1804 = vperm.xlu0 %1803, %v842
        %v1805 = vpop.permute.xlu0 %1804
        %1808 = vset.pattern.permute.xlu0 0
        %1809 = vperm.xlu0 %1808, %v843
        %v1810 = vpop.permute.xlu0 %1809
        %1813 = vset.pattern.permute.xlu0 0
        %1814 = vperm.xlu0 %1813, %v844
        %v1815 = vpop.permute.xlu0 %1814
        %1818 = vset.pattern.permute.xlu0 0
        %1819 = vperm.xlu0 %1818, %v845
        %v1820 = vpop.permute.xlu0 %1819
        %1823 = vset.pattern.permute.xlu0 0
        %1824 = vperm.xlu0 %1823, %v846
        %v1825 = vpop.permute.xlu0 %1824
        %1828 = vset.pattern.permute.xlu0 0
        %1829 = vperm.xlu0 %1828, %v847
        %v1830 = vpop.permute.xlu0 %1829
        %1833 = vset.pattern.permute.xlu0 0
        %1834 = vperm.xlu0 %1833, %v848
        %v1835 = vpop.permute.xlu0 %1834
        %1838 = vset.pattern.permute.xlu0 0
        %1839 = vperm.xlu0 %1838, %v849
        %v1840 = vpop.permute.xlu0 %1839
        %1843 = vset.pattern.permute.xlu0 0
        %1844 = vperm.xlu0 %1843, %v850
        %v1845 = vpop.permute.xlu0 %1844
        %1848 = vset.pattern.permute.xlu0 0
        %1849 = vperm.xlu0 %1848, %v851
        %v1850 = vpop.permute.xlu0 %1849
        %1853 = vset.pattern.permute.xlu0 0
        %1854 = vperm.xlu0 %1853, %v852
        %v1855 = vpop.permute.xlu0 %1854
        %1858 = vset.pattern.permute.xlu0 0
        %1859 = vperm.xlu0 %1858, %v853
        %v1860 = vpop.permute.xlu0 %1859
        %1863 = vset.pattern.permute.xlu0 0
        %1864 = vperm.xlu0 %1863, %v854
        %v1865 = vpop.permute.xlu0 %1864
        %1868 = vset.pattern.permute.xlu0 0
        %1869 = vperm.xlu0 %1868, %v855
        %v1870 = vpop.permute.xlu0 %1869
        %1873 = vset.pattern.permute.xlu0 0
        %1874 = vperm.xlu0 %1873, %v856
        %v1875 = vpop.permute.xlu0 %1874
        %1878 = vset.pattern.permute.xlu0 0
        %1879 = vperm.xlu0 %1878, %v857
        %v1880 = vpop.permute.xlu0 %1879
        %1883 = vset.pattern.permute.xlu0 0
        %1884 = vperm.xlu0 %1883, %v858
        %v1885 = vpop.permute.xlu0 %1884
        %1888 = vset.pattern.permute.xlu0 0
        %1889 = vperm.xlu0 %1888, %v859
        %v1890 = vpop.permute.xlu0 %1889
        %1893 = vset.pattern.permute.xlu0 0
        %1894 = vperm.xlu0 %1893, %v860
        %v1895 = vpop.permute.xlu0 %1894
        %1898 = vset.pattern.permute.xlu0 0
        %1899 = vperm.xlu0 %1898, %v861
        %v1900 = vpop.permute.xlu0 %1899
        %1903 = vset.pattern.permute.xlu0 0
        %1904 = vperm.xlu0 %1903, %v862
        %v1905 = vpop.permute.xlu0 %1904
        %1908 = vset.pattern.permute.xlu0 0
        %1909 = vperm.xlu0 %1908, %v863
        %v1910 = vpop.permute.xlu0 %1909
        %1913 = vset.pattern.permute.xlu0 0
        %1914 = vperm.xlu0 %1913, %v864
        %v1915 = vpop.permute.xlu0 %1914
        %1918 = vset.pattern.permute.xlu0 0
        %1919 = vperm.xlu0 %1918, %v865
        %v1920 = vpop.permute.xlu0 %1919
        %1923 = vset.pattern.permute.xlu0 0
        %1924 = vperm.xlu0 %1923, %v866
        %v1925 = vpop.permute.xlu0 %1924
        %1928 = vset.pattern.permute.xlu0 0
        %1929 = vperm.xlu0 %1928, %v867
        %v1930 = vpop.permute.xlu0 %1929
        %1933 = vset.pattern.permute.xlu0 0
        %1934 = vperm.xlu0 %1933, %v868
        %v1935 = vpop.permute.xlu0 %1934
        %1938 = vset.pattern.permute.xlu0 0
        %1939 = vperm.xlu0 %1938, %v869
        %v1940 = vpop.permute.xlu0 %1939
        %1943 = vset.pattern.permute.xlu0 0
        %1944 = vperm.xlu0 %1943, %v870
        %v1945 = vpop.permute.xlu0 %1944
        %1948 = vset.pattern.permute.xlu0 0
        %1949 = vperm.xlu0 %1948, %v871
        %v1950 = vpop.permute.xlu0 %1949
        %1953 = vset.pattern.permute.xlu0 0
        %1954 = vperm.xlu0 %1953, %v872
        %v1955 = vpop.permute.xlu0 %1954
        %1958 = vset.pattern.permute.xlu0 0
        %1959 = vperm.xlu0 %1958, %v873
        %v1960 = vpop.permute.xlu0 %1959
        %1963 = vset.pattern.permute.xlu0 0
        %1964 = vperm.xlu0 %1963, %v874
        %v1965 = vpop.permute.xlu0 %1964
        %1968 = vset.pattern.permute.xlu0 0
        %1969 = vperm.xlu0 %1968, %v875
        %v1970 = vpop.permute.xlu0 %1969
        %1973 = vset.pattern.permute.xlu0 0
        %1974 = vperm.xlu0 %1973, %v876
        %v1975 = vpop.permute.xlu0 %1974
        %1978 = vset.pattern.permute.xlu0 0
        %1979 = vperm.xlu0 %1978, %v877
        %v1980 = vpop.permute.xlu0 %1979
        %1983 = vset.pattern.permute.xlu0 0
        %1984 = vperm.xlu0 %1983, %v878
        %v1985 = vpop.permute.xlu0 %1984
        %1988 = vset.pattern.permute.xlu0 0
        %1989 = vperm.xlu0 %1988, %v879
        %v1990 = vpop.permute.xlu0 %1989
        %1993 = vset.pattern.permute.xlu0 0
        %1994 = vperm.xlu0 %1993, %v880
        %v1995 = vpop.permute.xlu0 %1994
        %1998 = vset.pattern.permute.xlu0 0
        %1999 = vperm.xlu0 %1998, %v881
        %v2000 = vpop.permute.xlu0 %1999
        %2003 = vset.pattern.permute.xlu0 0
        %2004 = vperm.xlu0 %2003, %v882
        %v2005 = vpop.permute.xlu0 %2004
        %2008 = vset.pattern.permute.xlu0 0
        %2009 = vperm.xlu0 %2008, %v883
        %v2010 = vpop.permute.xlu0 %2009
        %2013 = vset.pattern.permute.xlu0 0
        %2014 = vperm.xlu0 %2013, %v884
        %v2015 = vpop.permute.xlu0 %2014
        %2018 = vset.pattern.permute.xlu0 0
        %2019 = vperm.xlu0 %2018, %v885
        %v2020 = vpop.permute.xlu0 %2019
        %2023 = vset.pattern.permute.xlu0 0
        %2024 = vperm.xlu0 %2023, %v886
        %v2025 = vpop.permute.xlu0 %2024
        %2028 = vset.pattern.permute.xlu0 0
        %2029 = vperm.xlu0 %2028, %v887
        %v2030 = vpop.permute.xlu0 %2029
        %2033 = vset.pattern.permute.xlu0 0
        %2034 = vperm.xlu0 %2033, %v888
        %v2035 = vpop.permute.xlu0 %2034
        %2038 = vset.pattern.permute.xlu0 0
        %2039 = vperm.xlu0 %2038, %v889
        %v2040 = vpop.permute.xlu0 %2039
        %2043 = vset.pattern.permute.xlu0 0
        %2044 = vperm.xlu0 %2043, %v890
        %v2045 = vpop.permute.xlu0 %2044
        %2048 = vset.pattern.permute.xlu0 0
        %2049 = vperm.xlu0 %2048, %v891
        %v2050 = vpop.permute.xlu0 %2049
        %2053 = vset.pattern.permute.xlu0 0
        %2054 = vperm.xlu0 %2053, %v892
        %v2055 = vpop.permute.xlu0 %2054
        %2058 = vset.pattern.permute.xlu0 0
        %2059 = vperm.xlu0 %2058, %v893
        %v2060 = vpop.permute.xlu0 %2059
        %2063 = vset.pattern.permute.xlu0 0
        %2064 = vperm.xlu0 %2063, %v894
        %v2065 = vpop.permute.xlu0 %2064
        %2068 = vset.pattern.permute.xlu0 0
        %2069 = vperm.xlu0 %2068, %v895
        %v2070 = vpop.permute.xlu0 %2069
        %2073 = vset.pattern.permute.xlu0 0
        %2074 = vperm.xlu0 %2073, %v896
        %v2075 = vpop.permute.xlu0 %2074
        %2078 = vset.pattern.permute.xlu0 0
        %2079 = vperm.xlu0 %2078, %v897
        %v2080 = vpop.permute.xlu0 %2079
        %2083 = vset.pattern.permute.xlu0 0
        %2084 = vperm.xlu0 %2083, %v898
        %v2085 = vpop.permute.xlu0 %2084
        %2088 = vset.pattern.permute.xlu0 0
        %2089 = vperm.xlu0 %2088, %v899
        %v2090 = vpop.permute.xlu0 %2089
        %2093 = vset.pattern.permute.xlu0 0
        %2094 = vperm.xlu0 %2093, %v900
        %v2095 = vpop.permute.xlu0 %2094
        %2098 = vset.pattern.permute.xlu0 0
        %2099 = vperm.xlu0 %2098, %v901
        %v2100 = vpop.permute.xlu0 %2099
        %2103 = vset.pattern.permute.xlu0 0
        %2104 = vperm.xlu0 %2103, %v902
        %v2105 = vpop.permute.xlu0 %2104
        %2108 = vset.pattern.permute.xlu0 0
        %2109 = vperm.xlu0 %2108, %v903
        %v2110 = vpop.permute.xlu0 %2109
        %2113 = vset.pattern.permute.xlu0 0
        %2114 = vperm.xlu0 %2113, %v904
        %v2115 = vpop.permute.xlu0 %2114
        %2118 = vset.pattern.permute.xlu0 0
        %2119 = vperm.xlu0 %2118, %v905
        %v2120 = vpop.permute.xlu0 %2119
        %2123 = vset.pattern.permute.xlu0 0
        %2124 = vperm.xlu0 %2123, %v906
        %v2125 = vpop.permute.xlu0 %2124
        %2128 = vset.pattern.permute.xlu0 0
        %2129 = vperm.xlu0 %2128, %v907
        %v2130 = vpop.permute.xlu0 %2129
        %2133 = vset.pattern.permute.xlu0 0
        %2134 = vperm.xlu0 %2133, %v908
        %v2135 = vpop.permute.xlu0 %2134
        %2138 = vset.pattern.permute.xlu0 0
        %2139 = vperm.xlu0 %2138, %v909
        %v2140 = vpop.permute.xlu0 %2139
        %2143 = vset.pattern.permute.xlu0 0
        %2144 = vperm.xlu0 %2143, %v910
        %v2145 = vpop.permute.xlu0 %2144
        %2148 = vset.pattern.permute.xlu0 0
        %2149 = vperm.xlu0 %2148, %v911
        %v2150 = vpop.permute.xlu0 %2149
        %2153 = vset.pattern.permute.xlu0 0
        %2154 = vperm.xlu0 %2153, %v912
        %v2155 = vpop.permute.xlu0 %2154
        %2158 = vset.pattern.permute.xlu0 0
        %2159 = vperm.xlu0 %2158, %v913
        %v2160 = vpop.permute.xlu0 %2159
        %2163 = vset.pattern.permute.xlu0 0
        %2164 = vperm.xlu0 %2163, %v914
        %v2165 = vpop.permute.xlu0 %2164
        %2168 = vset.pattern.permute.xlu0 0
        %2169 = vperm.xlu0 %2168, %v915
        %v2170 = vpop.permute.xlu0 %2169
        %2173 = vset.pattern.permute.xlu0 0
        %2174 = vperm.xlu0 %2173, %v916
        %v2175 = vpop.permute.xlu0 %2174
        %2178 = vset.pattern.permute.xlu0 0
        %2179 = vperm.xlu0 %2178, %v917
        %v2180 = vpop.permute.xlu0 %2179
        %2183 = vset.pattern.permute.xlu0 0
        %2184 = vperm.xlu0 %2183, %v918
        %v2185 = vpop.permute.xlu0 %2184
        %2188 = vset.pattern.permute.xlu0 0
        %2189 = vperm.xlu0 %2188, %v919
        %v2190 = vpop.permute.xlu0 %2189
        %2193 = vset.pattern.permute.xlu0 0
        %2194 = vperm.xlu0 %2193, %v920
        %v2195 = vpop.permute.xlu0 %2194
        %2198 = vset.pattern.permute.xlu0 0
        %2199 = vperm.xlu0 %2198, %v921
        %v2200 = vpop.permute.xlu0 %2199
        %2203 = vset.pattern.permute.xlu0 0
        %2204 = vperm.xlu0 %2203, %v922
        %v2205 = vpop.permute.xlu0 %2204
        %2208 = vset.pattern.permute.xlu0 0
        %2209 = vperm.xlu0 %2208, %v923
        %v2210 = vpop.permute.xlu0 %2209
        %2213 = vset.pattern.permute.xlu0 0
        %2214 = vperm.xlu0 %2213, %v924
        %v2215 = vpop.permute.xlu0 %2214
        %2218 = vset.pattern.permute.xlu0 0
        %2219 = vperm.xlu0 %2218, %v925
        %v2220 = vpop.permute.xlu0 %2219
        %2223 = vset.pattern.permute.xlu0 0
        %2224 = vperm.xlu0 %2223, %v926
        %v2225 = vpop.permute.xlu0 %2224
        %2228 = vset.pattern.permute.xlu0 0
        %2229 = vperm.xlu0 %2228, %v927
        %v2230 = vpop.permute.xlu0 %2229
        %2233 = vset.pattern.permute.xlu0 0
        %2234 = vperm.xlu0 %2233, %v928
        %v2235 = vpop.permute.xlu0 %2234
        %2238 = vset.pattern.permute.xlu0 0
        %2239 = vperm.xlu0 %2238, %v929
        %v2240 = vpop.permute.xlu0 %2239
        %2243 = vset.pattern.permute.xlu0 0
        %2244 = vperm.xlu0 %2243, %v930
        %v2245 = vpop.permute.xlu0 %2244
        %2248 = vset.pattern.permute.xlu0 0
        %2249 = vperm.xlu0 %2248, %v931
        %v2250 = vpop.permute.xlu0 %2249
        %2253 = vset.pattern.permute.xlu0 0
        %2254 = vperm.xlu0 %2253, %v932
        %v2255 = vpop.permute.xlu0 %2254
        %2258 = vset.pattern.permute.xlu0 0
        %2259 = vperm.xlu0 %2258, %v933
        %v2260 = vpop.permute.xlu0 %2259
        %2263 = vset.pattern.permute.xlu0 0
        %2264 = vperm.xlu0 %2263, %v934
        %v2265 = vpop.permute.xlu0 %2264
        %2268 = vset.pattern.permute.xlu0 0
        %2269 = vperm.xlu0 %2268, %v935
        %v2270 = vpop.permute.xlu0 %2269
        %2273 = vset.pattern.permute.xlu0 0
        %2274 = vperm.xlu0 %2273, %v936
        %v2275 = vpop.permute.xlu0 %2274
        %2278 = vset.pattern.permute.xlu0 0
        %2279 = vperm.xlu0 %2278, %v937
        %v2280 = vpop.permute.xlu0 %2279
        %2283 = vset.pattern.permute.xlu0 0
        %2284 = vperm.xlu0 %2283, %v938
        %v2285 = vpop.permute.xlu0 %2284
        %2288 = vset.pattern.permute.xlu0 0
        %2289 = vperm.xlu0 %2288, %v939
        %v2290 = vpop.permute.xlu0 %2289
        %2293 = vset.pattern.permute.xlu0 0
        %2294 = vperm.xlu0 %2293, %v940
        %v2295 = vpop.permute.xlu0 %2294
        %2298 = vset.pattern.permute.xlu0 0
        %2299 = vperm.xlu0 %2298, %v941
        %v2300 = vpop.permute.xlu0 %2299
        %2303 = vset.pattern.permute.xlu0 0
        %2304 = vperm.xlu0 %2303, %v942
        %v2305 = vpop.permute.xlu0 %2304
        %2308 = vset.pattern.permute.xlu0 0
        %2309 = vperm.xlu0 %2308, %v943
        %v2310 = vpop.permute.xlu0 %2309
        %2313 = vset.pattern.permute.xlu0 0
        %2314 = vperm.xlu0 %2313, %v944
        %v2315 = vpop.permute.xlu0 %2314
        %2318 = vset.pattern.permute.xlu0 0
        %2319 = vperm.xlu0 %2318, %v945
        %v2320 = vpop.permute.xlu0 %2319
        %2323 = vset.pattern.permute.xlu0 0
        %2324 = vperm.xlu0 %2323, %v946
        %v2325 = vpop.permute.xlu0 %2324
        %2328 = vset.pattern.permute.xlu0 0
        %2329 = vperm.xlu0 %2328, %v947
        %v2330 = vpop.permute.xlu0 %2329
        %2333 = vset.pattern.permute.xlu0 0
        %2334 = vperm.xlu0 %2333, %v948
        %v2335 = vpop.permute.xlu0 %2334
        %2338 = vset.pattern.permute.xlu0 0
        %2339 = vperm.xlu0 %2338, %v949
        %v2340 = vpop.permute.xlu0 %2339
        %2343 = vset.pattern.permute.xlu0 0
        %2344 = vperm.xlu0 %2343, %v950
        %v2345 = vpop.permute.xlu0 %2344
        %2348 = vset.pattern.permute.xlu0 0
        %2349 = vperm.xlu0 %2348, %v951
        %v2350 = vpop.permute.xlu0 %2349
        %2353 = vset.pattern.permute.xlu0 0
        %2354 = vperm.xlu0 %2353, %v952
        %v2355 = vpop.permute.xlu0 %2354
        %2358 = vset.pattern.permute.xlu0 0
        %2359 = vperm.xlu0 %2358, %v953
        %v2360 = vpop.permute.xlu0 %2359
        %2363 = vset.pattern.permute.xlu0 0
        %2364 = vperm.xlu0 %2363, %v954
        %v2365 = vpop.permute.xlu0 %2364
        %2368 = vset.pattern.permute.xlu0 0
        %2369 = vperm.xlu0 %2368, %v955
        %v2370 = vpop.permute.xlu0 %2369
        %2373 = vset.pattern.permute.xlu0 0
        %2374 = vperm.xlu0 %2373, %v956
        %v2375 = vpop.permute.xlu0 %2374
        %2378 = vset.pattern.permute.xlu0 0
        %2379 = vperm.xlu0 %2378, %v957
        %v2380 = vpop.permute.xlu0 %2379
        %2383 = vset.pattern.permute.xlu0 0
        %2384 = vperm.xlu0 %2383, %v958
        %v2385 = vpop.permute.xlu0 %2384
        %2388 = vset.pattern.permute.xlu0 0
        %2389 = vperm.xlu0 %2388, %v959
        %v2390 = vpop.permute.xlu0 %2389
        %2393 = vset.pattern.permute.xlu0 0
        %2394 = vperm.xlu0 %2393, %v960
        %v2395 = vpop.permute.xlu0 %2394
        %2398 = vset.pattern.permute.xlu0 0
        %2399 = vperm.xlu0 %2398, %v961
        %v2400 = vpop.permute.xlu0 %2399
        %2403 = vset.pattern.permute.xlu0 0
        %2404 = vperm.xlu0 %2403, %v962
        %v2405 = vpop.permute.xlu0 %2404
        %2408 = vset.pattern.permute.xlu0 0
        %2409 = vperm.xlu0 %2408, %v963
        %v2410 = vpop.permute.xlu0 %2409
        %2413 = vset.pattern.permute.xlu0 0
        %2414 = vperm.xlu0 %2413, %v964
        %v2415 = vpop.permute.xlu0 %2414
        %2418 = vset.pattern.permute.xlu0 0
        %2419 = vperm.xlu0 %2418, %v965
        %v2420 = vpop.permute.xlu0 %2419
        %2423 = vset.pattern.permute.xlu0 0
        %2424 = vperm.xlu0 %2423, %v966
        %v2425 = vpop.permute.xlu0 %2424
        %2428 = vset.pattern.permute.xlu0 0
        %2429 = vperm.xlu0 %2428, %v967
        %v2430 = vpop.permute.xlu0 %2429
        %2433 = vset.pattern.permute.xlu0 0
        %2434 = vperm.xlu0 %2433, %v968
        %v2435 = vpop.permute.xlu0 %2434
        %2438 = vset.pattern.permute.xlu0 0
        %2439 = vperm.xlu0 %2438, %v969
        %v2440 = vpop.permute.xlu0 %2439
        %2443 = vset.pattern.permute.xlu0 0
        %2444 = vperm.xlu0 %2443, %v970
        %v2445 = vpop.permute.xlu0 %2444
        %2448 = vset.pattern.permute.xlu0 0
        %2449 = vperm.xlu0 %2448, %v971
        %v2450 = vpop.permute.xlu0 %2449
        %2453 = vset.pattern.permute.xlu0 0
        %2454 = vperm.xlu0 %2453, %v972
        %v2455 = vpop.permute.xlu0 %2454
        %2458 = vset.pattern.permute.xlu0 0
        %2459 = vperm.xlu0 %2458, %v973
        %v2460 = vpop.permute.xlu0 %2459
        %2463 = vset.pattern.permute.xlu0 0
        %2464 = vperm.xlu0 %2463, %v974
        %v2465 = vpop.permute.xlu0 %2464
        %2468 = vset.pattern.permute.xlu0 0
        %2469 = vperm.xlu0 %2468, %v975
        %v2470 = vpop.permute.xlu0 %2469
        %2473 = vset.pattern.permute.xlu0 0
        %2474 = vperm.xlu0 %2473, %v976
        %v2475 = vpop.permute.xlu0 %2474
        %2478 = vset.pattern.permute.xlu0 0
        %2479 = vperm.xlu0 %2478, %v977
        %v2480 = vpop.permute.xlu0 %2479
        %2483 = vset.pattern.permute.xlu0 0
        %2484 = vperm.xlu0 %2483, %v978
        %v2485 = vpop.permute.xlu0 %2484
        %2488 = vset.pattern.permute.xlu0 0
        %2489 = vperm.xlu0 %2488, %v979
        %v2490 = vpop.permute.xlu0 %2489
        %2493 = vset.pattern.permute.xlu0 0
        %2494 = vperm.xlu0 %2493, %v980
        %v2495 = vpop.permute.xlu0 %2494
        %2498 = vset.pattern.permute.xlu0 0
        %2499 = vperm.xlu0 %2498, %v981
        %v2500 = vpop.permute.xlu0 %2499
        %2503 = vset.pattern.permute.xlu0 0
        %2504 = vperm.xlu0 %2503, %v982
        %v2505 = vpop.permute.xlu0 %2504
        %2508 = vset.pattern.permute.xlu0 0
        %2509 = vperm.xlu0 %2508, %v983
        %v2510 = vpop.permute.xlu0 %2509
        %2513 = vset.pattern.permute.xlu0 0
        %2514 = vperm.xlu0 %2513, %v984
        %v2515 = vpop.permute.xlu0 %2514
        %2518 = vset.pattern.permute.xlu0 0
        %2519 = vperm.xlu0 %2518, %v985
        %v2520 = vpop.permute.xlu0 %2519
        %2523 = vset.pattern.permute.xlu0 0
        %2524 = vperm.xlu0 %2523, %v986
        %v2525 = vpop.permute.xlu0 %2524
        %2528 = vset.pattern.permute.xlu0 0
        %2529 = vperm.xlu0 %2528, %v987
        %v2530 = vpop.permute.xlu0 %2529
        %2533 = vset.pattern.permute.xlu0 0
        %2534 = vperm.xlu0 %2533, %v988
        %v2535 = vpop.permute.xlu0 %2534
        %2538 = vset.pattern.permute.xlu0 0
        %2539 = vperm.xlu0 %2538, %v989
        %v2540 = vpop.permute.xlu0 %2539
        %2543 = vset.pattern.permute.xlu0 0
        %2544 = vperm.xlu0 %2543, %v990
        %v2545 = vpop.permute.xlu0 %2544
        %2548 = vset.pattern.permute.xlu0 0
        %2549 = vperm.xlu0 %2548, %v991
        %v2550 = vpop.permute.xlu0 %2549
        %2553 = vset.pattern.permute.xlu0 0
        %2554 = vperm.xlu0 %2553, %v992
        %v2555 = vpop.permute.xlu0 %2554
        %2558 = vset.pattern.permute.xlu0 0
        %2559 = vperm.xlu0 %2558, %v993
        %v2560 = vpop.permute.xlu0 %2559
        %2563 = vset.pattern.permute.xlu0 0
        %2564 = vperm.xlu0 %2563, %v994
        %v2565 = vpop.permute.xlu0 %2564
        %2568 = vset.pattern.permute.xlu0 0
        %2569 = vperm.xlu0 %2568, %v995
        %v2570 = vpop.permute.xlu0 %2569
        %2573 = vset.pattern.permute.xlu0 0
        %2574 = vperm.xlu0 %2573, %v996
        %v2575 = vpop.permute.xlu0 %2574
        %2578 = vset.pattern.permute.xlu0 0
        %2579 = vperm.xlu0 %2578, %v997
        %v2580 = vpop.permute.xlu0 %2579
        %2583 = vset.pattern.permute.xlu0 0
        %2584 = vperm.xlu0 %2583, %v998
        %v2585 = vpop.permute.xlu0 %2584
        %2588 = vset.pattern.permute.xlu0 0
        %2589 = vperm.xlu0 %2588, %v999
        %v2590 = vpop.permute.xlu0 %2589
        %2593 = vset.pattern.permute.xlu0 0
        %2594 = vperm.xlu0 %2593, %v1000
        %v2595 = vpop.permute.xlu0 %2594
        %2598 = vset.pattern.permute.xlu0 0
        %2599 = vperm.xlu0 %2598, %v1001
        %v2600 = vpop.permute.xlu0 %2599
        %2603 = vset.pattern.permute.xlu0 0
        %2604 = vperm.xlu0 %2603, %v1002
        %v2605 = vpop.permute.xlu0 %2604
        %2608 = vset.pattern.permute.xlu0 0
        %2609 = vperm.xlu0 %2608, %v1003
        %v2610 = vpop.permute.xlu0 %2609
        %2613 = vset.pattern.permute.xlu0 0
        %2614 = vperm.xlu0 %2613, %v1004
        %v2615 = vpop.permute.xlu0 %2614
        %2618 = vset.pattern.permute.xlu0 0
        %2619 = vperm.xlu0 %2618, %v1005
        %v2620 = vpop.permute.xlu0 %2619
        %2623 = vset.pattern.permute.xlu0 0
        %2624 = vperm.xlu0 %2623, %v1006
        %v2625 = vpop.permute.xlu0 %2624
        %2628 = vset.pattern.permute.xlu0 0
        %2629 = vperm.xlu0 %2628, %v1007
        %v2630 = vpop.permute.xlu0 %2629
        %2633 = vset.pattern.permute.xlu0 0
        %2634 = vperm.xlu0 %2633, %v1008
        %v2635 = vpop.permute.xlu0 %2634
        %2638 = vset.pattern.permute.xlu0 0
        %2639 = vperm.xlu0 %2638, %v1009
        %v2640 = vpop.permute.xlu0 %2639
        %2643 = vset.pattern.permute.xlu0 0
        %2644 = vperm.xlu0 %2643, %v1010
        %v2645 = vpop.permute.xlu0 %2644
        %2648 = vset.pattern.permute.xlu0 0
        %2649 = vperm.xlu0 %2648, %v1011
        %v2650 = vpop.permute.xlu0 %2649
        %2653 = vset.pattern.permute.xlu0 0
        %2654 = vperm.xlu0 %2653, %v1012
        %v2655 = vpop.permute.xlu0 %2654
        %2658 = vset.pattern.permute.xlu0 0
        %2659 = vperm.xlu0 %2658, %v1013
        %v2660 = vpop.permute.xlu0 %2659
        %2663 = vset.pattern.permute.xlu0 0
        %2664 = vperm.xlu0 %2663, %v1014
        %v2665 = vpop.permute.xlu0 %2664
        %2668 = vset.pattern.permute.xlu0 0
        %2669 = vperm.xlu0 %2668, %v1015
        %v2670 = vpop.permute.xlu0 %2669
        %2673 = vset.pattern.permute.xlu0 0
        %2674 = vperm.xlu0 %2673, %v1016
        %v2675 = vpop.permute.xlu0 %2674
        %2678 = vset.pattern.permute.xlu0 0
        %2679 = vperm.xlu0 %2678, %v1017
        %v2680 = vpop.permute.xlu0 %2679
        %2683 = vset.pattern.permute.xlu0 0
        %2684 = vperm.xlu0 %2683, %v1018
        %v2685 = vpop.permute.xlu0 %2684
        %2688 = vset.pattern.permute.xlu0 0
        %2689 = vperm.xlu0 %2688, %v1019
        %v2690 = vpop.permute.xlu0 %2689
        %2693 = vset.pattern.permute.xlu0 0
        %2694 = vperm.xlu0 %2693, %v1020
        %v2695 = vpop.permute.xlu0 %2694
        %2698 = vset.pattern.permute.xlu0 0
        %2699 = vperm.xlu0 %2698, %v1021
        %v2700 = vpop.permute.xlu0 %2699
        %2703 = vset.pattern.permute.xlu0 0
        %2704 = vperm.xlu0 %2703, %v1022
        %v2705 = vpop.permute.xlu0 %2704
        %2708 = vset.pattern.permute.xlu0 0
        %2709 = vperm.xlu0 %2708, %v1023
        %v2710 = vpop.permute.xlu0 %2709
        %2713 = vset.pattern.permute.xlu0 0
        %2714 = vperm.xlu0 %2713, %v1024
        %v2715 = vpop.permute.xlu0 %2714
        %2718 = vset.pattern.permute.xlu0 0
        %2719 = vperm.xlu0 %2718, %v1025
        %v2720 = vpop.permute.xlu0 %2719
        %2723 = vset.pattern.permute.xlu0 0
        %2724 = vperm.xlu0 %2723, %v1026
        %v2725 = vpop.permute.xlu0 %2724
        %v3067 = vunpack.c.l.b16 %v347
        %v3068 = vunpack.c.l.b16 %v348
        %v3069 = vunpack.c.l.b16 %v349
        %v3070 = vunpack.c.l.b16 %v350
        %v3071 = vunpack.c.l.b16 %v351
        %v3072 = vunpack.c.l.b16 %v352
        %v3073 = vunpack.c.l.b16 %v353
        %v3074 = vunpack.c.l.b16 %v354
        %v3075 = vunpack.c.l.b16 %v355
        %v3076 = vunpack.c.l.b16 %v356
        %v3077 = vunpack.c.l.b16 %v357
        %v3078 = vunpack.c.l.b16 %v358
        %v3079 = vunpack.c.l.b16 %v359
        %v3080 = vunpack.c.l.b16 %v360
        %v3081 = vunpack.c.l.b16 %v361
        %v3082 = vunpack.c.l.b16 %v362
        %v3083 = vunpack.c.l.b16 %v363
        %v3084 = vunpack.c.l.b16 %v364
        %v3085 = vunpack.c.l.b16 %v365
        %v3086 = vunpack.c.l.b16 %v366
        %v3087 = vunpack.c.l.b16 %v367
        %v3088 = vunpack.c.l.b16 %v368
        %v3089 = vunpack.c.l.b16 %v369
        %v3090 = vunpack.c.l.b16 %v370
        %v3091 = vunpack.c.l.b16 %v371
        %v3092 = vunpack.c.l.b16 %v372
        %v3093 = vunpack.c.l.b16 %v373
        %v3094 = vunpack.c.l.b16 %v374
        %v3095 = vunpack.c.l.b16 %v375
        %v3096 = vunpack.c.l.b16 %v376
        %v3097 = vunpack.c.l.b16 %v377
        %v3098 = vunpack.c.l.b16 %v378
        %v3099 = vunpack.c.l.b16 %v379
        %v3100 = vunpack.c.l.b16 %v380
        %v3101 = vunpack.c.l.b16 %v381
        %v3102 = vunpack.c.l.b16 %v382
        %v3103 = vunpack.c.l.b16 %v383
        %v3104 = vunpack.c.l.b16 %v384
        %v3105 = vunpack.c.l.b16 %v385
        %v3106 = vunpack.c.l.b16 %v386
        %v3107 = vunpack.c.l.b16 %v387
        %v3108 = vunpack.c.l.b16 %v388
        %v3109 = vunpack.c.l.b16 %v389
        %v3110 = vunpack.c.l.b16 %v390
        %v3111 = vunpack.c.l.b16 %v391
        %v3112 = vunpack.c.l.b16 %v392
        %v3113 = vunpack.c.l.b16 %v393
        %v3114 = vunpack.c.l.b16 %v394
        %v3115 = vunpack.c.l.b16 %v395
        %v3116 = vunpack.c.l.b16 %v396
        %v3117 = vunpack.c.l.b16 %v397
        %v3118 = vunpack.c.l.b16 %v398
        %v3119 = vunpack.c.l.b16 %v399
        %v3120 = vunpack.c.l.b16 %v400
        %v3121 = vunpack.c.l.b16 %v401
        %v3122 = vunpack.c.l.b16 %v402
        %v3123 = vunpack.c.l.b16 %v403
        %v3124 = vunpack.c.l.b16 %v404
        %v3125 = vunpack.c.l.b16 %v405
        %v3126 = vunpack.c.l.b16 %v406
        %v3127 = vunpack.c.l.b16 %v407
        %v3128 = vunpack.c.l.b16 %v408
        %v3129 = vunpack.c.l.b16 %v409
        %v3130 = vunpack.c.l.b16 %v410
        %v3131 = vunpack.c.l.b16 %v411
        %v3132 = vunpack.c.l.b16 %v412
        %v3133 = vunpack.c.l.b16 %v413
        %v3134 = vunpack.c.l.b16 %v414
        %v3135 = vunpack.c.l.b16 %v415
        %v3136 = vunpack.c.l.b16 %v416
        %v3137 = vunpack.c.l.b16 %v417
        %v3138 = vunpack.c.l.b16 %v418
        %v3139 = vunpack.c.l.b16 %v419
        %v3140 = vunpack.c.l.b16 %v420
        %v3141 = vunpack.c.l.b16 %v421
        %v3142 = vunpack.c.l.b16 %v422
        %v3143 = vunpack.c.l.b16 %v423
        %v3144 = vunpack.c.l.b16 %v424
        %v3145 = vunpack.c.l.b16 %v425
        %v3146 = vunpack.c.l.b16 %v426
        %v3147 = vunpack.c.l.b16 %v427
        %v3148 = vunpack.c.l.b16 %v428
        %v3149 = vunpack.c.l.b16 %v429
        %v3150 = vunpack.c.l.b16 %v430
        %v3151 = vunpack.c.l.b16 %v431
        %v3152 = vunpack.c.l.b16 %v432
        %v3153 = vunpack.c.l.b16 %v433
        %v3154 = vunpack.c.l.b16 %v434
        %v3155 = vunpack.c.l.b16 %v435
        %v3156 = vunpack.c.l.b16 %v436
        %v3157 = vunpack.c.l.b16 %v437
        %v3158 = vunpack.c.l.b16 %v438
        %v3159 = vunpack.c.l.b16 %v439
        %v3160 = vunpack.c.l.b16 %v440
        %v3161 = vunpack.c.l.b16 %v441
        %v3162 = vunpack.c.l.b16 %v442
        %v3163 = vunpack.c.l.b16 %v443
        %v3164 = vunpack.c.l.b16 %v444
        %v3165 = vunpack.c.l.b16 %v445
        %v3166 = vunpack.c.l.b16 %v446
        %v3167 = vunpack.c.l.b16 %v447
        %v3168 = vunpack.c.l.b16 %v448
        %v3169 = vunpack.c.l.b16 %v449
        %v3170 = vunpack.c.l.b16 %v450
        %v3171 = vunpack.c.l.b16 %v451
        %v3172 = vunpack.c.l.b16 %v452
        %v3173 = vunpack.c.l.b16 %v453
        %v3174 = vunpack.c.l.b16 %v454
        %v3175 = vunpack.c.l.b16 %v455
        %v3176 = vunpack.c.l.b16 %v456
        %v3177 = vunpack.c.l.b16 %v457
        %v3178 = vunpack.c.l.b16 %v458
        %v3179 = vunpack.c.l.b16 %v459
        %v3180 = vunpack.c.l.b16 %v460
        %v3181 = vunpack.c.l.b16 %v461
        %v3182 = vunpack.c.l.b16 %v462
        %v3183 = vunpack.c.l.b16 %v463
        %v3184 = vunpack.c.l.b16 %v464
        %v3185 = vunpack.c.l.b16 %v465
        %v3186 = vunpack.c.l.b16 %v466
        %v3187 = vunpack.c.l.b16 %v467
        %v3188 = vunpack.c.l.b16 %v468
        %v3189 = vunpack.c.l.b16 %v469
        %v3190 = vunpack.c.l.b16 %v470
        %v3191 = vunpack.c.l.b16 %v471
        %v3192 = vunpack.c.l.b16 %v472
        %v3193 = vunpack.c.l.b16 %v473
        %v3194 = vunpack.c.l.b16 %v474
        %v3195 = vunpack.c.l.b16 %v475
        %v3196 = vunpack.c.l.b16 %v476
        %v3197 = vunpack.c.l.b16 %v477
        %v3198 = vunpack.c.l.b16 %v478
        %v3199 = vunpack.c.l.b16 %v479
        %v3200 = vunpack.c.l.b16 %v480
        %v3201 = vunpack.c.l.b16 %v481
        %v3202 = vunpack.c.l.b16 %v482
        %v3203 = vunpack.c.l.b16 %v483
        %v3204 = vunpack.c.l.b16 %v484
        %v3205 = vunpack.c.l.b16 %v485
        %v3206 = vunpack.c.l.b16 %v486
        %v3207 = vunpack.c.l.b16 %v487
        %v3208 = vunpack.c.l.b16 %v488
        %v3209 = vunpack.c.l.b16 %v489
        %v3210 = vunpack.c.l.b16 %v490
        %v3211 = vunpack.c.l.b16 %v491
        %v3212 = vunpack.c.l.b16 %v492
        %v3213 = vunpack.c.l.b16 %v493
        %v3214 = vunpack.c.l.b16 %v494
        %v3215 = vunpack.c.l.b16 %v495
        %v3216 = vunpack.c.l.b16 %v496
        %v3217 = vunpack.c.l.b16 %v497
        %v3218 = vunpack.c.l.b16 %v498
        %v3219 = vunpack.c.l.b16 %v499
        %v3220 = vunpack.c.l.b16 %v500
        %v3221 = vunpack.c.l.b16 %v501
        %v3222 = vunpack.c.l.b16 %v502
        %v3223 = vunpack.c.l.b16 %v503
        %v3224 = vunpack.c.l.b16 %v504
        %v3225 = vunpack.c.l.b16 %v505
        %v3226 = vunpack.c.l.b16 %v506
        %v3227 = vunpack.c.l.b16 %v507
        %v3228 = vunpack.c.l.b16 %v508
        %v3229 = vunpack.c.l.b16 %v509
        %v3230 = vunpack.c.l.b16 %v510
        %v3231 = vunpack.c.l.b16 %v511
        %v3232 = vunpack.c.l.b16 %v512
        %v3233 = vunpack.c.l.b16 %v513
        %v3234 = vunpack.c.l.b16 %v514
        %v3235 = vunpack.c.l.b16 %v515
        %v3236 = vunpack.c.l.b16 %v516
        %v3237 = vunpack.c.l.b16 %v517
        %v3238 = vunpack.c.l.b16 %v518
        %v3239 = vunpack.c.l.b16 %v519
        %v3240 = vunpack.c.l.b16 %v520
        %v3241 = vunpack.c.l.b16 %v521
        %v3242 = vunpack.c.l.b16 %v522
        %v3243 = vunpack.c.l.b16 %v523
        %v3244 = vunpack.c.l.b16 %v524
        %v3245 = vunpack.c.l.b16 %v525
        %v3246 = vunpack.c.l.b16 %v526
        %v3247 = vunpack.c.l.b16 %v527
        %v3248 = vunpack.c.l.b16 %v528
        %v3249 = vunpack.c.l.b16 %v529
        %v3250 = vunpack.c.l.b16 %v530
        %v3251 = vunpack.c.l.b16 %v531
        %v3252 = vunpack.c.l.b16 %v532
        %v3253 = vunpack.c.l.b16 %v533
        %v3254 = vunpack.c.l.b16 %v534
        %v3255 = vunpack.c.l.b16 %v535
        %v3256 = vunpack.c.l.b16 %v536
        %v3257 = vunpack.c.l.b16 %v537
        %v3258 = vunpack.c.l.b16 %v538
        %v3259 = vunpack.c.l.b16 %v539
        %v3260 = vunpack.c.l.b16 %v540
        %v3261 = vunpack.c.l.b16 %v541
        %v3262 = vunpack.c.l.b16 %v542
        %v3263 = vunpack.c.l.b16 %v543
        %v3264 = vunpack.c.l.b16 %v544
        %v3265 = vunpack.c.l.b16 %v545
        %v3266 = vunpack.c.l.b16 %v546
        %v3267 = vunpack.c.l.b16 %v547
        %v3268 = vunpack.c.l.b16 %v548
        %v3269 = vunpack.c.l.b16 %v549
        %v3270 = vunpack.c.l.b16 %v550
        %v3271 = vunpack.c.l.b16 %v551
        %v3272 = vunpack.c.l.b16 %v552
        %v3273 = vunpack.c.l.b16 %v553
        %v3274 = vunpack.c.l.b16 %v554
        %v3275 = vunpack.c.l.b16 %v555
        %v3276 = vunpack.c.l.b16 %v556
        %v3277 = vunpack.c.l.b16 %v557
        %v3278 = vunpack.c.l.b16 %v558
        %v3279 = vunpack.c.l.b16 %v559
        %v3280 = vunpack.c.l.b16 %v560
        %v3281 = vunpack.c.l.b16 %v561
        %v3282 = vunpack.c.l.b16 %v562
        %v3283 = vunpack.c.l.b16 %v563
        %v3284 = vunpack.c.l.b16 %v564
        %v3285 = vunpack.c.l.b16 %v565
        %v3286 = vunpack.c.l.b16 %v566
        %v3287 = vunpack.c.l.b16 %v567
        %v3288 = vunpack.c.l.b16 %v568
        %v3289 = vunpack.c.l.b16 %v569
        %v3290 = vunpack.c.l.b16 %v570
        %v3291 = vunpack.c.l.b16 %v571
        %v3292 = vunpack.c.l.b16 %v572
        %v3293 = vunpack.c.l.b16 %v573
        %v3294 = vunpack.c.l.b16 %v574
        %v3295 = vunpack.c.l.b16 %v575
        %v3296 = vunpack.c.l.b16 %v576
        %v3297 = vunpack.c.l.b16 %v577
        %v3298 = vunpack.c.l.b16 %v578
        %v3299 = vunpack.c.l.b16 %v579
        %v3300 = vunpack.c.l.b16 %v580
        %v3301 = vunpack.c.l.b16 %v581
        %v3302 = vunpack.c.l.b16 %v582
        %v3303 = vunpack.c.l.b16 %v583
        %v3304 = vunpack.c.l.b16 %v584
        %v3305 = vunpack.c.l.b16 %v585
        %v3306 = vunpack.c.l.b16 %v586
        %v3307 = vunpack.c.l.b16 %v587
        %v3308 = vunpack.c.l.b16 %v588
        %v3309 = vunpack.c.l.b16 %v589
        %v3310 = vunpack.c.l.b16 %v590
        %v3311 = vunpack.c.l.b16 %v591
        %v3312 = vunpack.c.l.b16 %v592
        %v3313 = vunpack.c.l.b16 %v593
        %v3314 = vunpack.c.l.b16 %v594
        %v3315 = vunpack.c.l.b16 %v595
        %v3316 = vunpack.c.l.b16 %v596
        %v3317 = vunpack.c.l.b16 %v597
        %v3318 = vunpack.c.l.b16 %v598
        %v3319 = vunpack.c.l.b16 %v599
        %v3320 = vunpack.c.l.b16 %v600
        %v3321 = vunpack.c.l.b16 %v601
        %v3322 = vunpack.c.l.b16 %v602
        %v3323 = vunpack.c.l.b16 %v603
        %v3324 = vunpack.c.l.b16 %v604
        %v3325 = vunpack.c.l.b16 %v605
        %v3326 = vunpack.c.l.b16 %v606
        %v3327 = vunpack.c.l.b16 %v607
        %v3328 = vunpack.c.l.b16 %v608
        %v3329 = vunpack.c.l.b16 %v609
        %v3330 = vunpack.c.l.b16 %v610
        %v3331 = vunpack.c.l.b16 %v611
        %v3332 = vunpack.c.l.b16 %v612
        %v3333 = vunpack.c.l.b16 %v613
        %v3334 = vunpack.c.l.b16 %v614
        %v3335 = vunpack.c.l.b16 %v615
        %v3336 = vunpack.c.l.b16 %v616
        %v3337 = vunpack.c.l.b16 %v617
        %v3338 = vunpack.c.l.b16 %v618
        %v3339 = vunpack.c.l.b16 %v619
        %v3340 = vunpack.c.l.b16 %v620
        %v3341 = vunpack.c.l.b16 %v621
        %v3342 = vunpack.c.l.b16 %v622
        %v3343 = vunpack.c.l.b16 %v623
        %v3344 = vunpack.c.l.b16 %v624
        %v3345 = vunpack.c.l.b16 %v625
        %v3346 = vunpack.c.l.b16 %v626
        %v3347 = vunpack.c.l.b16 %v627
        %v3348 = vunpack.c.l.b16 %v628
        %v3349 = vunpack.c.l.b16 %v629
        %v3350 = vunpack.c.l.b16 %v630
        %v3351 = vunpack.c.l.b16 %v631
        %v3352 = vunpack.c.l.b16 %v632
        %v3353 = vunpack.c.l.b16 %v633
        %v3354 = vunpack.c.l.b16 %v634
        %v3355 = vunpack.c.l.b16 %v635
        %v3356 = vunpack.c.l.b16 %v636
        %v3357 = vunpack.c.l.b16 %v637
        %v3358 = vunpack.c.l.b16 %v638
        %v3359 = vunpack.c.l.b16 %v639
        %v3360 = vunpack.c.l.b16 %v640
        %v3361 = vunpack.c.l.b16 %v641
        %v3362 = vunpack.c.l.b16 %v642
        %v3363 = vunpack.c.l.b16 %v643
        %v3364 = vunpack.c.l.b16 %v644
        %v3365 = vunpack.c.l.b16 %v645
        %v3366 = vunpack.c.l.b16 %v646
        %v3367 = vunpack.c.l.b16 %v647
        %v3368 = vunpack.c.l.b16 %v648
        %v3369 = vunpack.c.l.b16 %v649
        %v3370 = vunpack.c.l.b16 %v650
        %v3371 = vunpack.c.l.b16 %v651
        %v3372 = vunpack.c.l.b16 %v652
        %v3373 = vunpack.c.l.b16 %v653
        %v3374 = vunpack.c.l.b16 %v654
        %v3375 = vunpack.c.l.b16 %v655
        %v3376 = vunpack.c.l.b16 %v656
        %v3377 = vunpack.c.l.b16 %v657
        %v3378 = vunpack.c.l.b16 %v658
        %v3379 = vunpack.c.l.b16 %v659
        %v3380 = vunpack.c.l.b16 %v660
        %v3381 = vunpack.c.l.b16 %v661
        %v3382 = vunpack.c.l.b16 %v662
        %v3383 = vunpack.c.l.b16 %v663
        %v3384 = vunpack.c.l.b16 %v664
        %v3385 = vunpack.c.l.b16 %v665
        %v3386 = vunpack.c.l.b16 %v666
        %v3387 = vunpack.c.l.b16 %v667
        %v3388 = vunpack.c.l.b16 %v668
        %v3389 = vunpack.c.l.b16 %v669
        %v3390 = vunpack.c.l.b16 %v670
        %v3391 = vunpack.c.l.b16 %v671
        %v3392 = vunpack.c.l.b16 %v672
        %v3393 = vunpack.c.l.b16 %v673
        %v3394 = vunpack.c.l.b16 %v674
        %v3395 = vunpack.c.l.b16 %v675
        %v3396 = vunpack.c.l.b16 %v676
        %v3397 = vunpack.c.l.b16 %v677
        %v3398 = vunpack.c.l.b16 %v678
        %v3399 = vunpack.c.l.b16 %v679
        %v3400 = vunpack.c.l.b16 %v680
        %v3401 = vunpack.c.l.b16 %v681
        %v3402 = vunpack.c.l.b16 %v682
        %v3403 = vunpack.c.l.b16 %v683
        %v3404 = vunpack.c.l.b16 %v684
        %v3405 = vunpack.c.l.b16 %v685
        %v3406 = vunpack.c.l.b16 %v686
        %v3407 = vpack.c.b16 %v3068, %v3067
        %v3408 = vpack.c.b16 %v3070, %v3069
        %v3409 = vpack.c.b16 %v3072, %v3071
        %v3410 = vpack.c.b16 %v3074, %v3073
        %v3411 = vpack.c.b16 %v3076, %v3075
        %v3412 = vpack.c.b16 %v3078, %v3077
        %v3413 = vpack.c.b16 %v3080, %v3079
        %v3414 = vpack.c.b16 %v3082, %v3081
        %v3415 = vpack.c.b16 %v3084, %v3083
        %v3416 = vpack.c.b16 %v3086, %v3085
        %v3417 = vpack.c.b16 %v3088, %v3087
        %v3418 = vpack.c.b16 %v3090, %v3089
        %v3419 = vpack.c.b16 %v3092, %v3091
        %v3420 = vpack.c.b16 %v3094, %v3093
        %v3421 = vpack.c.b16 %v3096, %v3095
        %v3422 = vpack.c.b16 %v3098, %v3097
        %v3423 = vpack.c.b16 %v3100, %v3099
        %v3424 = vpack.c.b16 %v3102, %v3101
        %v3425 = vpack.c.b16 %v3104, %v3103
        %v3426 = vpack.c.b16 %v3106, %v3105
        %v3427 = vpack.c.b16 %v3108, %v3107
        %v3428 = vpack.c.b16 %v3110, %v3109
        %v3429 = vpack.c.b16 %v3112, %v3111
        %v3430 = vpack.c.b16 %v3114, %v3113
        %v3431 = vpack.c.b16 %v3116, %v3115
        %v3432 = vpack.c.b16 %v3118, %v3117
        %v3433 = vpack.c.b16 %v3120, %v3119
        %v3434 = vpack.c.b16 %v3122, %v3121
        %v3435 = vpack.c.b16 %v3124, %v3123
        %v3436 = vpack.c.b16 %v3126, %v3125
        %v3437 = vpack.c.b16 %v3128, %v3127
        %v3438 = vpack.c.b16 %v3130, %v3129
        %v3439 = vpack.c.b16 %v3132, %v3131
        %v3440 = vpack.c.b16 %v3134, %v3133
        %v3441 = vpack.c.b16 %v3136, %v3135
        %v3442 = vpack.c.b16 %v3138, %v3137
        %v3443 = vpack.c.b16 %v3140, %v3139
        %v3444 = vpack.c.b16 %v3142, %v3141
        %v3445 = vpack.c.b16 %v3144, %v3143
        %v3446 = vpack.c.b16 %v3146, %v3145
        %v3447 = vpack.c.b16 %v3148, %v3147
        %v3448 = vpack.c.b16 %v3150, %v3149
        %v3449 = vpack.c.b16 %v3152, %v3151
        %v3450 = vpack.c.b16 %v3154, %v3153
        %v3451 = vpack.c.b16 %v3156, %v3155
        %v3452 = vpack.c.b16 %v3158, %v3157
        %v3453 = vpack.c.b16 %v3160, %v3159
        %v3454 = vpack.c.b16 %v3162, %v3161
        %v3455 = vpack.c.b16 %v3164, %v3163
        %v3456 = vpack.c.b16 %v3166, %v3165
        %v3457 = vpack.c.b16 %v3168, %v3167
        %v3458 = vpack.c.b16 %v3170, %v3169
        %v3459 = vpack.c.b16 %v3172, %v3171
        %v3460 = vpack.c.b16 %v3174, %v3173
        %v3461 = vpack.c.b16 %v3176, %v3175
        %v3462 = vpack.c.b16 %v3178, %v3177
        %v3463 = vpack.c.b16 %v3180, %v3179
        %v3464 = vpack.c.b16 %v3182, %v3181
        %v3465 = vpack.c.b16 %v3184, %v3183
        %v3466 = vpack.c.b16 %v3186, %v3185
        %v3467 = vpack.c.b16 %v3188, %v3187
        %v3468 = vpack.c.b16 %v3190, %v3189
        %v3469 = vpack.c.b16 %v3192, %v3191
        %v3470 = vpack.c.b16 %v3194, %v3193
        %v3471 = vpack.c.b16 %v3196, %v3195
        %v3472 = vpack.c.b16 %v3198, %v3197
        %v3473 = vpack.c.b16 %v3200, %v3199
        %v3474 = vpack.c.b16 %v3202, %v3201
        %v3475 = vpack.c.b16 %v3204, %v3203
        %v3476 = vpack.c.b16 %v3206, %v3205
        %v3477 = vpack.c.b16 %v3208, %v3207
        %v3478 = vpack.c.b16 %v3210, %v3209
        %v3479 = vpack.c.b16 %v3212, %v3211
        %v3480 = vpack.c.b16 %v3214, %v3213
        %v3481 = vpack.c.b16 %v3216, %v3215
        %v3482 = vpack.c.b16 %v3218, %v3217
        %v3483 = vpack.c.b16 %v3220, %v3219
        %v3484 = vpack.c.b16 %v3222, %v3221
        %v3485 = vpack.c.b16 %v3224, %v3223
        %v3486 = vpack.c.b16 %v3226, %v3225
        %v3487 = vpack.c.b16 %v3228, %v3227
        %v3488 = vpack.c.b16 %v3230, %v3229
        %v3489 = vpack.c.b16 %v3232, %v3231
        %v3490 = vpack.c.b16 %v3234, %v3233
        %v3491 = vpack.c.b16 %v3236, %v3235
        %v3492 = vpack.c.b16 %v3238, %v3237
        %v3493 = vpack.c.b16 %v3240, %v3239
        %v3494 = vpack.c.b16 %v3242, %v3241
        %v3495 = vpack.c.b16 %v3244, %v3243
        %v3496 = vpack.c.b16 %v3246, %v3245
        %v3497 = vpack.c.b16 %v3248, %v3247
        %v3498 = vpack.c.b16 %v3250, %v3249
        %v3499 = vpack.c.b16 %v3252, %v3251
        %v3500 = vpack.c.b16 %v3254, %v3253
        %v3501 = vpack.c.b16 %v3256, %v3255
        %v3502 = vpack.c.b16 %v3258, %v3257
        %v3503 = vpack.c.b16 %v3260, %v3259
        %v3504 = vpack.c.b16 %v3262, %v3261
        %v3505 = vpack.c.b16 %v3264, %v3263
        %v3506 = vpack.c.b16 %v3266, %v3265
        %v3507 = vpack.c.b16 %v3268, %v3267
        %v3508 = vpack.c.b16 %v3270, %v3269
        %v3509 = vpack.c.b16 %v3272, %v3271
        %v3510 = vpack.c.b16 %v3274, %v3273
        %v3511 = vpack.c.b16 %v3276, %v3275
        %v3512 = vpack.c.b16 %v3278, %v3277
        %v3513 = vpack.c.b16 %v3280, %v3279
        %v3514 = vpack.c.b16 %v3282, %v3281
        %v3515 = vpack.c.b16 %v3284, %v3283
        %v3516 = vpack.c.b16 %v3286, %v3285
        %v3517 = vpack.c.b16 %v3288, %v3287
        %v3518 = vpack.c.b16 %v3290, %v3289
        %v3519 = vpack.c.b16 %v3292, %v3291
        %v3520 = vpack.c.b16 %v3294, %v3293
        %v3521 = vpack.c.b16 %v3296, %v3295
        %v3522 = vpack.c.b16 %v3298, %v3297
        %v3523 = vpack.c.b16 %v3300, %v3299
        %v3524 = vpack.c.b16 %v3302, %v3301
        %v3525 = vpack.c.b16 %v3304, %v3303
        %v3526 = vpack.c.b16 %v3306, %v3305
        %v3527 = vpack.c.b16 %v3308, %v3307
        %v3528 = vpack.c.b16 %v3310, %v3309
        %v3529 = vpack.c.b16 %v3312, %v3311
        %v3530 = vpack.c.b16 %v3314, %v3313
        %v3531 = vpack.c.b16 %v3316, %v3315
        %v3532 = vpack.c.b16 %v3318, %v3317
        %v3533 = vpack.c.b16 %v3320, %v3319
        %v3534 = vpack.c.b16 %v3322, %v3321
        %v3535 = vpack.c.b16 %v3324, %v3323
        %v3536 = vpack.c.b16 %v3326, %v3325
        %v3537 = vpack.c.b16 %v3328, %v3327
        %v3538 = vpack.c.b16 %v3330, %v3329
        %v3539 = vpack.c.b16 %v3332, %v3331
        %v3540 = vpack.c.b16 %v3334, %v3333
        %v3541 = vpack.c.b16 %v3336, %v3335
        %v3542 = vpack.c.b16 %v3338, %v3337
        %v3543 = vpack.c.b16 %v3340, %v3339
        %v3544 = vpack.c.b16 %v3342, %v3341
        %v3545 = vpack.c.b16 %v3344, %v3343
        %v3546 = vpack.c.b16 %v3346, %v3345
        %v3547 = vpack.c.b16 %v3348, %v3347
        %v3548 = vpack.c.b16 %v3350, %v3349
        %v3549 = vpack.c.b16 %v3352, %v3351
        %v3550 = vpack.c.b16 %v3354, %v3353
        %v3551 = vpack.c.b16 %v3356, %v3355
        %v3552 = vpack.c.b16 %v3358, %v3357
        %v3553 = vpack.c.b16 %v3360, %v3359
        %v3554 = vpack.c.b16 %v3362, %v3361
        %v3555 = vpack.c.b16 %v3364, %v3363
        %v3556 = vpack.c.b16 %v3366, %v3365
        %v3557 = vpack.c.b16 %v3368, %v3367
        %v3558 = vpack.c.b16 %v3370, %v3369
        %v3559 = vpack.c.b16 %v3372, %v3371
        %v3560 = vpack.c.b16 %v3374, %v3373
        %v3561 = vpack.c.b16 %v3376, %v3375
        %v3562 = vpack.c.b16 %v3378, %v3377
        %v3563 = vpack.c.b16 %v3380, %v3379
        %v3564 = vpack.c.b16 %v3382, %v3381
        %v3565 = vpack.c.b16 %v3384, %v3383
        %v3566 = vpack.c.b16 %v3386, %v3385
        %v3567 = vpack.c.b16 %v3388, %v3387
        %v3568 = vpack.c.b16 %v3390, %v3389
        %v3569 = vpack.c.b16 %v3392, %v3391
        %v3570 = vpack.c.b16 %v3394, %v3393
        %v3571 = vpack.c.b16 %v3396, %v3395
        %v3572 = vpack.c.b16 %v3398, %v3397
        %v3573 = vpack.c.b16 %v3400, %v3399
        %v3574 = vpack.c.b16 %v3402, %v3401
        %v3575 = vpack.c.b16 %v3404, %v3403
        %v3576 = vpack.c.b16 %v3406, %v3405
        %v3579 = vunpack.c.l.s4 1983009808
        %v3580 = vunpack.c.0.s8 %v3579
        %v3581 = vlaneseq
        %v3582 = vshrl.u32 %v3581, 7
        %v3583 = vsub.s32 %v3580, %v3582
        %v3584 = vrot.slane %v314, %v3583
        %v3585 = vcombine.high %v3584, %v3584
        %vm3586 = vcmask 31744
        %v3588 = vsel %vm3586, %v3407, 0
        %v3591 = vsel %vm3586, %v3408, 0
        %v3594 = vsel %vm3586, %v3409, 0
        %v3597 = vsel %vm3586, %v3410, 0
        %v3600 = vsel %vm3586, %v3411, 0
        %v3603 = vsel %vm3586, %v3412, 0
        %v3606 = vsel %vm3586, %v3413, 0
        %v3609 = vsel %vm3586, %v3414, 0
        %v3612 = vsel %vm3586, %v3415, 0
        %v3615 = vsel %vm3586, %v3416, 0
        %v3618 = vsel %vm3586, %v3417, 0
        %v3621 = vsel %vm3586, %v3418, 0
        %v3624 = vsel %vm3586, %v3419, 0
        %v3627 = vsel %vm3586, %v3420, 0
        %v3630 = vsel %vm3586, %v3421, 0
        %v3633 = vsel %vm3586, %v3422, 0
        %v3636 = vsel %vm3586, %v3423, 0
        %v3639 = vsel %vm3586, %v3424, 0
        %v3642 = vsel %vm3586, %v3425, 0
        %v3645 = vsel %vm3586, %v3426, 0
        %v3648 = vsel %vm3586, %v3427, 0
        %v3651 = vsel %vm3586, %v3428, 0
        %v3654 = vsel %vm3586, %v3429, 0
        %v3657 = vsel %vm3586, %v3430, 0
        %v3660 = vsel %vm3586, %v3431, 0
        %v3663 = vsel %vm3586, %v3432, 0
        %v3666 = vsel %vm3586, %v3433, 0
        %v3669 = vsel %vm3586, %v3434, 0
        %v3672 = vsel %vm3586, %v3435, 0
        %v3675 = vsel %vm3586, %v3436, 0
        %v3678 = vsel %vm3586, %v3437, 0
        %v3681 = vsel %vm3586, %v3438, 0
        %v3684 = vsel %vm3586, %v3439, 0
        %v3687 = vsel %vm3586, %v3440, 0
        %v3690 = vsel %vm3586, %v3441, 0
        %v3693 = vsel %vm3586, %v3442, 0
        %v3696 = vsel %vm3586, %v3443, 0
        %v3699 = vsel %vm3586, %v3444, 0
        %v3702 = vsel %vm3586, %v3445, 0
        %v3705 = vsel %vm3586, %v3446, 0
        %v3708 = vsel %vm3586, %v3447, 0
        %v3711 = vsel %vm3586, %v3448, 0
        %v3714 = vsel %vm3586, %v3449, 0
        %v3717 = vsel %vm3586, %v3450, 0
        %v3720 = vsel %vm3586, %v3451, 0
        %v3723 = vsel %vm3586, %v3452, 0
        %v3726 = vsel %vm3586, %v3453, 0
        %v3729 = vsel %vm3586, %v3454, 0
        %v3732 = vsel %vm3586, %v3455, 0
        %v3735 = vsel %vm3586, %v3456, 0
        %v3738 = vsel %vm3586, %v3457, 0
        %v3741 = vsel %vm3586, %v3458, 0
        %v3744 = vsel %vm3586, %v3459, 0
        %v3747 = vsel %vm3586, %v3460, 0
        %v3750 = vsel %vm3586, %v3461, 0
        %v3753 = vsel %vm3586, %v3462, 0
        %v3756 = vsel %vm3586, %v3463, 0
        %v3759 = vsel %vm3586, %v3464, 0
        %v3762 = vsel %vm3586, %v3465, 0
        %v3765 = vsel %vm3586, %v3466, 0
        %v3768 = vsel %vm3586, %v3467, 0
        %v3771 = vsel %vm3586, %v3468, 0
        %v3774 = vsel %vm3586, %v3469, 0
        %v3777 = vsel %vm3586, %v3470, 0
        %v3780 = vsel %vm3586, %v3471, 0
        %v3783 = vsel %vm3586, %v3472, 0
        %v3786 = vsel %vm3586, %v3473, 0
        %v3789 = vsel %vm3586, %v3474, 0
        %v3792 = vsel %vm3586, %v3475, 0
        %v3795 = vsel %vm3586, %v3476, 0
        %v3798 = vsel %vm3586, %v3477, 0
        %v3801 = vsel %vm3586, %v3478, 0
        %v3804 = vsel %vm3586, %v3479, 0
        %v3807 = vsel %vm3586, %v3480, 0
        %v3810 = vsel %vm3586, %v3481, 0
        %v3813 = vsel %vm3586, %v3482, 0
        %v3816 = vsel %vm3586, %v3483, 0
        %v3819 = vsel %vm3586, %v3484, 0
        %v3822 = vsel %vm3586, %v3485, 0
        %v3825 = vsel %vm3586, %v3486, 0
        %v3828 = vsel %vm3586, %v3487, 0
        %v3831 = vsel %vm3586, %v3488, 0
        %v3834 = vsel %vm3586, %v3489, 0
        %v3837 = vsel %vm3586, %v3490, 0
        %v3840 = vsel %vm3586, %v3491, 0
        %v3843 = vsel %vm3586, %v3492, 0
        %v3846 = vsel %vm3586, %v3493, 0
        %v3849 = vsel %vm3586, %v3494, 0
        %v3852 = vsel %vm3586, %v3495, 0
        %v3855 = vsel %vm3586, %v3496, 0
        %v3858 = vsel %vm3586, %v3497, 0
        %v3861 = vsel %vm3586, %v3498, 0
        %v3864 = vsel %vm3586, %v3499, 0
        %v3867 = vsel %vm3586, %v3500, 0
        %v3870 = vsel %vm3586, %v3501, 0
        %v3873 = vsel %vm3586, %v3502, 0
        %v3876 = vsel %vm3586, %v3503, 0
        %v3879 = vsel %vm3586, %v3504, 0
        %v3882 = vsel %vm3586, %v3505, 0
        %v3885 = vsel %vm3586, %v3506, 0
        %v3888 = vsel %vm3586, %v3507, 0
        %v3891 = vsel %vm3586, %v3508, 0
        %v3894 = vsel %vm3586, %v3509, 0
        %v3897 = vsel %vm3586, %v3510, 0
        %v3900 = vsel %vm3586, %v3511, 0
        %v3903 = vsel %vm3586, %v3512, 0
        %v3906 = vsel %vm3586, %v3513, 0
        %v3909 = vsel %vm3586, %v3514, 0
        %v3912 = vsel %vm3586, %v3515, 0
        %v3915 = vsel %vm3586, %v3516, 0
        %v3918 = vsel %vm3586, %v3517, 0
        %v3921 = vsel %vm3586, %v3518, 0
        %v3924 = vsel %vm3586, %v3519, 0
        %v3927 = vsel %vm3586, %v3520, 0
        %v3930 = vsel %vm3586, %v3521, 0
        %v3933 = vsel %vm3586, %v3522, 0
        %v3936 = vsel %vm3586, %v3523, 0
        %v3939 = vsel %vm3586, %v3524, 0
        %v3942 = vsel %vm3586, %v3525, 0
        %v3945 = vsel %vm3586, %v3526, 0
        %v3948 = vsel %vm3586, %v3527, 0
        %v3951 = vsel %vm3586, %v3528, 0
        %v3954 = vsel %vm3586, %v3529, 0
        %v3957 = vsel %vm3586, %v3530, 0
        %v3960 = vsel %vm3586, %v3531, 0
        %v3963 = vsel %vm3586, %v3532, 0
        %v3966 = vsel %vm3586, %v3533, 0
        %v3969 = vsel %vm3586, %v3534, 0
        %v3972 = vsel %vm3586, %v3535, 0
        %v3975 = vsel %vm3586, %v3536, 0
        %v3978 = vsel %vm3586, %v3537, 0
        %v3981 = vsel %vm3586, %v3538, 0
        %v3984 = vsel %vm3586, %v3539, 0
        %v3987 = vsel %vm3586, %v3540, 0
        %v3990 = vsel %vm3586, %v3541, 0
        %v3993 = vsel %vm3586, %v3542, 0
        %v3996 = vsel %vm3586, %v3543, 0
        %v3999 = vsel %vm3586, %v3544, 0
        %v4002 = vsel %vm3586, %v3545, 0
        %v4005 = vsel %vm3586, %v3546, 0
        %v4008 = vsel %vm3586, %v3547, 0
        %v4011 = vsel %vm3586, %v3548, 0
        %v4014 = vsel %vm3586, %v3549, 0
        %v4017 = vsel %vm3586, %v3550, 0
        %v4020 = vsel %vm3586, %v3551, 0
        %v4023 = vsel %vm3586, %v3552, 0
        %v4026 = vsel %vm3586, %v3553, 0
        %v4029 = vsel %vm3586, %v3554, 0
        %v4032 = vsel %vm3586, %v3555, 0
        %v4035 = vsel %vm3586, %v3556, 0
        %v4038 = vsel %vm3586, %v3557, 0
        %v4041 = vsel %vm3586, %v3558, 0
        %v4044 = vsel %vm3586, %v3559, 0
        %v4047 = vsel %vm3586, %v3560, 0
        %v4050 = vsel %vm3586, %v3561, 0
        %v4053 = vsel %vm3586, %v3562, 0
        %v4056 = vsel %vm3586, %v3563, 0
        %v4059 = vsel %vm3586, %v3564, 0
        %v4062 = vsel %vm3586, %v3565, 0
        %v4065 = vsel %vm3586, %v3566, 0
        %v4068 = vsel %vm3586, %v3567, 0
        %v4071 = vsel %vm3586, %v3568, 0
        %v4074 = vsel %vm3586, %v3569, 0
        %v4077 = vsel %vm3586, %v3570, 0
        %v4080 = vsel %vm3586, %v3571, 0
        %v4083 = vsel %vm3586, %v3572, 0
        %v4086 = vsel %vm3586, %v3573, 0
        %v4089 = vsel %vm3586, %v3574, 0
        %v4092 = vsel %vm3586, %v3575, 0
        %v4095 = vsel %vm3586, %v3576, 0
        %vm4097 = vcmask 1041408
        %v4099 = vsel %vm4097, %v3584, 0
        %v4102 = vsel %vm4097, %v3585, 0
        %4104 = vmatprep.subr.bf16.mxu0 %v4102
        %4105 = vmatpush1.bf16.msra.mxu0 %v4099
        %4106 = vmatprep.subr.bf16.mxu0 0
        %4107 = vmatpush1.bf16.msra.mxu0 0
        %4108 = vmatprep.subr.bf16.mxu0 0
        %4109 = vmatpush1.bf16.msra.mxu0 0
        %4110 = vmatprep.subr.bf16.mxu0 0
        %4111 = vmatpush1.bf16.msra.mxu0 0
        %4112 = vmatprep.subr.bf16.mxu0 0
        %4113 = vmatpush1.bf16.msra.mxu0 0
        %4114 = vmatprep.subr.bf16.mxu0 0
        %4115 = vmatpush1.bf16.msra.mxu0 0
        %4116 = vmatprep.subr.bf16.mxu0 0
        %4117 = vmatpush1.bf16.msra.mxu0 0
        %4118 = vmatprep.subr.bf16.mxu0 0
        %4119 = vmatpush1.bf16.msra.mxu0 0
        %4120 = vmatprep.subr.bf16.mxu0 0
        %4121 = vmatpush1.bf16.msra.mxu0 0
        %4122 = vmatprep.subr.bf16.mxu0 0
        %4123 = vmatpush1.bf16.msra.mxu0 0
        %4124 = vmatprep.subr.bf16.mxu0 0
        %4125 = vmatpush1.bf16.msra.mxu0 0
        %4126 = vmatprep.subr.bf16.mxu0 0
        %4127 = vmatpush1.bf16.msra.mxu0 0
        %4128 = vmatprep.subr.bf16.mxu0 0
        %4129 = vmatpush1.bf16.msra.mxu0 0
        %4130 = vmatprep.subr.bf16.mxu0 0
        %4131 = vmatpush1.bf16.msra.mxu0 0
        %4132 = vmatprep.subr.bf16.mxu0 0
        %4133 = vmatpush1.bf16.msra.mxu0 0
        %4134 = vmatprep.subr.bf16.mxu0 0
        %4135 = vmatpush1.bf16.msra.mxu0 0
        %4136 = vmatprep.mubr.bf16.mxu0 0
        %4137 = vmatmul.mubr.bf16.gmra.mrb[0].mxu0 %v3588
        %v4138 = vpop.f32.mrb[0].mxu0
        %v4139 = vadd.f32 %v1030, %v4138
        %v4140 = vpop.f32.mrb[0].mxu0
        %v4141 = vadd.f32 %v1030, %v4140
        %v4142 = vpop.f32.mrb[0].mxu0
        %v4143 = vadd.f32 %v1035, %v4142
        %v4144 = vpop.f32.mrb[0].mxu0
        %v4145 = vadd.f32 %v1035, %v4144
        %4146 = vmatprep.mubr.bf16.mxu0 0
        %4147 = vmatmul.mubr.bf16.gmra.mrb[0].mxu0 %v3591
        %v4148 = vpop.f32.mrb[0].mxu0
        %v4149 = vadd.f32 %v1040, %v4148
        %v4150 = vpop.f32.mrb[0].mxu0
        %v4151 = vadd.f32 %v1040, %v4150
        %v4152 = vpop.f32.mrb[0].mxu0
        %v4153 = vadd.f32 %v1045, %v4152
        %v4154 = vpop.f32.mrb[0].mxu0
        %v4155 = vadd.f32 %v1045, %v4154
        %4156 = vmatprep.mubr.bf16.mxu0 0
        %4157 = vmatmul.mubr.bf16.gmra.mrb[0].mxu0 %v3594
        %v4158 = vpop.f32.mrb[0].mxu0
        %v4159 = vadd.f32 %v1050, %v4158
        %v4160 = vpop.f32.mrb[0].mxu0
        %v4161 = vadd.f32 %v1050, %v4160
        %v4162 = vpop.f32.mrb[0].mxu0
        %v4163 = vadd.f32 %v1055, %v4162
        %v4164 = vpop.f32.mrb[0].mxu0
        %v4165 = vadd.f32 %v1055, %v4164
        %4166 = vmatprep.mubr.bf16.mxu0 0
        %4167 = vmatmul.mubr.bf16.gmra.mrb[0].mxu0 %v3597
        %v4168 = vpop.f32.mrb[0].mxu0
        %v4169 = vadd.f32 %v1060, %v4168
        %v4170 = vpop.f32.mrb[0].mxu0
        %v4171 = vadd.f32 %v1060, %v4170
        %v4172 = vpop.f32.mrb[0].mxu0
        %v4173 = vadd.f32 %v1065, %v4172
        %v4174 = vpop.f32.mrb[0].mxu0
        %v4175 = vadd.f32 %v1065, %v4174
        %4176 = vmatprep.mubr.bf16.mxu0 0
        %4177 = vmatmul.mubr.bf16.gmra.mrb[0].mxu0 %v3600
        %v4178 = vpop.f32.mrb[0].mxu0
        %v4179 = vadd.f32 %v1070, %v4178
        %v4180 = vpop.f32.mrb[0].mxu0
        %v4181 = vadd.f32 %v1070, %v4180
        %v4182 = vpop.f32.mrb[0].mxu0
        %v4183 = vadd.f32 %v1075, %v4182
        %v4184 = vpop.f32.mrb[0].mxu0
        %v4185 = vadd.f32 %v1075, %v4184
        %4186 = vmatprep.mubr.bf16.mxu0 0
        %4187 = vmatmul.mubr.bf16.gmra.mrb[0].mxu0 %v3603
        %v4188 = vpop.f32.mrb[0].mxu0
        %v4189 = vadd.f32 %v1080, %v4188
        %v4190 = vpop.f32.mrb[0].mxu0
        %v4191 = vadd.f32 %v1080, %v4190
        %v4192 = vpop.f32.mrb[0].mxu0
        %v4193 = vadd.f32 %v1085, %v4192
        %v4194 = vpop.f32.mrb[0].mxu0
        %v4195 = vadd.f32 %v1085, %v4194
        %4196 = vmatprep.mubr.bf16.mxu0 0
        %4197 = vmatmul.mubr.bf16.gmra.mrb[0].mxu0 %v3606
        %v4198 = vpop.f32.mrb[0].mxu0
        %v4199 = vadd.f32 %v1090, %v4198
        %v4200 = vpop.f32.mrb[0].mxu0
        %v4201 = vadd.f32 %v1090, %v4200
        %v4202 = vpop.f32.mrb[0].mxu0
        %v4203 = vadd.f32 %v1095, %v4202
        %v4204 = vpop.f32.mrb[0].mxu0
        %v4205 = vadd.f32 %v1095, %v4204
        %4206 = vmatprep.mubr.bf16.mxu0 0
        %4207 = vmatmul.mubr.bf16.gmra.mrb[0].mxu0 %v3609
        %v4208 = vpop.f32.mrb[0].mxu0
        %v4209 = vadd.f32 %v1100, %v4208
        %v4210 = vpop.f32.mrb[0].mxu0
        %v4211 = vadd.f32 %v1100, %v4210
        %v4212 = vpop.f32.mrb[0].mxu0
        %v4213 = vadd.f32 %v1105, %v4212
        %v4214 = vpop.f32.mrb[0].mxu0
        %v4215 = vadd.f32 %v1105, %v4214
        %4216 = vmatprep.mubr.bf16.mxu0 0
        %4217 = vmatmul.mubr.bf16.gmra.mrb[0].mxu0 %v3612
        %v4218 = vpop.f32.mrb[0].mxu0
        %v4219 = vadd.f32 %v1110, %v4218
        %v4220 = vpop.f32.mrb[0].mxu0
        %v4221 = vadd.f32 %v1110, %v4220
        %v4222 = vpop.f32.mrb[0].mxu0
        %v4223 = vadd.f32 %v1115, %v4222
        %v4224 = vpop.f32.mrb[0].mxu0
        %v4225 = vadd.f32 %v1115, %v4224
        %4226 = vmatprep.mubr.bf16.mxu0 0
        %4227 = vmatmul.mubr.bf16.gmra.mrb[0].mxu0 %v3615
        %v4228 = vpop.f32.mrb[0].mxu0
        %v4229 = vadd.f32 %v1120, %v4228
        %v4230 = vpop.f32.mrb[0].mxu0
        %v4231 = vadd.f32 %v1120, %v4230
        %v4232 = vpop.f32.mrb[0].mxu0
        %v4233 = vadd.f32 %v1125, %v4232
        %v4234 = vpop.f32.mrb[0].mxu0
        %v4235 = vadd.f32 %v1125, %v4234
        %4236 = vmatprep.mubr.bf16.mxu0 0
        %4237 = vmatmul.mubr.bf16.gmra.mrb[0].mxu0 %v3618
        %v4238 = vpop.f32.mrb[0].mxu0
        %v4239 = vadd.f32 %v1130, %v4238
        %v4240 = vpop.f32.mrb[0].mxu0
        %v4241 = vadd.f32 %v1130, %v4240
        %v4242 = vpop.f32.mrb[0].mxu0
        %v4243 = vadd.f32 %v1135, %v4242
        %v4244 = vpop.f32.mrb[0].mxu0
        %v4245 = vadd.f32 %v1135, %v4244
        %4246 = vmatprep.mubr.bf16.mxu0 0
        %4247 = vmatmul.mubr.bf16.gmra.mrb[0].mxu0 %v3621
        %v4248 = vpop.f32.mrb[0].mxu0
        %v4249 = vadd.f32 %v1140, %v4248
        %v4250 = vpop.f32.mrb[0].mxu0
        %v4251 = vadd.f32 %v1140, %v4250
        %v4252 = vpop.f32.mrb[0].mxu0
        %v4253 = vadd.f32 %v1145, %v4252
        %v4254 = vpop.f32.mrb[0].mxu0
        %v4255 = vadd.f32 %v1145, %v4254
        %4256 = vmatprep.mubr.bf16.mxu0 0
        %4257 = vmatmul.mubr.bf16.gmra.mrb[0].mxu0 %v3624
        %v4258 = vpop.f32.mrb[0].mxu0
        %v4259 = vadd.f32 %v1150, %v4258
        %v4260 = vpop.f32.mrb[0].mxu0
        %v4261 = vadd.f32 %v1150, %v4260
        %v4262 = vpop.f32.mrb[0].mxu0
        %v4263 = vadd.f32 %v1155, %v4262
        %v4264 = vpop.f32.mrb[0].mxu0
        %v4265 = vadd.f32 %v1155, %v4264
        %4266 = vmatprep.mubr.bf16.mxu0 0
        %4267 = vmatmul.mubr.bf16.gmra.mrb[0].mxu0 %v3627
        %v4268 = vpop.f32.mrb[0].mxu0
        %v4269 = vadd.f32 %v1160, %v4268
        %v4270 = vpop.f32.mrb[0].mxu0
        %v4271 = vadd.f32 %v1160, %v4270
        %v4272 = vpop.f32.mrb[0].mxu0
        %v4273 = vadd.f32 %v1165, %v4272
        %v4274 = vpop.f32.mrb[0].mxu0
        %v4275 = vadd.f32 %v1165, %v4274
        %4276 = vmatprep.mubr.bf16.mxu0 0
        %4277 = vmatmul.mubr.bf16.gmra.mrb[0].mxu0 %v3630
        %v4278 = vpop.f32.mrb[0].mxu0
        %v4279 = vadd.f32 %v1170, %v4278
        %v4280 = vpop.f32.mrb[0].mxu0
        %v4281 = vadd.f32 %v1170, %v4280
        %v4282 = vpop.f32.mrb[0].mxu0
        %v4283 = vadd.f32 %v1175, %v4282
        %v4284 = vpop.f32.mrb[0].mxu0
        %v4285 = vadd.f32 %v1175, %v4284
        %4286 = vmatprep.mubr.bf16.mxu0 0
        %4287 = vmatmul.mubr.bf16.gmra.mrb[0].mxu0 %v3633
        %v4288 = vpop.f32.mrb[0].mxu0
        %v4289 = vadd.f32 %v1180, %v4288
        %v4290 = vpop.f32.mrb[0].mxu0
        %v4291 = vadd.f32 %v1180, %v4290
        %v4292 = vpop.f32.mrb[0].mxu0
        %v4293 = vadd.f32 %v1185, %v4292
        %v4294 = vpop.f32.mrb[0].mxu0
        %v4295 = vadd.f32 %v1185, %v4294
        %4296 = vmatprep.mubr.bf16.mxu0 0
        %4297 = vmatmul.mubr.bf16.gmra.mrb[0].mxu0 %v3636
        %v4298 = vpop.f32.mrb[0].mxu0
        %v4299 = vadd.f32 %v1190, %v4298
        %v4300 = vpop.f32.mrb[0].mxu0
        %v4301 = vadd.f32 %v1190, %v4300
        %v4302 = vpop.f32.mrb[0].mxu0
        %v4303 = vadd.f32 %v1195, %v4302
        %v4304 = vpop.f32.mrb[0].mxu0
        %v4305 = vadd.f32 %v1195, %v4304
        %4306 = vmatprep.mubr.bf16.mxu0 0
        %4307 = vmatmul.mubr.bf16.gmra.mrb[0].mxu0 %v3639
        %v4308 = vpop.f32.mrb[0].mxu0
        %v4309 = vadd.f32 %v1200, %v4308
        %v4310 = vpop.f32.mrb[0].mxu0
        %v4311 = vadd.f32 %v1200, %v4310
        %v4312 = vpop.f32.mrb[0].mxu0
        %v4313 = vadd.f32 %v1205, %v4312
        %v4314 = vpop.f32.mrb[0].mxu0
        %v4315 = vadd.f32 %v1205, %v4314
        %4316 = vmatprep.mubr.bf16.mxu0 0
        %4317 = vmatmul.mubr.bf16.gmra.mrb[0].mxu0 %v3642
        %v4318 = vpop.f32.mrb[0].mxu0
        %v4319 = vadd.f32 %v1210, %v4318
        %v4320 = vpop.f32.mrb[0].mxu0
        %v4321 = vadd.f32 %v1210, %v4320
        %v4322 = vpop.f32.mrb[0].mxu0
        %v4323 = vadd.f32 %v1215, %v4322
        %v4324 = vpop.f32.mrb[0].mxu0
        %v4325 = vadd.f32 %v1215, %v4324
        %4326 = vmatprep.mubr.bf16.mxu0 0
        %4327 = vmatmul.mubr.bf16.gmra.mrb[0].mxu0 %v3645
        %v4328 = vpop.f32.mrb[0].mxu0
        %v4329 = vadd.f32 %v1220, %v4328
        %v4330 = vpop.f32.mrb[0].mxu0
        %v4331 = vadd.f32 %v1220, %v4330
        %v4332 = vpop.f32.mrb[0].mxu0
        %v4333 = vadd.f32 %v1225, %v4332
        %v4334 = vpop.f32.mrb[0].mxu0
        %v4335 = vadd.f32 %v1225, %v4334
        %4336 = vmatprep.mubr.bf16.mxu0 0
        %4337 = vmatmul.mubr.bf16.gmra.mrb[0].mxu0 %v3648
        %v4338 = vpop.f32.mrb[0].mxu0
        %v4339 = vadd.f32 %v1230, %v4338
        %v4340 = vpop.f32.mrb[0].mxu0
        %v4341 = vadd.f32 %v1230, %v4340
        %v4342 = vpop.f32.mrb[0].mxu0
        %v4343 = vadd.f32 %v1235, %v4342
        %v4344 = vpop.f32.mrb[0].mxu0
        %v4345 = vadd.f32 %v1235, %v4344
        %4346 = vmatprep.mubr.bf16.mxu0 0
        %4347 = vmatmul.mubr.bf16.gmra.mrb[0].mxu0 %v3651
        %v4348 = vpop.f32.mrb[0].mxu0
        %v4349 = vadd.f32 %v1240, %v4348
        %v4350 = vpop.f32.mrb[0].mxu0
        %v4351 = vadd.f32 %v1240, %v4350
        %v4352 = vpop.f32.mrb[0].mxu0
        %v4353 = vadd.f32 %v1245, %v4352
        %v4354 = vpop.f32.mrb[0].mxu0
        %v4355 = vadd.f32 %v1245, %v4354
        %4356 = vmatprep.mubr.bf16.mxu0 0
        %4357 = vmatmul.mubr.bf16.gmra.mrb[0].mxu0 %v3654
        %v4358 = vpop.f32.mrb[0].mxu0
        %v4359 = vadd.f32 %v1250, %v4358
        %v4360 = vpop.f32.mrb[0].mxu0
        %v4361 = vadd.f32 %v1250, %v4360
        %v4362 = vpop.f32.mrb[0].mxu0
        %v4363 = vadd.f32 %v1255, %v4362
        %v4364 = vpop.f32.mrb[0].mxu0
        %v4365 = vadd.f32 %v1255, %v4364
        %4366 = vmatprep.mubr.bf16.mxu0 0
        %4367 = vmatmul.mubr.bf16.gmra.mrb[0].mxu0 %v3657
        %v4368 = vpop.f32.mrb[0].mxu0
        %v4369 = vadd.f32 %v1260, %v4368
        %v4370 = vpop.f32.mrb[0].mxu0
        %v4371 = vadd.f32 %v1260, %v4370
        %v4372 = vpop.f32.mrb[0].mxu0
        %v4373 = vadd.f32 %v1265, %v4372
        %v4374 = vpop.f32.mrb[0].mxu0
        %v4375 = vadd.f32 %v1265, %v4374
        %4376 = vmatprep.mubr.bf16.mxu0 0
        %4377 = vmatmul.mubr.bf16.gmra.mrb[0].mxu0 %v3660
        %v4378 = vpop.f32.mrb[0].mxu0
        %v4379 = vadd.f32 %v1270, %v4378
        %v4380 = vpop.f32.mrb[0].mxu0
        %v4381 = vadd.f32 %v1270, %v4380
        %v4382 = vpop.f32.mrb[0].mxu0
        %v4383 = vadd.f32 %v1275, %v4382
        %v4384 = vpop.f32.mrb[0].mxu0
        %v4385 = vadd.f32 %v1275, %v4384
        %4386 = vmatprep.mubr.bf16.mxu0 0
        %4387 = vmatmul.mubr.bf16.gmra.mrb[0].mxu0 %v3663
        %v4388 = vpop.f32.mrb[0].mxu0
        %v4389 = vadd.f32 %v1280, %v4388
        %v4390 = vpop.f32.mrb[0].mxu0
        %v4391 = vadd.f32 %v1280, %v4390
        %v4392 = vpop.f32.mrb[0].mxu0
        %v4393 = vadd.f32 %v1285, %v4392
        %v4394 = vpop.f32.mrb[0].mxu0
        %v4395 = vadd.f32 %v1285, %v4394
        %4396 = vmatprep.mubr.bf16.mxu0 0
        %4397 = vmatmul.mubr.bf16.gmra.mrb[0].mxu0 %v3666
        %v4398 = vpop.f32.mrb[0].mxu0
        %v4399 = vadd.f32 %v1290, %v4398
        %v4400 = vpop.f32.mrb[0].mxu0
        %v4401 = vadd.f32 %v1290, %v4400
        %v4402 = vpop.f32.mrb[0].mxu0
        %v4403 = vadd.f32 %v1295, %v4402
        %v4404 = vpop.f32.mrb[0].mxu0
        %v4405 = vadd.f32 %v1295, %v4404
        %4406 = vmatprep.mubr.bf16.mxu0 0
        %4407 = vmatmul.mubr.bf16.gmra.mrb[0].mxu0 %v3669
        %v4408 = vpop.f32.mrb[0].mxu0
        %v4409 = vadd.f32 %v1300, %v4408
        %v4410 = vpop.f32.mrb[0].mxu0
        %v4411 = vadd.f32 %v1300, %v4410
        %v4412 = vpop.f32.mrb[0].mxu0
        %v4413 = vadd.f32 %v1305, %v4412
        %v4414 = vpop.f32.mrb[0].mxu0
        %v4415 = vadd.f32 %v1305, %v4414
        %4416 = vmatprep.mubr.bf16.mxu0 0
        %4417 = vmatmul.mubr.bf16.gmra.mrb[0].mxu0 %v3672
        %v4418 = vpop.f32.mrb[0].mxu0
        %v4419 = vadd.f32 %v1310, %v4418
        %v4420 = vpop.f32.mrb[0].mxu0
        %v4421 = vadd.f32 %v1310, %v4420
        %v4422 = vpop.f32.mrb[0].mxu0
        %v4423 = vadd.f32 %v1315, %v4422
        %v4424 = vpop.f32.mrb[0].mxu0
        %v4425 = vadd.f32 %v1315, %v4424
        %4426 = vmatprep.mubr.bf16.mxu0 0
        %4427 = vmatmul.mubr.bf16.gmra.mrb[0].mxu0 %v3675
        %v4428 = vpop.f32.mrb[0].mxu0
        %v4429 = vadd.f32 %v1320, %v4428
        %v4430 = vpop.f32.mrb[0].mxu0
        %v4431 = vadd.f32 %v1320, %v4430
        %v4432 = vpop.f32.mrb[0].mxu0
        %v4433 = vadd.f32 %v1325, %v4432
        %v4434 = vpop.f32.mrb[0].mxu0
        %v4435 = vadd.f32 %v1325, %v4434
        %4436 = vmatprep.mubr.bf16.mxu0 0
        %4437 = vmatmul.mubr.bf16.gmra.mrb[0].mxu0 %v3678
        %v4438 = vpop.f32.mrb[0].mxu0
        %v4439 = vadd.f32 %v1330, %v4438
        %v4440 = vpop.f32.mrb[0].mxu0
        %v4441 = vadd.f32 %v1330, %v4440
        %v4442 = vpop.f32.mrb[0].mxu0
        %v4443 = vadd.f32 %v1335, %v4442
        %v4444 = vpop.f32.mrb[0].mxu0
        %v4445 = vadd.f32 %v1335, %v4444
        %4446 = vmatprep.mubr.bf16.mxu0 0
        %4447 = vmatmul.mubr.bf16.gmra.mrb[0].mxu0 %v3681
        %v4448 = vpop.f32.mrb[0].mxu0
        %v4449 = vadd.f32 %v1340, %v4448
        %v4450 = vpop.f32.mrb[0].mxu0
        %v4451 = vadd.f32 %v1340, %v4450
        %v4452 = vpop.f32.mrb[0].mxu0
        %v4453 = vadd.f32 %v1345, %v4452
        %v4454 = vpop.f32.mrb[0].mxu0
        %v4455 = vadd.f32 %v1345, %v4454
        %4456 = vmatprep.mubr.bf16.mxu0 0
        %4457 = vmatmul.mubr.bf16.gmra.mrb[0].mxu0 %v3684
        %v4458 = vpop.f32.mrb[0].mxu0
        %v4459 = vadd.f32 %v1350, %v4458
        %v4460 = vpop.f32.mrb[0].mxu0
        %v4461 = vadd.f32 %v1350, %v4460
        %v4462 = vpop.f32.mrb[0].mxu0
        %v4463 = vadd.f32 %v1355, %v4462
        %v4464 = vpop.f32.mrb[0].mxu0
        %v4465 = vadd.f32 %v1355, %v4464
        %4466 = vmatprep.mubr.bf16.mxu0 0
        %4467 = vmatmul.mubr.bf16.gmra.mrb[0].mxu0 %v3687
        %v4468 = vpop.f32.mrb[0].mxu0
        %v4469 = vadd.f32 %v1360, %v4468
        %v4470 = vpop.f32.mrb[0].mxu0
        %v4471 = vadd.f32 %v1360, %v4470
        %v4472 = vpop.f32.mrb[0].mxu0
        %v4473 = vadd.f32 %v1365, %v4472
        %v4474 = vpop.f32.mrb[0].mxu0
        %v4475 = vadd.f32 %v1365, %v4474
        %4476 = vmatprep.mubr.bf16.mxu0 0
        %4477 = vmatmul.mubr.bf16.gmra.mrb[0].mxu0 %v3690
        %v4478 = vpop.f32.mrb[0].mxu0
        %v4479 = vadd.f32 %v1370, %v4478
        %v4480 = vpop.f32.mrb[0].mxu0
        %v4481 = vadd.f32 %v1370, %v4480
        %v4482 = vpop.f32.mrb[0].mxu0
        %v4483 = vadd.f32 %v1375, %v4482
        %v4484 = vpop.f32.mrb[0].mxu0
        %v4485 = vadd.f32 %v1375, %v4484
        %4486 = vmatprep.mubr.bf16.mxu0 0
        %4487 = vmatmul.mubr.bf16.gmra.mrb[0].mxu0 %v3693
        %v4488 = vpop.f32.mrb[0].mxu0
        %v4489 = vadd.f32 %v1380, %v4488
        %v4490 = vpop.f32.mrb[0].mxu0
        %v4491 = vadd.f32 %v1380, %v4490
        %v4492 = vpop.f32.mrb[0].mxu0
        %v4493 = vadd.f32 %v1385, %v4492
        %v4494 = vpop.f32.mrb[0].mxu0
        %v4495 = vadd.f32 %v1385, %v4494
        %4496 = vmatprep.mubr.bf16.mxu0 0
        %4497 = vmatmul.mubr.bf16.gmra.mrb[0].mxu0 %v3696
        %v4498 = vpop.f32.mrb[0].mxu0
        %v4499 = vadd.f32 %v1390, %v4498
        %v4500 = vpop.f32.mrb[0].mxu0
        %v4501 = vadd.f32 %v1390, %v4500
        %v4502 = vpop.f32.mrb[0].mxu0
        %v4503 = vadd.f32 %v1395, %v4502
        %v4504 = vpop.f32.mrb[0].mxu0
        %v4505 = vadd.f32 %v1395, %v4504
        %4506 = vmatprep.mubr.bf16.mxu0 0
        %4507 = vmatmul.mubr.bf16.gmra.mrb[0].mxu0 %v3699
        %v4508 = vpop.f32.mrb[0].mxu0
        %v4509 = vadd.f32 %v1400, %v4508
        %v4510 = vpop.f32.mrb[0].mxu0
        %v4511 = vadd.f32 %v1400, %v4510
        %v4512 = vpop.f32.mrb[0].mxu0
        %v4513 = vadd.f32 %v1405, %v4512
        %v4514 = vpop.f32.mrb[0].mxu0
        %v4515 = vadd.f32 %v1405, %v4514
        %4516 = vmatprep.mubr.bf16.mxu0 0
        %4517 = vmatmul.mubr.bf16.gmra.mrb[0].mxu0 %v3702
        %v4518 = vpop.f32.mrb[0].mxu0
        %v4519 = vadd.f32 %v1410, %v4518
        %v4520 = vpop.f32.mrb[0].mxu0
        %v4521 = vadd.f32 %v1410, %v4520
        %v4522 = vpop.f32.mrb[0].mxu0
        %v4523 = vadd.f32 %v1415, %v4522
        %v4524 = vpop.f32.mrb[0].mxu0
        %v4525 = vadd.f32 %v1415, %v4524
        %4526 = vmatprep.mubr.bf16.mxu0 0
        %4527 = vmatmul.mubr.bf16.gmra.mrb[0].mxu0 %v3705
        %v4528 = vpop.f32.mrb[0].mxu0
        %v4529 = vadd.f32 %v1420, %v4528
        %v4530 = vpop.f32.mrb[0].mxu0
        %v4531 = vadd.f32 %v1420, %v4530
        %v4532 = vpop.f32.mrb[0].mxu0
        %v4533 = vadd.f32 %v1425, %v4532
        %v4534 = vpop.f32.mrb[0].mxu0
        %v4535 = vadd.f32 %v1425, %v4534
        %4536 = vmatprep.mubr.bf16.mxu0 0
        %4537 = vmatmul.mubr.bf16.gmra.mrb[0].mxu0 %v3708
        %v4538 = vpop.f32.mrb[0].mxu0
        %v4539 = vadd.f32 %v1430, %v4538
        %v4540 = vpop.f32.mrb[0].mxu0
        %v4541 = vadd.f32 %v1430, %v4540
        %v4542 = vpop.f32.mrb[0].mxu0
        %v4543 = vadd.f32 %v1435, %v4542
        %v4544 = vpop.f32.mrb[0].mxu0
        %v4545 = vadd.f32 %v1435, %v4544
        %4546 = vmatprep.mubr.bf16.mxu0 0
        %4547 = vmatmul.mubr.bf16.gmra.mrb[0].mxu0 %v3711
        %v4548 = vpop.f32.mrb[0].mxu0
        %v4549 = vadd.f32 %v1440, %v4548
        %v4550 = vpop.f32.mrb[0].mxu0
        %v4551 = vadd.f32 %v1440, %v4550
        %v4552 = vpop.f32.mrb[0].mxu0
        %v4553 = vadd.f32 %v1445, %v4552
        %v4554 = vpop.f32.mrb[0].mxu0
        %v4555 = vadd.f32 %v1445, %v4554
        %4556 = vmatprep.mubr.bf16.mxu0 0
        %4557 = vmatmul.mubr.bf16.gmra.mrb[0].mxu0 %v3714
        %v4558 = vpop.f32.mrb[0].mxu0
        %v4559 = vadd.f32 %v1450, %v4558
        %v4560 = vpop.f32.mrb[0].mxu0
        %v4561 = vadd.f32 %v1450, %v4560
        %v4562 = vpop.f32.mrb[0].mxu0
        %v4563 = vadd.f32 %v1455, %v4562
        %v4564 = vpop.f32.mrb[0].mxu0
        %v4565 = vadd.f32 %v1455, %v4564
        %4566 = vmatprep.mubr.bf16.mxu0 0
        %4567 = vmatmul.mubr.bf16.gmra.mrb[0].mxu0 %v3717
        %v4568 = vpop.f32.mrb[0].mxu0
        %v4569 = vadd.f32 %v1460, %v4568
        %v4570 = vpop.f32.mrb[0].mxu0
        %v4571 = vadd.f32 %v1460, %v4570
        %v4572 = vpop.f32.mrb[0].mxu0
        %v4573 = vadd.f32 %v1465, %v4572
        %v4574 = vpop.f32.mrb[0].mxu0
        %v4575 = vadd.f32 %v1465, %v4574
        %4576 = vmatprep.mubr.bf16.mxu0 0
        %4577 = vmatmul.mubr.bf16.gmra.mrb[0].mxu0 %v3720
        %v4578 = vpop.f32.mrb[0].mxu0
        %v4579 = vadd.f32 %v1470, %v4578
        %v4580 = vpop.f32.mrb[0].mxu0
        %v4581 = vadd.f32 %v1470, %v4580
        %v4582 = vpop.f32.mrb[0].mxu0
        %v4583 = vadd.f32 %v1475, %v4582
        %v4584 = vpop.f32.mrb[0].mxu0
        %v4585 = vadd.f32 %v1475, %v4584
        %4586 = vmatprep.mubr.bf16.mxu0 0
        %4587 = vmatmul.mubr.bf16.gmra.mrb[0].mxu0 %v3723
        %v4588 = vpop.f32.mrb[0].mxu0
        %v4589 = vadd.f32 %v1480, %v4588
        %v4590 = vpop.f32.mrb[0].mxu0
        %v4591 = vadd.f32 %v1480, %v4590
        %v4592 = vpop.f32.mrb[0].mxu0
        %v4593 = vadd.f32 %v1485, %v4592
        %v4594 = vpop.f32.mrb[0].mxu0
        %v4595 = vadd.f32 %v1485, %v4594
        %4596 = vmatprep.mubr.bf16.mxu0 0
        %4597 = vmatmul.mubr.bf16.gmra.mrb[0].mxu0 %v3726
        %v4598 = vpop.f32.mrb[0].mxu0
        %v4599 = vadd.f32 %v1490, %v4598
        %v4600 = vpop.f32.mrb[0].mxu0
        %v4601 = vadd.f32 %v1490, %v4600
        %v4602 = vpop.f32.mrb[0].mxu0
        %v4603 = vadd.f32 %v1495, %v4602
        %v4604 = vpop.f32.mrb[0].mxu0
        %v4605 = vadd.f32 %v1495, %v4604
        %4606 = vmatprep.mubr.bf16.mxu0 0
        %4607 = vmatmul.mubr.bf16.gmra.mrb[0].mxu0 %v3729
        %v4608 = vpop.f32.mrb[0].mxu0
        %v4609 = vadd.f32 %v1500, %v4608
        %v4610 = vpop.f32.mrb[0].mxu0
        %v4611 = vadd.f32 %v1500, %v4610
        %v4612 = vpop.f32.mrb[0].mxu0
        %v4613 = vadd.f32 %v1505, %v4612
        %v4614 = vpop.f32.mrb[0].mxu0
        %v4615 = vadd.f32 %v1505, %v4614
        %4616 = vmatprep.mubr.bf16.mxu0 0
        %4617 = vmatmul.mubr.bf16.gmra.mrb[0].mxu0 %v3732
        %v4618 = vpop.f32.mrb[0].mxu0
        %v4619 = vadd.f32 %v1510, %v4618
        %v4620 = vpop.f32.mrb[0].mxu0
        %v4621 = vadd.f32 %v1510, %v4620
        %v4622 = vpop.f32.mrb[0].mxu0
        %v4623 = vadd.f32 %v1515, %v4622
        %v4624 = vpop.f32.mrb[0].mxu0
        %v4625 = vadd.f32 %v1515, %v4624
        %4626 = vmatprep.mubr.bf16.mxu0 0
        %4627 = vmatmul.mubr.bf16.gmra.mrb[0].mxu0 %v3735
        %v4628 = vpop.f32.mrb[0].mxu0
        %v4629 = vadd.f32 %v1520, %v4628
        %v4630 = vpop.f32.mrb[0].mxu0
        %v4631 = vadd.f32 %v1520, %v4630
        %v4632 = vpop.f32.mrb[0].mxu0
        %v4633 = vadd.f32 %v1525, %v4632
        %v4634 = vpop.f32.mrb[0].mxu0
        %v4635 = vadd.f32 %v1525, %v4634
        %4636 = vmatprep.mubr.bf16.mxu0 0
        %4637 = vmatmul.mubr.bf16.gmra.mrb[0].mxu0 %v3738
        %v4638 = vpop.f32.mrb[0].mxu0
        %v4639 = vadd.f32 %v1530, %v4638
        %v4640 = vpop.f32.mrb[0].mxu0
        %v4641 = vadd.f32 %v1530, %v4640
        %v4642 = vpop.f32.mrb[0].mxu0
        %v4643 = vadd.f32 %v1535, %v4642
        %v4644 = vpop.f32.mrb[0].mxu0
        %v4645 = vadd.f32 %v1535, %v4644
        %4646 = vmatprep.mubr.bf16.mxu0 0
        %4647 = vmatmul.mubr.bf16.gmra.mrb[0].mxu0 %v3741
        %v4648 = vpop.f32.mrb[0].mxu0
        %v4649 = vadd.f32 %v1540, %v4648
        %v4650 = vpop.f32.mrb[0].mxu0
        %v4651 = vadd.f32 %v1540, %v4650
        %v4652 = vpop.f32.mrb[0].mxu0
        %v4653 = vadd.f32 %v1545, %v4652
        %v4654 = vpop.f32.mrb[0].mxu0
        %v4655 = vadd.f32 %v1545, %v4654
        %4656 = vmatprep.mubr.bf16.mxu0 0
        %4657 = vmatmul.mubr.bf16.gmra.mrb[0].mxu0 %v3744
        %v4658 = vpop.f32.mrb[0].mxu0
        %v4659 = vadd.f32 %v1550, %v4658
        %v4660 = vpop.f32.mrb[0].mxu0
        %v4661 = vadd.f32 %v1550, %v4660
        %v4662 = vpop.f32.mrb[0].mxu0
        %v4663 = vadd.f32 %v1555, %v4662
        %v4664 = vpop.f32.mrb[0].mxu0
        %v4665 = vadd.f32 %v1555, %v4664
        %4666 = vmatprep.mubr.bf16.mxu0 0
        %4667 = vmatmul.mubr.bf16.gmra.mrb[0].mxu0 %v3747
        %v4668 = vpop.f32.mrb[0].mxu0
        %v4669 = vadd.f32 %v1560, %v4668
        %v4670 = vpop.f32.mrb[0].mxu0
        %v4671 = vadd.f32 %v1560, %v4670
        %v4672 = vpop.f32.mrb[0].mxu0
        %v4673 = vadd.f32 %v1565, %v4672
        %v4674 = vpop.f32.mrb[0].mxu0
        %v4675 = vadd.f32 %v1565, %v4674
        %4676 = vmatprep.mubr.bf16.mxu0 0
        %4677 = vmatmul.mubr.bf16.gmra.mrb[0].mxu0 %v3750
        %v4678 = vpop.f32.mrb[0].mxu0
        %v4679 = vadd.f32 %v1570, %v4678
        %v4680 = vpop.f32.mrb[0].mxu0
        %v4681 = vadd.f32 %v1570, %v4680
        %v4682 = vpop.f32.mrb[0].mxu0
        %v4683 = vadd.f32 %v1575, %v4682
        %v4684 = vpop.f32.mrb[0].mxu0
        %v4685 = vadd.f32 %v1575, %v4684
        %4686 = vmatprep.mubr.bf16.mxu0 0
        %4687 = vmatmul.mubr.bf16.gmra.mrb[0].mxu0 %v3753
        %v4688 = vpop.f32.mrb[0].mxu0
        %v4689 = vadd.f32 %v1580, %v4688
        %v4690 = vpop.f32.mrb[0].mxu0
        %v4691 = vadd.f32 %v1580, %v4690
        %v4692 = vpop.f32.mrb[0].mxu0
        %v4693 = vadd.f32 %v1585, %v4692
        %v4694 = vpop.f32.mrb[0].mxu0
        %v4695 = vadd.f32 %v1585, %v4694
        %4696 = vmatprep.mubr.bf16.mxu0 0
        %4697 = vmatmul.mubr.bf16.gmra.mrb[0].mxu0 %v3756
        %v4698 = vpop.f32.mrb[0].mxu0
        %v4699 = vadd.f32 %v1590, %v4698
        %v4700 = vpop.f32.mrb[0].mxu0
        %v4701 = vadd.f32 %v1590, %v4700
        %v4702 = vpop.f32.mrb[0].mxu0
        %v4703 = vadd.f32 %v1595, %v4702
        %v4704 = vpop.f32.mrb[0].mxu0
        %v4705 = vadd.f32 %v1595, %v4704
        %4706 = vmatprep.mubr.bf16.mxu0 0
        %4707 = vmatmul.mubr.bf16.gmra.mrb[0].mxu0 %v3759
        %v4708 = vpop.f32.mrb[0].mxu0
        %v4709 = vadd.f32 %v1600, %v4708
        %v4710 = vpop.f32.mrb[0].mxu0
        %v4711 = vadd.f32 %v1600, %v4710
        %v4712 = vpop.f32.mrb[0].mxu0
        %v4713 = vadd.f32 %v1605, %v4712
        %v4714 = vpop.f32.mrb[0].mxu0
        %v4715 = vadd.f32 %v1605, %v4714
        %4716 = vmatprep.mubr.bf16.mxu0 0
        %4717 = vmatmul.mubr.bf16.gmra.mrb[0].mxu0 %v3762
        %v4718 = vpop.f32.mrb[0].mxu0
        %v4719 = vadd.f32 %v1610, %v4718
        %v4720 = vpop.f32.mrb[0].mxu0
        %v4721 = vadd.f32 %v1610, %v4720
        %v4722 = vpop.f32.mrb[0].mxu0
        %v4723 = vadd.f32 %v1615, %v4722
        %v4724 = vpop.f32.mrb[0].mxu0
        %v4725 = vadd.f32 %v1615, %v4724
        %4726 = vmatprep.mubr.bf16.mxu0 0
        %4727 = vmatmul.mubr.bf16.gmra.mrb[0].mxu0 %v3765
        %v4728 = vpop.f32.mrb[0].mxu0
        %v4729 = vadd.f32 %v1620, %v4728
        %v4730 = vpop.f32.mrb[0].mxu0
        %v4731 = vadd.f32 %v1620, %v4730
        %v4732 = vpop.f32.mrb[0].mxu0
        %v4733 = vadd.f32 %v1625, %v4732
        %v4734 = vpop.f32.mrb[0].mxu0
        %v4735 = vadd.f32 %v1625, %v4734
        %4736 = vmatprep.mubr.bf16.mxu0 0
        %4737 = vmatmul.mubr.bf16.gmra.mrb[0].mxu0 %v3768
        %v4738 = vpop.f32.mrb[0].mxu0
        %v4739 = vadd.f32 %v1630, %v4738
        %v4740 = vpop.f32.mrb[0].mxu0
        %v4741 = vadd.f32 %v1630, %v4740
        %v4742 = vpop.f32.mrb[0].mxu0
        %v4743 = vadd.f32 %v1635, %v4742
        %v4744 = vpop.f32.mrb[0].mxu0
        %v4745 = vadd.f32 %v1635, %v4744
        %4746 = vmatprep.mubr.bf16.mxu0 0
        %4747 = vmatmul.mubr.bf16.gmra.mrb[0].mxu0 %v3771
        %v4748 = vpop.f32.mrb[0].mxu0
        %v4749 = vadd.f32 %v1640, %v4748
        %v4750 = vpop.f32.mrb[0].mxu0
        %v4751 = vadd.f32 %v1640, %v4750
        %v4752 = vpop.f32.mrb[0].mxu0
        %v4753 = vadd.f32 %v1645, %v4752
        %v4754 = vpop.f32.mrb[0].mxu0
        %v4755 = vadd.f32 %v1645, %v4754
        %4756 = vmatprep.mubr.bf16.mxu0 0
        %4757 = vmatmul.mubr.bf16.gmra.mrb[0].mxu0 %v3774
        %v4758 = vpop.f32.mrb[0].mxu0
        %v4759 = vadd.f32 %v1650, %v4758
        %v4760 = vpop.f32.mrb[0].mxu0
        %v4761 = vadd.f32 %v1650, %v4760
        %v4762 = vpop.f32.mrb[0].mxu0
        %v4763 = vadd.f32 %v1655, %v4762
        %v4764 = vpop.f32.mrb[0].mxu0
        %v4765 = vadd.f32 %v1655, %v4764
        %4766 = vmatprep.mubr.bf16.mxu0 0
        %4767 = vmatmul.mubr.bf16.gmra.mrb[0].mxu0 %v3777
        %v4768 = vpop.f32.mrb[0].mxu0
        %v4769 = vadd.f32 %v1660, %v4768
        %v4770 = vpop.f32.mrb[0].mxu0
        %v4771 = vadd.f32 %v1660, %v4770
        %v4772 = vpop.f32.mrb[0].mxu0
        %v4773 = vadd.f32 %v1665, %v4772
        %v4774 = vpop.f32.mrb[0].mxu0
        %v4775 = vadd.f32 %v1665, %v4774
        %4776 = vmatprep.mubr.bf16.mxu0 0
        %4777 = vmatmul.mubr.bf16.gmra.mrb[0].mxu0 %v3780
        %v4778 = vpop.f32.mrb[0].mxu0
        %v4779 = vadd.f32 %v1670, %v4778
        %v4780 = vpop.f32.mrb[0].mxu0
        %v4781 = vadd.f32 %v1670, %v4780
        %v4782 = vpop.f32.mrb[0].mxu0
        %v4783 = vadd.f32 %v1675, %v4782
        %v4784 = vpop.f32.mrb[0].mxu0
        %v4785 = vadd.f32 %v1675, %v4784
        %4786 = vmatprep.mubr.bf16.mxu0 0
        %4787 = vmatmul.mubr.bf16.gmra.mrb[0].mxu0 %v3783
        %v4788 = vpop.f32.mrb[0].mxu0
        %v4789 = vadd.f32 %v1680, %v4788
        %v4790 = vpop.f32.mrb[0].mxu0
        %v4791 = vadd.f32 %v1680, %v4790
        %v4792 = vpop.f32.mrb[0].mxu0
        %v4793 = vadd.f32 %v1685, %v4792
        %v4794 = vpop.f32.mrb[0].mxu0
        %v4795 = vadd.f32 %v1685, %v4794
        %4796 = vmatprep.mubr.bf16.mxu0 0
        %4797 = vmatmul.mubr.bf16.gmra.mrb[0].mxu0 %v3786
        %v4798 = vpop.f32.mrb[0].mxu0
        %v4799 = vadd.f32 %v1690, %v4798
        %v4800 = vpop.f32.mrb[0].mxu0
        %v4801 = vadd.f32 %v1690, %v4800
        %v4802 = vpop.f32.mrb[0].mxu0
        %v4803 = vadd.f32 %v1695, %v4802
        %v4804 = vpop.f32.mrb[0].mxu0
        %v4805 = vadd.f32 %v1695, %v4804
        %4806 = vmatprep.mubr.bf16.mxu0 0
        %4807 = vmatmul.mubr.bf16.gmra.mrb[0].mxu0 %v3789
        %v4808 = vpop.f32.mrb[0].mxu0
        %v4809 = vadd.f32 %v1700, %v4808
        %v4810 = vpop.f32.mrb[0].mxu0
        %v4811 = vadd.f32 %v1700, %v4810
        %v4812 = vpop.f32.mrb[0].mxu0
        %v4813 = vadd.f32 %v1705, %v4812
        %v4814 = vpop.f32.mrb[0].mxu0
        %v4815 = vadd.f32 %v1705, %v4814
        %4816 = vmatprep.mubr.bf16.mxu0 0
        %4817 = vmatmul.mubr.bf16.gmra.mrb[0].mxu0 %v3792
        %v4818 = vpop.f32.mrb[0].mxu0
        %v4819 = vadd.f32 %v1710, %v4818
        %v4820 = vpop.f32.mrb[0].mxu0
        %v4821 = vadd.f32 %v1710, %v4820
        %v4822 = vpop.f32.mrb[0].mxu0
        %v4823 = vadd.f32 %v1715, %v4822
        %v4824 = vpop.f32.mrb[0].mxu0
        %v4825 = vadd.f32 %v1715, %v4824
        %4826 = vmatprep.mubr.bf16.mxu0 0
        %4827 = vmatmul.mubr.bf16.gmra.mrb[0].mxu0 %v3795
        %v4828 = vpop.f32.mrb[0].mxu0
        %v4829 = vadd.f32 %v1720, %v4828
        %v4830 = vpop.f32.mrb[0].mxu0
        %v4831 = vadd.f32 %v1720, %v4830
        %v4832 = vpop.f32.mrb[0].mxu0
        %v4833 = vadd.f32 %v1725, %v4832
        %v4834 = vpop.f32.mrb[0].mxu0
        %v4835 = vadd.f32 %v1725, %v4834
        %4836 = vmatprep.mubr.bf16.mxu0 0
        %4837 = vmatmul.mubr.bf16.gmra.mrb[0].mxu0 %v3798
        %v4838 = vpop.f32.mrb[0].mxu0
        %v4839 = vadd.f32 %v1730, %v4838
        %v4840 = vpop.f32.mrb[0].mxu0
        %v4841 = vadd.f32 %v1730, %v4840
        %v4842 = vpop.f32.mrb[0].mxu0
        %v4843 = vadd.f32 %v1735, %v4842
        %v4844 = vpop.f32.mrb[0].mxu0
        %v4845 = vadd.f32 %v1735, %v4844
        %4846 = vmatprep.mubr.bf16.mxu0 0
        %4847 = vmatmul.mubr.bf16.gmra.mrb[0].mxu0 %v3801
        %v4848 = vpop.f32.mrb[0].mxu0
        %v4849 = vadd.f32 %v1740, %v4848
        %v4850 = vpop.f32.mrb[0].mxu0
        %v4851 = vadd.f32 %v1740, %v4850
        %v4852 = vpop.f32.mrb[0].mxu0
        %v4853 = vadd.f32 %v1745, %v4852
        %v4854 = vpop.f32.mrb[0].mxu0
        %v4855 = vadd.f32 %v1745, %v4854
        %4856 = vmatprep.mubr.bf16.mxu0 0
        %4857 = vmatmul.mubr.bf16.gmra.mrb[0].mxu0 %v3804
        %v4858 = vpop.f32.mrb[0].mxu0
        %v4859 = vadd.f32 %v1750, %v4858
        %v4860 = vpop.f32.mrb[0].mxu0
        %v4861 = vadd.f32 %v1750, %v4860
        %v4862 = vpop.f32.mrb[0].mxu0
        %v4863 = vadd.f32 %v1755, %v4862
        %v4864 = vpop.f32.mrb[0].mxu0
        %v4865 = vadd.f32 %v1755, %v4864
        %4866 = vmatprep.mubr.bf16.mxu0 0
        %4867 = vmatmul.mubr.bf16.gmra.mrb[0].mxu0 %v3807
        %v4868 = vpop.f32.mrb[0].mxu0
        %v4869 = vadd.f32 %v1760, %v4868
        %v4870 = vpop.f32.mrb[0].mxu0
        %v4871 = vadd.f32 %v1760, %v4870
        %v4872 = vpop.f32.mrb[0].mxu0
        %v4873 = vadd.f32 %v1765, %v4872
        %v4874 = vpop.f32.mrb[0].mxu0
        %v4875 = vadd.f32 %v1765, %v4874
        %4876 = vmatprep.mubr.bf16.mxu0 0
        %4877 = vmatmul.mubr.bf16.gmra.mrb[0].mxu0 %v3810
        %v4878 = vpop.f32.mrb[0].mxu0
        %v4879 = vadd.f32 %v1770, %v4878
        %v4880 = vpop.f32.mrb[0].mxu0
        %v4881 = vadd.f32 %v1770, %v4880
        %v4882 = vpop.f32.mrb[0].mxu0
        %v4883 = vadd.f32 %v1775, %v4882
        %v4884 = vpop.f32.mrb[0].mxu0
        %v4885 = vadd.f32 %v1775, %v4884
        %4886 = vmatprep.mubr.bf16.mxu0 0
        %4887 = vmatmul.mubr.bf16.gmra.mrb[0].mxu0 %v3813
        %v4888 = vpop.f32.mrb[0].mxu0
        %v4889 = vadd.f32 %v1780, %v4888
        %v4890 = vpop.f32.mrb[0].mxu0
        %v4891 = vadd.f32 %v1780, %v4890
        %v4892 = vpop.f32.mrb[0].mxu0
        %v4893 = vadd.f32 %v1785, %v4892
        %v4894 = vpop.f32.mrb[0].mxu0
        %v4895 = vadd.f32 %v1785, %v4894
        %4896 = vmatprep.mubr.bf16.mxu0 0
        %4897 = vmatmul.mubr.bf16.gmra.mrb[0].mxu0 %v3816
        %v4898 = vpop.f32.mrb[0].mxu0
        %v4899 = vadd.f32 %v1790, %v4898
        %v4900 = vpop.f32.mrb[0].mxu0
        %v4901 = vadd.f32 %v1790, %v4900
        %v4902 = vpop.f32.mrb[0].mxu0
        %v4903 = vadd.f32 %v1795, %v4902
        %v4904 = vpop.f32.mrb[0].mxu0
        %v4905 = vadd.f32 %v1795, %v4904
        %4906 = vmatprep.mubr.bf16.mxu0 0
        %4907 = vmatmul.mubr.bf16.gmra.mrb[0].mxu0 %v3819
        %v4908 = vpop.f32.mrb[0].mxu0
        %v4909 = vadd.f32 %v1800, %v4908
        %v4910 = vpop.f32.mrb[0].mxu0
        %v4911 = vadd.f32 %v1800, %v4910
        %v4912 = vpop.f32.mrb[0].mxu0
        %v4913 = vadd.f32 %v1805, %v4912
        %v4914 = vpop.f32.mrb[0].mxu0
        %v4915 = vadd.f32 %v1805, %v4914
        %4916 = vmatprep.mubr.bf16.mxu0 0
        %4917 = vmatmul.mubr.bf16.gmra.mrb[0].mxu0 %v3822
        %v4918 = vpop.f32.mrb[0].mxu0
        %v4919 = vadd.f32 %v1810, %v4918
        %v4920 = vpop.f32.mrb[0].mxu0
        %v4921 = vadd.f32 %v1810, %v4920
        %v4922 = vpop.f32.mrb[0].mxu0
        %v4923 = vadd.f32 %v1815, %v4922
        %v4924 = vpop.f32.mrb[0].mxu0
        %v4925 = vadd.f32 %v1815, %v4924
        %4926 = vmatprep.mubr.bf16.mxu0 0
        %4927 = vmatmul.mubr.bf16.gmra.mrb[0].mxu0 %v3825
        %v4928 = vpop.f32.mrb[0].mxu0
        %v4929 = vadd.f32 %v1820, %v4928
        %v4930 = vpop.f32.mrb[0].mxu0
        %v4931 = vadd.f32 %v1820, %v4930
        %v4932 = vpop.f32.mrb[0].mxu0
        %v4933 = vadd.f32 %v1825, %v4932
        %v4934 = vpop.f32.mrb[0].mxu0
        %v4935 = vadd.f32 %v1825, %v4934
        %4936 = vmatprep.mubr.bf16.mxu0 0
        %4937 = vmatmul.mubr.bf16.gmra.mrb[0].mxu0 %v3828
        %v4938 = vpop.f32.mrb[0].mxu0
        %v4939 = vadd.f32 %v1830, %v4938
        %v4940 = vpop.f32.mrb[0].mxu0
        %v4941 = vadd.f32 %v1830, %v4940
        %v4942 = vpop.f32.mrb[0].mxu0
        %v4943 = vadd.f32 %v1835, %v4942
        %v4944 = vpop.f32.mrb[0].mxu0
        %v4945 = vadd.f32 %v1835, %v4944
        %4946 = vmatprep.mubr.bf16.mxu0 0
        %4947 = vmatmul.mubr.bf16.gmra.mrb[0].mxu0 %v3831
        %v4948 = vpop.f32.mrb[0].mxu0
        %v4949 = vadd.f32 %v1840, %v4948
        %v4950 = vpop.f32.mrb[0].mxu0
        %v4951 = vadd.f32 %v1840, %v4950
        %v4952 = vpop.f32.mrb[0].mxu0
        %v4953 = vadd.f32 %v1845, %v4952
        %v4954 = vpop.f32.mrb[0].mxu0
        %v4955 = vadd.f32 %v1845, %v4954
        %4956 = vmatprep.mubr.bf16.mxu0 0
        %4957 = vmatmul.mubr.bf16.gmra.mrb[0].mxu0 %v3834
        %v4958 = vpop.f32.mrb[0].mxu0
        %v4959 = vadd.f32 %v1850, %v4958
        %v4960 = vpop.f32.mrb[0].mxu0
        %v4961 = vadd.f32 %v1850, %v4960
        %v4962 = vpop.f32.mrb[0].mxu0
        %v4963 = vadd.f32 %v1855, %v4962
        %v4964 = vpop.f32.mrb[0].mxu0
        %v4965 = vadd.f32 %v1855, %v4964
        %4966 = vmatprep.mubr.bf16.mxu0 0
        %4967 = vmatmul.mubr.bf16.gmra.mrb[0].mxu0 %v3837
        %v4968 = vpop.f32.mrb[0].mxu0
        %v4969 = vadd.f32 %v1860, %v4968
        %v4970 = vpop.f32.mrb[0].mxu0
        %v4971 = vadd.f32 %v1860, %v4970
        %v4972 = vpop.f32.mrb[0].mxu0
        %v4973 = vadd.f32 %v1865, %v4972
        %v4974 = vpop.f32.mrb[0].mxu0
        %v4975 = vadd.f32 %v1865, %v4974
        %4976 = vmatprep.mubr.bf16.mxu0 0
        %4977 = vmatmul.mubr.bf16.gmra.mrb[0].mxu0 %v3840
        %v4978 = vpop.f32.mrb[0].mxu0
        %v4979 = vadd.f32 %v1870, %v4978
        %v4980 = vpop.f32.mrb[0].mxu0
        %v4981 = vadd.f32 %v1870, %v4980
        %v4982 = vpop.f32.mrb[0].mxu0
        %v4983 = vadd.f32 %v1875, %v4982
        %v4984 = vpop.f32.mrb[0].mxu0
        %v4985 = vadd.f32 %v1875, %v4984
        %4986 = vmatprep.mubr.bf16.mxu0 0
        %4987 = vmatmul.mubr.bf16.gmra.mrb[0].mxu0 %v3843
        %v4988 = vpop.f32.mrb[0].mxu0
        %v4989 = vadd.f32 %v1880, %v4988
        %v4990 = vpop.f32.mrb[0].mxu0
        %v4991 = vadd.f32 %v1880, %v4990
        %v4992 = vpop.f32.mrb[0].mxu0
        %v4993 = vadd.f32 %v1885, %v4992
        %v4994 = vpop.f32.mrb[0].mxu0
        %v4995 = vadd.f32 %v1885, %v4994
        %4996 = vmatprep.mubr.bf16.mxu0 0
        %4997 = vmatmul.mubr.bf16.gmra.mrb[0].mxu0 %v3846
        %v4998 = vpop.f32.mrb[0].mxu0
        %v4999 = vadd.f32 %v1890, %v4998
        %v5000 = vpop.f32.mrb[0].mxu0
        %v5001 = vadd.f32 %v1890, %v5000
        %v5002 = vpop.f32.mrb[0].mxu0
        %v5003 = vadd.f32 %v1895, %v5002
        %v5004 = vpop.f32.mrb[0].mxu0
        %v5005 = vadd.f32 %v1895, %v5004
        %5006 = vmatprep.mubr.bf16.mxu0 0
        %5007 = vmatmul.mubr.bf16.gmra.mrb[0].mxu0 %v3849
        %v5008 = vpop.f32.mrb[0].mxu0
        %v5009 = vadd.f32 %v1900, %v5008
        %v5010 = vpop.f32.mrb[0].mxu0
        %v5011 = vadd.f32 %v1900, %v5010
        %v5012 = vpop.f32.mrb[0].mxu0
        %v5013 = vadd.f32 %v1905, %v5012
        %v5014 = vpop.f32.mrb[0].mxu0
        %v5015 = vadd.f32 %v1905, %v5014
        %5016 = vmatprep.mubr.bf16.mxu0 0
        %5017 = vmatmul.mubr.bf16.gmra.mrb[0].mxu0 %v3852
        %v5018 = vpop.f32.mrb[0].mxu0
        %v5019 = vadd.f32 %v1910, %v5018
        %v5020 = vpop.f32.mrb[0].mxu0
        %v5021 = vadd.f32 %v1910, %v5020
        %v5022 = vpop.f32.mrb[0].mxu0
        %v5023 = vadd.f32 %v1915, %v5022
        %v5024 = vpop.f32.mrb[0].mxu0
        %v5025 = vadd.f32 %v1915, %v5024
        %5026 = vmatprep.mubr.bf16.mxu0 0
        %5027 = vmatmul.mubr.bf16.gmra.mrb[0].mxu0 %v3855
        %v5028 = vpop.f32.mrb[0].mxu0
        %v5029 = vadd.f32 %v1920, %v5028
        %v5030 = vpop.f32.mrb[0].mxu0
        %v5031 = vadd.f32 %v1920, %v5030
        %v5032 = vpop.f32.mrb[0].mxu0
        %v5033 = vadd.f32 %v1925, %v5032
        %v5034 = vpop.f32.mrb[0].mxu0
        %v5035 = vadd.f32 %v1925, %v5034
        %5036 = vmatprep.mubr.bf16.mxu0 0
        %5037 = vmatmul.mubr.bf16.gmra.mrb[0].mxu0 %v3858
        %v5038 = vpop.f32.mrb[0].mxu0
        %v5039 = vadd.f32 %v1930, %v5038
        %v5040 = vpop.f32.mrb[0].mxu0
        %v5041 = vadd.f32 %v1930, %v5040
        %v5042 = vpop.f32.mrb[0].mxu0
        %v5043 = vadd.f32 %v1935, %v5042
        %v5044 = vpop.f32.mrb[0].mxu0
        %v5045 = vadd.f32 %v1935, %v5044
        %5046 = vmatprep.mubr.bf16.mxu0 0
        %5047 = vmatmul.mubr.bf16.gmra.mrb[0].mxu0 %v3861
        %v5048 = vpop.f32.mrb[0].mxu0
        %v5049 = vadd.f32 %v1940, %v5048
        %v5050 = vpop.f32.mrb[0].mxu0
        %v5051 = vadd.f32 %v1940, %v5050
        %v5052 = vpop.f32.mrb[0].mxu0
        %v5053 = vadd.f32 %v1945, %v5052
        %v5054 = vpop.f32.mrb[0].mxu0
        %v5055 = vadd.f32 %v1945, %v5054
        %5056 = vmatprep.mubr.bf16.mxu0 0
        %5057 = vmatmul.mubr.bf16.gmra.mrb[0].mxu0 %v3864
        %v5058 = vpop.f32.mrb[0].mxu0
        %v5059 = vadd.f32 %v1950, %v5058
        %v5060 = vpop.f32.mrb[0].mxu0
        %v5061 = vadd.f32 %v1950, %v5060
        %v5062 = vpop.f32.mrb[0].mxu0
        %v5063 = vadd.f32 %v1955, %v5062
        %v5064 = vpop.f32.mrb[0].mxu0
        %v5065 = vadd.f32 %v1955, %v5064
        %5066 = vmatprep.mubr.bf16.mxu0 0
        %5067 = vmatmul.mubr.bf16.gmra.mrb[0].mxu0 %v3867
        %v5068 = vpop.f32.mrb[0].mxu0
        %v5069 = vadd.f32 %v1960, %v5068
        %v5070 = vpop.f32.mrb[0].mxu0
        %v5071 = vadd.f32 %v1960, %v5070
        %v5072 = vpop.f32.mrb[0].mxu0
        %v5073 = vadd.f32 %v1965, %v5072
        %v5074 = vpop.f32.mrb[0].mxu0
        %v5075 = vadd.f32 %v1965, %v5074
        %5076 = vmatprep.mubr.bf16.mxu0 0
        %5077 = vmatmul.mubr.bf16.gmra.mrb[0].mxu0 %v3870
        %v5078 = vpop.f32.mrb[0].mxu0
        %v5079 = vadd.f32 %v1970, %v5078
        %v5080 = vpop.f32.mrb[0].mxu0
        %v5081 = vadd.f32 %v1970, %v5080
        %v5082 = vpop.f32.mrb[0].mxu0
        %v5083 = vadd.f32 %v1975, %v5082
        %v5084 = vpop.f32.mrb[0].mxu0
        %v5085 = vadd.f32 %v1975, %v5084
        %5086 = vmatprep.mubr.bf16.mxu0 0
        %5087 = vmatmul.mubr.bf16.gmra.mrb[0].mxu0 %v3873
        %v5088 = vpop.f32.mrb[0].mxu0
        %v5089 = vadd.f32 %v1980, %v5088
        %v5090 = vpop.f32.mrb[0].mxu0
        %v5091 = vadd.f32 %v1980, %v5090
        %v5092 = vpop.f32.mrb[0].mxu0
        %v5093 = vadd.f32 %v1985, %v5092
        %v5094 = vpop.f32.mrb[0].mxu0
        %v5095 = vadd.f32 %v1985, %v5094
        %5096 = vmatprep.mubr.bf16.mxu0 0
        %5097 = vmatmul.mubr.bf16.gmra.mrb[0].mxu0 %v3876
        %v5098 = vpop.f32.mrb[0].mxu0
        %v5099 = vadd.f32 %v1990, %v5098
        %v5100 = vpop.f32.mrb[0].mxu0
        %v5101 = vadd.f32 %v1990, %v5100
        %v5102 = vpop.f32.mrb[0].mxu0
        %v5103 = vadd.f32 %v1995, %v5102
        %v5104 = vpop.f32.mrb[0].mxu0
        %v5105 = vadd.f32 %v1995, %v5104
        %5106 = vmatprep.mubr.bf16.mxu0 0
        %5107 = vmatmul.mubr.bf16.gmra.mrb[0].mxu0 %v3879
        %v5108 = vpop.f32.mrb[0].mxu0
        %v5109 = vadd.f32 %v2000, %v5108
        %v5110 = vpop.f32.mrb[0].mxu0
        %v5111 = vadd.f32 %v2000, %v5110
        %v5112 = vpop.f32.mrb[0].mxu0
        %v5113 = vadd.f32 %v2005, %v5112
        %v5114 = vpop.f32.mrb[0].mxu0
        %v5115 = vadd.f32 %v2005, %v5114
        %5116 = vmatprep.mubr.bf16.mxu0 0
        %5117 = vmatmul.mubr.bf16.gmra.mrb[0].mxu0 %v3882
        %v5118 = vpop.f32.mrb[0].mxu0
        %v5119 = vadd.f32 %v2010, %v5118
        %v5120 = vpop.f32.mrb[0].mxu0
        %v5121 = vadd.f32 %v2010, %v5120
        %v5122 = vpop.f32.mrb[0].mxu0
        %v5123 = vadd.f32 %v2015, %v5122
        %v5124 = vpop.f32.mrb[0].mxu0
        %v5125 = vadd.f32 %v2015, %v5124
        %5126 = vmatprep.mubr.bf16.mxu0 0
        %5127 = vmatmul.mubr.bf16.gmra.mrb[0].mxu0 %v3885
        %v5128 = vpop.f32.mrb[0].mxu0
        %v5129 = vadd.f32 %v2020, %v5128
        %v5130 = vpop.f32.mrb[0].mxu0
        %v5131 = vadd.f32 %v2020, %v5130
        %v5132 = vpop.f32.mrb[0].mxu0
        %v5133 = vadd.f32 %v2025, %v5132
        %v5134 = vpop.f32.mrb[0].mxu0
        %v5135 = vadd.f32 %v2025, %v5134
        %5136 = vmatprep.mubr.bf16.mxu0 0
        %5137 = vmatmul.mubr.bf16.gmra.mrb[0].mxu0 %v3888
        %v5138 = vpop.f32.mrb[0].mxu0
        %v5139 = vadd.f32 %v2030, %v5138
        %v5140 = vpop.f32.mrb[0].mxu0
        %v5141 = vadd.f32 %v2030, %v5140
        %v5142 = vpop.f32.mrb[0].mxu0
        %v5143 = vadd.f32 %v2035, %v5142
        %v5144 = vpop.f32.mrb[0].mxu0
        %v5145 = vadd.f32 %v2035, %v5144
        %5146 = vmatprep.mubr.bf16.mxu0 0
        %5147 = vmatmul.mubr.bf16.gmra.mrb[0].mxu0 %v3891
        %v5148 = vpop.f32.mrb[0].mxu0
        %v5149 = vadd.f32 %v2040, %v5148
        %v5150 = vpop.f32.mrb[0].mxu0
        %v5151 = vadd.f32 %v2040, %v5150
        %v5152 = vpop.f32.mrb[0].mxu0
        %v5153 = vadd.f32 %v2045, %v5152
        %v5154 = vpop.f32.mrb[0].mxu0
        %v5155 = vadd.f32 %v2045, %v5154
        %5156 = vmatprep.mubr.bf16.mxu0 0
        %5157 = vmatmul.mubr.bf16.gmra.mrb[0].mxu0 %v3894
        %v5158 = vpop.f32.mrb[0].mxu0
        %v5159 = vadd.f32 %v2050, %v5158
        %v5160 = vpop.f32.mrb[0].mxu0
        %v5161 = vadd.f32 %v2050, %v5160
        %v5162 = vpop.f32.mrb[0].mxu0
        %v5163 = vadd.f32 %v2055, %v5162
        %v5164 = vpop.f32.mrb[0].mxu0
        %v5165 = vadd.f32 %v2055, %v5164
        %5166 = vmatprep.mubr.bf16.mxu0 0
        %5167 = vmatmul.mubr.bf16.gmra.mrb[0].mxu0 %v3897
        %v5168 = vpop.f32.mrb[0].mxu0
        %v5169 = vadd.f32 %v2060, %v5168
        %v5170 = vpop.f32.mrb[0].mxu0
        %v5171 = vadd.f32 %v2060, %v5170
        %v5172 = vpop.f32.mrb[0].mxu0
        %v5173 = vadd.f32 %v2065, %v5172
        %v5174 = vpop.f32.mrb[0].mxu0
        %v5175 = vadd.f32 %v2065, %v5174
        %5176 = vmatprep.mubr.bf16.mxu0 0
        %5177 = vmatmul.mubr.bf16.gmra.mrb[0].mxu0 %v3900
        %v5178 = vpop.f32.mrb[0].mxu0
        %v5179 = vadd.f32 %v2070, %v5178
        %v5180 = vpop.f32.mrb[0].mxu0
        %v5181 = vadd.f32 %v2070, %v5180
        %v5182 = vpop.f32.mrb[0].mxu0
        %v5183 = vadd.f32 %v2075, %v5182
        %v5184 = vpop.f32.mrb[0].mxu0
        %v5185 = vadd.f32 %v2075, %v5184
        %5186 = vmatprep.mubr.bf16.mxu0 0
        %5187 = vmatmul.mubr.bf16.gmra.mrb[0].mxu0 %v3903
        %v5188 = vpop.f32.mrb[0].mxu0
        %v5189 = vadd.f32 %v2080, %v5188
        %v5190 = vpop.f32.mrb[0].mxu0
        %v5191 = vadd.f32 %v2080, %v5190
        %v5192 = vpop.f32.mrb[0].mxu0
        %v5193 = vadd.f32 %v2085, %v5192
        %v5194 = vpop.f32.mrb[0].mxu0
        %v5195 = vadd.f32 %v2085, %v5194
        %5196 = vmatprep.mubr.bf16.mxu0 0
        %5197 = vmatmul.mubr.bf16.gmra.mrb[0].mxu0 %v3906
        %v5198 = vpop.f32.mrb[0].mxu0
        %v5199 = vadd.f32 %v2090, %v5198
        %v5200 = vpop.f32.mrb[0].mxu0
        %v5201 = vadd.f32 %v2090, %v5200
        %v5202 = vpop.f32.mrb[0].mxu0
        %v5203 = vadd.f32 %v2095, %v5202
        %v5204 = vpop.f32.mrb[0].mxu0
        %v5205 = vadd.f32 %v2095, %v5204
        %5206 = vmatprep.mubr.bf16.mxu0 0
        %5207 = vmatmul.mubr.bf16.gmra.mrb[0].mxu0 %v3909
        %v5208 = vpop.f32.mrb[0].mxu0
        %v5209 = vadd.f32 %v2100, %v5208
        %v5210 = vpop.f32.mrb[0].mxu0
        %v5211 = vadd.f32 %v2100, %v5210
        %v5212 = vpop.f32.mrb[0].mxu0
        %v5213 = vadd.f32 %v2105, %v5212
        %v5214 = vpop.f32.mrb[0].mxu0
        %v5215 = vadd.f32 %v2105, %v5214
        %5216 = vmatprep.mubr.bf16.mxu0 0
        %5217 = vmatmul.mubr.bf16.gmra.mrb[0].mxu0 %v3912
        %v5218 = vpop.f32.mrb[0].mxu0
        %v5219 = vadd.f32 %v2110, %v5218
        %v5220 = vpop.f32.mrb[0].mxu0
        %v5221 = vadd.f32 %v2110, %v5220
        %v5222 = vpop.f32.mrb[0].mxu0
        %v5223 = vadd.f32 %v2115, %v5222
        %v5224 = vpop.f32.mrb[0].mxu0
        %v5225 = vadd.f32 %v2115, %v5224
        %5226 = vmatprep.mubr.bf16.mxu0 0
        %5227 = vmatmul.mubr.bf16.gmra.mrb[0].mxu0 %v3915
        %v5228 = vpop.f32.mrb[0].mxu0
        %v5229 = vadd.f32 %v2120, %v5228
        %v5230 = vpop.f32.mrb[0].mxu0
        %v5231 = vadd.f32 %v2120, %v5230
        %v5232 = vpop.f32.mrb[0].mxu0
        %v5233 = vadd.f32 %v2125, %v5232
        %v5234 = vpop.f32.mrb[0].mxu0
        %v5235 = vadd.f32 %v2125, %v5234
        %5236 = vmatprep.mubr.bf16.mxu0 0
        %5237 = vmatmul.mubr.bf16.gmra.mrb[0].mxu0 %v3918
        %v5238 = vpop.f32.mrb[0].mxu0
        %v5239 = vadd.f32 %v2130, %v5238
        %v5240 = vpop.f32.mrb[0].mxu0
        %v5241 = vadd.f32 %v2130, %v5240
        %v5242 = vpop.f32.mrb[0].mxu0
        %v5243 = vadd.f32 %v2135, %v5242
        %v5244 = vpop.f32.mrb[0].mxu0
        %v5245 = vadd.f32 %v2135, %v5244
        %5246 = vmatprep.mubr.bf16.mxu0 0
        %5247 = vmatmul.mubr.bf16.gmra.mrb[0].mxu0 %v3921
        %v5248 = vpop.f32.mrb[0].mxu0
        %v5249 = vadd.f32 %v2140, %v5248
        %v5250 = vpop.f32.mrb[0].mxu0
        %v5251 = vadd.f32 %v2140, %v5250
        %v5252 = vpop.f32.mrb[0].mxu0
        %v5253 = vadd.f32 %v2145, %v5252
        %v5254 = vpop.f32.mrb[0].mxu0
        %v5255 = vadd.f32 %v2145, %v5254
        %5256 = vmatprep.mubr.bf16.mxu0 0
        %5257 = vmatmul.mubr.bf16.gmra.mrb[0].mxu0 %v3924
        %v5258 = vpop.f32.mrb[0].mxu0
        %v5259 = vadd.f32 %v2150, %v5258
        %v5260 = vpop.f32.mrb[0].mxu0
        %v5261 = vadd.f32 %v2150, %v5260
        %v5262 = vpop.f32.mrb[0].mxu0
        %v5263 = vadd.f32 %v2155, %v5262
        %v5264 = vpop.f32.mrb[0].mxu0
        %v5265 = vadd.f32 %v2155, %v5264
        %5266 = vmatprep.mubr.bf16.mxu0 0
        %5267 = vmatmul.mubr.bf16.gmra.mrb[0].mxu0 %v3927
        %v5268 = vpop.f32.mrb[0].mxu0
        %v5269 = vadd.f32 %v2160, %v5268
        %v5270 = vpop.f32.mrb[0].mxu0
        %v5271 = vadd.f32 %v2160, %v5270
        %v5272 = vpop.f32.mrb[0].mxu0
        %v5273 = vadd.f32 %v2165, %v5272
        %v5274 = vpop.f32.mrb[0].mxu0
        %v5275 = vadd.f32 %v2165, %v5274
        %5276 = vmatprep.mubr.bf16.mxu0 0
        %5277 = vmatmul.mubr.bf16.gmra.mrb[0].mxu0 %v3930
        %v5278 = vpop.f32.mrb[0].mxu0
        %v5279 = vadd.f32 %v2170, %v5278
        %v5280 = vpop.f32.mrb[0].mxu0
        %v5281 = vadd.f32 %v2170, %v5280
        %v5282 = vpop.f32.mrb[0].mxu0
        %v5283 = vadd.f32 %v2175, %v5282
        %v5284 = vpop.f32.mrb[0].mxu0
        %v5285 = vadd.f32 %v2175, %v5284
        %5286 = vmatprep.mubr.bf16.mxu0 0
        %5287 = vmatmul.mubr.bf16.gmra.mrb[0].mxu0 %v3933
        %v5288 = vpop.f32.mrb[0].mxu0
        %v5289 = vadd.f32 %v2180, %v5288
        %v5290 = vpop.f32.mrb[0].mxu0
        %v5291 = vadd.f32 %v2180, %v5290
        %v5292 = vpop.f32.mrb[0].mxu0
        %v5293 = vadd.f32 %v2185, %v5292
        %v5294 = vpop.f32.mrb[0].mxu0
        %v5295 = vadd.f32 %v2185, %v5294
        %5296 = vmatprep.mubr.bf16.mxu0 0
        %5297 = vmatmul.mubr.bf16.gmra.mrb[0].mxu0 %v3936
        %v5298 = vpop.f32.mrb[0].mxu0
        %v5299 = vadd.f32 %v2190, %v5298
        %v5300 = vpop.f32.mrb[0].mxu0
        %v5301 = vadd.f32 %v2190, %v5300
        %v5302 = vpop.f32.mrb[0].mxu0
        %v5303 = vadd.f32 %v2195, %v5302
        %v5304 = vpop.f32.mrb[0].mxu0
        %v5305 = vadd.f32 %v2195, %v5304
        %5306 = vmatprep.mubr.bf16.mxu0 0
        %5307 = vmatmul.mubr.bf16.gmra.mrb[0].mxu0 %v3939
        %v5308 = vpop.f32.mrb[0].mxu0
        %v5309 = vadd.f32 %v2200, %v5308
        %v5310 = vpop.f32.mrb[0].mxu0
        %v5311 = vadd.f32 %v2200, %v5310
        %v5312 = vpop.f32.mrb[0].mxu0
        %v5313 = vadd.f32 %v2205, %v5312
        %v5314 = vpop.f32.mrb[0].mxu0
        %v5315 = vadd.f32 %v2205, %v5314
        %5316 = vmatprep.mubr.bf16.mxu0 0
        %5317 = vmatmul.mubr.bf16.gmra.mrb[0].mxu0 %v3942
        %v5318 = vpop.f32.mrb[0].mxu0
        %v5319 = vadd.f32 %v2210, %v5318
        %v5320 = vpop.f32.mrb[0].mxu0
        %v5321 = vadd.f32 %v2210, %v5320
        %v5322 = vpop.f32.mrb[0].mxu0
        %v5323 = vadd.f32 %v2215, %v5322
        %v5324 = vpop.f32.mrb[0].mxu0
        %v5325 = vadd.f32 %v2215, %v5324
        %5326 = vmatprep.mubr.bf16.mxu0 0
        %5327 = vmatmul.mubr.bf16.gmra.mrb[0].mxu0 %v3945
        %v5328 = vpop.f32.mrb[0].mxu0
        %v5329 = vadd.f32 %v2220, %v5328
        %v5330 = vpop.f32.mrb[0].mxu0
        %v5331 = vadd.f32 %v2220, %v5330
        %v5332 = vpop.f32.mrb[0].mxu0
        %v5333 = vadd.f32 %v2225, %v5332
        %v5334 = vpop.f32.mrb[0].mxu0
        %v5335 = vadd.f32 %v2225, %v5334
        %5336 = vmatprep.mubr.bf16.mxu0 0
        %5337 = vmatmul.mubr.bf16.gmra.mrb[0].mxu0 %v3948
        %v5338 = vpop.f32.mrb[0].mxu0
        %v5339 = vadd.f32 %v2230, %v5338
        %v5340 = vpop.f32.mrb[0].mxu0
        %v5341 = vadd.f32 %v2230, %v5340
        %v5342 = vpop.f32.mrb[0].mxu0
        %v5343 = vadd.f32 %v2235, %v5342
        %v5344 = vpop.f32.mrb[0].mxu0
        %v5345 = vadd.f32 %v2235, %v5344
        %5346 = vmatprep.mubr.bf16.mxu0 0
        %5347 = vmatmul.mubr.bf16.gmra.mrb[0].mxu0 %v3951
        %v5348 = vpop.f32.mrb[0].mxu0
        %v5349 = vadd.f32 %v2240, %v5348
        %v5350 = vpop.f32.mrb[0].mxu0
        %v5351 = vadd.f32 %v2240, %v5350
        %v5352 = vpop.f32.mrb[0].mxu0
        %v5353 = vadd.f32 %v2245, %v5352
        %v5354 = vpop.f32.mrb[0].mxu0
        %v5355 = vadd.f32 %v2245, %v5354
        %5356 = vmatprep.mubr.bf16.mxu0 0
        %5357 = vmatmul.mubr.bf16.gmra.mrb[0].mxu0 %v3954
        %v5358 = vpop.f32.mrb[0].mxu0
        %v5359 = vadd.f32 %v2250, %v5358
        %v5360 = vpop.f32.mrb[0].mxu0
        %v5361 = vadd.f32 %v2250, %v5360
        %v5362 = vpop.f32.mrb[0].mxu0
        %v5363 = vadd.f32 %v2255, %v5362
        %v5364 = vpop.f32.mrb[0].mxu0
        %v5365 = vadd.f32 %v2255, %v5364
        %5366 = vmatprep.mubr.bf16.mxu0 0
        %5367 = vmatmul.mubr.bf16.gmra.mrb[0].mxu0 %v3957
        %v5368 = vpop.f32.mrb[0].mxu0
        %v5369 = vadd.f32 %v2260, %v5368
        %v5370 = vpop.f32.mrb[0].mxu0
        %v5371 = vadd.f32 %v2260, %v5370
        %v5372 = vpop.f32.mrb[0].mxu0
        %v5373 = vadd.f32 %v2265, %v5372
        %v5374 = vpop.f32.mrb[0].mxu0
        %v5375 = vadd.f32 %v2265, %v5374
        %5376 = vmatprep.mubr.bf16.mxu0 0
        %5377 = vmatmul.mubr.bf16.gmra.mrb[0].mxu0 %v3960
        %v5378 = vpop.f32.mrb[0].mxu0
        %v5379 = vadd.f32 %v2270, %v5378
        %v5380 = vpop.f32.mrb[0].mxu0
        %v5381 = vadd.f32 %v2270, %v5380
        %v5382 = vpop.f32.mrb[0].mxu0
        %v5383 = vadd.f32 %v2275, %v5382
        %v5384 = vpop.f32.mrb[0].mxu0
        %v5385 = vadd.f32 %v2275, %v5384
        %5386 = vmatprep.mubr.bf16.mxu0 0
        %5387 = vmatmul.mubr.bf16.gmra.mrb[0].mxu0 %v3963
        %v5388 = vpop.f32.mrb[0].mxu0
        %v5389 = vadd.f32 %v2280, %v5388
        %v5390 = vpop.f32.mrb[0].mxu0
        %v5391 = vadd.f32 %v2280, %v5390
        %v5392 = vpop.f32.mrb[0].mxu0
        %v5393 = vadd.f32 %v2285, %v5392
        %v5394 = vpop.f32.mrb[0].mxu0
        %v5395 = vadd.f32 %v2285, %v5394
        %5396 = vmatprep.mubr.bf16.mxu0 0
        %5397 = vmatmul.mubr.bf16.gmra.mrb[0].mxu0 %v3966
        %v5398 = vpop.f32.mrb[0].mxu0
        %v5399 = vadd.f32 %v2290, %v5398
        %v5400 = vpop.f32.mrb[0].mxu0
        %v5401 = vadd.f32 %v2290, %v5400
        %v5402 = vpop.f32.mrb[0].mxu0
        %v5403 = vadd.f32 %v2295, %v5402
        %v5404 = vpop.f32.mrb[0].mxu0
        %v5405 = vadd.f32 %v2295, %v5404
        %5406 = vmatprep.mubr.bf16.mxu0 0
        %5407 = vmatmul.mubr.bf16.gmra.mrb[0].mxu0 %v3969
        %v5408 = vpop.f32.mrb[0].mxu0
        %v5409 = vadd.f32 %v2300, %v5408
        %v5410 = vpop.f32.mrb[0].mxu0
        %v5411 = vadd.f32 %v2300, %v5410
        %v5412 = vpop.f32.mrb[0].mxu0
        %v5413 = vadd.f32 %v2305, %v5412
        %v5414 = vpop.f32.mrb[0].mxu0
        %v5415 = vadd.f32 %v2305, %v5414
        %5416 = vmatprep.mubr.bf16.mxu0 0
        %5417 = vmatmul.mubr.bf16.gmra.mrb[0].mxu0 %v3972
        %v5418 = vpop.f32.mrb[0].mxu0
        %v5419 = vadd.f32 %v2310, %v5418
        %v5420 = vpop.f32.mrb[0].mxu0
        %v5421 = vadd.f32 %v2310, %v5420
        %v5422 = vpop.f32.mrb[0].mxu0
        %v5423 = vadd.f32 %v2315, %v5422
        %v5424 = vpop.f32.mrb[0].mxu0
        %v5425 = vadd.f32 %v2315, %v5424
        %5426 = vmatprep.mubr.bf16.mxu0 0
        %5427 = vmatmul.mubr.bf16.gmra.mrb[0].mxu0 %v3975
        %v5428 = vpop.f32.mrb[0].mxu0
        %v5429 = vadd.f32 %v2320, %v5428
        %v5430 = vpop.f32.mrb[0].mxu0
        %v5431 = vadd.f32 %v2320, %v5430
        %v5432 = vpop.f32.mrb[0].mxu0
        %v5433 = vadd.f32 %v2325, %v5432
        %v5434 = vpop.f32.mrb[0].mxu0
        %v5435 = vadd.f32 %v2325, %v5434
        %5436 = vmatprep.mubr.bf16.mxu0 0
        %5437 = vmatmul.mubr.bf16.gmra.mrb[0].mxu0 %v3978
        %v5438 = vpop.f32.mrb[0].mxu0
        %v5439 = vadd.f32 %v2330, %v5438
        %v5440 = vpop.f32.mrb[0].mxu0
        %v5441 = vadd.f32 %v2330, %v5440
        %v5442 = vpop.f32.mrb[0].mxu0
        %v5443 = vadd.f32 %v2335, %v5442
        %v5444 = vpop.f32.mrb[0].mxu0
        %v5445 = vadd.f32 %v2335, %v5444
        %5446 = vmatprep.mubr.bf16.mxu0 0
        %5447 = vmatmul.mubr.bf16.gmra.mrb[0].mxu0 %v3981
        %v5448 = vpop.f32.mrb[0].mxu0
        %v5449 = vadd.f32 %v2340, %v5448
        %v5450 = vpop.f32.mrb[0].mxu0
        %v5451 = vadd.f32 %v2340, %v5450
        %v5452 = vpop.f32.mrb[0].mxu0
        %v5453 = vadd.f32 %v2345, %v5452
        %v5454 = vpop.f32.mrb[0].mxu0
        %v5455 = vadd.f32 %v2345, %v5454
        %5456 = vmatprep.mubr.bf16.mxu0 0
        %5457 = vmatmul.mubr.bf16.gmra.mrb[0].mxu0 %v3984
        %v5458 = vpop.f32.mrb[0].mxu0
        %v5459 = vadd.f32 %v2350, %v5458
        %v5460 = vpop.f32.mrb[0].mxu0
        %v5461 = vadd.f32 %v2350, %v5460
        %v5462 = vpop.f32.mrb[0].mxu0
        %v5463 = vadd.f32 %v2355, %v5462
        %v5464 = vpop.f32.mrb[0].mxu0
        %v5465 = vadd.f32 %v2355, %v5464
        %5466 = vmatprep.mubr.bf16.mxu0 0
        %5467 = vmatmul.mubr.bf16.gmra.mrb[0].mxu0 %v3987
        %v5468 = vpop.f32.mrb[0].mxu0
        %v5469 = vadd.f32 %v2360, %v5468
        %v5470 = vpop.f32.mrb[0].mxu0
        %v5471 = vadd.f32 %v2360, %v5470
        %v5472 = vpop.f32.mrb[0].mxu0
        %v5473 = vadd.f32 %v2365, %v5472
        %v5474 = vpop.f32.mrb[0].mxu0
        %v5475 = vadd.f32 %v2365, %v5474
        %5476 = vmatprep.mubr.bf16.mxu0 0
        %5477 = vmatmul.mubr.bf16.gmra.mrb[0].mxu0 %v3990
        %v5478 = vpop.f32.mrb[0].mxu0
        %v5479 = vadd.f32 %v2370, %v5478
        %v5480 = vpop.f32.mrb[0].mxu0
        %v5481 = vadd.f32 %v2370, %v5480
        %v5482 = vpop.f32.mrb[0].mxu0
        %v5483 = vadd.f32 %v2375, %v5482
        %v5484 = vpop.f32.mrb[0].mxu0
        %v5485 = vadd.f32 %v2375, %v5484
        %5486 = vmatprep.mubr.bf16.mxu0 0
        %5487 = vmatmul.mubr.bf16.gmra.mrb[0].mxu0 %v3993
        %v5488 = vpop.f32.mrb[0].mxu0
        %v5489 = vadd.f32 %v2380, %v5488
        %v5490 = vpop.f32.mrb[0].mxu0
        %v5491 = vadd.f32 %v2380, %v5490
        %v5492 = vpop.f32.mrb[0].mxu0
        %v5493 = vadd.f32 %v2385, %v5492
        %v5494 = vpop.f32.mrb[0].mxu0
        %v5495 = vadd.f32 %v2385, %v5494
        %5496 = vmatprep.mubr.bf16.mxu0 0
        %5497 = vmatmul.mubr.bf16.gmra.mrb[0].mxu0 %v3996
        %v5498 = vpop.f32.mrb[0].mxu0
        %v5499 = vadd.f32 %v2390, %v5498
        %v5500 = vpop.f32.mrb[0].mxu0
        %v5501 = vadd.f32 %v2390, %v5500
        %v5502 = vpop.f32.mrb[0].mxu0
        %v5503 = vadd.f32 %v2395, %v5502
        %v5504 = vpop.f32.mrb[0].mxu0
        %v5505 = vadd.f32 %v2395, %v5504
        %5506 = vmatprep.mubr.bf16.mxu0 0
        %5507 = vmatmul.mubr.bf16.gmra.mrb[0].mxu0 %v3999
        %v5508 = vpop.f32.mrb[0].mxu0
        %v5509 = vadd.f32 %v2400, %v5508
        %v5510 = vpop.f32.mrb[0].mxu0
        %v5511 = vadd.f32 %v2400, %v5510
        %v5512 = vpop.f32.mrb[0].mxu0
        %v5513 = vadd.f32 %v2405, %v5512
        %v5514 = vpop.f32.mrb[0].mxu0
        %v5515 = vadd.f32 %v2405, %v5514
        %5516 = vmatprep.mubr.bf16.mxu0 0
        %5517 = vmatmul.mubr.bf16.gmra.mrb[0].mxu0 %v4002
        %v5518 = vpop.f32.mrb[0].mxu0
        %v5519 = vadd.f32 %v2410, %v5518
        %v5520 = vpop.f32.mrb[0].mxu0
        %v5521 = vadd.f32 %v2410, %v5520
        %v5522 = vpop.f32.mrb[0].mxu0
        %v5523 = vadd.f32 %v2415, %v5522
        %v5524 = vpop.f32.mrb[0].mxu0
        %v5525 = vadd.f32 %v2415, %v5524
        %5526 = vmatprep.mubr.bf16.mxu0 0
        %5527 = vmatmul.mubr.bf16.gmra.mrb[0].mxu0 %v4005
        %v5528 = vpop.f32.mrb[0].mxu0
        %v5529 = vadd.f32 %v2420, %v5528
        %v5530 = vpop.f32.mrb[0].mxu0
        %v5531 = vadd.f32 %v2420, %v5530
        %v5532 = vpop.f32.mrb[0].mxu0
        %v5533 = vadd.f32 %v2425, %v5532
        %v5534 = vpop.f32.mrb[0].mxu0
        %v5535 = vadd.f32 %v2425, %v5534
        %5536 = vmatprep.mubr.bf16.mxu0 0
        %5537 = vmatmul.mubr.bf16.gmra.mrb[0].mxu0 %v4008
        %v5538 = vpop.f32.mrb[0].mxu0
        %v5539 = vadd.f32 %v2430, %v5538
        %v5540 = vpop.f32.mrb[0].mxu0
        %v5541 = vadd.f32 %v2430, %v5540
        %v5542 = vpop.f32.mrb[0].mxu0
        %v5543 = vadd.f32 %v2435, %v5542
        %v5544 = vpop.f32.mrb[0].mxu0
        %v5545 = vadd.f32 %v2435, %v5544
        %5546 = vmatprep.mubr.bf16.mxu0 0
        %5547 = vmatmul.mubr.bf16.gmra.mrb[0].mxu0 %v4011
        %v5548 = vpop.f32.mrb[0].mxu0
        %v5549 = vadd.f32 %v2440, %v5548
        %v5550 = vpop.f32.mrb[0].mxu0
        %v5551 = vadd.f32 %v2440, %v5550
        %v5552 = vpop.f32.mrb[0].mxu0
        %v5553 = vadd.f32 %v2445, %v5552
        %v5554 = vpop.f32.mrb[0].mxu0
        %v5555 = vadd.f32 %v2445, %v5554
        %5556 = vmatprep.mubr.bf16.mxu0 0
        %5557 = vmatmul.mubr.bf16.gmra.mrb[0].mxu0 %v4014
        %v5558 = vpop.f32.mrb[0].mxu0
        %v5559 = vadd.f32 %v2450, %v5558
        %v5560 = vpop.f32.mrb[0].mxu0
        %v5561 = vadd.f32 %v2450, %v5560
        %v5562 = vpop.f32.mrb[0].mxu0
        %v5563 = vadd.f32 %v2455, %v5562
        %v5564 = vpop.f32.mrb[0].mxu0
        %v5565 = vadd.f32 %v2455, %v5564
        %5566 = vmatprep.mubr.bf16.mxu0 0
        %5567 = vmatmul.mubr.bf16.gmra.mrb[0].mxu0 %v4017
        %v5568 = vpop.f32.mrb[0].mxu0
        %v5569 = vadd.f32 %v2460, %v5568
        %v5570 = vpop.f32.mrb[0].mxu0
        %v5571 = vadd.f32 %v2460, %v5570
        %v5572 = vpop.f32.mrb[0].mxu0
        %v5573 = vadd.f32 %v2465, %v5572
        %v5574 = vpop.f32.mrb[0].mxu0
        %v5575 = vadd.f32 %v2465, %v5574
        %5576 = vmatprep.mubr.bf16.mxu0 0
        %5577 = vmatmul.mubr.bf16.gmra.mrb[0].mxu0 %v4020
        %v5578 = vpop.f32.mrb[0].mxu0
        %v5579 = vadd.f32 %v2470, %v5578
        %v5580 = vpop.f32.mrb[0].mxu0
        %v5581 = vadd.f32 %v2470, %v5580
        %v5582 = vpop.f32.mrb[0].mxu0
        %v5583 = vadd.f32 %v2475, %v5582
        %v5584 = vpop.f32.mrb[0].mxu0
        %v5585 = vadd.f32 %v2475, %v5584
        %5586 = vmatprep.mubr.bf16.mxu0 0
        %5587 = vmatmul.mubr.bf16.gmra.mrb[0].mxu0 %v4023
        %v5588 = vpop.f32.mrb[0].mxu0
        %v5589 = vadd.f32 %v2480, %v5588
        %v5590 = vpop.f32.mrb[0].mxu0
        %v5591 = vadd.f32 %v2480, %v5590
        %v5592 = vpop.f32.mrb[0].mxu0
        %v5593 = vadd.f32 %v2485, %v5592
        %v5594 = vpop.f32.mrb[0].mxu0
        %v5595 = vadd.f32 %v2485, %v5594
        %5596 = vmatprep.mubr.bf16.mxu0 0
        %5597 = vmatmul.mubr.bf16.gmra.mrb[0].mxu0 %v4026
        %v5598 = vpop.f32.mrb[0].mxu0
        %v5599 = vadd.f32 %v2490, %v5598
        %v5600 = vpop.f32.mrb[0].mxu0
        %v5601 = vadd.f32 %v2490, %v5600
        %v5602 = vpop.f32.mrb[0].mxu0
        %v5603 = vadd.f32 %v2495, %v5602
        %v5604 = vpop.f32.mrb[0].mxu0
        %v5605 = vadd.f32 %v2495, %v5604
        %5606 = vmatprep.mubr.bf16.mxu0 0
        %5607 = vmatmul.mubr.bf16.gmra.mrb[0].mxu0 %v4029
        %v5608 = vpop.f32.mrb[0].mxu0
        %v5609 = vadd.f32 %v2500, %v5608
        %v5610 = vpop.f32.mrb[0].mxu0
        %v5611 = vadd.f32 %v2500, %v5610
        %v5612 = vpop.f32.mrb[0].mxu0
        %v5613 = vadd.f32 %v2505, %v5612
        %v5614 = vpop.f32.mrb[0].mxu0
        %v5615 = vadd.f32 %v2505, %v5614
        %5616 = vmatprep.mubr.bf16.mxu0 0
        %5617 = vmatmul.mubr.bf16.gmra.mrb[0].mxu0 %v4032
        %v5618 = vpop.f32.mrb[0].mxu0
        %v5619 = vadd.f32 %v2510, %v5618
        %v5620 = vpop.f32.mrb[0].mxu0
        %v5621 = vadd.f32 %v2510, %v5620
        %v5622 = vpop.f32.mrb[0].mxu0
        %v5623 = vadd.f32 %v2515, %v5622
        %v5624 = vpop.f32.mrb[0].mxu0
        %v5625 = vadd.f32 %v2515, %v5624
        %5626 = vmatprep.mubr.bf16.mxu0 0
        %5627 = vmatmul.mubr.bf16.gmra.mrb[0].mxu0 %v4035
        %v5628 = vpop.f32.mrb[0].mxu0
        %v5629 = vadd.f32 %v2520, %v5628
        %v5630 = vpop.f32.mrb[0].mxu0
        %v5631 = vadd.f32 %v2520, %v5630
        %v5632 = vpop.f32.mrb[0].mxu0
        %v5633 = vadd.f32 %v2525, %v5632
        %v5634 = vpop.f32.mrb[0].mxu0
        %v5635 = vadd.f32 %v2525, %v5634
        %5636 = vmatprep.mubr.bf16.mxu0 0
        %5637 = vmatmul.mubr.bf16.gmra.mrb[0].mxu0 %v4038
        %v5638 = vpop.f32.mrb[0].mxu0
        %v5639 = vadd.f32 %v2530, %v5638
        %v5640 = vpop.f32.mrb[0].mxu0
        %v5641 = vadd.f32 %v2530, %v5640
        %v5642 = vpop.f32.mrb[0].mxu0
        %v5643 = vadd.f32 %v2535, %v5642
        %v5644 = vpop.f32.mrb[0].mxu0
        %v5645 = vadd.f32 %v2535, %v5644
        %5646 = vmatprep.mubr.bf16.mxu0 0
        %5647 = vmatmul.mubr.bf16.gmra.mrb[0].mxu0 %v4041
        %v5648 = vpop.f32.mrb[0].mxu0
        %v5649 = vadd.f32 %v2540, %v5648
        %v5650 = vpop.f32.mrb[0].mxu0
        %v5651 = vadd.f32 %v2540, %v5650
        %v5652 = vpop.f32.mrb[0].mxu0
        %v5653 = vadd.f32 %v2545, %v5652
        %v5654 = vpop.f32.mrb[0].mxu0
        %v5655 = vadd.f32 %v2545, %v5654
        %5656 = vmatprep.mubr.bf16.mxu0 0
        %5657 = vmatmul.mubr.bf16.gmra.mrb[0].mxu0 %v4044
        %v5658 = vpop.f32.mrb[0].mxu0
        %v5659 = vadd.f32 %v2550, %v5658
        %v5660 = vpop.f32.mrb[0].mxu0
        %v5661 = vadd.f32 %v2550, %v5660
        %v5662 = vpop.f32.mrb[0].mxu0
        %v5663 = vadd.f32 %v2555, %v5662
        %v5664 = vpop.f32.mrb[0].mxu0
        %v5665 = vadd.f32 %v2555, %v5664
        %5666 = vmatprep.mubr.bf16.mxu0 0
        %5667 = vmatmul.mubr.bf16.gmra.mrb[0].mxu0 %v4047
        %v5668 = vpop.f32.mrb[0].mxu0
        %v5669 = vadd.f32 %v2560, %v5668
        %v5670 = vpop.f32.mrb[0].mxu0
        %v5671 = vadd.f32 %v2560, %v5670
        %v5672 = vpop.f32.mrb[0].mxu0
        %v5673 = vadd.f32 %v2565, %v5672
        %v5674 = vpop.f32.mrb[0].mxu0
        %v5675 = vadd.f32 %v2565, %v5674
        %5676 = vmatprep.mubr.bf16.mxu0 0
        %5677 = vmatmul.mubr.bf16.gmra.mrb[0].mxu0 %v4050
        %v5678 = vpop.f32.mrb[0].mxu0
        %v5679 = vadd.f32 %v2570, %v5678
        %v5680 = vpop.f32.mrb[0].mxu0
        %v5681 = vadd.f32 %v2570, %v5680
        %v5682 = vpop.f32.mrb[0].mxu0
        %v5683 = vadd.f32 %v2575, %v5682
        %v5684 = vpop.f32.mrb[0].mxu0
        %v5685 = vadd.f32 %v2575, %v5684
        %5686 = vmatprep.mubr.bf16.mxu0 0
        %5687 = vmatmul.mubr.bf16.gmra.mrb[0].mxu0 %v4053
        %v5688 = vpop.f32.mrb[0].mxu0
        %v5689 = vadd.f32 %v2580, %v5688
        %v5690 = vpop.f32.mrb[0].mxu0
        %v5691 = vadd.f32 %v2580, %v5690
        %v5692 = vpop.f32.mrb[0].mxu0
        %v5693 = vadd.f32 %v2585, %v5692
        %v5694 = vpop.f32.mrb[0].mxu0
        %v5695 = vadd.f32 %v2585, %v5694
        %5696 = vmatprep.mubr.bf16.mxu0 0
        %5697 = vmatmul.mubr.bf16.gmra.mrb[0].mxu0 %v4056
        %v5698 = vpop.f32.mrb[0].mxu0
        %v5699 = vadd.f32 %v2590, %v5698
        %v5700 = vpop.f32.mrb[0].mxu0
        %v5701 = vadd.f32 %v2590, %v5700
        %v5702 = vpop.f32.mrb[0].mxu0
        %v5703 = vadd.f32 %v2595, %v5702
        %v5704 = vpop.f32.mrb[0].mxu0
        %v5705 = vadd.f32 %v2595, %v5704
        %5706 = vmatprep.mubr.bf16.mxu0 0
        %5707 = vmatmul.mubr.bf16.gmra.mrb[0].mxu0 %v4059
        %v5708 = vpop.f32.mrb[0].mxu0
        %v5709 = vadd.f32 %v2600, %v5708
        %v5710 = vpop.f32.mrb[0].mxu0
        %v5711 = vadd.f32 %v2600, %v5710
        %v5712 = vpop.f32.mrb[0].mxu0
        %v5713 = vadd.f32 %v2605, %v5712
        %v5714 = vpop.f32.mrb[0].mxu0
        %v5715 = vadd.f32 %v2605, %v5714
        %5716 = vmatprep.mubr.bf16.mxu0 0
        %5717 = vmatmul.mubr.bf16.gmra.mrb[0].mxu0 %v4062
        %v5718 = vpop.f32.mrb[0].mxu0
        %v5719 = vadd.f32 %v2610, %v5718
        %v5720 = vpop.f32.mrb[0].mxu0
        %v5721 = vadd.f32 %v2610, %v5720
        %v5722 = vpop.f32.mrb[0].mxu0
        %v5723 = vadd.f32 %v2615, %v5722
        %v5724 = vpop.f32.mrb[0].mxu0
        %v5725 = vadd.f32 %v2615, %v5724
        %5726 = vmatprep.mubr.bf16.mxu0 0
        %5727 = vmatmul.mubr.bf16.gmra.mrb[0].mxu0 %v4065
        %v5728 = vpop.f32.mrb[0].mxu0
        %v5729 = vadd.f32 %v2620, %v5728
        %v5730 = vpop.f32.mrb[0].mxu0
        %v5731 = vadd.f32 %v2620, %v5730
        %v5732 = vpop.f32.mrb[0].mxu0
        %v5733 = vadd.f32 %v2625, %v5732
        %v5734 = vpop.f32.mrb[0].mxu0
        %v5735 = vadd.f32 %v2625, %v5734
        %5736 = vmatprep.mubr.bf16.mxu0 0
        %5737 = vmatmul.mubr.bf16.gmra.mrb[0].mxu0 %v4068
        %v5738 = vpop.f32.mrb[0].mxu0
        %v5739 = vadd.f32 %v2630, %v5738
        %v5740 = vpop.f32.mrb[0].mxu0
        %v5741 = vadd.f32 %v2630, %v5740
        %v5742 = vpop.f32.mrb[0].mxu0
        %v5743 = vadd.f32 %v2635, %v5742
        %v5744 = vpop.f32.mrb[0].mxu0
        %v5745 = vadd.f32 %v2635, %v5744
        %5746 = vmatprep.mubr.bf16.mxu0 0
        %5747 = vmatmul.mubr.bf16.gmra.mrb[0].mxu0 %v4071
        %v5748 = vpop.f32.mrb[0].mxu0
        %v5749 = vadd.f32 %v2640, %v5748
        %v5750 = vpop.f32.mrb[0].mxu0
        %v5751 = vadd.f32 %v2640, %v5750
        %v5752 = vpop.f32.mrb[0].mxu0
        %v5753 = vadd.f32 %v2645, %v5752
        %v5754 = vpop.f32.mrb[0].mxu0
        %v5755 = vadd.f32 %v2645, %v5754
        %5756 = vmatprep.mubr.bf16.mxu0 0
        %5757 = vmatmul.mubr.bf16.gmra.mrb[0].mxu0 %v4074
        %v5758 = vpop.f32.mrb[0].mxu0
        %v5759 = vadd.f32 %v2650, %v5758
        %v5760 = vpop.f32.mrb[0].mxu0
        %v5761 = vadd.f32 %v2650, %v5760
        %v5762 = vpop.f32.mrb[0].mxu0
        %v5763 = vadd.f32 %v2655, %v5762
        %v5764 = vpop.f32.mrb[0].mxu0
        %v5765 = vadd.f32 %v2655, %v5764
        %5766 = vmatprep.mubr.bf16.mxu0 0
        %5767 = vmatmul.mubr.bf16.gmra.mrb[0].mxu0 %v4077
        %v5768 = vpop.f32.mrb[0].mxu0
        %v5769 = vadd.f32 %v2660, %v5768
        %v5770 = vpop.f32.mrb[0].mxu0
        %v5771 = vadd.f32 %v2660, %v5770
        %v5772 = vpop.f32.mrb[0].mxu0
        %v5773 = vadd.f32 %v2665, %v5772
        %v5774 = vpop.f32.mrb[0].mxu0
        %v5775 = vadd.f32 %v2665, %v5774
        %5776 = vmatprep.mubr.bf16.mxu0 0
        %5777 = vmatmul.mubr.bf16.gmra.mrb[0].mxu0 %v4080
        %v5778 = vpop.f32.mrb[0].mxu0
        %v5779 = vadd.f32 %v2670, %v5778
        %v5780 = vpop.f32.mrb[0].mxu0
        %v5781 = vadd.f32 %v2670, %v5780
        %v5782 = vpop.f32.mrb[0].mxu0
        %v5783 = vadd.f32 %v2675, %v5782
        %v5784 = vpop.f32.mrb[0].mxu0
        %v5785 = vadd.f32 %v2675, %v5784
        %5786 = vmatprep.mubr.bf16.mxu0 0
        %5787 = vmatmul.mubr.bf16.gmra.mrb[0].mxu0 %v4083
        %v5788 = vpop.f32.mrb[0].mxu0
        %v5789 = vadd.f32 %v2680, %v5788
        %v5790 = vpop.f32.mrb[0].mxu0
        %v5791 = vadd.f32 %v2680, %v5790
        %v5792 = vpop.f32.mrb[0].mxu0
        %v5793 = vadd.f32 %v2685, %v5792
        %v5794 = vpop.f32.mrb[0].mxu0
        %v5795 = vadd.f32 %v2685, %v5794
        %5796 = vmatprep.mubr.bf16.mxu0 0
        %5797 = vmatmul.mubr.bf16.gmra.mrb[0].mxu0 %v4086
        %v5798 = vpop.f32.mrb[0].mxu0
        %v5799 = vadd.f32 %v2690, %v5798
        %v5800 = vpop.f32.mrb[0].mxu0
        %v5801 = vadd.f32 %v2690, %v5800
        %v5802 = vpop.f32.mrb[0].mxu0
        %v5803 = vadd.f32 %v2695, %v5802
        %v5804 = vpop.f32.mrb[0].mxu0
        %v5805 = vadd.f32 %v2695, %v5804
        %5806 = vmatprep.mubr.bf16.mxu0 0
        %5807 = vmatmul.mubr.bf16.gmra.mrb[0].mxu0 %v4089
        %v5808 = vpop.f32.mrb[0].mxu0
        %v5809 = vadd.f32 %v2700, %v5808
        %v5810 = vpop.f32.mrb[0].mxu0
        %v5811 = vadd.f32 %v2700, %v5810
        %v5812 = vpop.f32.mrb[0].mxu0
        %v5813 = vadd.f32 %v2705, %v5812
        %v5814 = vpop.f32.mrb[0].mxu0
        %v5815 = vadd.f32 %v2705, %v5814
        %5816 = vmatprep.mubr.bf16.mxu0 0
        %5817 = vmatmul.mubr.bf16.gmra.mrb[0].mxu0 %v4092
        %v5818 = vpop.f32.mrb[0].mxu0
        %v5819 = vadd.f32 %v2710, %v5818
        %v5820 = vpop.f32.mrb[0].mxu0
        %v5821 = vadd.f32 %v2710, %v5820
        %v5822 = vpop.f32.mrb[0].mxu0
        %v5823 = vadd.f32 %v2715, %v5822
        %v5824 = vpop.f32.mrb[0].mxu0
        %v5825 = vadd.f32 %v2715, %v5824
        %5826 = vmatprep.mubr.bf16.mxu0 0
        %5827 = vmatmul.mubr.bf16.gmra.mrb[0].mxu0 %v4095
        %v5828 = vpop.f32.mrb[0].mxu0
        %v5829 = vadd.f32 %v2720, %v5828
        %v5830 = vpop.f32.mrb[0].mxu0
        %v5831 = vadd.f32 %v2720, %v5830
        %v5832 = vpop.f32.mrb[0].mxu0
        %v5833 = vadd.f32 %v2725, %v5832
        %v5834 = vpop.f32.mrb[0].mxu0
        %v5835 = vadd.f32 %v2725, %v5834
        %5836 = vdwg.mxu0
        %v5837 = vld [vmem:[#allocation5] sm:$0xf]
        %v5838 = vld [vmem:[#allocation7] sm:$0x3]
        %v5840 = vlaneseq
        %v5841 = vshrl.u32 %v5840, 7
        %v5842 = vsub.s32 0, %v5841
        %v5843 = vrot.slane %v5838, %v5842
        %v5844 = vlaneseq
        %v5845 = vshrl.u32 %v5844, 7
        %v5846 = vsub.s32 1, %v5845
        %v5847 = vrot.slane %v5838, %v5846
        %v5882 = vunpack.c.l.b16 %v315
        %v5883 = vunpack.c.l.b16 %v316
        %v5884 = vunpack.c.l.b16 %v317
        %v5885 = vunpack.c.l.b16 %v318
        %v5886 = vunpack.c.l.b16 %v319
        %v5887 = vunpack.c.l.b16 %v320
        %v5888 = vunpack.c.l.b16 %v321
        %v5889 = vunpack.c.l.b16 %v322
        %v5890 = vunpack.c.l.b16 %v323
        %v5891 = vunpack.c.l.b16 %v324
        %v5892 = vunpack.c.l.b16 %v325
        %v5893 = vunpack.c.l.b16 %v326
        %v5894 = vunpack.c.l.b16 %v327
        %v5895 = vunpack.c.l.b16 %v328
        %v5896 = vunpack.c.l.b16 %v329
        %v5897 = vunpack.c.l.b16 %v330
        %v5898 = vunpack.c.l.b16 %v331
        %v5899 = vunpack.c.l.b16 %v332
        %v5900 = vunpack.c.l.b16 %v333
        %v5901 = vunpack.c.l.b16 %v334
        %v5902 = vunpack.c.l.b16 %v335
        %v5903 = vunpack.c.l.b16 %v336
        %v5904 = vunpack.c.l.b16 %v337
        %v5905 = vunpack.c.l.b16 %v338
        %v5906 = vunpack.c.l.b16 %v339
        %v5907 = vunpack.c.l.b16 %v340
        %v5908 = vunpack.c.l.b16 %v341
        %v5909 = vunpack.c.l.b16 %v342
        %v5910 = vunpack.c.l.b16 %v343
        %v5911 = vunpack.c.l.b16 %v344
        %v5912 = vunpack.c.l.b16 %v345
        %v5913 = vunpack.c.l.b16 %v346
        %v5914 = vpack.c.b16 %v5883, %v5882
        %v5915 = vpack.c.b16 %v5885, %v5884
        %v5916 = vpack.c.b16 %v5887, %v5886
        %v5917 = vpack.c.b16 %v5889, %v5888
        %v5918 = vpack.c.b16 %v5891, %v5890
        %v5919 = vpack.c.b16 %v5893, %v5892
        %v5920 = vpack.c.b16 %v5895, %v5894
        %v5921 = vpack.c.b16 %v5897, %v5896
        %v5922 = vpack.c.b16 %v5899, %v5898
        %v5923 = vpack.c.b16 %v5901, %v5900
        %v5924 = vpack.c.b16 %v5903, %v5902
        %v5925 = vpack.c.b16 %v5905, %v5904
        %v5926 = vpack.c.b16 %v5907, %v5906
        %v5927 = vpack.c.b16 %v5909, %v5908
        %v5928 = vpack.c.b16 %v5911, %v5910
        %v5929 = vpack.c.b16 %v5913, %v5912
        %v5932 = vunpack.c.l.s4 1983009808
        %v5933 = vunpack.c.0.s8 %v5932
        %v5934 = vlaneseq
        %v5935 = vshrl.u32 %v5934, 7
        %v5936 = vsub.s32 %v5933, %v5935
        %v5937 = vrot.slane %v5837, %v5936
        %v5938 = vcombine.high %v5937, %v5937
        %v5940 = vsel %vm3586, %v5914, 0
        %v5943 = vsel %vm3586, %v5915, 0
        %v5946 = vsel %vm3586, %v5916, 0
        %v5949 = vsel %vm3586, %v5917, 0
        %v5952 = vsel %vm3586, %v5918, 0
        %v5955 = vsel %vm3586, %v5919, 0
        %v5958 = vsel %vm3586, %v5920, 0
        %v5961 = vsel %vm3586, %v5921, 0
        %v5964 = vsel %vm3586, %v5922, 0
        %v5967 = vsel %vm3586, %v5923, 0
        %v5970 = vsel %vm3586, %v5924, 0
        %v5973 = vsel %vm3586, %v5925, 0
        %v5976 = vsel %vm3586, %v5926, 0
        %v5979 = vsel %vm3586, %v5927, 0
        %v5982 = vsel %vm3586, %v5928, 0
        %v5985 = vsel %vm3586, %v5929, 0
        %v5988 = vsel %vm4097, %v5937, 0
        %v5991 = vsel %vm4097, %v5938, 0
        %5993 = vmatprep.subr.bf16.mxu0 %v5991
        %5994 = vmatpush1.bf16.msra.mxu0 %v5988
        %5995 = vmatprep.subr.bf16.mxu0 0
        %5996 = vmatpush1.bf16.msra.mxu0 0
        %5997 = vmatprep.subr.bf16.mxu0 0
        %5998 = vmatpush1.bf16.msra.mxu0 0
        %5999 = vmatprep.subr.bf16.mxu0 0
        %6000 = vmatpush1.bf16.msra.mxu0 0
        %6001 = vmatprep.subr.bf16.mxu0 0
        %6002 = vmatpush1.bf16.msra.mxu0 0
        %6003 = vmatprep.subr.bf16.mxu0 0
        %6004 = vmatpush1.bf16.msra.mxu0 0
        %6005 = vmatprep.subr.bf16.mxu0 0
        %6006 = vmatpush1.bf16.msra.mxu0 0
        %6007 = vmatprep.subr.bf16.mxu0 0
        %6008 = vmatpush1.bf16.msra.mxu0 0
        %6009 = vmatprep.subr.bf16.mxu0 0
        %6010 = vmatpush1.bf16.msra.mxu0 0
        %6011 = vmatprep.subr.bf16.mxu0 0
        %6012 = vmatpush1.bf16.msra.mxu0 0
        %6013 = vmatprep.subr.bf16.mxu0 0
        %6014 = vmatpush1.bf16.msra.mxu0 0
        %6015 = vmatprep.subr.bf16.mxu0 0
        %6016 = vmatpush1.bf16.msra.mxu0 0
        %6017 = vmatprep.subr.bf16.mxu0 0
        %6018 = vmatpush1.bf16.msra.mxu0 0
        %6019 = vmatprep.subr.bf16.mxu0 0
        %6020 = vmatpush1.bf16.msra.mxu0 0
        %6021 = vmatprep.subr.bf16.mxu0 0
        %6022 = vmatpush1.bf16.msra.mxu0 0
        %6023 = vmatprep.subr.bf16.mxu0 0
        %6024 = vmatpush1.bf16.msra.mxu0 0
        %6025 = vmatprep.mubr.bf16.mxu0 0
        %6026 = vmatmul.mubr.bf16.gmra.mrb[0].mxu0 %v5940
        %v6027 = vpop.f32.mrb[0].mxu0
        %v6028 = vadd.f32 %v5843, %v6027
        %v6029 = vpop.f32.mrb[0].mxu0
        %v6030 = vadd.f32 %v5847, %v6029
        %v6031 = vpop.f32.mrb[0].mxu0
        %v6032 = vadd.f32 %v5843, %v6031
        %v6033 = vpop.f32.mrb[0].mxu0
        %v6034 = vadd.f32 %v5847, %v6033
        %6035 = vmatprep.mubr.bf16.mxu0 0
        %6036 = vmatmul.mubr.bf16.gmra.mrb[0].mxu0 %v5943
        %v6037 = vpop.f32.mrb[0].mxu0
        %v6038 = vadd.f32 %v5843, %v6037
        %v6039 = vpop.f32.mrb[0].mxu0
        %v6040 = vadd.f32 %v5847, %v6039
        %v6041 = vpop.f32.mrb[0].mxu0
        %v6042 = vadd.f32 %v5843, %v6041
        %v6043 = vpop.f32.mrb[0].mxu0
        %v6044 = vadd.f32 %v5847, %v6043
        %6045 = vmatprep.mubr.bf16.mxu0 0
        %6046 = vmatmul.mubr.bf16.gmra.mrb[0].mxu0 %v5946
        %v6047 = vpop.f32.mrb[0].mxu0
        %v6048 = vadd.f32 %v5843, %v6047
        %v6049 = vpop.f32.mrb[0].mxu0
        %v6050 = vadd.f32 %v5847, %v6049
        %v6051 = vpop.f32.mrb[0].mxu0
        %v6052 = vadd.f32 %v5843, %v6051
        %v6053 = vpop.f32.mrb[0].mxu0
        %v6054 = vadd.f32 %v5847, %v6053
        %6055 = vmatprep.mubr.bf16.mxu0 0
        %6056 = vmatmul.mubr.bf16.gmra.mrb[0].mxu0 %v5949
        %v6057 = vpop.f32.mrb[0].mxu0
        %v6058 = vadd.f32 %v5843, %v6057
        %v6059 = vpop.f32.mrb[0].mxu0
        %v6060 = vadd.f32 %v5847, %v6059
        %v6061 = vpop.f32.mrb[0].mxu0
        %v6062 = vadd.f32 %v5843, %v6061
        %v6063 = vpop.f32.mrb[0].mxu0
        %v6064 = vadd.f32 %v5847, %v6063
        %6065 = vmatprep.mubr.bf16.mxu0 0
        %6066 = vmatmul.mubr.bf16.gmra.mrb[0].mxu0 %v5952
        %v6067 = vpop.f32.mrb[0].mxu0
        %v6068 = vadd.f32 %v5843, %v6067
        %v6069 = vpop.f32.mrb[0].mxu0
        %v6070 = vadd.f32 %v5847, %v6069
        %v6071 = vpop.f32.mrb[0].mxu0
        %v6072 = vadd.f32 %v5843, %v6071
        %v6073 = vpop.f32.mrb[0].mxu0
        %v6074 = vadd.f32 %v5847, %v6073
        %6075 = vmatprep.mubr.bf16.mxu0 0
        %6076 = vmatmul.mubr.bf16.gmra.mrb[0].mxu0 %v5955
        %v6077 = vpop.f32.mrb[0].mxu0
        %v6078 = vadd.f32 %v5843, %v6077
        %v6079 = vpop.f32.mrb[0].mxu0
        %v6080 = vadd.f32 %v5847, %v6079
        %v6081 = vpop.f32.mrb[0].mxu0
        %v6082 = vadd.f32 %v5843, %v6081
        %v6083 = vpop.f32.mrb[0].mxu0
        %v6084 = vadd.f32 %v5847, %v6083
        %6085 = vmatprep.mubr.bf16.mxu0 0
        %6086 = vmatmul.mubr.bf16.gmra.mrb[0].mxu0 %v5958
        %v6087 = vpop.f32.mrb[0].mxu0
        %v6088 = vadd.f32 %v5843, %v6087
        %v6089 = vpop.f32.mrb[0].mxu0
        %v6090 = vadd.f32 %v5847, %v6089
        %v6091 = vpop.f32.mrb[0].mxu0
        %v6092 = vadd.f32 %v5843, %v6091
        %v6093 = vpop.f32.mrb[0].mxu0
        %v6094 = vadd.f32 %v5847, %v6093
        %6095 = vmatprep.mubr.bf16.mxu0 0
        %6096 = vmatmul.mubr.bf16.gmra.mrb[0].mxu0 %v5961
        %v6097 = vpop.f32.mrb[0].mxu0
        %v6098 = vadd.f32 %v5843, %v6097
        %v6099 = vpop.f32.mrb[0].mxu0
        %v6100 = vadd.f32 %v5847, %v6099
        %v6101 = vpop.f32.mrb[0].mxu0
        %v6102 = vadd.f32 %v5843, %v6101
        %v6103 = vpop.f32.mrb[0].mxu0
        %v6104 = vadd.f32 %v5847, %v6103
        %6105 = vmatprep.mubr.bf16.mxu0 0
        %6106 = vmatmul.mubr.bf16.gmra.mrb[0].mxu0 %v5964
        %v6107 = vpop.f32.mrb[0].mxu0
        %v6108 = vadd.f32 %v5843, %v6107
        %v6109 = vpop.f32.mrb[0].mxu0
        %v6110 = vadd.f32 %v5847, %v6109
        %v6111 = vpop.f32.mrb[0].mxu0
        %v6112 = vadd.f32 %v5843, %v6111
        %v6113 = vpop.f32.mrb[0].mxu0
        %v6114 = vadd.f32 %v5847, %v6113
        %6115 = vmatprep.mubr.bf16.mxu0 0
        %6116 = vmatmul.mubr.bf16.gmra.mrb[0].mxu0 %v5967
        %v6117 = vpop.f32.mrb[0].mxu0
        %v6118 = vadd.f32 %v5843, %v6117
        %v6119 = vpop.f32.mrb[0].mxu0
        %v6120 = vadd.f32 %v5847, %v6119
        %v6121 = vpop.f32.mrb[0].mxu0
        %v6122 = vadd.f32 %v5843, %v6121
        %v6123 = vpop.f32.mrb[0].mxu0
        %v6124 = vadd.f32 %v5847, %v6123
        %6125 = vmatprep.mubr.bf16.mxu0 0
        %6126 = vmatmul.mubr.bf16.gmra.mrb[0].mxu0 %v5970
        %v6127 = vpop.f32.mrb[0].mxu0
        %v6128 = vadd.f32 %v5843, %v6127
        %v6129 = vpop.f32.mrb[0].mxu0
        %v6130 = vadd.f32 %v5847, %v6129
        %v6131 = vpop.f32.mrb[0].mxu0
        %v6132 = vadd.f32 %v5843, %v6131
        %v6133 = vpop.f32.mrb[0].mxu0
        %v6134 = vadd.f32 %v5847, %v6133
        %6135 = vmatprep.mubr.bf16.mxu0 0
        %6136 = vmatmul.mubr.bf16.gmra.mrb[0].mxu0 %v5973
        %v6137 = vpop.f32.mrb[0].mxu0
        %v6138 = vadd.f32 %v5843, %v6137
        %v6139 = vpop.f32.mrb[0].mxu0
        %v6140 = vadd.f32 %v5847, %v6139
        %v6141 = vpop.f32.mrb[0].mxu0
        %v6142 = vadd.f32 %v5843, %v6141
        %v6143 = vpop.f32.mrb[0].mxu0
        %v6144 = vadd.f32 %v5847, %v6143
        %6145 = vmatprep.mubr.bf16.mxu0 0
        %6146 = vmatmul.mubr.bf16.gmra.mrb[0].mxu0 %v5976
        %v6147 = vpop.f32.mrb[0].mxu0
        %v6148 = vadd.f32 %v5843, %v6147
        %v6149 = vpop.f32.mrb[0].mxu0
        %v6150 = vadd.f32 %v5847, %v6149
        %v6151 = vpop.f32.mrb[0].mxu0
        %v6152 = vadd.f32 %v5843, %v6151
        %v6153 = vpop.f32.mrb[0].mxu0
        %v6154 = vadd.f32 %v5847, %v6153
        %6155 = vmatprep.mubr.bf16.mxu0 0
        %6156 = vmatmul.mubr.bf16.gmra.mrb[0].mxu0 %v5979
        %v6157 = vpop.f32.mrb[0].mxu0
        %v6158 = vadd.f32 %v5843, %v6157
        %v6159 = vpop.f32.mrb[0].mxu0
        %v6160 = vadd.f32 %v5847, %v6159
        %v6161 = vpop.f32.mrb[0].mxu0
        %v6162 = vadd.f32 %v5843, %v6161
        %v6163 = vpop.f32.mrb[0].mxu0
        %v6164 = vadd.f32 %v5847, %v6163
        %6165 = vmatprep.mubr.bf16.mxu0 0
        %6166 = vmatmul.mubr.bf16.gmra.mrb[0].mxu0 %v5982
        %v6167 = vpop.f32.mrb[0].mxu0
        %v6168 = vadd.f32 %v5843, %v6167
        %v6169 = vpop.f32.mrb[0].mxu0
        %v6170 = vadd.f32 %v5847, %v6169
        %v6171 = vpop.f32.mrb[0].mxu0
        %v6172 = vadd.f32 %v5843, %v6171
        %v6173 = vpop.f32.mrb[0].mxu0
        %v6174 = vadd.f32 %v5847, %v6173
        %6175 = vmatprep.mubr.bf16.mxu0 0
        %6176 = vmatmul.mubr.bf16.gmra.mrb[0].mxu0 %v5985
        %v6177 = vpop.f32.mrb[0].mxu0
        %v6178 = vadd.f32 %v5843, %v6177
        %v6179 = vpop.f32.mrb[0].mxu0
        %v6180 = vadd.f32 %v5847, %v6179
        %v6181 = vpop.f32.mrb[0].mxu0
        %v6182 = vadd.f32 %v5843, %v6181
        %v6183 = vpop.f32.mrb[0].mxu0
        %v6184 = vadd.f32 %v5847, %v6183
        %6185 = vdwg.mxu0
        %v6186 = vpack.c.bf16 %v6032, %v6028
        %v6187 = vpack.c.bf16 %v6034, %v6030
        %v6188 = vpack.c.bf16 %v6042, %v6038
        %v6189 = vpack.c.bf16 %v6044, %v6040
        %v6190 = vpack.c.bf16 %v6052, %v6048
        %v6191 = vpack.c.bf16 %v6054, %v6050
        %v6192 = vpack.c.bf16 %v6062, %v6058
        %v6193 = vpack.c.bf16 %v6064, %v6060
        %v6194 = vpack.c.bf16 %v6072, %v6068
        %v6195 = vpack.c.bf16 %v6074, %v6070
        %v6196 = vpack.c.bf16 %v6082, %v6078
        %v6197 = vpack.c.bf16 %v6084, %v6080
        %v6198 = vpack.c.bf16 %v6092, %v6088
        %v6199 = vpack.c.bf16 %v6094, %v6090
        %v6200 = vpack.c.bf16 %v6102, %v6098
        %v6201 = vpack.c.bf16 %v6104, %v6100
        %v6202 = vpack.c.bf16 %v6112, %v6108
        %v6203 = vpack.c.bf16 %v6114, %v6110
        %v6204 = vpack.c.bf16 %v6122, %v6118
        %v6205 = vpack.c.bf16 %v6124, %v6120
        %v6206 = vpack.c.bf16 %v6132, %v6128
        %v6207 = vpack.c.bf16 %v6134, %v6130
        %v6208 = vpack.c.bf16 %v6142, %v6138
        %v6209 = vpack.c.bf16 %v6144, %v6140
        %v6210 = vpack.c.bf16 %v6152, %v6148
        %v6211 = vpack.c.bf16 %v6154, %v6150
        %v6212 = vpack.c.bf16 %v6162, %v6158
        %v6213 = vpack.c.bf16 %v6164, %v6160
        %v6214 = vpack.c.bf16 %v6172, %v6168
        %v6215 = vpack.c.bf16 %v6174, %v6170
        %v6216 = vpack.c.bf16 %v6182, %v6178
        %v6217 = vpack.c.bf16 %v6184, %v6180
        %v6218 = vpack.c.bf16 %v5743, %v5739
        %v6219 = vpack.c.bf16 %v5745, %v5741
        %v6220 = vpack.c.bf16 %v5753, %v5749
        %v6221 = vpack.c.bf16 %v5755, %v5751
        %v6222 = vpack.c.bf16 %v5763, %v5759
        %v6223 = vpack.c.bf16 %v5765, %v5761
        %v6224 = vpack.c.bf16 %v5773, %v5769
        %v6225 = vpack.c.bf16 %v5775, %v5771
        %v6226 = vpack.c.bf16 %v5783, %v5779
        %v6227 = vpack.c.bf16 %v5785, %v5781
        %v6228 = vpack.c.bf16 %v5793, %v5789
        %v6229 = vpack.c.bf16 %v5795, %v5791
        %v6230 = vpack.c.bf16 %v5803, %v5799
        %v6231 = vpack.c.bf16 %v5805, %v5801
        %v6232 = vpack.c.bf16 %v5813, %v5809
        %v6233 = vpack.c.bf16 %v5815, %v5811
        %v6234 = vpack.c.bf16 %v5823, %v5819
        %v6235 = vpack.c.bf16 %v5825, %v5821
        %v6236 = vpack.c.bf16 %v5833, %v5829
        %v6237 = vpack.c.bf16 %v5835, %v5831
        %vm6238 = vcmask 261120
        %v6240 = vsel %vm6238, %v6187, 0
        %v6243 = vsel %vm6238, %v6189, 0
        %v6246 = vsel %vm6238, %v6191, 0
        %v6249 = vsel %vm6238, %v6193, 0
        %v6252 = vsel %vm6238, %v6195, 0
        %v6255 = vsel %vm6238, %v6197, 0
        %v6258 = vsel %vm6238, %v6199, 0
        %v6261 = vsel %vm6238, %v6201, 0
        %v6264 = vsel %vm6238, %v6203, 0
        %v6267 = vsel %vm6238, %v6205, 0
        %v6270 = vsel %vm6238, %v6207, 0
        %v6273 = vsel %vm6238, %v6209, 0
        %v6276 = vsel %vm6238, %v6211, 0
        %v6279 = vsel %vm6238, %v6213, 0
        %v6282 = vsel %vm6238, %v6215, 0
        %v6285 = vsel %vm6238, %v6217, 0
        %6287 = vmatprep.subr.bf16.mxu0 %v6219
        %6288 = vmatpush1.bf16.msra.mxu0 %v6218
        %6289 = vmatprep.subr.bf16.mxu0 %v6221
        %6290 = vmatpush1.bf16.msra.mxu0 %v6220
        %6291 = vmatprep.subr.bf16.mxu0 %v6223
        %6292 = vmatpush1.bf16.msra.mxu0 %v6222
        %6293 = vmatprep.subr.bf16.mxu0 %v6225
        %6294 = vmatpush1.bf16.msra.mxu0 %v6224
        %6295 = vmatprep.subr.bf16.mxu0 %v6227
        %6296 = vmatpush1.bf16.msra.mxu0 %v6226
        %6297 = vmatprep.subr.bf16.mxu0 %v6229
        %6298 = vmatpush1.bf16.msra.mxu0 %v6228
        %6299 = vmatprep.subr.bf16.mxu0 %v6231
        %6300 = vmatpush1.bf16.msra.mxu0 %v6230
        %6301 = vmatprep.subr.bf16.mxu0 %v6233
        %6302 = vmatpush1.bf16.msra.mxu0 %v6232
        %6303 = vmatprep.subr.bf16.mxu0 %v6235
        %6304 = vmatpush1.bf16.msra.mxu0 %v6234
        %6305 = vmatprep.subr.bf16.mxu0 %v6237
        %6306 = vmatpush1.bf16.msra.mxu0 %v6236
        %6307 = vmatprep.subr.bf16.mxu0 0
        %6308 = vmatpush1.bf16.msra.mxu0 0
        %6309 = vmatprep.subr.bf16.mxu0 0
        %6310 = vmatpush1.bf16.msra.mxu0 0
        %6311 = vmatprep.subr.bf16.mxu0 0
        %6312 = vmatpush1.bf16.msra.mxu0 0
        %6313 = vmatprep.subr.bf16.mxu0 0
        %6314 = vmatpush1.bf16.msra.mxu0 0
        %6315 = vmatprep.subr.bf16.mxu0 0
        %6316 = vmatpush1.bf16.msra.mxu0 0
        %6317 = vmatprep.subr.bf16.mxu0 0
        %6318 = vmatpush1.bf16.msra.mxu0 0
        %6319 = vmatprep.mubr.bf16.mxu0 %v6240
        %6320 = vmatmul.mubr.bf16.gmra.mrb[0].mxu0 %v6186
        %v6321 = vpop.f32.mrb[0].mxu0
        %v6322 = vadd.f32 0.0, %v6321
        %v6323 = vpop.f32.mrb[0].mxu0
        %v6324 = vadd.f32 0.0, %v6323
        %v6325 = vpop.f32.mrb[0].mxu0
        %v6326 = vadd.f32 0.0, %v6325
        %v6327 = vpop.f32.mrb[0].mxu0
        %v6328 = vadd.f32 0.0, %v6327
        %6329 = vmatprep.mubr.bf16.mxu0 %v6243
        %6330 = vmatmul.mubr.bf16.gmra.mrb[0].mxu0 %v6188
        %v6331 = vpop.f32.mrb[0].mxu0
        %v6332 = vadd.f32 0.0, %v6331
        %v6333 = vpop.f32.mrb[0].mxu0
        %v6334 = vadd.f32 0.0, %v6333
        %v6335 = vpop.f32.mrb[0].mxu0
        %v6336 = vadd.f32 0.0, %v6335
        %v6337 = vpop.f32.mrb[0].mxu0
        %v6338 = vadd.f32 0.0, %v6337
        %6339 = vmatprep.mubr.bf16.mxu0 %v6246
        %6340 = vmatmul.mubr.bf16.gmra.mrb[0].mxu0 %v6190
        %v6341 = vpop.f32.mrb[0].mxu0
        %v6342 = vadd.f32 0.0, %v6341
        %v6343 = vpop.f32.mrb[0].mxu0
        %v6344 = vadd.f32 0.0, %v6343
        %v6345 = vpop.f32.mrb[0].mxu0
        %v6346 = vadd.f32 0.0, %v6345
        %v6347 = vpop.f32.mrb[0].mxu0
        %v6348 = vadd.f32 0.0, %v6347
        %6349 = vmatprep.mubr.bf16.mxu0 %v6249
        %6350 = vmatmul.mubr.bf16.gmra.mrb[0].mxu0 %v6192
        %v6351 = vpop.f32.mrb[0].mxu0
        %v6352 = vadd.f32 0.0, %v6351
        %v6353 = vpop.f32.mrb[0].mxu0
        %v6354 = vadd.f32 0.0, %v6353
        %v6355 = vpop.f32.mrb[0].mxu0
        %v6356 = vadd.f32 0.0, %v6355
        %v6357 = vpop.f32.mrb[0].mxu0
        %v6358 = vadd.f32 0.0, %v6357
        %6359 = vmatprep.mubr.bf16.mxu0 %v6252
        %6360 = vmatmul.mubr.bf16.gmra.mrb[0].mxu0 %v6194
        %v6361 = vpop.f32.mrb[0].mxu0
        %v6362 = vadd.f32 0.0, %v6361
        %v6363 = vpop.f32.mrb[0].mxu0
        %v6364 = vadd.f32 0.0, %v6363
        %v6365 = vpop.f32.mrb[0].mxu0
        %v6366 = vadd.f32 0.0, %v6365
        %v6367 = vpop.f32.mrb[0].mxu0
        %v6368 = vadd.f32 0.0, %v6367
        %6369 = vmatprep.mubr.bf16.mxu0 %v6255
        %6370 = vmatmul.mubr.bf16.gmra.mrb[0].mxu0 %v6196
        %v6371 = vpop.f32.mrb[0].mxu0
        %v6372 = vadd.f32 0.0, %v6371
        %v6373 = vpop.f32.mrb[0].mxu0
        %v6374 = vadd.f32 0.0, %v6373
        %v6375 = vpop.f32.mrb[0].mxu0
        %v6376 = vadd.f32 0.0, %v6375
        %v6377 = vpop.f32.mrb[0].mxu0
        %v6378 = vadd.f32 0.0, %v6377
        %6379 = vmatprep.mubr.bf16.mxu0 %v6258
        %6380 = vmatmul.mubr.bf16.gmra.mrb[0].mxu0 %v6198
        %v6381 = vpop.f32.mrb[0].mxu0
        %v6382 = vadd.f32 0.0, %v6381
        %v6383 = vpop.f32.mrb[0].mxu0
        %v6384 = vadd.f32 0.0, %v6383
        %v6385 = vpop.f32.mrb[0].mxu0
        %v6386 = vadd.f32 0.0, %v6385
        %v6387 = vpop.f32.mrb[0].mxu0
        %v6388 = vadd.f32 0.0, %v6387
        %6389 = vmatprep.mubr.bf16.mxu0 %v6261
        %6390 = vmatmul.mubr.bf16.gmra.mrb[0].mxu0 %v6200
        %v6391 = vpop.f32.mrb[0].mxu0
        %v6392 = vadd.f32 0.0, %v6391
        %v6393 = vpop.f32.mrb[0].mxu0
        %v6394 = vadd.f32 0.0, %v6393
        %v6395 = vpop.f32.mrb[0].mxu0
        %v6396 = vadd.f32 0.0, %v6395
        %v6397 = vpop.f32.mrb[0].mxu0
        %v6398 = vadd.f32 0.0, %v6397
        %6399 = vmatprep.mubr.bf16.mxu0 %v6264
        %6400 = vmatmul.mubr.bf16.gmra.mrb[0].mxu0 %v6202
        %v6401 = vpop.f32.mrb[0].mxu0
        %v6402 = vadd.f32 0.0, %v6401
        %v6403 = vpop.f32.mrb[0].mxu0
        %v6404 = vadd.f32 0.0, %v6403
        %v6405 = vpop.f32.mrb[0].mxu0
        %v6406 = vadd.f32 0.0, %v6405
        %v6407 = vpop.f32.mrb[0].mxu0
        %v6408 = vadd.f32 0.0, %v6407
        %6409 = vmatprep.mubr.bf16.mxu0 %v6267
        %6410 = vmatmul.mubr.bf16.gmra.mrb[0].mxu0 %v6204
        %v6411 = vpop.f32.mrb[0].mxu0
        %v6412 = vadd.f32 0.0, %v6411
        %v6413 = vpop.f32.mrb[0].mxu0
        %v6414 = vadd.f32 0.0, %v6413
        %v6415 = vpop.f32.mrb[0].mxu0
        %v6416 = vadd.f32 0.0, %v6415
        %v6417 = vpop.f32.mrb[0].mxu0
        %v6418 = vadd.f32 0.0, %v6417
        %6419 = vmatprep.mubr.bf16.mxu0 %v6270
        %6420 = vmatmul.mubr.bf16.gmra.mrb[0].mxu0 %v6206
        %v6421 = vpop.f32.mrb[0].mxu0
        %v6422 = vadd.f32 0.0, %v6421
        %v6423 = vpop.f32.mrb[0].mxu0
        %v6424 = vadd.f32 0.0, %v6423
        %v6425 = vpop.f32.mrb[0].mxu0
        %v6426 = vadd.f32 0.0, %v6425
        %v6427 = vpop.f32.mrb[0].mxu0
        %v6428 = vadd.f32 0.0, %v6427
        %6429 = vmatprep.mubr.bf16.mxu0 %v6273
        %6430 = vmatmul.mubr.bf16.gmra.mrb[0].mxu0 %v6208
        %v6431 = vpop.f32.mrb[0].mxu0
        %v6432 = vadd.f32 0.0, %v6431
        %v6433 = vpop.f32.mrb[0].mxu0
        %v6434 = vadd.f32 0.0, %v6433
        %v6435 = vpop.f32.mrb[0].mxu0
        %v6436 = vadd.f32 0.0, %v6435
        %v6437 = vpop.f32.mrb[0].mxu0
        %v6438 = vadd.f32 0.0, %v6437
        %6439 = vmatprep.mubr.bf16.mxu0 %v6276
        %6440 = vmatmul.mubr.bf16.gmra.mrb[0].mxu0 %v6210
        %v6441 = vpop.f32.mrb[0].mxu0
        %v6442 = vadd.f32 0.0, %v6441
        %v6443 = vpop.f32.mrb[0].mxu0
        %v6444 = vadd.f32 0.0, %v6443
        %v6445 = vpop.f32.mrb[0].mxu0
        %v6446 = vadd.f32 0.0, %v6445
        %v6447 = vpop.f32.mrb[0].mxu0
        %v6448 = vadd.f32 0.0, %v6447
        %6449 = vmatprep.mubr.bf16.mxu0 %v6279
        %6450 = vmatmul.mubr.bf16.gmra.mrb[0].mxu0 %v6212
        %v6451 = vpop.f32.mrb[0].mxu0
        %v6452 = vadd.f32 0.0, %v6451
        %v6453 = vpop.f32.mrb[0].mxu0
        %v6454 = vadd.f32 0.0, %v6453
        %v6455 = vpop.f32.mrb[0].mxu0
        %v6456 = vadd.f32 0.0, %v6455
        %v6457 = vpop.f32.mrb[0].mxu0
        %v6458 = vadd.f32 0.0, %v6457
        %6459 = vmatprep.mubr.bf16.mxu0 %v6282
        %6460 = vmatmul.mubr.bf16.gmra.mrb[0].mxu0 %v6214
        %v6461 = vpop.f32.mrb[0].mxu0
        %v6462 = vadd.f32 0.0, %v6461
        %v6463 = vpop.f32.mrb[0].mxu0
        %v6464 = vadd.f32 0.0, %v6463
        %v6465 = vpop.f32.mrb[0].mxu0
        %v6466 = vadd.f32 0.0, %v6465
        %v6467 = vpop.f32.mrb[0].mxu0
        %v6468 = vadd.f32 0.0, %v6467
        %6469 = vmatprep.mubr.bf16.mxu0 %v6285
        %6470 = vmatmul.mubr.bf16.gmra.mrb[0].mxu0 %v6216
        %v6471 = vpop.f32.mrb[0].mxu0
        %v6472 = vadd.f32 0.0, %v6471
        %v6473 = vpop.f32.mrb[0].mxu0
        %v6474 = vadd.f32 0.0, %v6473
        %v6475 = vpop.f32.mrb[0].mxu0
        %v6476 = vadd.f32 0.0, %v6475
        %v6477 = vpop.f32.mrb[0].mxu0
        %v6478 = vadd.f32 0.0, %v6477
        %6479 = vdwg.mxu0
        %v6480 = vmax.f32 %v6322, %v6324
        %6481 = vmax.xlane.f32.xlu0 %v6480
        %v6482 = vpop.xlane.xlu0 %6481
        %v6483 = vmax.f32 %v6326, %v6328
        %6484 = vmax.xlane.f32.xlu0 %v6483
        %v6485 = vpop.xlane.xlu0 %6484
        %v6486 = vmax.f32 %v6332, %v6334
        %6487 = vmax.xlane.f32.xlu0 %v6486
        %v6488 = vpop.xlane.xlu0 %6487
        %v6489 = vmax.f32 %v6336, %v6338
        %6490 = vmax.xlane.f32.xlu0 %v6489
        %v6491 = vpop.xlane.xlu0 %6490
        %v6492 = vmax.f32 %v6342, %v6344
        %6493 = vmax.xlane.f32.xlu0 %v6492
        %v6494 = vpop.xlane.xlu0 %6493
        %v6495 = vmax.f32 %v6346, %v6348
        %6496 = vmax.xlane.f32.xlu0 %v6495
        %v6497 = vpop.xlane.xlu0 %6496
        %v6498 = vmax.f32 %v6352, %v6354
        %6499 = vmax.xlane.f32.xlu0 %v6498
        %v6500 = vpop.xlane.xlu0 %6499
        %v6501 = vmax.f32 %v6356, %v6358
        %6502 = vmax.xlane.f32.xlu0 %v6501
        %v6503 = vpop.xlane.xlu0 %6502
        %v6504 = vmax.f32 %v6362, %v6364
        %6505 = vmax.xlane.f32.xlu0 %v6504
        %v6506 = vpop.xlane.xlu0 %6505
        %v6507 = vmax.f32 %v6366, %v6368
        %6508 = vmax.xlane.f32.xlu0 %v6507
        %v6509 = vpop.xlane.xlu0 %6508
        %v6510 = vmax.f32 %v6372, %v6374
        %6511 = vmax.xlane.f32.xlu0 %v6510
        %v6512 = vpop.xlane.xlu0 %6511
        %v6513 = vmax.f32 %v6376, %v6378
        %6514 = vmax.xlane.f32.xlu0 %v6513
        %v6515 = vpop.xlane.xlu0 %6514
        %v6516 = vmax.f32 %v6382, %v6384
        %6517 = vmax.xlane.f32.xlu0 %v6516
        %v6518 = vpop.xlane.xlu0 %6517
        %v6519 = vmax.f32 %v6386, %v6388
        %6520 = vmax.xlane.f32.xlu0 %v6519
        %v6521 = vpop.xlane.xlu0 %6520
        %v6522 = vmax.f32 %v6392, %v6394
        %6523 = vmax.xlane.f32.xlu0 %v6522
        %v6524 = vpop.xlane.xlu0 %6523
        %v6525 = vmax.f32 %v6396, %v6398
        %6526 = vmax.xlane.f32.xlu0 %v6525
        %v6527 = vpop.xlane.xlu0 %6526
        %v6528 = vmax.f32 %v6402, %v6404
        %6529 = vmax.xlane.f32.xlu0 %v6528
        %v6530 = vpop.xlane.xlu0 %6529
        %v6531 = vmax.f32 %v6406, %v6408
        %6532 = vmax.xlane.f32.xlu0 %v6531
        %v6533 = vpop.xlane.xlu0 %6532
        %v6534 = vmax.f32 %v6412, %v6414
        %6535 = vmax.xlane.f32.xlu0 %v6534
        %v6536 = vpop.xlane.xlu0 %6535
        %v6537 = vmax.f32 %v6416, %v6418
        %6538 = vmax.xlane.f32.xlu0 %v6537
        %v6539 = vpop.xlane.xlu0 %6538
        %v6540 = vmax.f32 %v6422, %v6424
        %6541 = vmax.xlane.f32.xlu0 %v6540
        %v6542 = vpop.xlane.xlu0 %6541
        %v6543 = vmax.f32 %v6426, %v6428
        %6544 = vmax.xlane.f32.xlu0 %v6543
        %v6545 = vpop.xlane.xlu0 %6544
        %v6546 = vmax.f32 %v6432, %v6434
        %6547 = vmax.xlane.f32.xlu0 %v6546
        %v6548 = vpop.xlane.xlu0 %6547
        %v6549 = vmax.f32 %v6436, %v6438
        %6550 = vmax.xlane.f32.xlu0 %v6549
        %v6551 = vpop.xlane.xlu0 %6550
        %v6552 = vmax.f32 %v6442, %v6444
        %6553 = vmax.xlane.f32.xlu0 %v6552
        %v6554 = vpop.xlane.xlu0 %6553
        %v6555 = vmax.f32 %v6446, %v6448
        %6556 = vmax.xlane.f32.xlu0 %v6555
        %v6557 = vpop.xlane.xlu0 %6556
        %v6558 = vmax.f32 %v6452, %v6454
        %6559 = vmax.xlane.f32.xlu0 %v6558
        %v6560 = vpop.xlane.xlu0 %6559
        %v6561 = vmax.f32 %v6456, %v6458
        %6562 = vmax.xlane.f32.xlu0 %v6561
        %v6563 = vpop.xlane.xlu0 %6562
        %v6564 = vmax.f32 %v6462, %v6464
        %6565 = vmax.xlane.f32.xlu0 %v6564
        %v6566 = vpop.xlane.xlu0 %6565
        %v6567 = vmax.f32 %v6466, %v6468
        %6568 = vmax.xlane.f32.xlu0 %v6567
        %v6569 = vpop.xlane.xlu0 %6568
        %v6570 = vmax.f32 %v6472, %v6474
        %6571 = vmax.xlane.f32.xlu0 %v6570
        %v6572 = vpop.xlane.xlu0 %6571
        %v6573 = vmax.f32 %v6476, %v6478
        %6574 = vmax.xlane.f32.xlu0 %v6573
        %v6575 = vpop.xlane.xlu0 %6574
        %v6576 = vsub.f32 %v6322, %v6482
        %v6577 = vsub.f32 %v6324, %v6482
        %v6578 = vsub.f32 %v6326, %v6485
        %v6579 = vsub.f32 %v6328, %v6485
        %v6580 = vsub.f32 %v6332, %v6488
        %v6581 = vsub.f32 %v6334, %v6488
        %v6582 = vsub.f32 %v6336, %v6491
        %v6583 = vsub.f32 %v6338, %v6491
        %v6584 = vsub.f32 %v6342, %v6494
        %v6585 = vsub.f32 %v6344, %v6494
        %v6586 = vsub.f32 %v6346, %v6497
        %v6587 = vsub.f32 %v6348, %v6497
        %v6588 = vsub.f32 %v6352, %v6500
        %v6589 = vsub.f32 %v6354, %v6500
        %v6590 = vsub.f32 %v6356, %v6503
        %v6591 = vsub.f32 %v6358, %v6503
        %v6592 = vsub.f32 %v6362, %v6506
        %v6593 = vsub.f32 %v6364, %v6506
        %v6594 = vsub.f32 %v6366, %v6509
        %v6595 = vsub.f32 %v6368, %v6509
        %v6596 = vsub.f32 %v6372, %v6512
        %v6597 = vsub.f32 %v6374, %v6512
        %v6598 = vsub.f32 %v6376, %v6515
        %v6599 = vsub.f32 %v6378, %v6515
        %v6600 = vsub.f32 %v6382, %v6518
        %v6601 = vsub.f32 %v6384, %v6518
        %v6602 = vsub.f32 %v6386, %v6521
        %v6603 = vsub.f32 %v6388, %v6521
        %v6604 = vsub.f32 %v6392, %v6524
        %v6605 = vsub.f32 %v6394, %v6524
        %v6606 = vsub.f32 %v6396, %v6527
        %v6607 = vsub.f32 %v6398, %v6527
        %v6608 = vsub.f32 %v6402, %v6530
        %v6609 = vsub.f32 %v6404, %v6530
        %v6610 = vsub.f32 %v6406, %v6533
        %v6611 = vsub.f32 %v6408, %v6533
        %v6612 = vsub.f32 %v6412, %v6536
        %v6613 = vsub.f32 %v6414, %v6536
        %v6614 = vsub.f32 %v6416, %v6539
        %v6615 = vsub.f32 %v6418, %v6539
        %v6616 = vsub.f32 %v6422, %v6542
        %v6617 = vsub.f32 %v6424, %v6542
        %v6618 = vsub.f32 %v6426, %v6545
        %v6619 = vsub.f32 %v6428, %v6545
        %v6620 = vsub.f32 %v6432, %v6548
        %v6621 = vsub.f32 %v6434, %v6548
        %v6622 = vsub.f32 %v6436, %v6551
        %v6623 = vsub.f32 %v6438, %v6551
        %v6624 = vsub.f32 %v6442, %v6554
        %v6625 = vsub.f32 %v6444, %v6554
        %v6626 = vsub.f32 %v6446, %v6557
        %v6627 = vsub.f32 %v6448, %v6557
        %v6628 = vsub.f32 %v6452, %v6560
        %v6629 = vsub.f32 %v6454, %v6560
        %v6630 = vsub.f32 %v6456, %v6563
        %v6631 = vsub.f32 %v6458, %v6563
        %v6632 = vsub.f32 %v6462, %v6566
        %v6633 = vsub.f32 %v6464, %v6566
        %v6634 = vsub.f32 %v6466, %v6569
        %v6635 = vsub.f32 %v6468, %v6569
        %v6636 = vsub.f32 %v6472, %v6572
        %v6637 = vsub.f32 %v6474, %v6572
        %v6638 = vsub.f32 %v6476, %v6575
        %v6639 = vsub.f32 %v6478, %v6575
        %v6640 = vmul.f32 %v6576, 1.442695
        %v6641 = vpow.pop %v6640
        %v6642 = vmul.f32 %v6577, 1.442695
        %v6643 = vpow.pop %v6642
        %v6644 = vmul.f32 %v6578, 1.442695
        %v6645 = vpow.pop %v6644
        %v6646 = vmul.f32 %v6579, 1.442695
        %v6647 = vpow.pop %v6646
        %v6648 = vmul.f32 %v6580, 1.442695
        %v6649 = vpow.pop %v6648
        %v6650 = vmul.f32 %v6581, 1.442695
        %v6651 = vpow.pop %v6650
        %v6652 = vmul.f32 %v6582, 1.442695
        %v6653 = vpow.pop %v6652
        %v6654 = vmul.f32 %v6583, 1.442695
        %v6655 = vpow.pop %v6654
        %v6656 = vmul.f32 %v6584, 1.442695
        %v6657 = vpow.pop %v6656
        %v6658 = vmul.f32 %v6585, 1.442695
        %v6659 = vpow.pop %v6658
        %v6660 = vmul.f32 %v6586, 1.442695
        %v6661 = vpow.pop %v6660
        %v6662 = vmul.f32 %v6587, 1.442695
        %v6663 = vpow.pop %v6662
        %v6664 = vmul.f32 %v6588, 1.442695
        %v6665 = vpow.pop %v6664
        %v6666 = vmul.f32 %v6589, 1.442695
        %v6667 = vpow.pop %v6666
        %v6668 = vmul.f32 %v6590, 1.442695
        %v6669 = vpow.pop %v6668
        %v6670 = vmul.f32 %v6591, 1.442695
        %v6671 = vpow.pop %v6670
        %v6672 = vmul.f32 %v6592, 1.442695
        %v6673 = vpow.pop %v6672
        %v6674 = vmul.f32 %v6593, 1.442695
        %v6675 = vpow.pop %v6674
        %v6676 = vmul.f32 %v6594, 1.442695
        %v6677 = vpow.pop %v6676
        %v6678 = vmul.f32 %v6595, 1.442695
        %v6679 = vpow.pop %v6678
        %v6680 = vmul.f32 %v6596, 1.442695
        %v6681 = vpow.pop %v6680
        %v6682 = vmul.f32 %v6597, 1.442695
        %v6683 = vpow.pop %v6682
        %v6684 = vmul.f32 %v6598, 1.442695
        %v6685 = vpow.pop %v6684
        %v6686 = vmul.f32 %v6599, 1.442695
        %v6687 = vpow.pop %v6686
        %v6688 = vmul.f32 %v6600, 1.442695
        %v6689 = vpow.pop %v6688
        %v6690 = vmul.f32 %v6601, 1.442695
        %v6691 = vpow.pop %v6690
        %v6692 = vmul.f32 %v6602, 1.442695
        %v6693 = vpow.pop %v6692
        %v6694 = vmul.f32 %v6603, 1.442695
        %v6695 = vpow.pop %v6694
        %v6696 = vmul.f32 %v6604, 1.442695
        %v6697 = vpow.pop %v6696
        %v6698 = vmul.f32 %v6605, 1.442695
        %v6699 = vpow.pop %v6698
        %v6700 = vmul.f32 %v6606, 1.442695
        %v6701 = vpow.pop %v6700
        %v6702 = vmul.f32 %v6607, 1.442695
        %v6703 = vpow.pop %v6702
        %v6704 = vmul.f32 %v6608, 1.442695
        %v6705 = vpow.pop %v6704
        %v6706 = vmul.f32 %v6609, 1.442695
        %v6707 = vpow.pop %v6706
        %v6708 = vmul.f32 %v6610, 1.442695
        %v6709 = vpow.pop %v6708
        %v6710 = vmul.f32 %v6611, 1.442695
        %v6711 = vpow.pop %v6710
        %v6712 = vmul.f32 %v6612, 1.442695
        %v6713 = vpow.pop %v6712
        %v6714 = vmul.f32 %v6613, 1.442695
        %v6715 = vpow.pop %v6714
        %v6716 = vmul.f32 %v6614, 1.442695
        %v6717 = vpow.pop %v6716
        %v6718 = vmul.f32 %v6615, 1.442695
        %v6719 = vpow.pop %v6718
        %v6720 = vmul.f32 %v6616, 1.442695
        %v6721 = vpow.pop %v6720
        %v6722 = vmul.f32 %v6617, 1.442695
        %v6723 = vpow.pop %v6722
        %v6724 = vmul.f32 %v6618, 1.442695
        %v6725 = vpow.pop %v6724
        %v6726 = vmul.f32 %v6619, 1.442695
        %v6727 = vpow.pop %v6726
        %v6728 = vmul.f32 %v6620, 1.442695
        %v6729 = vpow.pop %v6728
        %v6730 = vmul.f32 %v6621, 1.442695
        %v6731 = vpow.pop %v6730
        %v6732 = vmul.f32 %v6622, 1.442695
        %v6733 = vpow.pop %v6732
        %v6734 = vmul.f32 %v6623, 1.442695
        %v6735 = vpow.pop %v6734
        %v6736 = vmul.f32 %v6624, 1.442695
        %v6737 = vpow.pop %v6736
        %v6738 = vmul.f32 %v6625, 1.442695
        %v6739 = vpow.pop %v6738
        %v6740 = vmul.f32 %v6626, 1.442695
        %v6741 = vpow.pop %v6740
        %v6742 = vmul.f32 %v6627, 1.442695
        %v6743 = vpow.pop %v6742
        %v6744 = vmul.f32 %v6628, 1.442695
        %v6745 = vpow.pop %v6744
        %v6746 = vmul.f32 %v6629, 1.442695
        %v6747 = vpow.pop %v6746
        %v6748 = vmul.f32 %v6630, 1.442695
        %v6749 = vpow.pop %v6748
        %v6750 = vmul.f32 %v6631, 1.442695
        %v6751 = vpow.pop %v6750
        %v6752 = vmul.f32 %v6632, 1.442695
        %v6753 = vpow.pop %v6752
        %v6754 = vmul.f32 %v6633, 1.442695
        %v6755 = vpow.pop %v6754
        %v6756 = vmul.f32 %v6634, 1.442695
        %v6757 = vpow.pop %v6756
        %v6758 = vmul.f32 %v6635, 1.442695
        %v6759 = vpow.pop %v6758
        %v6760 = vmul.f32 %v6636, 1.442695
        %v6761 = vpow.pop %v6760
        %v6762 = vmul.f32 %v6637, 1.442695
        %v6763 = vpow.pop %v6762
        %v6764 = vmul.f32 %v6638, 1.442695
        %v6765 = vpow.pop %v6764
        %v6766 = vmul.f32 %v6639, 1.442695
        %v6767 = vpow.pop %v6766
        %v6768 = vadd.f32 %v6641, %v6643
        %6769 = vadd.xlane.f32.xlu0 %v6768
        %v6770 = vpop.xlane.xlu0 %6769
        %v6771 = vadd.f32 %v6645, %v6647
        %6772 = vadd.xlane.f32.xlu0 %v6771
        %v6773 = vpop.xlane.xlu0 %6772
        %v6774 = vadd.f32 %v6649, %v6651
        %6775 = vadd.xlane.f32.xlu0 %v6774
        %v6776 = vpop.xlane.xlu0 %6775
        %v6777 = vadd.f32 %v6653, %v6655
        %6778 = vadd.xlane.f32.xlu0 %v6777
        %v6779 = vpop.xlane.xlu0 %6778
        %v6780 = vadd.f32 %v6657, %v6659
        %6781 = vadd.xlane.f32.xlu0 %v6780
        %v6782 = vpop.xlane.xlu0 %6781
        %v6783 = vadd.f32 %v6661, %v6663
        %6784 = vadd.xlane.f32.xlu0 %v6783
        %v6785 = vpop.xlane.xlu0 %6784
        %v6786 = vadd.f32 %v6665, %v6667
        %6787 = vadd.xlane.f32.xlu0 %v6786
        %v6788 = vpop.xlane.xlu0 %6787
        %v6789 = vadd.f32 %v6669, %v6671
        %6790 = vadd.xlane.f32.xlu0 %v6789
        %v6791 = vpop.xlane.xlu0 %6790
        %v6792 = vadd.f32 %v6673, %v6675
        %6793 = vadd.xlane.f32.xlu0 %v6792
        %v6794 = vpop.xlane.xlu0 %6793
        %v6795 = vadd.f32 %v6677, %v6679
        %6796 = vadd.xlane.f32.xlu0 %v6795
        %v6797 = vpop.xlane.xlu0 %6796
        %v6798 = vadd.f32 %v6681, %v6683
        %6799 = vadd.xlane.f32.xlu0 %v6798
        %v6800 = vpop.xlane.xlu0 %6799
        %v6801 = vadd.f32 %v6685, %v6687
        %6802 = vadd.xlane.f32.xlu0 %v6801
        %v6803 = vpop.xlane.xlu0 %6802
        %v6804 = vadd.f32 %v6689, %v6691
        %6805 = vadd.xlane.f32.xlu0 %v6804
        %v6806 = vpop.xlane.xlu0 %6805
        %v6807 = vadd.f32 %v6693, %v6695
        %6808 = vadd.xlane.f32.xlu0 %v6807
        %v6809 = vpop.xlane.xlu0 %6808
        %v6810 = vadd.f32 %v6697, %v6699
        %6811 = vadd.xlane.f32.xlu0 %v6810
        %v6812 = vpop.xlane.xlu0 %6811
        %v6813 = vadd.f32 %v6701, %v6703
        %6814 = vadd.xlane.f32.xlu0 %v6813
        %v6815 = vpop.xlane.xlu0 %6814
        %v6816 = vadd.f32 %v6705, %v6707
        %6817 = vadd.xlane.f32.xlu0 %v6816
        %v6818 = vpop.xlane.xlu0 %6817
        %v6819 = vadd.f32 %v6709, %v6711
        %6820 = vadd.xlane.f32.xlu0 %v6819
        %v6821 = vpop.xlane.xlu0 %6820
        %v6822 = vadd.f32 %v6713, %v6715
        %6823 = vadd.xlane.f32.xlu0 %v6822
        %v6824 = vpop.xlane.xlu0 %6823
        %v6825 = vadd.f32 %v6717, %v6719
        %6826 = vadd.xlane.f32.xlu0 %v6825
        %v6827 = vpop.xlane.xlu0 %6826
        %v6828 = vadd.f32 %v6721, %v6723
        %6829 = vadd.xlane.f32.xlu0 %v6828
        %v6830 = vpop.xlane.xlu0 %6829
        %v6831 = vadd.f32 %v6725, %v6727
        %6832 = vadd.xlane.f32.xlu0 %v6831
        %v6833 = vpop.xlane.xlu0 %6832
        %v6834 = vadd.f32 %v6729, %v6731
        %6835 = vadd.xlane.f32.xlu0 %v6834
        %v6836 = vpop.xlane.xlu0 %6835
        %v6837 = vadd.f32 %v6733, %v6735
        %6838 = vadd.xlane.f32.xlu0 %v6837
        %v6839 = vpop.xlane.xlu0 %6838
        %v6840 = vadd.f32 %v6737, %v6739
        %6841 = vadd.xlane.f32.xlu0 %v6840
        %v6842 = vpop.xlane.xlu0 %6841
        %v6843 = vadd.f32 %v6741, %v6743
        %6844 = vadd.xlane.f32.xlu0 %v6843
        %v6845 = vpop.xlane.xlu0 %6844
        %v6846 = vadd.f32 %v6745, %v6747
        %6847 = vadd.xlane.f32.xlu0 %v6846
        %v6848 = vpop.xlane.xlu0 %6847
        %v6849 = vadd.f32 %v6749, %v6751
        %6850 = vadd.xlane.f32.xlu0 %v6849
        %v6851 = vpop.xlane.xlu0 %6850
        %v6852 = vadd.f32 %v6753, %v6755
        %6853 = vadd.xlane.f32.xlu0 %v6852
        %v6854 = vpop.xlane.xlu0 %6853
        %v6855 = vadd.f32 %v6757, %v6759
        %6856 = vadd.xlane.f32.xlu0 %v6855
        %v6857 = vpop.xlane.xlu0 %6856
        %v6858 = vadd.f32 %v6761, %v6763
        %6859 = vadd.xlane.f32.xlu0 %v6858
        %v6860 = vpop.xlane.xlu0 %6859
        %v6861 = vadd.f32 %v6765, %v6767
        %6862 = vadd.xlane.f32.xlu0 %v6861
        %v6863 = vpop.xlane.xlu0 %6862
        %v6864 = vrcp.pop %v6770
        %v6865 = vrcp.pop %v6773
        %v6866 = vrcp.pop %v6776
        %v6867 = vrcp.pop %v6779
        %v6868 = vrcp.pop %v6782
        %v6869 = vrcp.pop %v6785
        %v6870 = vrcp.pop %v6788
        %v6871 = vrcp.pop %v6791
        %v6872 = vrcp.pop %v6794
        %v6873 = vrcp.pop %v6797
        %v6874 = vrcp.pop %v6800
        %v6875 = vrcp.pop %v6803
        %v6876 = vrcp.pop %v6806
        %v6877 = vrcp.pop %v6809
        %v6878 = vrcp.pop %v6812
        %v6879 = vrcp.pop %v6815
        %v6880 = vrcp.pop %v6818
        %v6881 = vrcp.pop %v6821
        %v6882 = vrcp.pop %v6824
        %v6883 = vrcp.pop %v6827
        %v6884 = vrcp.pop %v6830
        %v6885 = vrcp.pop %v6833
        %v6886 = vrcp.pop %v6836
        %v6887 = vrcp.pop %v6839
        %v6888 = vrcp.pop %v6842
        %v6889 = vrcp.pop %v6845
        %v6890 = vrcp.pop %v6848
        %v6891 = vrcp.pop %v6851
        %v6892 = vrcp.pop %v6854
        %v6893 = vrcp.pop %v6857
        %v6894 = vrcp.pop %v6860
        %v6895 = vrcp.pop %v6863
        %v6896 = vmul.f32 %v6641, %v6864
        %v6897 = vmul.f32 %v6643, %v6864
        %v6898 = vmul.f32 %v6645, %v6865
        %v6899 = vmul.f32 %v6647, %v6865
        %v6900 = vmul.f32 %v6649, %v6866
        %v6901 = vmul.f32 %v6651, %v6866
        %v6902 = vmul.f32 %v6653, %v6867
        %v6903 = vmul.f32 %v6655, %v6867
        %v6904 = vmul.f32 %v6657, %v6868
        %v6905 = vmul.f32 %v6659, %v6868
        %v6906 = vmul.f32 %v6661, %v6869
        %v6907 = vmul.f32 %v6663, %v6869
        %v6908 = vmul.f32 %v6665, %v6870
        %v6909 = vmul.f32 %v6667, %v6870
        %v6910 = vmul.f32 %v6669, %v6871
        %v6911 = vmul.f32 %v6671, %v6871
        %v6912 = vmul.f32 %v6673, %v6872
        %v6913 = vmul.f32 %v6675, %v6872
        %v6914 = vmul.f32 %v6677, %v6873
        %v6915 = vmul.f32 %v6679, %v6873
        %v6916 = vmul.f32 %v6681, %v6874
        %v6917 = vmul.f32 %v6683, %v6874
        %v6918 = vmul.f32 %v6685, %v6875
        %v6919 = vmul.f32 %v6687, %v6875
        %v6920 = vmul.f32 %v6689, %v6876
        %v6921 = vmul.f32 %v6691, %v6876
        %v6922 = vmul.f32 %v6693, %v6877
        %v6923 = vmul.f32 %v6695, %v6877
        %v6924 = vmul.f32 %v6697, %v6878
        %v6925 = vmul.f32 %v6699, %v6878
        %v6926 = vmul.f32 %v6701, %v6879
        %v6927 = vmul.f32 %v6703, %v6879
        %v6928 = vmul.f32 %v6705, %v6880
        %v6929 = vmul.f32 %v6707, %v6880
        %v6930 = vmul.f32 %v6709, %v6881
        %v6931 = vmul.f32 %v6711, %v6881
        %v6932 = vmul.f32 %v6713, %v6882
        %v6933 = vmul.f32 %v6715, %v6882
        %v6934 = vmul.f32 %v6717, %v6883
        %v6935 = vmul.f32 %v6719, %v6883
        %v6936 = vmul.f32 %v6721, %v6884
        %v6937 = vmul.f32 %v6723, %v6884
        %v6938 = vmul.f32 %v6725, %v6885
        %v6939 = vmul.f32 %v6727, %v6885
        %v6940 = vmul.f32 %v6729, %v6886
        %v6941 = vmul.f32 %v6731, %v6886
        %v6942 = vmul.f32 %v6733, %v6887
        %v6943 = vmul.f32 %v6735, %v6887
        %v6944 = vmul.f32 %v6737, %v6888
        %v6945 = vmul.f32 %v6739, %v6888
        %v6946 = vmul.f32 %v6741, %v6889
        %v6947 = vmul.f32 %v6743, %v6889
        %v6948 = vmul.f32 %v6745, %v6890
        %v6949 = vmul.f32 %v6747, %v6890
        %v6950 = vmul.f32 %v6749, %v6891
        %v6951 = vmul.f32 %v6751, %v6891
        %v6952 = vmul.f32 %v6753, %v6892
        %v6953 = vmul.f32 %v6755, %v6892
        %v6954 = vmul.f32 %v6757, %v6893
        %v6955 = vmul.f32 %v6759, %v6893
        %v6956 = vmul.f32 %v6761, %v6894
        %v6957 = vmul.f32 %v6763, %v6894
        %v6958 = vmul.f32 %v6765, %v6895
        %v6959 = vmul.f32 %v6767, %v6895
        %v6960 = vpack.c.bf16 %v4943, %v4939
        %v6961 = vpack.c.bf16 %v4945, %v4941
        %v6962 = vpack.c.bf16 %v4953, %v4949
        %v6963 = vpack.c.bf16 %v4955, %v4951
        %v6964 = vpack.c.bf16 %v4963, %v4959
        %v6965 = vpack.c.bf16 %v4965, %v4961
        %v6966 = vpack.c.bf16 %v4973, %v4969
        %v6967 = vpack.c.bf16 %v4975, %v4971
        %v6968 = vpack.c.bf16 %v4983, %v4979
        %v6969 = vpack.c.bf16 %v4985, %v4981
        %v6970 = vpack.c.bf16 %v4993, %v4989
        %v6971 = vpack.c.bf16 %v4995, %v4991
        %v6972 = vpack.c.bf16 %v5003, %v4999
        %v6973 = vpack.c.bf16 %v5005, %v5001
        %v6974 = vpack.c.bf16 %v5013, %v5009
        %v6975 = vpack.c.bf16 %v5015, %v5011
        %v6976 = vpack.c.bf16 %v5023, %v5019
        %v6977 = vpack.c.bf16 %v5025, %v5021
        %v6978 = vpack.c.bf16 %v5033, %v5029
        %v6979 = vpack.c.bf16 %v5035, %v5031
        %v6980 = vpack.c.bf16 %v5043, %v5039
        %v6981 = vpack.c.bf16 %v5045, %v5041
        %v6982 = vpack.c.bf16 %v5053, %v5049
        %v6983 = vpack.c.bf16 %v5055, %v5051
        %v6984 = vpack.c.bf16 %v5063, %v5059
        %v6985 = vpack.c.bf16 %v5065, %v5061
        %v6986 = vpack.c.bf16 %v5073, %v5069
        %v6987 = vpack.c.bf16 %v5075, %v5071
        %v6988 = vpack.c.bf16 %v5083, %v5079
        %v6989 = vpack.c.bf16 %v5085, %v5081
        %v6990 = vpack.c.bf16 %v5093, %v5089
        %v6991 = vpack.c.bf16 %v5095, %v5091
        %v6992 = vpack.c.bf16 %v5103, %v5099
        %v6993 = vpack.c.bf16 %v5105, %v5101
        %v6994 = vpack.c.bf16 %v5113, %v5109
        %v6995 = vpack.c.bf16 %v5115, %v5111
        %v6996 = vpack.c.bf16 %v5123, %v5119
        %v6997 = vpack.c.bf16 %v5125, %v5121
        %v6998 = vpack.c.bf16 %v5133, %v5129
        %v6999 = vpack.c.bf16 %v5135, %v5131
        %v7000 = vpack.c.bf16 %v5143, %v5139
        %v7001 = vpack.c.bf16 %v5145, %v5141
        %v7002 = vpack.c.bf16 %v5153, %v5149
        %v7003 = vpack.c.bf16 %v5155, %v5151
        %v7004 = vpack.c.bf16 %v5163, %v5159
        %v7005 = vpack.c.bf16 %v5165, %v5161
        %v7006 = vpack.c.bf16 %v5173, %v5169
        %v7007 = vpack.c.bf16 %v5175, %v5171
        %v7008 = vpack.c.bf16 %v5183, %v5179
        %v7009 = vpack.c.bf16 %v5185, %v5181
        %v7010 = vpack.c.bf16 %v5193, %v5189
        %v7011 = vpack.c.bf16 %v5195, %v5191
        %v7012 = vpack.c.bf16 %v5203, %v5199
        %v7013 = vpack.c.bf16 %v5205, %v5201
        %v7014 = vpack.c.bf16 %v5213, %v5209
        %v7015 = vpack.c.bf16 %v5215, %v5211
        %v7016 = vpack.c.bf16 %v5223, %v5219
        %v7017 = vpack.c.bf16 %v5225, %v5221
        %v7018 = vpack.c.bf16 %v5233, %v5229
        %v7019 = vpack.c.bf16 %v5235, %v5231
        %v7020 = vpack.c.bf16 %v5243, %v5239
        %v7021 = vpack.c.bf16 %v5245, %v5241
        %v7022 = vpack.c.bf16 %v5253, %v5249
        %v7023 = vpack.c.bf16 %v5255, %v5251
        %v7024 = vpack.c.bf16 %v5263, %v5259
        %v7025 = vpack.c.bf16 %v5265, %v5261
        %v7026 = vpack.c.bf16 %v5273, %v5269
        %v7027 = vpack.c.bf16 %v5275, %v5271
        %v7028 = vpack.c.bf16 %v5283, %v5279
        %v7029 = vpack.c.bf16 %v5285, %v5281
        %v7030 = vpack.c.bf16 %v5293, %v5289
        %v7031 = vpack.c.bf16 %v5295, %v5291
        %v7032 = vpack.c.bf16 %v5303, %v5299
        %v7033 = vpack.c.bf16 %v5305, %v5301
        %v7034 = vpack.c.bf16 %v5313, %v5309
        %v7035 = vpack.c.bf16 %v5315, %v5311
        %v7036 = vpack.c.bf16 %v5323, %v5319
        %v7037 = vpack.c.bf16 %v5325, %v5321
        %v7038 = vpack.c.bf16 %v5333, %v5329
        %v7039 = vpack.c.bf16 %v5335, %v5331
        %v7040 = vpack.c.bf16 %v5343, %v5339
        %v7041 = vpack.c.bf16 %v5345, %v5341
        %v7042 = vpack.c.bf16 %v5353, %v5349
        %v7043 = vpack.c.bf16 %v5355, %v5351
        %v7044 = vpack.c.bf16 %v5363, %v5359
        %v7045 = vpack.c.bf16 %v5365, %v5361
        %v7046 = vpack.c.bf16 %v5373, %v5369
        %v7047 = vpack.c.bf16 %v5375, %v5371
        %v7048 = vpack.c.bf16 %v5383, %v5379
        %v7049 = vpack.c.bf16 %v5385, %v5381
        %v7050 = vpack.c.bf16 %v5393, %v5389
        %v7051 = vpack.c.bf16 %v5395, %v5391
        %v7052 = vpack.c.bf16 %v5403, %v5399
        %v7053 = vpack.c.bf16 %v5405, %v5401
        %v7054 = vpack.c.bf16 %v5413, %v5409
        %v7055 = vpack.c.bf16 %v5415, %v5411
        %v7056 = vpack.c.bf16 %v5423, %v5419
        %v7057 = vpack.c.bf16 %v5425, %v5421
        %v7058 = vpack.c.bf16 %v5433, %v5429
        %v7059 = vpack.c.bf16 %v5435, %v5431
        %v7060 = vpack.c.bf16 %v5443, %v5439
        %v7061 = vpack.c.bf16 %v5445, %v5441
        %v7062 = vpack.c.bf16 %v5453, %v5449
        %v7063 = vpack.c.bf16 %v5455, %v5451
        %v7064 = vpack.c.bf16 %v5463, %v5459
        %v7065 = vpack.c.bf16 %v5465, %v5461
        %v7066 = vpack.c.bf16 %v5473, %v5469
        %v7067 = vpack.c.bf16 %v5475, %v5471
        %v7068 = vpack.c.bf16 %v5483, %v5479
        %v7069 = vpack.c.bf16 %v5485, %v5481
        %v7070 = vpack.c.bf16 %v5493, %v5489
        %v7071 = vpack.c.bf16 %v5495, %v5491
        %v7072 = vpack.c.bf16 %v5503, %v5499
        %v7073 = vpack.c.bf16 %v5505, %v5501
        %v7074 = vpack.c.bf16 %v5513, %v5509
        %v7075 = vpack.c.bf16 %v5515, %v5511
        %v7076 = vpack.c.bf16 %v5523, %v5519
        %v7077 = vpack.c.bf16 %v5525, %v5521
        %v7078 = vpack.c.bf16 %v5533, %v5529
        %v7079 = vpack.c.bf16 %v5535, %v5531
        %v7080 = vpack.c.bf16 %v5543, %v5539
        %v7081 = vpack.c.bf16 %v5545, %v5541
        %v7082 = vpack.c.bf16 %v5553, %v5549
        %v7083 = vpack.c.bf16 %v5555, %v5551
        %v7084 = vpack.c.bf16 %v5563, %v5559
        %v7085 = vpack.c.bf16 %v5565, %v5561
        %v7086 = vpack.c.bf16 %v5573, %v5569
        %v7087 = vpack.c.bf16 %v5575, %v5571
        %v7088 = vpack.c.bf16 %v5583, %v5579
        %v7089 = vpack.c.bf16 %v5585, %v5581
        %v7090 = vpack.c.bf16 %v5593, %v5589
        %v7091 = vpack.c.bf16 %v5595, %v5591
        %v7092 = vpack.c.bf16 %v5603, %v5599
        %v7093 = vpack.c.bf16 %v5605, %v5601
        %v7094 = vpack.c.bf16 %v5613, %v5609
        %v7095 = vpack.c.bf16 %v5615, %v5611
        %v7096 = vpack.c.bf16 %v5623, %v5619
        %v7097 = vpack.c.bf16 %v5625, %v5621
        %v7098 = vpack.c.bf16 %v5633, %v5629
        %v7099 = vpack.c.bf16 %v5635, %v5631
        %v7100 = vpack.c.bf16 %v5643, %v5639
        %v7101 = vpack.c.bf16 %v5645, %v5641
        %v7102 = vpack.c.bf16 %v5653, %v5649
        %v7103 = vpack.c.bf16 %v5655, %v5651
        %v7104 = vpack.c.bf16 %v5663, %v5659
        %v7105 = vpack.c.bf16 %v5665, %v5661
        %v7106 = vpack.c.bf16 %v5673, %v5669
        %v7107 = vpack.c.bf16 %v5675, %v5671
        %v7108 = vpack.c.bf16 %v5683, %v5679
        %v7109 = vpack.c.bf16 %v5685, %v5681
        %v7110 = vpack.c.bf16 %v5693, %v5689
        %v7111 = vpack.c.bf16 %v5695, %v5691
        %v7112 = vpack.c.bf16 %v5703, %v5699
        %v7113 = vpack.c.bf16 %v5705, %v5701
        %v7114 = vpack.c.bf16 %v5713, %v5709
        %v7115 = vpack.c.bf16 %v5715, %v5711
        %v7116 = vpack.c.bf16 %v5723, %v5719
        %v7117 = vpack.c.bf16 %v5725, %v5721
        %v7118 = vpack.c.bf16 %v5733, %v5729
        %v7119 = vpack.c.bf16 %v5735, %v5731
        %v7120 = vpack.c.bf16 %v6898, %v6896
        %v7121 = vpack.c.bf16 %v6899, %v6897
        %v7122 = vpack.c.bf16 %v6902, %v6900
        %v7123 = vpack.c.bf16 %v6903, %v6901
        %v7124 = vpack.c.bf16 %v6906, %v6904
        %v7125 = vpack.c.bf16 %v6907, %v6905
        %v7126 = vpack.c.bf16 %v6910, %v6908
        %v7127 = vpack.c.bf16 %v6911, %v6909
        %v7128 = vpack.c.bf16 %v6914, %v6912
        %v7129 = vpack.c.bf16 %v6915, %v6913
        %v7130 = vpack.c.bf16 %v6918, %v6916
        %v7131 = vpack.c.bf16 %v6919, %v6917
        %v7132 = vpack.c.bf16 %v6922, %v6920
        %v7133 = vpack.c.bf16 %v6923, %v6921
        %v7134 = vpack.c.bf16 %v6926, %v6924
        %v7135 = vpack.c.bf16 %v6927, %v6925
        %v7136 = vpack.c.bf16 %v6930, %v6928
        %v7137 = vpack.c.bf16 %v6931, %v6929
        %v7138 = vpack.c.bf16 %v6934, %v6932
        %v7139 = vpack.c.bf16 %v6935, %v6933
        %v7140 = vpack.c.bf16 %v6938, %v6936
        %v7141 = vpack.c.bf16 %v6939, %v6937
        %v7142 = vpack.c.bf16 %v6942, %v6940
        %v7143 = vpack.c.bf16 %v6943, %v6941
        %v7144 = vpack.c.bf16 %v6946, %v6944
        %v7145 = vpack.c.bf16 %v6947, %v6945
        %v7146 = vpack.c.bf16 %v6950, %v6948
        %v7147 = vpack.c.bf16 %v6951, %v6949
        %v7148 = vpack.c.bf16 %v6954, %v6952
        %v7149 = vpack.c.bf16 %v6955, %v6953
        %v7150 = vpack.c.bf16 %v6958, %v6956
        %v7151 = vpack.c.bf16 %v6959, %v6957
        %7152 = vmatprep.subr.bf16.mxu0 %v7121
        %7153 = vmatpush1.bf16.xpose.msra.mxu0 %v7120
        %7154 = vmatprep.subr.bf16.mxu0 %v7123
        %7155 = vmatpush1.bf16.xpose.msra.mxu0 %v7122
        %7156 = vmatprep.subr.bf16.mxu0 %v7125
        %7157 = vmatpush1.bf16.xpose.msra.mxu0 %v7124
        %7158 = vmatprep.subr.bf16.mxu0 %v7127
        %7159 = vmatpush1.bf16.xpose.msra.mxu0 %v7126
        %7160 = vmatprep.subr.bf16.mxu0 %v7129
        %7161 = vmatpush1.bf16.xpose.msra.mxu0 %v7128
        %7162 = vmatprep.subr.bf16.mxu0 %v7131
        %7163 = vmatpush1.bf16.xpose.msra.mxu0 %v7130
        %7164 = vmatprep.subr.bf16.mxu0 %v7133
        %7165 = vmatpush1.bf16.xpose.msra.mxu0 %v7132
        %7166 = vmatprep.subr.bf16.mxu0 %v7135
        %7167 = vmatpush1.bf16.xpose.msra.mxu0 %v7134
        %7168 = vmatprep.subr.bf16.mxu0 %v7137
        %7169 = vmatpush1.bf16.xpose.msra.mxu0 %v7136
        %7170 = vmatprep.subr.bf16.mxu0 %v7139
        %7171 = vmatpush1.bf16.xpose.msra.mxu0 %v7138
        %7172 = vmatprep.subr.bf16.mxu0 %v7141
        %7173 = vmatpush1.bf16.xpose.msra.mxu0 %v7140
        %7174 = vmatprep.subr.bf16.mxu0 %v7143
        %7175 = vmatpush1.bf16.xpose.msra.mxu0 %v7142
        %7176 = vmatprep.subr.bf16.mxu0 %v7145
        %7177 = vmatpush1.bf16.xpose.msra.mxu0 %v7144
        %7178 = vmatprep.subr.bf16.mxu0 %v7147
        %7179 = vmatpush1.bf16.xpose.msra.mxu0 %v7146
        %7180 = vmatprep.subr.bf16.mxu0 %v7149
        %7181 = vmatpush1.bf16.xpose.msra.mxu0 %v7148
        %7182 = vmatprep.subr.bf16.mxu0 %v7151
        %7183 = vmatpush1.bf16.xpose.msra.mxu0 %v7150
        %7184 = vmatprep.mubr.bf16.mxu0 %v6961
        %7185 = vmatmul.mubr.bf16.gmra.mrb[0].mxu0 %v6960
        %v7186 = vpop.f32.mrb[0].mxu0
        %v7187 = vadd.f32 %v4139, %v7186
        %v7188 = vpop.f32.mrb[0].mxu0
        %v7189 = vadd.f32 %v4141, %v7188
        %v7190 = vpop.f32.mrb[0].mxu0
        %v7191 = vadd.f32 %v4143, %v7190
        %v7192 = vpop.f32.mrb[0].mxu0
        %v7193 = vadd.f32 %v4145, %v7192
        %7194 = vmatprep.mubr.bf16.mxu0 %v6963
        %7195 = vmatmul.mubr.bf16.gmra.mrb[0].mxu0 %v6962
        %v7196 = vpop.f32.mrb[0].mxu0
        %v7197 = vadd.f32 %v4149, %v7196
        %v7198 = vpop.f32.mrb[0].mxu0
        %v7199 = vadd.f32 %v4151, %v7198
        %v7200 = vpop.f32.mrb[0].mxu0
        %v7201 = vadd.f32 %v4153, %v7200
        %v7202 = vpop.f32.mrb[0].mxu0
        %v7203 = vadd.f32 %v4155, %v7202
        %7204 = vmatprep.mubr.bf16.mxu0 %v6965
        %7205 = vmatmul.mubr.bf16.gmra.mrb[0].mxu0 %v6964
        %v7206 = vpop.f32.mrb[0].mxu0
        %v7207 = vadd.f32 %v4159, %v7206
        %v7208 = vpop.f32.mrb[0].mxu0
        %v7209 = vadd.f32 %v4161, %v7208
        %v7210 = vpop.f32.mrb[0].mxu0
        %v7211 = vadd.f32 %v4163, %v7210
        %v7212 = vpop.f32.mrb[0].mxu0
        %v7213 = vadd.f32 %v4165, %v7212
        %7214 = vmatprep.mubr.bf16.mxu0 %v6967
        %7215 = vmatmul.mubr.bf16.gmra.mrb[0].mxu0 %v6966
        %v7216 = vpop.f32.mrb[0].mxu0
        %v7217 = vadd.f32 %v4169, %v7216
        %v7218 = vpop.f32.mrb[0].mxu0
        %v7219 = vadd.f32 %v4171, %v7218
        %v7220 = vpop.f32.mrb[0].mxu0
        %v7221 = vadd.f32 %v4173, %v7220
        %v7222 = vpop.f32.mrb[0].mxu0
        %v7223 = vadd.f32 %v4175, %v7222
        %7224 = vmatprep.mubr.bf16.mxu0 %v6969
        %7225 = vmatmul.mubr.bf16.gmra.mrb[0].mxu0 %v6968
        %v7226 = vpop.f32.mrb[0].mxu0
        %v7227 = vadd.f32 %v4179, %v7226
        %v7228 = vpop.f32.mrb[0].mxu0
        %v7229 = vadd.f32 %v4181, %v7228
        %v7230 = vpop.f32.mrb[0].mxu0
        %v7231 = vadd.f32 %v4183, %v7230
        %v7232 = vpop.f32.mrb[0].mxu0
        %v7233 = vadd.f32 %v4185, %v7232
        %7234 = vmatprep.mubr.bf16.mxu0 %v6971
        %7235 = vmatmul.mubr.bf16.gmra.mrb[0].mxu0 %v6970
        %v7236 = vpop.f32.mrb[0].mxu0
        %v7237 = vadd.f32 %v4189, %v7236
        %v7238 = vpop.f32.mrb[0].mxu0
        %v7239 = vadd.f32 %v4191, %v7238
        %v7240 = vpop.f32.mrb[0].mxu0
        %v7241 = vadd.f32 %v4193, %v7240
        %v7242 = vpop.f32.mrb[0].mxu0
        %v7243 = vadd.f32 %v4195, %v7242
        %7244 = vmatprep.mubr.bf16.mxu0 %v6973
        %7245 = vmatmul.mubr.bf16.gmra.mrb[0].mxu0 %v6972
        %v7246 = vpop.f32.mrb[0].mxu0
        %v7247 = vadd.f32 %v4199, %v7246
        %v7248 = vpop.f32.mrb[0].mxu0
        %v7249 = vadd.f32 %v4201, %v7248
        %v7250 = vpop.f32.mrb[0].mxu0
        %v7251 = vadd.f32 %v4203, %v7250
        %v7252 = vpop.f32.mrb[0].mxu0
        %v7253 = vadd.f32 %v4205, %v7252
        %7254 = vmatprep.mubr.bf16.mxu0 %v6975
        %7255 = vmatmul.mubr.bf16.gmra.mrb[0].mxu0 %v6974
        %v7256 = vpop.f32.mrb[0].mxu0
        %v7257 = vadd.f32 %v4209, %v7256
        %v7258 = vpop.f32.mrb[0].mxu0
        %v7259 = vadd.f32 %v4211, %v7258
        %v7260 = vpop.f32.mrb[0].mxu0
        %v7261 = vadd.f32 %v4213, %v7260
        %v7262 = vpop.f32.mrb[0].mxu0
        %v7263 = vadd.f32 %v4215, %v7262
        %7264 = vmatprep.mubr.bf16.mxu0 %v6977
        %7265 = vmatmul.mubr.bf16.gmra.mrb[0].mxu0 %v6976
        %v7266 = vpop.f32.mrb[0].mxu0
        %v7267 = vadd.f32 %v4219, %v7266
        %v7268 = vpop.f32.mrb[0].mxu0
        %v7269 = vadd.f32 %v4221, %v7268
        %v7270 = vpop.f32.mrb[0].mxu0
        %v7271 = vadd.f32 %v4223, %v7270
        %v7272 = vpop.f32.mrb[0].mxu0
        %v7273 = vadd.f32 %v4225, %v7272
        %7274 = vmatprep.mubr.bf16.mxu0 %v6979
        %7275 = vmatmul.mubr.bf16.gmra.mrb[0].mxu0 %v6978
        %v7276 = vpop.f32.mrb[0].mxu0
        %v7277 = vadd.f32 %v4229, %v7276
        %v7278 = vpop.f32.mrb[0].mxu0
        %v7279 = vadd.f32 %v4231, %v7278
        %v7280 = vpop.f32.mrb[0].mxu0
        %v7281 = vadd.f32 %v4233, %v7280
        %v7282 = vpop.f32.mrb[0].mxu0
        %v7283 = vadd.f32 %v4235, %v7282
        %7284 = vmatprep.mubr.bf16.mxu0 %v6981
        %7285 = vmatmul.mubr.bf16.gmra.mrb[0].mxu0 %v6980
        %v7286 = vpop.f32.mrb[0].mxu0
        %v7287 = vadd.f32 %v4239, %v7286
        %v7288 = vpop.f32.mrb[0].mxu0
        %v7289 = vadd.f32 %v4241, %v7288
        %v7290 = vpop.f32.mrb[0].mxu0
        %v7291 = vadd.f32 %v4243, %v7290
        %v7292 = vpop.f32.mrb[0].mxu0
        %v7293 = vadd.f32 %v4245, %v7292
        %7294 = vmatprep.mubr.bf16.mxu0 %v6983
        %7295 = vmatmul.mubr.bf16.gmra.mrb[0].mxu0 %v6982
        %v7296 = vpop.f32.mrb[0].mxu0
        %v7297 = vadd.f32 %v4249, %v7296
        %v7298 = vpop.f32.mrb[0].mxu0
        %v7299 = vadd.f32 %v4251, %v7298
        %v7300 = vpop.f32.mrb[0].mxu0
        %v7301 = vadd.f32 %v4253, %v7300
        %v7302 = vpop.f32.mrb[0].mxu0
        %v7303 = vadd.f32 %v4255, %v7302
        %7304 = vmatprep.mubr.bf16.mxu0 %v6985
        %7305 = vmatmul.mubr.bf16.gmra.mrb[0].mxu0 %v6984
        %v7306 = vpop.f32.mrb[0].mxu0
        %v7307 = vadd.f32 %v4259, %v7306
        %v7308 = vpop.f32.mrb[0].mxu0
        %v7309 = vadd.f32 %v4261, %v7308
        %v7310 = vpop.f32.mrb[0].mxu0
        %v7311 = vadd.f32 %v4263, %v7310
        %v7312 = vpop.f32.mrb[0].mxu0
        %v7313 = vadd.f32 %v4265, %v7312
        %7314 = vmatprep.mubr.bf16.mxu0 %v6987
        %7315 = vmatmul.mubr.bf16.gmra.mrb[0].mxu0 %v6986
        %v7316 = vpop.f32.mrb[0].mxu0
        %v7317 = vadd.f32 %v4269, %v7316
        %v7318 = vpop.f32.mrb[0].mxu0
        %v7319 = vadd.f32 %v4271, %v7318
        %v7320 = vpop.f32.mrb[0].mxu0
        %v7321 = vadd.f32 %v4273, %v7320
        %v7322 = vpop.f32.mrb[0].mxu0
        %v7323 = vadd.f32 %v4275, %v7322
        %7324 = vmatprep.mubr.bf16.mxu0 %v6989
        %7325 = vmatmul.mubr.bf16.gmra.mrb[0].mxu0 %v6988
        %v7326 = vpop.f32.mrb[0].mxu0
        %v7327 = vadd.f32 %v4279, %v7326
        %v7328 = vpop.f32.mrb[0].mxu0
        %v7329 = vadd.f32 %v4281, %v7328
        %v7330 = vpop.f32.mrb[0].mxu0
        %v7331 = vadd.f32 %v4283, %v7330
        %v7332 = vpop.f32.mrb[0].mxu0
        %v7333 = vadd.f32 %v4285, %v7332
        %7334 = vmatprep.mubr.bf16.mxu0 %v6991
        %7335 = vmatmul.mubr.bf16.gmra.mrb[0].mxu0 %v6990
        %v7336 = vpop.f32.mrb[0].mxu0
        %v7337 = vadd.f32 %v4289, %v7336
        %v7338 = vpop.f32.mrb[0].mxu0
        %v7339 = vadd.f32 %v4291, %v7338
        %v7340 = vpop.f32.mrb[0].mxu0
        %v7341 = vadd.f32 %v4293, %v7340
        %v7342 = vpop.f32.mrb[0].mxu0
        %v7343 = vadd.f32 %v4295, %v7342
        %7344 = vmatprep.mubr.bf16.mxu0 %v6993
        %7345 = vmatmul.mubr.bf16.gmra.mrb[0].mxu0 %v6992
        %v7346 = vpop.f32.mrb[0].mxu0
        %v7347 = vadd.f32 %v4299, %v7346
        %v7348 = vpop.f32.mrb[0].mxu0
        %v7349 = vadd.f32 %v4301, %v7348
        %v7350 = vpop.f32.mrb[0].mxu0
        %v7351 = vadd.f32 %v4303, %v7350
        %v7352 = vpop.f32.mrb[0].mxu0
        %v7353 = vadd.f32 %v4305, %v7352
        %7354 = vmatprep.mubr.bf16.mxu0 %v6995
        %7355 = vmatmul.mubr.bf16.gmra.mrb[0].mxu0 %v6994
        %v7356 = vpop.f32.mrb[0].mxu0
        %v7357 = vadd.f32 %v4309, %v7356
        %v7358 = vpop.f32.mrb[0].mxu0
        %v7359 = vadd.f32 %v4311, %v7358
        %v7360 = vpop.f32.mrb[0].mxu0
        %v7361 = vadd.f32 %v4313, %v7360
        %v7362 = vpop.f32.mrb[0].mxu0
        %v7363 = vadd.f32 %v4315, %v7362
        %7364 = vmatprep.mubr.bf16.mxu0 %v6997
        %7365 = vmatmul.mubr.bf16.gmra.mrb[0].mxu0 %v6996
        %v7366 = vpop.f32.mrb[0].mxu0
        %v7367 = vadd.f32 %v4319, %v7366
        %v7368 = vpop.f32.mrb[0].mxu0
        %v7369 = vadd.f32 %v4321, %v7368
        %v7370 = vpop.f32.mrb[0].mxu0
        %v7371 = vadd.f32 %v4323, %v7370
        %v7372 = vpop.f32.mrb[0].mxu0
        %v7373 = vadd.f32 %v4325, %v7372
        %7374 = vmatprep.mubr.bf16.mxu0 %v6999
        %7375 = vmatmul.mubr.bf16.gmra.mrb[0].mxu0 %v6998
        %v7376 = vpop.f32.mrb[0].mxu0
        %v7377 = vadd.f32 %v4329, %v7376
        %v7378 = vpop.f32.mrb[0].mxu0
        %v7379 = vadd.f32 %v4331, %v7378
        %v7380 = vpop.f32.mrb[0].mxu0
        %v7381 = vadd.f32 %v4333, %v7380
        %v7382 = vpop.f32.mrb[0].mxu0
        %v7383 = vadd.f32 %v4335, %v7382
        %7384 = vmatprep.mubr.bf16.mxu0 %v7001
        %7385 = vmatmul.mubr.bf16.gmra.mrb[0].mxu0 %v7000
        %v7386 = vpop.f32.mrb[0].mxu0
        %v7387 = vadd.f32 %v4339, %v7386
        %v7388 = vpop.f32.mrb[0].mxu0
        %v7389 = vadd.f32 %v4341, %v7388
        %v7390 = vpop.f32.mrb[0].mxu0
        %v7391 = vadd.f32 %v4343, %v7390
        %v7392 = vpop.f32.mrb[0].mxu0
        %v7393 = vadd.f32 %v4345, %v7392
        %7394 = vmatprep.mubr.bf16.mxu0 %v7003
        %7395 = vmatmul.mubr.bf16.gmra.mrb[0].mxu0 %v7002
        %v7396 = vpop.f32.mrb[0].mxu0
        %v7397 = vadd.f32 %v4349, %v7396
        %v7398 = vpop.f32.mrb[0].mxu0
        %v7399 = vadd.f32 %v4351, %v7398
        %v7400 = vpop.f32.mrb[0].mxu0
        %v7401 = vadd.f32 %v4353, %v7400
        %v7402 = vpop.f32.mrb[0].mxu0
        %v7403 = vadd.f32 %v4355, %v7402
        %7404 = vmatprep.mubr.bf16.mxu0 %v7005
        %7405 = vmatmul.mubr.bf16.gmra.mrb[0].mxu0 %v7004
        %v7406 = vpop.f32.mrb[0].mxu0
        %v7407 = vadd.f32 %v4359, %v7406
        %v7408 = vpop.f32.mrb[0].mxu0
        %v7409 = vadd.f32 %v4361, %v7408
        %v7410 = vpop.f32.mrb[0].mxu0
        %v7411 = vadd.f32 %v4363, %v7410
        %v7412 = vpop.f32.mrb[0].mxu0
        %v7413 = vadd.f32 %v4365, %v7412
        %7414 = vmatprep.mubr.bf16.mxu0 %v7007
        %7415 = vmatmul.mubr.bf16.gmra.mrb[0].mxu0 %v7006
        %v7416 = vpop.f32.mrb[0].mxu0
        %v7417 = vadd.f32 %v4369, %v7416
        %v7418 = vpop.f32.mrb[0].mxu0
        %v7419 = vadd.f32 %v4371, %v7418
        %v7420 = vpop.f32.mrb[0].mxu0
        %v7421 = vadd.f32 %v4373, %v7420
        %v7422 = vpop.f32.mrb[0].mxu0
        %v7423 = vadd.f32 %v4375, %v7422
        %7424 = vmatprep.mubr.bf16.mxu0 %v7009
        %7425 = vmatmul.mubr.bf16.gmra.mrb[0].mxu0 %v7008
        %v7426 = vpop.f32.mrb[0].mxu0
        %v7427 = vadd.f32 %v4379, %v7426
        %v7428 = vpop.f32.mrb[0].mxu0
        %v7429 = vadd.f32 %v4381, %v7428
        %v7430 = vpop.f32.mrb[0].mxu0
        %v7431 = vadd.f32 %v4383, %v7430
        %v7432 = vpop.f32.mrb[0].mxu0
        %v7433 = vadd.f32 %v4385, %v7432
        %7434 = vmatprep.mubr.bf16.mxu0 %v7011
        %7435 = vmatmul.mubr.bf16.gmra.mrb[0].mxu0 %v7010
        %v7436 = vpop.f32.mrb[0].mxu0
        %v7437 = vadd.f32 %v4389, %v7436
        %v7438 = vpop.f32.mrb[0].mxu0
        %v7439 = vadd.f32 %v4391, %v7438
        %v7440 = vpop.f32.mrb[0].mxu0
        %v7441 = vadd.f32 %v4393, %v7440
        %v7442 = vpop.f32.mrb[0].mxu0
        %v7443 = vadd.f32 %v4395, %v7442
        %7444 = vmatprep.mubr.bf16.mxu0 %v7013
        %7445 = vmatmul.mubr.bf16.gmra.mrb[0].mxu0 %v7012
        %v7446 = vpop.f32.mrb[0].mxu0
        %v7447 = vadd.f32 %v4399, %v7446
        %v7448 = vpop.f32.mrb[0].mxu0
        %v7449 = vadd.f32 %v4401, %v7448
        %v7450 = vpop.f32.mrb[0].mxu0
        %v7451 = vadd.f32 %v4403, %v7450
        %v7452 = vpop.f32.mrb[0].mxu0
        %v7453 = vadd.f32 %v4405, %v7452
        %7454 = vmatprep.mubr.bf16.mxu0 %v7015
        %7455 = vmatmul.mubr.bf16.gmra.mrb[0].mxu0 %v7014
        %v7456 = vpop.f32.mrb[0].mxu0
        %v7457 = vadd.f32 %v4409, %v7456
        %v7458 = vpop.f32.mrb[0].mxu0
        %v7459 = vadd.f32 %v4411, %v7458
        %v7460 = vpop.f32.mrb[0].mxu0
        %v7461 = vadd.f32 %v4413, %v7460
        %v7462 = vpop.f32.mrb[0].mxu0
        %v7463 = vadd.f32 %v4415, %v7462
        %7464 = vmatprep.mubr.bf16.mxu0 %v7017
        %7465 = vmatmul.mubr.bf16.gmra.mrb[0].mxu0 %v7016
        %v7466 = vpop.f32.mrb[0].mxu0
        %v7467 = vadd.f32 %v4419, %v7466
        %v7468 = vpop.f32.mrb[0].mxu0
        %v7469 = vadd.f32 %v4421, %v7468
        %v7470 = vpop.f32.mrb[0].mxu0
        %v7471 = vadd.f32 %v4423, %v7470
        %v7472 = vpop.f32.mrb[0].mxu0
        %v7473 = vadd.f32 %v4425, %v7472
        %7474 = vmatprep.mubr.bf16.mxu0 %v7019
        %7475 = vmatmul.mubr.bf16.gmra.mrb[0].mxu0 %v7018
        %v7476 = vpop.f32.mrb[0].mxu0
        %v7477 = vadd.f32 %v4429, %v7476
        %v7478 = vpop.f32.mrb[0].mxu0
        %v7479 = vadd.f32 %v4431, %v7478
        %v7480 = vpop.f32.mrb[0].mxu0
        %v7481 = vadd.f32 %v4433, %v7480
        %v7482 = vpop.f32.mrb[0].mxu0
        %v7483 = vadd.f32 %v4435, %v7482
        %7484 = vmatprep.mubr.bf16.mxu0 %v7021
        %7485 = vmatmul.mubr.bf16.gmra.mrb[0].mxu0 %v7020
        %v7486 = vpop.f32.mrb[0].mxu0
        %v7487 = vadd.f32 %v4439, %v7486
        %v7488 = vpop.f32.mrb[0].mxu0
        %v7489 = vadd.f32 %v4441, %v7488
        %v7490 = vpop.f32.mrb[0].mxu0
        %v7491 = vadd.f32 %v4443, %v7490
        %v7492 = vpop.f32.mrb[0].mxu0
        %v7493 = vadd.f32 %v4445, %v7492
        %7494 = vmatprep.mubr.bf16.mxu0 %v7023
        %7495 = vmatmul.mubr.bf16.gmra.mrb[0].mxu0 %v7022
        %v7496 = vpop.f32.mrb[0].mxu0
        %v7497 = vadd.f32 %v4449, %v7496
        %v7498 = vpop.f32.mrb[0].mxu0
        %v7499 = vadd.f32 %v4451, %v7498
        %v7500 = vpop.f32.mrb[0].mxu0
        %v7501 = vadd.f32 %v4453, %v7500
        %v7502 = vpop.f32.mrb[0].mxu0
        %v7503 = vadd.f32 %v4455, %v7502
        %7504 = vmatprep.mubr.bf16.mxu0 %v7025
        %7505 = vmatmul.mubr.bf16.gmra.mrb[0].mxu0 %v7024
        %v7506 = vpop.f32.mrb[0].mxu0
        %v7507 = vadd.f32 %v4459, %v7506
        %v7508 = vpop.f32.mrb[0].mxu0
        %v7509 = vadd.f32 %v4461, %v7508
        %v7510 = vpop.f32.mrb[0].mxu0
        %v7511 = vadd.f32 %v4463, %v7510
        %v7512 = vpop.f32.mrb[0].mxu0
        %v7513 = vadd.f32 %v4465, %v7512
        %7514 = vmatprep.mubr.bf16.mxu0 %v7027
        %7515 = vmatmul.mubr.bf16.gmra.mrb[0].mxu0 %v7026
        %v7516 = vpop.f32.mrb[0].mxu0
        %v7517 = vadd.f32 %v4469, %v7516
        %v7518 = vpop.f32.mrb[0].mxu0
        %v7519 = vadd.f32 %v4471, %v7518
        %v7520 = vpop.f32.mrb[0].mxu0
        %v7521 = vadd.f32 %v4473, %v7520
        %v7522 = vpop.f32.mrb[0].mxu0
        %v7523 = vadd.f32 %v4475, %v7522
        %7524 = vmatprep.mubr.bf16.mxu0 %v7029
        %7525 = vmatmul.mubr.bf16.gmra.mrb[0].mxu0 %v7028
        %v7526 = vpop.f32.mrb[0].mxu0
        %v7527 = vadd.f32 %v4479, %v7526
        %v7528 = vpop.f32.mrb[0].mxu0
        %v7529 = vadd.f32 %v4481, %v7528
        %v7530 = vpop.f32.mrb[0].mxu0
        %v7531 = vadd.f32 %v4483, %v7530
        %v7532 = vpop.f32.mrb[0].mxu0
        %v7533 = vadd.f32 %v4485, %v7532
        %7534 = vmatprep.mubr.bf16.mxu0 %v7031
        %7535 = vmatmul.mubr.bf16.gmra.mrb[0].mxu0 %v7030
        %v7536 = vpop.f32.mrb[0].mxu0
        %v7537 = vadd.f32 %v4489, %v7536
        %v7538 = vpop.f32.mrb[0].mxu0
        %v7539 = vadd.f32 %v4491, %v7538
        %v7540 = vpop.f32.mrb[0].mxu0
        %v7541 = vadd.f32 %v4493, %v7540
        %v7542 = vpop.f32.mrb[0].mxu0
        %v7543 = vadd.f32 %v4495, %v7542
        %7544 = vmatprep.mubr.bf16.mxu0 %v7033
        %7545 = vmatmul.mubr.bf16.gmra.mrb[0].mxu0 %v7032
        %v7546 = vpop.f32.mrb[0].mxu0
        %v7547 = vadd.f32 %v4499, %v7546
        %v7548 = vpop.f32.mrb[0].mxu0
        %v7549 = vadd.f32 %v4501, %v7548
        %v7550 = vpop.f32.mrb[0].mxu0
        %v7551 = vadd.f32 %v4503, %v7550
        %v7552 = vpop.f32.mrb[0].mxu0
        %v7553 = vadd.f32 %v4505, %v7552
        %7554 = vmatprep.mubr.bf16.mxu0 %v7035
        %7555 = vmatmul.mubr.bf16.gmra.mrb[0].mxu0 %v7034
        %v7556 = vpop.f32.mrb[0].mxu0
        %v7557 = vadd.f32 %v4509, %v7556
        %v7558 = vpop.f32.mrb[0].mxu0
        %v7559 = vadd.f32 %v4511, %v7558
        %v7560 = vpop.f32.mrb[0].mxu0
        %v7561 = vadd.f32 %v4513, %v7560
        %v7562 = vpop.f32.mrb[0].mxu0
        %v7563 = vadd.f32 %v4515, %v7562
        %7564 = vmatprep.mubr.bf16.mxu0 %v7037
        %7565 = vmatmul.mubr.bf16.gmra.mrb[0].mxu0 %v7036
        %v7566 = vpop.f32.mrb[0].mxu0
        %v7567 = vadd.f32 %v4519, %v7566
        %v7568 = vpop.f32.mrb[0].mxu0
        %v7569 = vadd.f32 %v4521, %v7568
        %v7570 = vpop.f32.mrb[0].mxu0
        %v7571 = vadd.f32 %v4523, %v7570
        %v7572 = vpop.f32.mrb[0].mxu0
        %v7573 = vadd.f32 %v4525, %v7572
        %7574 = vmatprep.mubr.bf16.mxu0 %v7039
        %7575 = vmatmul.mubr.bf16.gmra.mrb[0].mxu0 %v7038
        %v7576 = vpop.f32.mrb[0].mxu0
        %v7577 = vadd.f32 %v4529, %v7576
        %v7578 = vpop.f32.mrb[0].mxu0
        %v7579 = vadd.f32 %v4531, %v7578
        %v7580 = vpop.f32.mrb[0].mxu0
        %v7581 = vadd.f32 %v4533, %v7580
        %v7582 = vpop.f32.mrb[0].mxu0
        %v7583 = vadd.f32 %v4535, %v7582
        %7584 = vmatprep.mubr.bf16.mxu0 %v7041
        %7585 = vmatmul.mubr.bf16.gmra.mrb[0].mxu0 %v7040
        %v7586 = vpop.f32.mrb[0].mxu0
        %v7587 = vadd.f32 %v4539, %v7586
        %v7588 = vpop.f32.mrb[0].mxu0
        %v7589 = vadd.f32 %v4541, %v7588
        %v7590 = vpop.f32.mrb[0].mxu0
        %v7591 = vadd.f32 %v4543, %v7590
        %v7592 = vpop.f32.mrb[0].mxu0
        %v7593 = vadd.f32 %v4545, %v7592
        %7594 = vmatprep.mubr.bf16.mxu0 %v7043
        %7595 = vmatmul.mubr.bf16.gmra.mrb[0].mxu0 %v7042
        %v7596 = vpop.f32.mrb[0].mxu0
        %v7597 = vadd.f32 %v4549, %v7596
        %v7598 = vpop.f32.mrb[0].mxu0
        %v7599 = vadd.f32 %v4551, %v7598
        %v7600 = vpop.f32.mrb[0].mxu0
        %v7601 = vadd.f32 %v4553, %v7600
        %v7602 = vpop.f32.mrb[0].mxu0
        %v7603 = vadd.f32 %v4555, %v7602
        %7604 = vmatprep.mubr.bf16.mxu0 %v7045
        %7605 = vmatmul.mubr.bf16.gmra.mrb[0].mxu0 %v7044
        %v7606 = vpop.f32.mrb[0].mxu0
        %v7607 = vadd.f32 %v4559, %v7606
        %v7608 = vpop.f32.mrb[0].mxu0
        %v7609 = vadd.f32 %v4561, %v7608
        %v7610 = vpop.f32.mrb[0].mxu0
        %v7611 = vadd.f32 %v4563, %v7610
        %v7612 = vpop.f32.mrb[0].mxu0
        %v7613 = vadd.f32 %v4565, %v7612
        %7614 = vmatprep.mubr.bf16.mxu0 %v7047
        %7615 = vmatmul.mubr.bf16.gmra.mrb[0].mxu0 %v7046
        %v7616 = vpop.f32.mrb[0].mxu0
        %v7617 = vadd.f32 %v4569, %v7616
        %v7618 = vpop.f32.mrb[0].mxu0
        %v7619 = vadd.f32 %v4571, %v7618
        %v7620 = vpop.f32.mrb[0].mxu0
        %v7621 = vadd.f32 %v4573, %v7620
        %v7622 = vpop.f32.mrb[0].mxu0
        %v7623 = vadd.f32 %v4575, %v7622
        %7624 = vmatprep.mubr.bf16.mxu0 %v7049
        %7625 = vmatmul.mubr.bf16.gmra.mrb[0].mxu0 %v7048
        %v7626 = vpop.f32.mrb[0].mxu0
        %v7627 = vadd.f32 %v4579, %v7626
        %v7628 = vpop.f32.mrb[0].mxu0
        %v7629 = vadd.f32 %v4581, %v7628
        %v7630 = vpop.f32.mrb[0].mxu0
        %v7631 = vadd.f32 %v4583, %v7630
        %v7632 = vpop.f32.mrb[0].mxu0
        %v7633 = vadd.f32 %v4585, %v7632
        %7634 = vmatprep.mubr.bf16.mxu0 %v7051
        %7635 = vmatmul.mubr.bf16.gmra.mrb[0].mxu0 %v7050
        %v7636 = vpop.f32.mrb[0].mxu0
        %v7637 = vadd.f32 %v4589, %v7636
        %v7638 = vpop.f32.mrb[0].mxu0
        %v7639 = vadd.f32 %v4591, %v7638
        %v7640 = vpop.f32.mrb[0].mxu0
        %v7641 = vadd.f32 %v4593, %v7640
        %v7642 = vpop.f32.mrb[0].mxu0
        %v7643 = vadd.f32 %v4595, %v7642
        %7644 = vmatprep.mubr.bf16.mxu0 %v7053
        %7645 = vmatmul.mubr.bf16.gmra.mrb[0].mxu0 %v7052
        %v7646 = vpop.f32.mrb[0].mxu0
        %v7647 = vadd.f32 %v4599, %v7646
        %v7648 = vpop.f32.mrb[0].mxu0
        %v7649 = vadd.f32 %v4601, %v7648
        %v7650 = vpop.f32.mrb[0].mxu0
        %v7651 = vadd.f32 %v4603, %v7650
        %v7652 = vpop.f32.mrb[0].mxu0
        %v7653 = vadd.f32 %v4605, %v7652
        %7654 = vmatprep.mubr.bf16.mxu0 %v7055
        %7655 = vmatmul.mubr.bf16.gmra.mrb[0].mxu0 %v7054
        %v7656 = vpop.f32.mrb[0].mxu0
        %v7657 = vadd.f32 %v4609, %v7656
        %v7658 = vpop.f32.mrb[0].mxu0
        %v7659 = vadd.f32 %v4611, %v7658
        %v7660 = vpop.f32.mrb[0].mxu0
        %v7661 = vadd.f32 %v4613, %v7660
        %v7662 = vpop.f32.mrb[0].mxu0
        %v7663 = vadd.f32 %v4615, %v7662
        %7664 = vmatprep.mubr.bf16.mxu0 %v7057
        %7665 = vmatmul.mubr.bf16.gmra.mrb[0].mxu0 %v7056
        %v7666 = vpop.f32.mrb[0].mxu0
        %v7667 = vadd.f32 %v4619, %v7666
        %v7668 = vpop.f32.mrb[0].mxu0
        %v7669 = vadd.f32 %v4621, %v7668
        %v7670 = vpop.f32.mrb[0].mxu0
        %v7671 = vadd.f32 %v4623, %v7670
        %v7672 = vpop.f32.mrb[0].mxu0
        %v7673 = vadd.f32 %v4625, %v7672
        %7674 = vmatprep.mubr.bf16.mxu0 %v7059
        %7675 = vmatmul.mubr.bf16.gmra.mrb[0].mxu0 %v7058
        %v7676 = vpop.f32.mrb[0].mxu0
        %v7677 = vadd.f32 %v4629, %v7676
        %v7678 = vpop.f32.mrb[0].mxu0
        %v7679 = vadd.f32 %v4631, %v7678
        %v7680 = vpop.f32.mrb[0].mxu0
        %v7681 = vadd.f32 %v4633, %v7680
        %v7682 = vpop.f32.mrb[0].mxu0
        %v7683 = vadd.f32 %v4635, %v7682
        %7684 = vmatprep.mubr.bf16.mxu0 %v7061
        %7685 = vmatmul.mubr.bf16.gmra.mrb[0].mxu0 %v7060
        %v7686 = vpop.f32.mrb[0].mxu0
        %v7687 = vadd.f32 %v4639, %v7686
        %v7688 = vpop.f32.mrb[0].mxu0
        %v7689 = vadd.f32 %v4641, %v7688
        %v7690 = vpop.f32.mrb[0].mxu0
        %v7691 = vadd.f32 %v4643, %v7690
        %v7692 = vpop.f32.mrb[0].mxu0
        %v7693 = vadd.f32 %v4645, %v7692
        %7694 = vmatprep.mubr.bf16.mxu0 %v7063
        %7695 = vmatmul.mubr.bf16.gmra.mrb[0].mxu0 %v7062
        %v7696 = vpop.f32.mrb[0].mxu0
        %v7697 = vadd.f32 %v4649, %v7696
        %v7698 = vpop.f32.mrb[0].mxu0
        %v7699 = vadd.f32 %v4651, %v7698
        %v7700 = vpop.f32.mrb[0].mxu0
        %v7701 = vadd.f32 %v4653, %v7700
        %v7702 = vpop.f32.mrb[0].mxu0
        %v7703 = vadd.f32 %v4655, %v7702
        %7704 = vmatprep.mubr.bf16.mxu0 %v7065
        %7705 = vmatmul.mubr.bf16.gmra.mrb[0].mxu0 %v7064
        %v7706 = vpop.f32.mrb[0].mxu0
        %v7707 = vadd.f32 %v4659, %v7706
        %v7708 = vpop.f32.mrb[0].mxu0
        %v7709 = vadd.f32 %v4661, %v7708
        %v7710 = vpop.f32.mrb[0].mxu0
        %v7711 = vadd.f32 %v4663, %v7710
        %v7712 = vpop.f32.mrb[0].mxu0
        %v7713 = vadd.f32 %v4665, %v7712
        %7714 = vmatprep.mubr.bf16.mxu0 %v7067
        %7715 = vmatmul.mubr.bf16.gmra.mrb[0].mxu0 %v7066
        %v7716 = vpop.f32.mrb[0].mxu0
        %v7717 = vadd.f32 %v4669, %v7716
        %v7718 = vpop.f32.mrb[0].mxu0
        %v7719 = vadd.f32 %v4671, %v7718
        %v7720 = vpop.f32.mrb[0].mxu0
        %v7721 = vadd.f32 %v4673, %v7720
        %v7722 = vpop.f32.mrb[0].mxu0
        %v7723 = vadd.f32 %v4675, %v7722
        %7724 = vmatprep.mubr.bf16.mxu0 %v7069
        %7725 = vmatmul.mubr.bf16.gmra.mrb[0].mxu0 %v7068
        %v7726 = vpop.f32.mrb[0].mxu0
        %v7727 = vadd.f32 %v4679, %v7726
        %v7728 = vpop.f32.mrb[0].mxu0
        %v7729 = vadd.f32 %v4681, %v7728
        %v7730 = vpop.f32.mrb[0].mxu0
        %v7731 = vadd.f32 %v4683, %v7730
        %v7732 = vpop.f32.mrb[0].mxu0
        %v7733 = vadd.f32 %v4685, %v7732
        %7734 = vmatprep.mubr.bf16.mxu0 %v7071
        %7735 = vmatmul.mubr.bf16.gmra.mrb[0].mxu0 %v7070
        %v7736 = vpop.f32.mrb[0].mxu0
        %v7737 = vadd.f32 %v4689, %v7736
        %v7738 = vpop.f32.mrb[0].mxu0
        %v7739 = vadd.f32 %v4691, %v7738
        %v7740 = vpop.f32.mrb[0].mxu0
        %v7741 = vadd.f32 %v4693, %v7740
        %v7742 = vpop.f32.mrb[0].mxu0
        %v7743 = vadd.f32 %v4695, %v7742
        %7744 = vmatprep.mubr.bf16.mxu0 %v7073
        %7745 = vmatmul.mubr.bf16.gmra.mrb[0].mxu0 %v7072
        %v7746 = vpop.f32.mrb[0].mxu0
        %v7747 = vadd.f32 %v4699, %v7746
        %v7748 = vpop.f32.mrb[0].mxu0
        %v7749 = vadd.f32 %v4701, %v7748
        %v7750 = vpop.f32.mrb[0].mxu0
        %v7751 = vadd.f32 %v4703, %v7750
        %v7752 = vpop.f32.mrb[0].mxu0
        %v7753 = vadd.f32 %v4705, %v7752
        %7754 = vmatprep.mubr.bf16.mxu0 %v7075
        %7755 = vmatmul.mubr.bf16.gmra.mrb[0].mxu0 %v7074
        %v7756 = vpop.f32.mrb[0].mxu0
        %v7757 = vadd.f32 %v4709, %v7756
        %v7758 = vpop.f32.mrb[0].mxu0
        %v7759 = vadd.f32 %v4711, %v7758
        %v7760 = vpop.f32.mrb[0].mxu0
        %v7761 = vadd.f32 %v4713, %v7760
        %v7762 = vpop.f32.mrb[0].mxu0
        %v7763 = vadd.f32 %v4715, %v7762
        %7764 = vmatprep.mubr.bf16.mxu0 %v7077
        %7765 = vmatmul.mubr.bf16.gmra.mrb[0].mxu0 %v7076
        %v7766 = vpop.f32.mrb[0].mxu0
        %v7767 = vadd.f32 %v4719, %v7766
        %v7768 = vpop.f32.mrb[0].mxu0
        %v7769 = vadd.f32 %v4721, %v7768
        %v7770 = vpop.f32.mrb[0].mxu0
        %v7771 = vadd.f32 %v4723, %v7770
        %v7772 = vpop.f32.mrb[0].mxu0
        %v7773 = vadd.f32 %v4725, %v7772
        %7774 = vmatprep.mubr.bf16.mxu0 %v7079
        %7775 = vmatmul.mubr.bf16.gmra.mrb[0].mxu0 %v7078
        %v7776 = vpop.f32.mrb[0].mxu0
        %v7777 = vadd.f32 %v4729, %v7776
        %v7778 = vpop.f32.mrb[0].mxu0
        %v7779 = vadd.f32 %v4731, %v7778
        %v7780 = vpop.f32.mrb[0].mxu0
        %v7781 = vadd.f32 %v4733, %v7780
        %v7782 = vpop.f32.mrb[0].mxu0
        %v7783 = vadd.f32 %v4735, %v7782
        %7784 = vmatprep.mubr.bf16.mxu0 %v7081
        %7785 = vmatmul.mubr.bf16.gmra.mrb[0].mxu0 %v7080
        %v7786 = vpop.f32.mrb[0].mxu0
        %v7787 = vadd.f32 %v4739, %v7786
        %v7788 = vpop.f32.mrb[0].mxu0
        %v7789 = vadd.f32 %v4741, %v7788
        %v7790 = vpop.f32.mrb[0].mxu0
        %v7791 = vadd.f32 %v4743, %v7790
        %v7792 = vpop.f32.mrb[0].mxu0
        %v7793 = vadd.f32 %v4745, %v7792
        %7794 = vmatprep.mubr.bf16.mxu0 %v7083
        %7795 = vmatmul.mubr.bf16.gmra.mrb[0].mxu0 %v7082
        %v7796 = vpop.f32.mrb[0].mxu0
        %v7797 = vadd.f32 %v4749, %v7796
        %v7798 = vpop.f32.mrb[0].mxu0
        %v7799 = vadd.f32 %v4751, %v7798
        %v7800 = vpop.f32.mrb[0].mxu0
        %v7801 = vadd.f32 %v4753, %v7800
        %v7802 = vpop.f32.mrb[0].mxu0
        %v7803 = vadd.f32 %v4755, %v7802
        %7804 = vmatprep.mubr.bf16.mxu0 %v7085
        %7805 = vmatmul.mubr.bf16.gmra.mrb[0].mxu0 %v7084
        %v7806 = vpop.f32.mrb[0].mxu0
        %v7807 = vadd.f32 %v4759, %v7806
        %v7808 = vpop.f32.mrb[0].mxu0
        %v7809 = vadd.f32 %v4761, %v7808
        %v7810 = vpop.f32.mrb[0].mxu0
        %v7811 = vadd.f32 %v4763, %v7810
        %v7812 = vpop.f32.mrb[0].mxu0
        %v7813 = vadd.f32 %v4765, %v7812
        %7814 = vmatprep.mubr.bf16.mxu0 %v7087
        %7815 = vmatmul.mubr.bf16.gmra.mrb[0].mxu0 %v7086
        %v7816 = vpop.f32.mrb[0].mxu0
        %v7817 = vadd.f32 %v4769, %v7816
        %v7818 = vpop.f32.mrb[0].mxu0
        %v7819 = vadd.f32 %v4771, %v7818
        %v7820 = vpop.f32.mrb[0].mxu0
        %v7821 = vadd.f32 %v4773, %v7820
        %v7822 = vpop.f32.mrb[0].mxu0
        %v7823 = vadd.f32 %v4775, %v7822
        %7824 = vmatprep.mubr.bf16.mxu0 %v7089
        %7825 = vmatmul.mubr.bf16.gmra.mrb[0].mxu0 %v7088
        %v7826 = vpop.f32.mrb[0].mxu0
        %v7827 = vadd.f32 %v4779, %v7826
        %v7828 = vpop.f32.mrb[0].mxu0
        %v7829 = vadd.f32 %v4781, %v7828
        %v7830 = vpop.f32.mrb[0].mxu0
        %v7831 = vadd.f32 %v4783, %v7830
        %v7832 = vpop.f32.mrb[0].mxu0
        %v7833 = vadd.f32 %v4785, %v7832
        %7834 = vmatprep.mubr.bf16.mxu0 %v7091
        %7835 = vmatmul.mubr.bf16.gmra.mrb[0].mxu0 %v7090
        %v7836 = vpop.f32.mrb[0].mxu0
        %v7837 = vadd.f32 %v4789, %v7836
        %v7838 = vpop.f32.mrb[0].mxu0
        %v7839 = vadd.f32 %v4791, %v7838
        %v7840 = vpop.f32.mrb[0].mxu0
        %v7841 = vadd.f32 %v4793, %v7840
        %v7842 = vpop.f32.mrb[0].mxu0
        %v7843 = vadd.f32 %v4795, %v7842
        %7844 = vmatprep.mubr.bf16.mxu0 %v7093
        %7845 = vmatmul.mubr.bf16.gmra.mrb[0].mxu0 %v7092
        %v7846 = vpop.f32.mrb[0].mxu0
        %v7847 = vadd.f32 %v4799, %v7846
        %v7848 = vpop.f32.mrb[0].mxu0
        %v7849 = vadd.f32 %v4801, %v7848
        %v7850 = vpop.f32.mrb[0].mxu0
        %v7851 = vadd.f32 %v4803, %v7850
        %v7852 = vpop.f32.mrb[0].mxu0
        %v7853 = vadd.f32 %v4805, %v7852
        %7854 = vmatprep.mubr.bf16.mxu0 %v7095
        %7855 = vmatmul.mubr.bf16.gmra.mrb[0].mxu0 %v7094
        %v7856 = vpop.f32.mrb[0].mxu0
        %v7857 = vadd.f32 %v4809, %v7856
        %v7858 = vpop.f32.mrb[0].mxu0
        %v7859 = vadd.f32 %v4811, %v7858
        %v7860 = vpop.f32.mrb[0].mxu0
        %v7861 = vadd.f32 %v4813, %v7860
        %v7862 = vpop.f32.mrb[0].mxu0
        %v7863 = vadd.f32 %v4815, %v7862
        %7864 = vmatprep.mubr.bf16.mxu0 %v7097
        %7865 = vmatmul.mubr.bf16.gmra.mrb[0].mxu0 %v7096
        %v7866 = vpop.f32.mrb[0].mxu0
        %v7867 = vadd.f32 %v4819, %v7866
        %v7868 = vpop.f32.mrb[0].mxu0
        %v7869 = vadd.f32 %v4821, %v7868
        %v7870 = vpop.f32.mrb[0].mxu0
        %v7871 = vadd.f32 %v4823, %v7870
        %v7872 = vpop.f32.mrb[0].mxu0
        %v7873 = vadd.f32 %v4825, %v7872
        %7874 = vmatprep.mubr.bf16.mxu0 %v7099
        %7875 = vmatmul.mubr.bf16.gmra.mrb[0].mxu0 %v7098
        %v7876 = vpop.f32.mrb[0].mxu0
        %v7877 = vadd.f32 %v4829, %v7876
        %v7878 = vpop.f32.mrb[0].mxu0
        %v7879 = vadd.f32 %v4831, %v7878
        %v7880 = vpop.f32.mrb[0].mxu0
        %v7881 = vadd.f32 %v4833, %v7880
        %v7882 = vpop.f32.mrb[0].mxu0
        %v7883 = vadd.f32 %v4835, %v7882
        %7884 = vmatprep.mubr.bf16.mxu0 %v7101
        %7885 = vmatmul.mubr.bf16.gmra.mrb[0].mxu0 %v7100
        %v7886 = vpop.f32.mrb[0].mxu0
        %v7887 = vadd.f32 %v4839, %v7886
        %v7888 = vpop.f32.mrb[0].mxu0
        %v7889 = vadd.f32 %v4841, %v7888
        %v7890 = vpop.f32.mrb[0].mxu0
        %v7891 = vadd.f32 %v4843, %v7890
        %v7892 = vpop.f32.mrb[0].mxu0
        %v7893 = vadd.f32 %v4845, %v7892
        %7894 = vmatprep.mubr.bf16.mxu0 %v7103
        %7895 = vmatmul.mubr.bf16.gmra.mrb[0].mxu0 %v7102
        %v7896 = vpop.f32.mrb[0].mxu0
        %v7897 = vadd.f32 %v4849, %v7896
        %v7898 = vpop.f32.mrb[0].mxu0
        %v7899 = vadd.f32 %v4851, %v7898
        %v7900 = vpop.f32.mrb[0].mxu0
        %v7901 = vadd.f32 %v4853, %v7900
        %v7902 = vpop.f32.mrb[0].mxu0
        %v7903 = vadd.f32 %v4855, %v7902
        %7904 = vmatprep.mubr.bf16.mxu0 %v7105
        %7905 = vmatmul.mubr.bf16.gmra.mrb[0].mxu0 %v7104
        %v7906 = vpop.f32.mrb[0].mxu0
        %v7907 = vadd.f32 %v4859, %v7906
        %v7908 = vpop.f32.mrb[0].mxu0
        %v7909 = vadd.f32 %v4861, %v7908
        %v7910 = vpop.f32.mrb[0].mxu0
        %v7911 = vadd.f32 %v4863, %v7910
        %v7912 = vpop.f32.mrb[0].mxu0
        %v7913 = vadd.f32 %v4865, %v7912
        %7914 = vmatprep.mubr.bf16.mxu0 %v7107
        %7915 = vmatmul.mubr.bf16.gmra.mrb[0].mxu0 %v7106
        %v7916 = vpop.f32.mrb[0].mxu0
        %v7917 = vadd.f32 %v4869, %v7916
        %v7918 = vpop.f32.mrb[0].mxu0
        %v7919 = vadd.f32 %v4871, %v7918
        %v7920 = vpop.f32.mrb[0].mxu0
        %v7921 = vadd.f32 %v4873, %v7920
        %v7922 = vpop.f32.mrb[0].mxu0
        %v7923 = vadd.f32 %v4875, %v7922
        %7924 = vmatprep.mubr.bf16.mxu0 %v7109
        %7925 = vmatmul.mubr.bf16.gmra.mrb[0].mxu0 %v7108
        %v7926 = vpop.f32.mrb[0].mxu0
        %v7927 = vadd.f32 %v4879, %v7926
        %v7928 = vpop.f32.mrb[0].mxu0
        %v7929 = vadd.f32 %v4881, %v7928
        %v7930 = vpop.f32.mrb[0].mxu0
        %v7931 = vadd.f32 %v4883, %v7930
        %v7932 = vpop.f32.mrb[0].mxu0
        %v7933 = vadd.f32 %v4885, %v7932
        %7934 = vmatprep.mubr.bf16.mxu0 %v7111
        %7935 = vmatmul.mubr.bf16.gmra.mrb[0].mxu0 %v7110
        %v7936 = vpop.f32.mrb[0].mxu0
        %v7937 = vadd.f32 %v4889, %v7936
        %v7938 = vpop.f32.mrb[0].mxu0
        %v7939 = vadd.f32 %v4891, %v7938
        %v7940 = vpop.f32.mrb[0].mxu0
        %v7941 = vadd.f32 %v4893, %v7940
        %v7942 = vpop.f32.mrb[0].mxu0
        %v7943 = vadd.f32 %v4895, %v7942
        %7944 = vmatprep.mubr.bf16.mxu0 %v7113
        %7945 = vmatmul.mubr.bf16.gmra.mrb[0].mxu0 %v7112
        %v7946 = vpop.f32.mrb[0].mxu0
        %v7947 = vadd.f32 %v4899, %v7946
        %v7948 = vpop.f32.mrb[0].mxu0
        %v7949 = vadd.f32 %v4901, %v7948
        %v7950 = vpop.f32.mrb[0].mxu0
        %v7951 = vadd.f32 %v4903, %v7950
        %v7952 = vpop.f32.mrb[0].mxu0
        %v7953 = vadd.f32 %v4905, %v7952
        %7954 = vmatprep.mubr.bf16.mxu0 %v7115
        %7955 = vmatmul.mubr.bf16.gmra.mrb[0].mxu0 %v7114
        %v7956 = vpop.f32.mrb[0].mxu0
        %v7957 = vadd.f32 %v4909, %v7956
        %v7958 = vpop.f32.mrb[0].mxu0
        %v7959 = vadd.f32 %v4911, %v7958
        %v7960 = vpop.f32.mrb[0].mxu0
        %v7961 = vadd.f32 %v4913, %v7960
        %v7962 = vpop.f32.mrb[0].mxu0
        %v7963 = vadd.f32 %v4915, %v7962
        %7964 = vmatprep.mubr.bf16.mxu0 %v7117
        %7965 = vmatmul.mubr.bf16.gmra.mrb[0].mxu0 %v7116
        %v7966 = vpop.f32.mrb[0].mxu0
        %v7967 = vadd.f32 %v4919, %v7966
        %v7968 = vpop.f32.mrb[0].mxu0
        %v7969 = vadd.f32 %v4921, %v7968
        %v7970 = vpop.f32.mrb[0].mxu0
        %v7971 = vadd.f32 %v4923, %v7970
        %v7972 = vpop.f32.mrb[0].mxu0
        %v7973 = vadd.f32 %v4925, %v7972
        %7974 = vmatprep.mubr.bf16.mxu0 %v7119
        %7975 = vmatmul.mubr.bf16.gmra.mrb[0].mxu0 %v7118
        %v7976 = vpop.f32.mrb[0].mxu0
        %v7977 = vadd.f32 %v4929, %v7976
        %v7978 = vpop.f32.mrb[0].mxu0
        %v7979 = vadd.f32 %v4931, %v7978
        %v7980 = vpop.f32.mrb[0].mxu0
        %v7981 = vadd.f32 %v4933, %v7980
        %v7982 = vpop.f32.mrb[0].mxu0
        %v7983 = vadd.f32 %v4935, %v7982
        %7984 = vdwg.mxu0
        %7985 = vst [vmem:[%s307] sm:$0xff] %v7187
        %7986 = vst [vmem:[%s307 + $0x8] sm:$0xff] %v7189
        %7987 = vst [vmem:[%s307 + $0x10] sm:$0xff] %v7191
        %7988 = vst [vmem:[%s307 + $0x18] sm:$0xff] %v7193
        %7989 = vst [vmem:[%s307 + $0x20] sm:$0xff] %v7197
        %7990 = vst [vmem:[%s307 + $0x28] sm:$0xff] %v7199
        %7991 = vst [vmem:[%s307 + $0x30] sm:$0xff] %v7201
        %7992 = vst [vmem:[%s307 + $0x38] sm:$0xff] %v7203
        %7993 = vst [vmem:[%s307 + $0x40] sm:$0xff] %v7207
        %7994 = vst [vmem:[%s307 + $0x48] sm:$0xff] %v7209
        %7995 = vst [vmem:[%s307 + $0x50] sm:$0xff] %v7211
        %7996 = vst [vmem:[%s307 + $0x58] sm:$0xff] %v7213
        %7997 = vst [vmem:[%s307 + $0x60] sm:$0xff] %v7217
        %7998 = vst [vmem:[%s307 + $0x68] sm:$0xff] %v7219
        %7999 = vst [vmem:[%s307 + $0x70] sm:$0xff] %v7221
        %8000 = vst [vmem:[%s307 + $0x78] sm:$0xff] %v7223
        %8001 = vst [vmem:[%s307 + $0x80] sm:$0xff] %v7227
        %8002 = vst [vmem:[%s307 + $0x88] sm:$0xff] %v7229
        %8003 = vst [vmem:[%s307 + $0x90] sm:$0xff] %v7231
        %8004 = vst [vmem:[%s307 + $0x98] sm:$0xff] %v7233
        %8005 = vst [vmem:[%s307 + $0xa0] sm:$0xff] %v7237
        %8006 = vst [vmem:[%s307 + $0xa8] sm:$0xff] %v7239
        %8007 = vst [vmem:[%s307 + $0xb0] sm:$0xff] %v7241
        %8008 = vst [vmem:[%s307 + $0xb8] sm:$0xff] %v7243
        %8009 = vst [vmem:[%s307 + $0xc0] sm:$0xff] %v7247
        %8010 = vst [vmem:[%s307 + $0xc8] sm:$0xff] %v7249
        %8011 = vst [vmem:[%s307 + $0xd0] sm:$0xff] %v7251
        %8012 = vst [vmem:[%s307 + $0xd8] sm:$0xff] %v7253
        %8013 = vst [vmem:[%s307 + $0xe0] sm:$0xff] %v7257
        %8014 = vst [vmem:[%s307 + $0xe8] sm:$0xff] %v7259
        %8015 = vst [vmem:[%s307 + $0xf0] sm:$0xff] %v7261
        %8016 = vst [vmem:[%s307 + $0xf8] sm:$0xff] %v7263
        %8017 = vst [vmem:[%s307 + $0x100] sm:$0xff] %v7267
        %8018 = vst [vmem:[%s307 + $0x108] sm:$0xff] %v7269
        %8019 = vst [vmem:[%s307 + $0x110] sm:$0xff] %v7271
        %8020 = vst [vmem:[%s307 + $0x118] sm:$0xff] %v7273
        %8021 = vst [vmem:[%s307 + $0x120] sm:$0xff] %v7277
        %8022 = vst [vmem:[%s307 + $0x128] sm:$0xff] %v7279
        %8023 = vst [vmem:[%s307 + $0x130] sm:$0xff] %v7281
        %8024 = vst [vmem:[%s307 + $0x138] sm:$0xff] %v7283
        %8025 = vst [vmem:[%s307 + $0x140] sm:$0xff] %v7287
        %8026 = vst [vmem:[%s307 + $0x148] sm:$0xff] %v7289
        %8027 = vst [vmem:[%s307 + $0x150] sm:$0xff] %v7291
        %8028 = vst [vmem:[%s307 + $0x158] sm:$0xff] %v7293
        %8029 = vst [vmem:[%s307 + $0x160] sm:$0xff] %v7297
        %8030 = vst [vmem:[%s307 + $0x168] sm:$0xff] %v7299
        %8031 = vst [vmem:[%s307 + $0x170] sm:$0xff] %v7301
        %8032 = vst [vmem:[%s307 + $0x178] sm:$0xff] %v7303
        %8033 = vst [vmem:[%s307 + $0x180] sm:$0xff] %v7307
        %8034 = vst [vmem:[%s307 + $0x188] sm:$0xff] %v7309
        %8035 = vst [vmem:[%s307 + $0x190] sm:$0xff] %v7311
        %8036 = vst [vmem:[%s307 + $0x198] sm:$0xff] %v7313
        %8037 = vst [vmem:[%s307 + $0x1a0] sm:$0xff] %v7317
        %8038 = vst [vmem:[%s307 + $0x1a8] sm:$0xff] %v7319
        %8039 = vst [vmem:[%s307 + $0x1b0] sm:$0xff] %v7321
        %8040 = vst [vmem:[%s307 + $0x1b8] sm:$0xff] %v7323
        %8041 = vst [vmem:[%s307 + $0x1c0] sm:$0xff] %v7327
        %8042 = vst [vmem:[%s307 + $0x1c8] sm:$0xff] %v7329
        %8043 = vst [vmem:[%s307 + $0x1d0] sm:$0xff] %v7331
        %8044 = vst [vmem:[%s307 + $0x1d8] sm:$0xff] %v7333
        %8045 = vst [vmem:[%s307 + $0x1e0] sm:$0xff] %v7337
        %8046 = vst [vmem:[%s307 + $0x1e8] sm:$0xff] %v7339
        %8047 = vst [vmem:[%s307 + $0x1f0] sm:$0xff] %v7341
        %8048 = vst [vmem:[%s307 + $0x1f8] sm:$0xff] %v7343
        %8049 = vst [vmem:[%s307 + $0x200] sm:$0xff] %v7347
        %8050 = vst [vmem:[%s307 + $0x208] sm:$0xff] %v7349
        %8051 = vst [vmem:[%s307 + $0x210] sm:$0xff] %v7351
        %8052 = vst [vmem:[%s307 + $0x218] sm:$0xff] %v7353
        %8053 = vst [vmem:[%s307 + $0x220] sm:$0xff] %v7357
        %8054 = vst [vmem:[%s307 + $0x228] sm:$0xff] %v7359
        %8055 = vst [vmem:[%s307 + $0x230] sm:$0xff] %v7361
        %8056 = vst [vmem:[%s307 + $0x238] sm:$0xff] %v7363
        %8057 = vst [vmem:[%s307 + $0x240] sm:$0xff] %v7367
        %8058 = vst [vmem:[%s307 + $0x248] sm:$0xff] %v7369
        %8059 = vst [vmem:[%s307 + $0x250] sm:$0xff] %v7371
        %8060 = vst [vmem:[%s307 + $0x258] sm:$0xff] %v7373
        %8061 = vst [vmem:[%s307 + $0x260] sm:$0xff] %v7377
        %8062 = vst [vmem:[%s307 + $0x268] sm:$0xff] %v7379
        %8063 = vst [vmem:[%s307 + $0x270] sm:$0xff] %v7381
        %8064 = vst [vmem:[%s307 + $0x278] sm:$0xff] %v7383
        %8065 = vst [vmem:[%s307 + $0x280] sm:$0xff] %v7387
        %8066 = vst [vmem:[%s307 + $0x288] sm:$0xff] %v7389
        %8067 = vst [vmem:[%s307 + $0x290] sm:$0xff] %v7391
        %8068 = vst [vmem:[%s307 + $0x298] sm:$0xff] %v7393
        %8069 = vst [vmem:[%s307 + $0x2a0] sm:$0xff] %v7397
        %8070 = vst [vmem:[%s307 + $0x2a8] sm:$0xff] %v7399
        %8071 = vst [vmem:[%s307 + $0x2b0] sm:$0xff] %v7401
        %8072 = vst [vmem:[%s307 + $0x2b8] sm:$0xff] %v7403
        %8073 = vst [vmem:[%s307 + $0x2c0] sm:$0xff] %v7407
        %8074 = vst [vmem:[%s307 + $0x2c8] sm:$0xff] %v7409
        %8075 = vst [vmem:[%s307 + $0x2d0] sm:$0xff] %v7411
        %8076 = vst [vmem:[%s307 + $0x2d8] sm:$0xff] %v7413
        %8077 = vst [vmem:[%s307 + $0x2e0] sm:$0xff] %v7417
        %8078 = vst [vmem:[%s307 + $0x2e8] sm:$0xff] %v7419
        %8079 = vst [vmem:[%s307 + $0x2f0] sm:$0xff] %v7421
        %8080 = vst [vmem:[%s307 + $0x2f8] sm:$0xff] %v7423
        %8081 = vst [vmem:[%s307 + $0x300] sm:$0xff] %v7427
        %8082 = vst [vmem:[%s307 + $0x308] sm:$0xff] %v7429
        %8083 = vst [vmem:[%s307 + $0x310] sm:$0xff] %v7431
        %8084 = vst [vmem:[%s307 + $0x318] sm:$0xff] %v7433
        %8085 = vst [vmem:[%s307 + $0x320] sm:$0xff] %v7437
        %8086 = vst [vmem:[%s307 + $0x328] sm:$0xff] %v7439
        %8087 = vst [vmem:[%s307 + $0x330] sm:$0xff] %v7441
        %8088 = vst [vmem:[%s307 + $0x338] sm:$0xff] %v7443
        %8089 = vst [vmem:[%s307 + $0x340] sm:$0xff] %v7447
        %8090 = vst [vmem:[%s307 + $0x348] sm:$0xff] %v7449
        %8091 = vst [vmem:[%s307 + $0x350] sm:$0xff] %v7451
        %8092 = vst [vmem:[%s307 + $0x358] sm:$0xff] %v7453
        %8093 = vst [vmem:[%s307 + $0x360] sm:$0xff] %v7457
        %8094 = vst [vmem:[%s307 + $0x368] sm:$0xff] %v7459
        %8095 = vst [vmem:[%s307 + $0x370] sm:$0xff] %v7461
        %8096 = vst [vmem:[%s307 + $0x378] sm:$0xff] %v7463
        %8097 = vst [vmem:[%s307 + $0x380] sm:$0xff] %v7467
        %8098 = vst [vmem:[%s307 + $0x388] sm:$0xff] %v7469
        %8099 = vst [vmem:[%s307 + $0x390] sm:$0xff] %v7471
        %8100 = vst [vmem:[%s307 + $0x398] sm:$0xff] %v7473
        %8101 = vst [vmem:[%s307 + $0x3a0] sm:$0xff] %v7477
        %8102 = vst [vmem:[%s307 + $0x3a8] sm:$0xff] %v7479
        %8103 = vst [vmem:[%s307 + $0x3b0] sm:$0xff] %v7481
        %8104 = vst [vmem:[%s307 + $0x3b8] sm:$0xff] %v7483
        %8105 = vst [vmem:[%s307 + $0x3c0] sm:$0xff] %v7487
        %8106 = vst [vmem:[%s307 + $0x3c8] sm:$0xff] %v7489
        %8107 = vst [vmem:[%s307 + $0x3d0] sm:$0xff] %v7491
        %8108 = vst [vmem:[%s307 + $0x3d8] sm:$0xff] %v7493
        %8109 = vst [vmem:[%s307 + $0x3e0] sm:$0xff] %v7497
        %8110 = vst [vmem:[%s307 + $0x3e8] sm:$0xff] %v7499
        %8111 = vst [vmem:[%s307 + $0x3f0] sm:$0xff] %v7501
        %8112 = vst [vmem:[%s307 + $0x3f8] sm:$0xff] %v7503
        %8113 = vst [vmem:[%s307 + $0x400] sm:$0xff] %v7507
        %8114 = vst [vmem:[%s307 + $0x408] sm:$0xff] %v7509
        %8115 = vst [vmem:[%s307 + $0x410] sm:$0xff] %v7511
        %8116 = vst [vmem:[%s307 + $0x418] sm:$0xff] %v7513
        %8117 = vst [vmem:[%s307 + $0x420] sm:$0xff] %v7517
        %8118 = vst [vmem:[%s307 + $0x428] sm:$0xff] %v7519
        %8119 = vst [vmem:[%s307 + $0x430] sm:$0xff] %v7521
        %8120 = vst [vmem:[%s307 + $0x438] sm:$0xff] %v7523
        %8121 = vst [vmem:[%s307 + $0x440] sm:$0xff] %v7527
        %8122 = vst [vmem:[%s307 + $0x448] sm:$0xff] %v7529
        %8123 = vst [vmem:[%s307 + $0x450] sm:$0xff] %v7531
        %8124 = vst [vmem:[%s307 + $0x458] sm:$0xff] %v7533
        %8125 = vst [vmem:[%s307 + $0x460] sm:$0xff] %v7537
        %8126 = vst [vmem:[%s307 + $0x468] sm:$0xff] %v7539
        %8127 = vst [vmem:[%s307 + $0x470] sm:$0xff] %v7541
        %8128 = vst [vmem:[%s307 + $0x478] sm:$0xff] %v7543
        %8129 = vst [vmem:[%s307 + $0x480] sm:$0xff] %v7547
        %8130 = vst [vmem:[%s307 + $0x488] sm:$0xff] %v7549
        %8131 = vst [vmem:[%s307 + $0x490] sm:$0xff] %v7551
        %8132 = vst [vmem:[%s307 + $0x498] sm:$0xff] %v7553
        %8133 = vst [vmem:[%s307 + $0x4a0] sm:$0xff] %v7557
        %8134 = vst [vmem:[%s307 + $0x4a8] sm:$0xff] %v7559
        %8135 = vst [vmem:[%s307 + $0x4b0] sm:$0xff] %v7561
        %8136 = vst [vmem:[%s307 + $0x4b8] sm:$0xff] %v7563
        %8137 = vst [vmem:[%s307 + $0x4c0] sm:$0xff] %v7567
        %8138 = vst [vmem:[%s307 + $0x4c8] sm:$0xff] %v7569
        %8139 = vst [vmem:[%s307 + $0x4d0] sm:$0xff] %v7571
        %8140 = vst [vmem:[%s307 + $0x4d8] sm:$0xff] %v7573
        %8141 = vst [vmem:[%s307 + $0x4e0] sm:$0xff] %v7577
        %8142 = vst [vmem:[%s307 + $0x4e8] sm:$0xff] %v7579
        %8143 = vst [vmem:[%s307 + $0x4f0] sm:$0xff] %v7581
        %8144 = vst [vmem:[%s307 + $0x4f8] sm:$0xff] %v7583
        %8145 = vst [vmem:[%s307 + $0x500] sm:$0xff] %v7587
        %8146 = vst [vmem:[%s307 + $0x508] sm:$0xff] %v7589
        %8147 = vst [vmem:[%s307 + $0x510] sm:$0xff] %v7591
        %8148 = vst [vmem:[%s307 + $0x518] sm:$0xff] %v7593
        %8149 = vst [vmem:[%s307 + $0x520] sm:$0xff] %v7597
        %8150 = vst [vmem:[%s307 + $0x528] sm:$0xff] %v7599
        %8151 = vst [vmem:[%s307 + $0x530] sm:$0xff] %v7601
        %8152 = vst [vmem:[%s307 + $0x538] sm:$0xff] %v7603
        %8153 = vst [vmem:[%s307 + $0x540] sm:$0xff] %v7607
        %8154 = vst [vmem:[%s307 + $0x548] sm:$0xff] %v7609
        %8155 = vst [vmem:[%s307 + $0x550] sm:$0xff] %v7611
        %8156 = vst [vmem:[%s307 + $0x558] sm:$0xff] %v7613
        %8157 = vst [vmem:[%s307 + $0x560] sm:$0xff] %v7617
        %8158 = vst [vmem:[%s307 + $0x568] sm:$0xff] %v7619
        %8159 = vst [vmem:[%s307 + $0x570] sm:$0xff] %v7621
        %8160 = vst [vmem:[%s307 + $0x578] sm:$0xff] %v7623
        %8161 = vst [vmem:[%s307 + $0x580] sm:$0xff] %v7627
        %8162 = vst [vmem:[%s307 + $0x588] sm:$0xff] %v7629
        %8163 = vst [vmem:[%s307 + $0x590] sm:$0xff] %v7631
        %8164 = vst [vmem:[%s307 + $0x598] sm:$0xff] %v7633
        %8165 = vst [vmem:[%s307 + $0x5a0] sm:$0xff] %v7637
        %8166 = vst [vmem:[%s307 + $0x5a8] sm:$0xff] %v7639
        %8167 = vst [vmem:[%s307 + $0x5b0] sm:$0xff] %v7641
        %8168 = vst [vmem:[%s307 + $0x5b8] sm:$0xff] %v7643
        %8169 = vst [vmem:[%s307 + $0x5c0] sm:$0xff] %v7647
        %8170 = vst [vmem:[%s307 + $0x5c8] sm:$0xff] %v7649
        %8171 = vst [vmem:[%s307 + $0x5d0] sm:$0xff] %v7651
        %8172 = vst [vmem:[%s307 + $0x5d8] sm:$0xff] %v7653
        %8173 = vst [vmem:[%s307 + $0x5e0] sm:$0xff] %v7657
        %8174 = vst [vmem:[%s307 + $0x5e8] sm:$0xff] %v7659
        %8175 = vst [vmem:[%s307 + $0x5f0] sm:$0xff] %v7661
        %8176 = vst [vmem:[%s307 + $0x5f8] sm:$0xff] %v7663
        %8177 = vst [vmem:[%s307 + $0x600] sm:$0xff] %v7667
        %8178 = vst [vmem:[%s307 + $0x608] sm:$0xff] %v7669
        %8179 = vst [vmem:[%s307 + $0x610] sm:$0xff] %v7671
        %8180 = vst [vmem:[%s307 + $0x618] sm:$0xff] %v7673
        %8181 = vst [vmem:[%s307 + $0x620] sm:$0xff] %v7677
        %8182 = vst [vmem:[%s307 + $0x628] sm:$0xff] %v7679
        %8183 = vst [vmem:[%s307 + $0x630] sm:$0xff] %v7681
        %8184 = vst [vmem:[%s307 + $0x638] sm:$0xff] %v7683
        %8185 = vst [vmem:[%s307 + $0x640] sm:$0xff] %v7687
        %8186 = vst [vmem:[%s307 + $0x648] sm:$0xff] %v7689
        %8187 = vst [vmem:[%s307 + $0x650] sm:$0xff] %v7691
        %8188 = vst [vmem:[%s307 + $0x658] sm:$0xff] %v7693
        %8189 = vst [vmem:[%s307 + $0x660] sm:$0xff] %v7697
        %8190 = vst [vmem:[%s307 + $0x668] sm:$0xff] %v7699
        %8191 = vst [vmem:[%s307 + $0x670] sm:$0xff] %v7701
        %8192 = vst [vmem:[%s307 + $0x678] sm:$0xff] %v7703
        %8193 = vst [vmem:[%s307 + $0x680] sm:$0xff] %v7707
        %8194 = vst [vmem:[%s307 + $0x688] sm:$0xff] %v7709
        %8195 = vst [vmem:[%s307 + $0x690] sm:$0xff] %v7711
        %8196 = vst [vmem:[%s307 + $0x698] sm:$0xff] %v7713
        %8197 = vst [vmem:[%s307 + $0x6a0] sm:$0xff] %v7717
        %8198 = vst [vmem:[%s307 + $0x6a8] sm:$0xff] %v7719
        %8199 = vst [vmem:[%s307 + $0x6b0] sm:$0xff] %v7721
        %8200 = vst [vmem:[%s307 + $0x6b8] sm:$0xff] %v7723
        %8201 = vst [vmem:[%s307 + $0x6c0] sm:$0xff] %v7727
        %8202 = vst [vmem:[%s307 + $0x6c8] sm:$0xff] %v7729
        %8203 = vst [vmem:[%s307 + $0x6d0] sm:$0xff] %v7731
        %8204 = vst [vmem:[%s307 + $0x6d8] sm:$0xff] %v7733
        %8205 = vst [vmem:[%s307 + $0x6e0] sm:$0xff] %v7737
        %8206 = vst [vmem:[%s307 + $0x6e8] sm:$0xff] %v7739
        %8207 = vst [vmem:[%s307 + $0x6f0] sm:$0xff] %v7741
        %8208 = vst [vmem:[%s307 + $0x6f8] sm:$0xff] %v7743
        %8209 = vst [vmem:[%s307 + $0x700] sm:$0xff] %v7747
        %8210 = vst [vmem:[%s307 + $0x708] sm:$0xff] %v7749
        %8211 = vst [vmem:[%s307 + $0x710] sm:$0xff] %v7751
        %8212 = vst [vmem:[%s307 + $0x718] sm:$0xff] %v7753
        %8213 = vst [vmem:[%s307 + $0x720] sm:$0xff] %v7757
        %8214 = vst [vmem:[%s307 + $0x728] sm:$0xff] %v7759
        %8215 = vst [vmem:[%s307 + $0x730] sm:$0xff] %v7761
        %8216 = vst [vmem:[%s307 + $0x738] sm:$0xff] %v7763
        %8217 = vst [vmem:[%s307 + $0x740] sm:$0xff] %v7767
        %8218 = vst [vmem:[%s307 + $0x748] sm:$0xff] %v7769
        %8219 = vst [vmem:[%s307 + $0x750] sm:$0xff] %v7771
        %8220 = vst [vmem:[%s307 + $0x758] sm:$0xff] %v7773
        %8221 = vst [vmem:[%s307 + $0x760] sm:$0xff] %v7777
        %8222 = vst [vmem:[%s307 + $0x768] sm:$0xff] %v7779
        %8223 = vst [vmem:[%s307 + $0x770] sm:$0xff] %v7781
        %8224 = vst [vmem:[%s307 + $0x778] sm:$0xff] %v7783
        %8225 = vst [vmem:[%s307 + $0x780] sm:$0xff] %v7787
        %8226 = vst [vmem:[%s307 + $0x788] sm:$0xff] %v7789
        %8227 = vst [vmem:[%s307 + $0x790] sm:$0xff] %v7791
        %8228 = vst [vmem:[%s307 + $0x798] sm:$0xff] %v7793
        %8229 = vst [vmem:[%s307 + $0x7a0] sm:$0xff] %v7797
        %8230 = vst [vmem:[%s307 + $0x7a8] sm:$0xff] %v7799
        %8231 = vst [vmem:[%s307 + $0x7b0] sm:$0xff] %v7801
        %8232 = vst [vmem:[%s307 + $0x7b8] sm:$0xff] %v7803
        %8233 = vst [vmem:[%s307 + $0x7c0] sm:$0xff] %v7807
        %8234 = vst [vmem:[%s307 + $0x7c8] sm:$0xff] %v7809
        %8235 = vst [vmem:[%s307 + $0x7d0] sm:$0xff] %v7811
        %8236 = vst [vmem:[%s307 + $0x7d8] sm:$0xff] %v7813
        %8237 = vst [vmem:[%s307 + $0x7e0] sm:$0xff] %v7817
        %8238 = vst [vmem:[%s307 + $0x7e8] sm:$0xff] %v7819
        %8239 = vst [vmem:[%s307 + $0x7f0] sm:$0xff] %v7821
        %8240 = vst [vmem:[%s307 + $0x7f8] sm:$0xff] %v7823
        %8241 = vst [vmem:[%s307 + $0x800] sm:$0xff] %v7827
        %8242 = vst [vmem:[%s307 + $0x808] sm:$0xff] %v7829
        %8243 = vst [vmem:[%s307 + $0x810] sm:$0xff] %v7831
        %8244 = vst [vmem:[%s307 + $0x818] sm:$0xff] %v7833
        %8245 = vst [vmem:[%s307 + $0x820] sm:$0xff] %v7837
        %8246 = vst [vmem:[%s307 + $0x828] sm:$0xff] %v7839
        %8247 = vst [vmem:[%s307 + $0x830] sm:$0xff] %v7841
        %8248 = vst [vmem:[%s307 + $0x838] sm:$0xff] %v7843
        %8249 = vst [vmem:[%s307 + $0x840] sm:$0xff] %v7847
        %8250 = vst [vmem:[%s307 + $0x848] sm:$0xff] %v7849
        %8251 = vst [vmem:[%s307 + $0x850] sm:$0xff] %v7851
        %8252 = vst [vmem:[%s307 + $0x858] sm:$0xff] %v7853
        %8253 = vst [vmem:[%s307 + $0x860] sm:$0xff] %v7857
        %8254 = vst [vmem:[%s307 + $0x868] sm:$0xff] %v7859
        %8255 = vst [vmem:[%s307 + $0x870] sm:$0xff] %v7861
        %8256 = vst [vmem:[%s307 + $0x878] sm:$0xff] %v7863
        %8257 = vst [vmem:[%s307 + $0x880] sm:$0xff] %v7867
        %8258 = vst [vmem:[%s307 + $0x888] sm:$0xff] %v7869
        %8259 = vst [vmem:[%s307 + $0x890] sm:$0xff] %v7871
        %8260 = vst [vmem:[%s307 + $0x898] sm:$0xff] %v7873
        %8261 = vst [vmem:[%s307 + $0x8a0] sm:$0xff] %v7877
        %8262 = vst [vmem:[%s307 + $0x8a8] sm:$0xff] %v7879
        %8263 = vst [vmem:[%s307 + $0x8b0] sm:$0xff] %v7881
        %8264 = vst [vmem:[%s307 + $0x8b8] sm:$0xff] %v7883
        %8265 = vst [vmem:[%s307 + $0x8c0] sm:$0xff] %v7887
        %8266 = vst [vmem:[%s307 + $0x8c8] sm:$0xff] %v7889
        %8267 = vst [vmem:[%s307 + $0x8d0] sm:$0xff] %v7891
        %8268 = vst [vmem:[%s307 + $0x8d8] sm:$0xff] %v7893
        %8269 = vst [vmem:[%s307 + $0x8e0] sm:$0xff] %v7897
        %8270 = vst [vmem:[%s307 + $0x8e8] sm:$0xff] %v7899
        %8271 = vst [vmem:[%s307 + $0x8f0] sm:$0xff] %v7901
        %8272 = vst [vmem:[%s307 + $0x8f8] sm:$0xff] %v7903
        %8273 = vst [vmem:[%s307 + $0x900] sm:$0xff] %v7907
        %8274 = vst [vmem:[%s307 + $0x908] sm:$0xff] %v7909
        %8275 = vst [vmem:[%s307 + $0x910] sm:$0xff] %v7911
        %8276 = vst [vmem:[%s307 + $0x918] sm:$0xff] %v7913
        %8277 = vst [vmem:[%s307 + $0x920] sm:$0xff] %v7917
        %8278 = vst [vmem:[%s307 + $0x928] sm:$0xff] %v7919
        %8279 = vst [vmem:[%s307 + $0x930] sm:$0xff] %v7921
        %8280 = vst [vmem:[%s307 + $0x938] sm:$0xff] %v7923
        %8281 = vst [vmem:[%s307 + $0x940] sm:$0xff] %v7927
        %8282 = vst [vmem:[%s307 + $0x948] sm:$0xff] %v7929
        %8283 = vst [vmem:[%s307 + $0x950] sm:$0xff] %v7931
        %8284 = vst [vmem:[%s307 + $0x958] sm:$0xff] %v7933
        %8285 = vst [vmem:[%s307 + $0x960] sm:$0xff] %v7937
        %8286 = vst [vmem:[%s307 + $0x968] sm:$0xff] %v7939
        %8287 = vst [vmem:[%s307 + $0x970] sm:$0xff] %v7941
        %8288 = vst [vmem:[%s307 + $0x978] sm:$0xff] %v7943
        %8289 = vst [vmem:[%s307 + $0x980] sm:$0xff] %v7947
        %8290 = vst [vmem:[%s307 + $0x988] sm:$0xff] %v7949
        %8291 = vst [vmem:[%s307 + $0x990] sm:$0xff] %v7951
        %8292 = vst [vmem:[%s307 + $0x998] sm:$0xff] %v7953
        %8293 = vst [vmem:[%s307 + $0x9a0] sm:$0xff] %v7957
        %8294 = vst [vmem:[%s307 + $0x9a8] sm:$0xff] %v7959
        %8295 = vst [vmem:[%s307 + $0x9b0] sm:$0xff] %v7961
        %8296 = vst [vmem:[%s307 + $0x9b8] sm:$0xff] %v7963
        %8297 = vst [vmem:[%s307 + $0x9c0] sm:$0xff] %v7967
        %8298 = vst [vmem:[%s307 + $0x9c8] sm:$0xff] %v7969
        %8299 = vst [vmem:[%s307 + $0x9d0] sm:$0xff] %v7971
        %8300 = vst [vmem:[%s307 + $0x9d8] sm:$0xff] %v7973
        %8301 = vst [vmem:[%s307 + $0x9e0] sm:$0xff] %v7977
        %8302 = vst [vmem:[%s307 + $0x9e8] sm:$0xff] %v7979
        %8303 = vst [vmem:[%s307 + $0x9f0] sm:$0xff] %v7981
        %8304 = vst [vmem:[%s307 + $0x9f8] sm:$0xff] %v7983
        %s8305 = sand.u32 %s168, 1
        %s8306 = scalar_lea.sflag [#allocation4], %s8305
        %s8307 = sand.u32 %s168, 1
        %s8308 = smul.addr %s8307, 2560
        %s8309 = scalar_lea.vmem [#allocation8], %s8308
        // Predicated region
        $region57: #{tpu_custom_call.1} parent=43 // pred_check
          %p8310 = pneg %p178
        $region58: #{tpu_custom_call.1} parent=43 // pred_check_branch
          %8312 = sbr.rel (%p8310) target = $region60
        $region59: #{tpu_custom_call.1} parent=43 // pred_region
          %s8314 = ssub.s32 40960, 40960
          %8315 = vsyncadd %s8306, %s8314
          %s8316 = smul.addr %s24, 320
          %s8317 = smul.addr %s8316, 128
          %s8318 = scalar_lea.hbm %s6, %s8317
          %s8319 = sshll.u32 %s8309, 4
          %s8320 = int_to_ptr.vmem [resolvable:$true] %s8319
          %8325 = dma.vmem_to_hbm [thread:$0]  %s8320, 40960, %s8318, %s8306, 256, 256, 16
        $region60: #{tpu_custom_call.1} parent=43 // pred_fallthru
          _
      $region44: #{tpu_custom_call.1} parent=5 // pred_fallthru
        _
      %p8326 = scmp.le.s32.totalorder 2, %s19
      // Predicated region
      $region61: #{tpu_custom_call.1} parent=5 // pred_check
        %p8327 = pneg %p8326
      $region62: #{tpu_custom_call.1} parent=5 // pred_check_branch
        %8329 = sbr.rel (%p8327) target = $region64
      $region63: #{tpu_custom_call.1} parent=5 // pred_region
        %s8330 = ssub.s32 %s19, 2
        // Predicated region
        $region65: #{tpu_custom_call.1} parent=63 // pred_check
          %p8331 = pneg %p184
        $region66: #{tpu_custom_call.1} parent=63 // pred_check_branch
          %8333 = sbr.rel (%p8331) target = $region68
        $region67: #{tpu_custom_call.1} parent=63 // pred_region
          %s8334 = sand.u32 %s169, 1
          %s8335 = scalar_lea.sflag [#allocation4], %s8334
          %s8336 = sand.u32 %s169, 1
          %s8337 = smul.addr %s8336, 2560
          %s8338 = scalar_lea.vmem [#allocation8], %s8337
          %8339 = dma.done %s8335, 40960
        $region68: #{tpu_custom_call.1} parent=63 // pred_fallthru
          _
      $region64: #{tpu_custom_call.1} parent=5 // pred_fallthru
        _
    $region6: #{tpu_custom_call.1} parent=1 // loop_footer
      %s23 = sadd.s32 1, %s19
    $region7: #{tpu_custom_call.1} parent=1 // loop_footer_branch
      %18 = sbr.rel target = $region3
    $region8: #{tpu_custom_call.1} parent=1 // loop_exit
      _
    %8340 = vsyncpa [#allocation3], 1
    %s8341 = scalar_lea.sflag [#allocation3], 1
    %8342 = vsyncpa %s8341, 1
    %8343 = vsyncpa [#allocation6], 1
    %8344 = vsyncpa [#allocation4], 1
    %s8345 = scalar_lea.sflag [#allocation4], 1
    %8346 = vsyncpa %s8345, 1

</llo_original>
